<compile_context>
chip_gen: v6e
topology: v6e:2x2x1
jax: 0.10.0
libtpu: 0.0.40
codegen_flags: <defaults>
</compile_context>

<pallas_src>
import functools

import jax
import jax.numpy as jnp
from jax.experimental import pallas as pl
from jax.experimental.pallas import tpu as pltpu

LANE = 128
_TAPS3 = tuple((kh, kw) for kh in range(3) for kw in range(3))


def _round_up(x, m):
    return (x + m - 1) // m * m


# ----------------------------------------------------------------------------
# Pallas kernel bodies.
#   out = [relu]( sum_t shift_t(x) @ w_t + bias  [+ residual | + x_sc@w_sc+b_sc] )
# ----------------------------------------------------------------------------
def _conv_taps_matmul(x_ref, w_ref, b_ref, *, taps, Ho, Wo):
    """Accumulate the tap matmuls in f32.

    x_ref: (1, Hp, Wp, Cin)  bf16  spatially padded NHWC slab (one image)
    w_ref: (T, Cin, tn)      bf16  BN scale already folded in
    b_ref: (1, tn)           f32   folded BN bias
    returns (Ho*Wo, tn) f32
    """
    cin = x_ref.shape[-1]
    cn = w_ref.shape[-1]
    acc = jnp.zeros((Ho * Wo, cn), jnp.float32)
    for t, (kh, kw) in enumerate(taps):
        xt = x_ref[0, kh:kh + Ho, kw:kw + Wo, :].reshape(Ho * Wo, cin)
        acc = acc + jnp.dot(xt, w_ref[t], preferred_element_type=jnp.float32)
    return acc + b_ref[...]


def _conv_bn_kernel(x_ref, w_ref, b_ref, o_ref, *, taps, Ho, Wo, apply_relu):
    out = _conv_taps_matmul(x_ref, w_ref, b_ref, taps=taps, Ho=Ho, Wo=Wo)
    if apply_relu:
        out = jnp.maximum(out, 0.0)
    o_ref[0] = out.astype(o_ref.dtype)


def _conv_bn_res_kernel(x_ref, w_ref, b_ref, res_ref, o_ref, *, taps, Ho, Wo,
                        apply_relu):
    """conv + BN + precomputed residual (identity-shortcut path)."""
    out = _conv_taps_matmul(x_ref, w_ref, b_ref, taps=taps, Ho=Ho, Wo=Wo)
    out = out + res_ref[0].astype(jnp.float32)
    if apply_relu:
        out = jnp.maximum(out, 0.0)
    o_ref[0] = out.astype(o_ref.dtype)


def _conv_bn_scproj_kernel(x_ref, w_ref, b_ref, xsc_ref, wsc_ref, bsc_ref,
                           o_ref, *, taps, Ho, Wo, apply_relu):
    """conv + BN with the projection shortcut (1x1 conv + BN) fused in."""
    out = _conv_taps_matmul(x_ref, w_ref, b_ref, taps=taps, Ho=Ho, Wo=Wo)
    res = jnp.dot(xsc_ref[0], wsc_ref[...], preferred_element_type=jnp.float32)
    out = out + res + bsc_ref[...]
    if apply_relu:
        out = jnp.maximum(out, 0.0)
    o_ref[0] = out.astype(o_ref.dtype)


# ----------------------------------------------------------------------------
# pallas_call wrapper.
# ----------------------------------------------------------------------------
def conv_bn_act(xp_nhwc, w_taps, bias, *, taps, Ho, Wo, residual=None,
                shortcut=None, apply_relu, out_dtype=jnp.float32):
    """Fused conv (+folded BN) (+residual | +fused 1x1 shortcut) (+ReLU).

    xp_nhwc:  [N, Hp, Wp, Cin]  spatially padded input (any float dtype)
    w_taps:   [T, Cin, Cn]      scale-folded weights, Cn multiple of 128
    bias:     [Cn]              folded BN bias
    residual: [N, Ho*Wo, Cn]    optional, added before the ReLU (identity path)
    shortcut: (x_sc [N,Ho*Wo,Csc], w_sc [Csc,Cn], b_sc [Cn]) optional fused
              projection shortcut, added before the ReLU
    returns   [N, Ho*Wo, Cn]    flattened-NHWC output of `out_dtype`
    """
    N, Hp, Wp, Cin = xp_nhwc.shape
    T, Cw, Cn = w_taps.shape
    assert T == len(taps) and Cw == Cin and Cn % LANE == 0
    assert not (residual is not None and shortcut is not None)

    # Tile Cout when it is large so the (T, Cin, tn) weight block and the
    # (Ho*Wo, tn) accumulator stay comfortably inside VMEM (v7x: 64 MiB) and
    # the second TensorCore has work to shard.
    tn = 256 if (Cn % 256 == 0 and Cn > 256) else Cn
    grid = (N, Cn // tn)

    bias2 = bias.reshape(1, Cn).astype(jnp.float32)

    in_specs = [
        pl.BlockSpec((1, Hp, Wp, Cin), lambda n, j: (n, 0, 0, 0)),
        pl.BlockSpec((T, Cin, tn), lambda n, j: (0, 0, j)),
        pl.BlockSpec((1, tn), lambda n, j: (0, j)),
    ]
    args = [xp_nhwc.astype(jnp.bfloat16), w_taps.astype(jnp.bfloat16), bias2]

    if shortcut is not None:
        x_sc, w_sc, b_sc = shortcut
        Csc = x_sc.shape[-1]
        kernel = functools.partial(_conv_bn_scproj_kernel, taps=tuple(taps),
                                   Ho=Ho, Wo=Wo, apply_relu=apply_relu)
        in_specs += [
            pl.BlockSpec((1, Ho * Wo, Csc), lambda n, j: (n, 0, 0)),
            pl.BlockSpec((Csc, tn), lambda n, j: (0, j)),
            pl.BlockSpec((1, tn), lambda n, j: (0, j)),
        ]
        args += [x_sc.astype(jnp.bfloat16), w_sc.astype(jnp.bfloat16),
                 b_sc.reshape(1, Cn).astype(jnp.float32)]
    elif residual is not None:
        kernel = functools.partial(_conv_bn_res_kernel, taps=tuple(taps),
                                   Ho=Ho, Wo=Wo, apply_relu=apply_relu)
        in_specs.append(pl.BlockSpec((1, Ho * Wo, tn), lambda n, j: (n, 0, j)))
        args.append(residual.astype(jnp.float32))
    else:
        kernel = functools.partial(_conv_bn_kernel, taps=tuple(taps),
                                   Ho=Ho, Wo=Wo, apply_relu=apply_relu)

    return pl.pallas_call(
        kernel,
        out_shape=jax.ShapeDtypeStruct((N, Ho * Wo, Cn), out_dtype),
        grid_spec=pltpu.PrefetchScalarGridSpec(
            num_scalar_prefetch=0,
            grid=grid,
            in_specs=in_specs,
            out_specs=pl.BlockSpec((1, Ho * Wo, tn), lambda n, j: (n, 0, j)),
        ),
        compiler_params=pltpu.CompilerParams(
            dimension_semantics=("parallel", "parallel"),
            vmem_limit_bytes=48 * 1024 * 1024,
        ),
    )(*args)


# ----------------------------------------------------------------------------
# Glue: BN folding, weight packing, (fallback) im2col for strided 3x3 conv.
# ----------------------------------------------------------------------------
def _fold_bn(gamma, beta, mean, var, eps=1e-5):
    scale = gamma / jnp.sqrt(var + eps)
    return scale, beta - mean * scale


def _prep_w3x3(w, scale, cn_in, cn_out):
    """w: [Cout, Cin, 3, 3] -> [9, cn_in, cn_out] bf16, BN scale folded in."""
    Cout, Cin, _, _ = w.shape
    wt = jnp.transpose(w, (2, 3, 1, 0)).reshape(9, Cin, Cout)
    wt = wt * scale[None, None, :]
    wt = jnp.pad(wt, ((0, 0), (0, cn_in - Cin), (0, cn_out - Cout)))
    return wt.astype(jnp.bfloat16)


def _prep_wsc(w, scale, cn_out):
    """w: [Cout, Cin, 1, 1] -> [Cin, cn_out] bf16, BN scale folded in."""
    Cout, Cin = w.shape[:2]
    wt = w.reshape(Cout, Cin).T * scale[None, :]
    return jnp.pad(wt, ((0, 0), (0, cn_out - Cout))).astype(jnp.bfloat16)


def _pad_c(v, cn):
    return jnp.pad(v, (0, cn - v.shape[0]))


def _im2col_3x3(x_nhwc, stride):
    """[N,H,W,C] -> [N,Ho,Wo,9*C] patches, channel order (kh, kw, cin)."""
    N, H, W, C = x_nhwc.shape
    xp = jnp.pad(x_nhwc, ((0, 0), (1, 1), (1, 1), (0, 0)))
    Ho = (H - 1) // stride + 1
    Wo = (W - 1) // stride + 1
    cols = [xp[:, kh:kh + (Ho - 1) * stride + 1:stride,
               kw:kw + (Wo - 1) * stride + 1:stride, :]
            for kh, kw in _TAPS3]
    return jnp.concatenate(cols, axis=-1)


# ----------------------------------------------------------------------------
# BasicBlock forward.
# ----------------------------------------------------------------------------
def basic_block_forward(x, params, *, stride):
    """x: [N, Cin, H, W] f32 -> [N, Cout, Ho, Wo] f32 (eval-mode BatchNorm)."""
    N, Cin, H, W = x.shape
    Cout = params["conv1_w"].shape[0]
    Ho = (H - 1) // stride + 1
    Wo = (W - 1) // stride + 1
    Cn = _round_up(Cout, LANE)

    x_nhwc = jnp.transpose(x, (0, 2, 3, 1))                      # [N,H,W,Cin]

    # ---- conv1 + bn1 + relu (bf16 output feeds conv2 directly) --------------
    s1, b1 = _fold_bn(params["bn1_g"], params["bn1_b"],
                      params["bn1_m"], params["bn1_v"])
    w1 = _prep_w3x3(params["conv1_w"], s1, cn_in=Cin, cn_out=Cn)  # [9, Cin, Cn]
    if stride == 1:
        xp1 = jnp.pad(x_nhwc, ((0, 0), (1, 1), (1, 1), (0, 0)))
        out1 = conv_bn_act(xp1, w1, _pad_c(b1, Cn), taps=_TAPS3, Ho=Ho, Wo=Wo,
                           apply_relu=True, out_dtype=jnp.bfloat16)
    else:
        # TODO(synk): strided 3x3 windows fall back to an XLA-side im2col; the
        # in-kernel tap reduction currently covers stride == 1 only.
        patches = _im2col_3x3(x_nhwc, stride)                     # [N,Ho,Wo,9*Cin]
        out1 = conv_bn_act(patches, w1.reshape(1, 9 * Cin, Cn), _pad_c(b1, Cn),
                           taps=((0, 0),), Ho=Ho, Wo=Wo,
                           apply_relu=True, out_dtype=jnp.bfloat16)

    # ---- conv2 + bn2 + shortcut + relu, all in one kernel --------------------
    s2, b2 = _fold_bn(params["bn2_g"], params["bn2_b"],
                      params["bn2_m"], params["bn2_v"])
    w2 = _prep_w3x3(params["conv2_w"], s2, cn_in=Cn, cn_out=Cn)   # [9, Cn, Cn]
    xp2 = jnp.pad(out1.reshape(N, Ho, Wo, Cn), ((0, 0), (1, 1), (1, 1), (0, 0)))

    if "sc_conv_w" in params:
        # Projection shortcut: fuse the 1x1 conv + BN into the conv2 epilogue.
        sc_s, sc_b = _fold_bn(params["sc_bn_g"], params["sc_bn_b"],
                              params["sc_bn_m"], params["sc_bn_v"])
        w_sc = _prep_wsc(params["sc_conv_w"], sc_s, Cn)            # [Cin, Cn]
        x_sc = x_nhwc[:, ::stride, ::stride, :].reshape(N, Ho * Wo, Cin)
        out2 = conv_bn_act(xp2, w2, _pad_c(b2, Cn), taps=_TAPS3, Ho=Ho, Wo=Wo,
                           shortcut=(x_sc, w_sc, _pad_c(sc_b, Cn)),
                           apply_relu=True, out_dtype=jnp.float32)
    else:
        assert stride == 1 and Cin == Cout, "identity shortcut needs matching shape"
        residual = jnp.pad(x_nhwc.reshape(N, H * W, Cin),
                           ((0, 0), (0, 0), (0, Cn - Cin)))
        out2 = conv_bn_act(xp2, w2, _pad_c(b2, Cn), taps=_TAPS3, Ho=Ho, Wo=Wo,
                           residual=residual, apply_relu=True,
                           out_dtype=jnp.float32)                 # [N,Ho*Wo,Cn]

    out = out2.reshape(N, Ho, Wo, Cn)[..., :Cout]
    return jnp.transpose(out, (0, 3, 1, 2))


# ----------------------------------------------------------------------------
# Pure-JAX reference (lax convs) for correctness check.
# ----------------------------------------------------------------------------
def _ref_forward(x, params, *, stride):
    def conv(x, w, s, pad):
        return jax.lax.conv_general_dilated(
            x, w, window_strides=(s, s), padding=pad,
            dimension_numbers=("NCHW", "OIHW", "NCHW"))

    def bn(x, g, b, m, v, eps=1e-5):
        sc = g / jnp.sqrt(v + eps)
        return x * sc[None, :, None, None] + (b - m * sc)[None, :, None, None]

    out = jax.nn.relu(bn(conv(x, params["conv1_w"], stride, [(1, 1), (1, 1)]),
                         params["bn1_g"], params["bn1_b"],
                         params["bn1_m"], params["bn1_v"]))
    out = bn(conv(out, params["conv2_w"], 1, [(1, 1), (1, 1)]),
             params["bn2_g"], params["bn2_b"], params["bn2_m"], params["bn2_v"])
    if "sc_conv_w" in params:
        sc = bn(conv(x, params["sc_conv_w"], stride, [(0, 0), (0, 0)]),
                params["sc_bn_g"], params["sc_bn_b"],
                params["sc_bn_m"], params["sc_bn_v"])
    else:
        sc = x
    return jax.nn.relu(out + sc)


def make_params(key, in_planes, planes, stride):
    ks = jax.random.split(key, 8)
    p = {
        "conv1_w": 0.1 * jax.random.normal(ks[0], (planes, in_planes, 3, 3), jnp.float32),
        "conv2_w": 0.1 * jax.random.normal(ks[1], (planes, planes, 3, 3), jnp.float32),
        "bn1_g": 1.0 + 0.1 * jax.random.normal(ks[2], (planes,), jnp.float32),
        "bn1_b": 0.1 * jax.random.normal(ks[3], (planes,), jnp.float32),
        "bn1_m": 0.05 * jax.random.normal(ks[4], (planes,), jnp.float32),
        "bn1_v": 1.0 + 0.1 * jnp.abs(jax.random.normal(ks[5], (planes,), jnp.float32)),
        "bn2_g": 1.0 + 0.1 * jax.random.normal(ks[6], (planes,), jnp.float32),
        "bn2_b": 0.1 * jax.random.normal(ks[7], (planes,), jnp.float32),
        "bn2_m": jnp.zeros((planes,), jnp.float32),
        "bn2_v": jnp.ones((planes,), jnp.float32),
    }
    if stride != 1 or in_planes != planes:
        ks2 = jax.random.split(jax.random.fold_in(key, 1), 5)
        p.update({
            "sc_conv_w": 0.1 * jax.random.normal(ks2[0], (planes, in_planes, 1, 1), jnp.float32),
            "sc_bn_g": 1.0 + 0.1 * jax.random.normal(ks2[1], (planes,), jnp.float32),
            "sc_bn_b": 0.1 * jax.random.normal(ks2[2], (planes,), jnp.float32),
            "sc_bn_m": 0.05 * jax.random.normal(ks2[3], (planes,), jnp.float32),
            "sc_bn_v": 1.0 + 0.1 * jnp.abs(jax.random.normal(ks2[4], (planes,), jnp.float32)),
        })
    return p


if __name__ == "__main__":
    key = jax.random.PRNGKey(0)
    in_planes, planes, stride = 4, 8, 1       # projection-shortcut path
    N, H, W = 2, 16, 16

    kx, kp = jax.random.split(key)
    x = jax.random.normal(kx, (N, in_planes, H, W), jnp.float32)
    params = make_params(kp, in_planes, planes, stride)

    fwd = jax.jit(functools.partial(basic_block_forward, stride=stride))
    out = jax.block_until_ready(fwd(x, params))

    ref = jax.block_until_ready(_ref_forward(x, params, stride=stride))
    assert out.shape == ref.shape == (N, planes, H, W)
    err = float(jnp.max(jnp.abs(out - ref)))
    # bf16 MXU inputs (f32 accumulation) -> loosened tolerance vs f32 reference.
    assert jnp.allclose(out, ref, atol=5e-2, rtol=5e-2), f"mismatch vs reference (max abs err {err})"

    print("KERNEL_OK")
</pallas_src>

<mosaic_0001>
module attributes {stable_mosaic.version = 11 : i64} {
  func.func @_conv_bn_kernel(%arg0: i32, %arg1: i32, %arg2: memref<1x18x18x4xbf16, #tpu.memory_space<vmem>>, %arg3: memref<9x4x128xbf16, #tpu.memory_space<vmem>>, %arg4: memref<1x128xf32, #tpu.memory_space<vmem>>, %arg5: memref<1x256x128xbf16, #tpu.memory_space<vmem>>) attributes {dimension_semantics = [#tpu.dimension_semantics<parallel>, #tpu.dimension_semantics<parallel>], iteration_bounds = array<i64: 2, 1>, scalar_prefetch = 0 : i64, scratch_operands = 0 : i64, tpu.core_type = #tpu.core_type<tc>, window_params = [{transform_indices = @transform_0, window_bounds = array<i64: 1, 18, 18, 4>}, {transform_indices = @transform_1, window_bounds = array<i64: 9, 4, 128>}, {transform_indices = @transform_2, window_bounds = array<i64: 1, 128>}, {transform_indices = @transform_3, window_bounds = array<i64: 1, 256, 128>}]} {
    %cst = arith.constant 0.000000e+00 : f32
    %0 = vector.broadcast %cst : f32 to vector<256x128xf32>
    %c0 = arith.constant 0 : index
    %c0_0 = arith.constant 0 : index
    %c0_1 = arith.constant 0 : index
    %c0_2 = arith.constant 0 : index
    %1 = vector.load %arg2[%c0, %c0_0, %c0_1, %c0_2] : memref<1x18x18x4xbf16, #tpu.memory_space<vmem>>, vector<1x16x16x4xbf16>
    %2 = vector.shape_cast %1 : vector<1x16x16x4xbf16> to vector<16x16x4xbf16>
    %3 = vector.shape_cast %2 : vector<16x16x4xbf16> to vector<256x4xbf16>
    %c0_3 = arith.constant 0 : index
    %c0_4 = arith.constant 0 : index
    %c0_5 = arith.constant 0 : index
    %4 = vector.load %arg3[%c0_3, %c0_4, %c0_5] : memref<9x4x128xbf16, #tpu.memory_space<vmem>>, vector<1x4x128xbf16>
    %5 = vector.shape_cast %4 : vector<1x4x128xbf16> to vector<4x128xbf16>
    %cst_6 = arith.constant dense<0.000000e+00> : vector<256x128xf32>
    %6 = tpu.matmul %3, %5, %cst_6 {dimension_numbers = #tpu.dot_dimension_numbers<[1], [0], [0], [1], [0, 0, 1, 1], [], []>} : vector<256x4xbf16>, vector<4x128xbf16>, vector<256x128xf32> -> vector<256x128xf32>
    %7 = arith.addf %0, %6 : vector<256x128xf32>
    %c0_7 = arith.constant 0 : index
    %c0_8 = arith.constant 0 : index
    %c1 = arith.constant 1 : index
    %c0_9 = arith.constant 0 : index
    %8 = vector.load %arg2[%c0_7, %c0_8, %c1, %c0_9] : memref<1x18x18x4xbf16, #tpu.memory_space<vmem>>, vector<1x16x16x4xbf16>
    %9 = vector.shape_cast %8 : vector<1x16x16x4xbf16> to vector<16x16x4xbf16>
    %10 = vector.shape_cast %9 : vector<16x16x4xbf16> to vector<256x4xbf16>
    %c1_10 = arith.constant 1 : index
    %c0_11 = arith.constant 0 : index
    %c0_12 = arith.constant 0 : index
    %11 = vector.load %arg3[%c1_10, %c0_11, %c0_12] : memref<9x4x128xbf16, #tpu.memory_space<vmem>>, vector<1x4x128xbf16>
    %12 = vector.shape_cast %11 : vector<1x4x128xbf16> to vector<4x128xbf16>
    %cst_13 = arith.constant dense<0.000000e+00> : vector<256x128xf32>
    %13 = tpu.matmul %10, %12, %cst_13 {dimension_numbers = #tpu.dot_dimension_numbers<[1], [0], [0], [1], [0, 0, 1, 1], [], []>} : vector<256x4xbf16>, vector<4x128xbf16>, vector<256x128xf32> -> vector<256x128xf32>
    %14 = arith.addf %7, %13 : vector<256x128xf32>
    %c0_14 = arith.constant 0 : index
    %c0_15 = arith.constant 0 : index
    %c2 = arith.constant 2 : index
    %c0_16 = arith.constant 0 : index
    %15 = vector.load %arg2[%c0_14, %c0_15, %c2, %c0_16] : memref<1x18x18x4xbf16, #tpu.memory_space<vmem>>, vector<1x16x16x4xbf16>
    %16 = vector.shape_cast %15 : vector<1x16x16x4xbf16> to vector<16x16x4xbf16>
    %17 = vector.shape_cast %16 : vector<16x16x4xbf16> to vector<256x4xbf16>
    %c2_17 = arith.constant 2 : index
    %c0_18 = arith.constant 0 : index
    %c0_19 = arith.constant 0 : index
    %18 = vector.load %arg3[%c2_17, %c0_18, %c0_19] : memref<9x4x128xbf16, #tpu.memory_space<vmem>>, vector<1x4x128xbf16>
    %19 = vector.shape_cast %18 : vector<1x4x128xbf16> to vector<4x128xbf16>
    %cst_20 = arith.constant dense<0.000000e+00> : vector<256x128xf32>
    %20 = tpu.matmul %17, %19, %cst_20 {dimension_numbers = #tpu.dot_dimension_numbers<[1], [0], [0], [1], [0, 0, 1, 1], [], []>} : vector<256x4xbf16>, vector<4x128xbf16>, vector<256x128xf32> -> vector<256x128xf32>
    %21 = arith.addf %14, %20 : vector<256x128xf32>
    %c0_21 = arith.constant 0 : index
    %c1_22 = arith.constant 1 : index
    %c0_23 = arith.constant 0 : index
    %c0_24 = arith.constant 0 : index
    %22 = vector.load %arg2[%c0_21, %c1_22, %c0_23, %c0_24] : memref<1x18x18x4xbf16, #tpu.memory_space<vmem>>, vector<1x16x16x4xbf16>
    %23 = vector.shape_cast %22 : vector<1x16x16x4xbf16> to vector<16x16x4xbf16>
    %24 = vector.shape_cast %23 : vector<16x16x4xbf16> to vector<256x4xbf16>
    %c3 = arith.constant 3 : index
    %c0_25 = arith.constant 0 : index
    %c0_26 = arith.constant 0 : index
    %25 = vector.load %arg3[%c3, %c0_25, %c0_26] : memref<9x4x128xbf16, #tpu.memory_space<vmem>>, vector<1x4x128xbf16>
    %26 = vector.shape_cast %25 : vector<1x4x128xbf16> to vector<4x128xbf16>
    %cst_27 = arith.constant dense<0.000000e+00> : vector<256x128xf32>
    %27 = tpu.matmul %24, %26, %cst_27 {dimension_numbers = #tpu.dot_dimension_numbers<[1], [0], [0], [1], [0, 0, 1, 1], [], []>} : vector<256x4xbf16>, vector<4x128xbf16>, vector<256x128xf32> -> vector<256x128xf32>
    %28 = arith.addf %21, %27 : vector<256x128xf32>
    %c0_28 = arith.constant 0 : index
    %c1_29 = arith.constant 1 : index
    %c1_30 = arith.constant 1 : index
    %c0_31 = arith.constant 0 : index
    %29 = vector.load %arg2[%c0_28, %c1_29, %c1_30, %c0_31] : memref<1x18x18x4xbf16, #tpu.memory_space<vmem>>, vector<1x16x16x4xbf16>
    %30 = vector.shape_cast %29 : vector<1x16x16x4xbf16> to vector<16x16x4xbf16>
    %31 = vector.shape_cast %30 : vector<16x16x4xbf16> to vector<256x4xbf16>
    %c4 = arith.constant 4 : index
    %c0_32 = arith.constant 0 : index
    %c0_33 = arith.constant 0 : index
    %32 = vector.load %arg3[%c4, %c0_32, %c0_33] : memref<9x4x128xbf16, #tpu.memory_space<vmem>>, vector<1x4x128xbf16>
    %33 = vector.shape_cast %32 : vector<1x4x128xbf16> to vector<4x128xbf16>
    %cst_34 = arith.constant dense<0.000000e+00> : vector<256x128xf32>
    %34 = tpu.matmul %31, %33, %cst_34 {dimension_numbers = #tpu.dot_dimension_numbers<[1], [0], [0], [1], [0, 0, 1, 1], [], []>} : vector<256x4xbf16>, vector<4x128xbf16>, vector<256x128xf32> -> vector<256x128xf32>
    %35 = arith.addf %28, %34 : vector<256x128xf32>
    %c0_35 = arith.constant 0 : index
    %c1_36 = arith.constant 1 : index
    %c2_37 = arith.constant 2 : index
    %c0_38 = arith.constant 0 : index
    %36 = vector.load %arg2[%c0_35, %c1_36, %c2_37, %c0_38] : memref<1x18x18x4xbf16, #tpu.memory_space<vmem>>, vector<1x16x16x4xbf16>
    %37 = vector.shape_cast %36 : vector<1x16x16x4xbf16> to vector<16x16x4xbf16>
    %38 = vector.shape_cast %37 : vector<16x16x4xbf16> to vector<256x4xbf16>
    %c5 = arith.constant 5 : index
    %c0_39 = arith.constant 0 : index
    %c0_40 = arith.constant 0 : index
    %39 = vector.load %arg3[%c5, %c0_39, %c0_40] : memref<9x4x128xbf16, #tpu.memory_space<vmem>>, vector<1x4x128xbf16>
    %40 = vector.shape_cast %39 : vector<1x4x128xbf16> to vector<4x128xbf16>
    %cst_41 = arith.constant dense<0.000000e+00> : vector<256x128xf32>
    %41 = tpu.matmul %38, %40, %cst_41 {dimension_numbers = #tpu.dot_dimension_numbers<[1], [0], [0], [1], [0, 0, 1, 1], [], []>} : vector<256x4xbf16>, vector<4x128xbf16>, vector<256x128xf32> -> vector<256x128xf32>
    %42 = arith.addf %35, %41 : vector<256x128xf32>
    %c0_42 = arith.constant 0 : index
    %c2_43 = arith.constant 2 : index
    %c0_44 = arith.constant 0 : index
    %c0_45 = arith.constant 0 : index
    %43 = vector.load %arg2[%c0_42, %c2_43, %c0_44, %c0_45] : memref<1x18x18x4xbf16, #tpu.memory_space<vmem>>, vector<1x16x16x4xbf16>
    %44 = vector.shape_cast %43 : vector<1x16x16x4xbf16> to vector<16x16x4xbf16>
    %45 = vector.shape_cast %44 : vector<16x16x4xbf16> to vector<256x4xbf16>
    %c6 = arith.constant 6 : index
    %c0_46 = arith.constant 0 : index
    %c0_47 = arith.constant 0 : index
    %46 = vector.load %arg3[%c6, %c0_46, %c0_47] : memref<9x4x128xbf16, #tpu.memory_space<vmem>>, vector<1x4x128xbf16>
    %47 = vector.shape_cast %46 : vector<1x4x128xbf16> to vector<4x128xbf16>
    %cst_48 = arith.constant dense<0.000000e+00> : vector<256x128xf32>
    %48 = tpu.matmul %45, %47, %cst_48 {dimension_numbers = #tpu.dot_dimension_numbers<[1], [0], [0], [1], [0, 0, 1, 1], [], []>} : vector<256x4xbf16>, vector<4x128xbf16>, vector<256x128xf32> -> vector<256x128xf32>
    %49 = arith.addf %42, %48 : vector<256x128xf32>
    %c0_49 = arith.constant 0 : index
    %c2_50 = arith.constant 2 : index
    %c1_51 = arith.constant 1 : index
    %c0_52 = arith.constant 0 : index
    %50 = vector.load %arg2[%c0_49, %c2_50, %c1_51, %c0_52] : memref<1x18x18x4xbf16, #tpu.memory_space<vmem>>, vector<1x16x16x4xbf16>
    %51 = vector.shape_cast %50 : vector<1x16x16x4xbf16> to vector<16x16x4xbf16>
    %52 = vector.shape_cast %51 : vector<16x16x4xbf16> to vector<256x4xbf16>
    %c7 = arith.constant 7 : index
    %c0_53 = arith.constant 0 : index
    %c0_54 = arith.constant 0 : index
    %53 = vector.load %arg3[%c7, %c0_53, %c0_54] : memref<9x4x128xbf16, #tpu.memory_space<vmem>>, vector<1x4x128xbf16>
    %54 = vector.shape_cast %53 : vector<1x4x128xbf16> to vector<4x128xbf16>
    %cst_55 = arith.constant dense<0.000000e+00> : vector<256x128xf32>
    %55 = tpu.matmul %52, %54, %cst_55 {dimension_numbers = #tpu.dot_dimension_numbers<[1], [0], [0], [1], [0, 0, 1, 1], [], []>} : vector<256x4xbf16>, vector<4x128xbf16>, vector<256x128xf32> -> vector<256x128xf32>
    %56 = arith.addf %49, %55 : vector<256x128xf32>
    %c0_56 = arith.constant 0 : index
    %c2_57 = arith.constant 2 : index
    %c2_58 = arith.constant 2 : index
    %c0_59 = arith.constant 0 : index
    %57 = vector.load %arg2[%c0_56, %c2_57, %c2_58, %c0_59] : memref<1x18x18x4xbf16, #tpu.memory_space<vmem>>, vector<1x16x16x4xbf16>
    %58 = vector.shape_cast %57 : vector<1x16x16x4xbf16> to vector<16x16x4xbf16>
    %59 = vector.shape_cast %58 : vector<16x16x4xbf16> to vector<256x4xbf16>
    %c8 = arith.constant 8 : index
    %c0_60 = arith.constant 0 : index
    %c0_61 = arith.constant 0 : index
    %60 = vector.load %arg3[%c8, %c0_60, %c0_61] : memref<9x4x128xbf16, #tpu.memory_space<vmem>>, vector<1x4x128xbf16>
    %61 = vector.shape_cast %60 : vector<1x4x128xbf16> to vector<4x128xbf16>
    %cst_62 = arith.constant dense<0.000000e+00> : vector<256x128xf32>
    %62 = tpu.matmul %59, %61, %cst_62 {dimension_numbers = #tpu.dot_dimension_numbers<[1], [0], [0], [1], [0, 0, 1, 1], [], []>} : vector<256x4xbf16>, vector<4x128xbf16>, vector<256x128xf32> -> vector<256x128xf32>
    %63 = arith.addf %56, %62 : vector<256x128xf32>
    %c0_63 = arith.constant 0 : index
    %c0_64 = arith.constant 0 : index
    %64 = vector.load %arg4[%c0_63, %c0_64] : memref<1x128xf32, #tpu.memory_space<vmem>>, vector<1x128xf32>
    %65 = vector.broadcast %64 : vector<1x128xf32> to vector<256x128xf32>
    %66 = arith.addf %63, %65 : vector<256x128xf32>
    %cst_65 = arith.constant 0.000000e+00 : f32
    %67 = vector.broadcast %cst_65 : f32 to vector<256x128xf32>
    %68 = arith.maximumf %66, %67 : vector<256x128xf32>
    %69 = arith.truncf %68 : vector<256x128xf32> to vector<256x128xbf16>
    %c0_66 = arith.constant 0 : index
    %c0_67 = arith.constant 0 : index
    %c0_68 = arith.constant 0 : index
    %70 = vector.load %arg5[%c0_66, %c0_67, %c0_68] : memref<1x256x128xbf16, #tpu.memory_space<vmem>>, vector<1x256x128xbf16>
    %71 = vector.shape_cast %70 : vector<1x256x128xbf16> to vector<256x128xbf16>
    %72 = vector.shape_cast %69 : vector<256x128xbf16> to vector<1x256x128xbf16>
    tpu.vector_store %arg5[%c0_66, %c0_67, %c0_68], %72 {strides = array<i32>} : memref<1x256x128xbf16, #tpu.memory_space<vmem>>, vector<1x256x128xbf16>,
    return
  }
  func.func @transform_0(%arg0: i32, %arg1: i32) -> (i32, i32, i32, i32) {
    %c0_i32 = arith.constant 0 : i32
    %c0_i32_0 = arith.constant 0 : i32
    %c0_i32_1 = arith.constant 0 : i32
    %c0_i32_2 = arith.constant 0 : i32
    return %arg0, %c0_i32, %c0_i32_0, %c0_i32_1 : i32, i32, i32, i32
  }
  func.func @transform_1(%arg0: i32, %arg1: i32) -> (i32, i32, i32) {
    %c0_i32 = arith.constant 0 : i32
    %c0_i32_0 = arith.constant 0 : i32
    %c0_i32_1 = arith.constant 0 : i32
    return %c0_i32, %c0_i32_0, %arg1 : i32, i32, i32
  }
  func.func @transform_2(%arg0: i32, %arg1: i32) -> (i32, i32) {
    %c0_i32 = arith.constant 0 : i32
    %c0_i32_0 = arith.constant 0 : i32
    return %c0_i32, %arg1 : i32, i32
  }
  func.func @transform_3(%arg0: i32, %arg1: i32) -> (i32, i32, i32) {
    %c0_i32 = arith.constant 0 : i32
    %c0_i32_0 = arith.constant 0 : i32
    return %arg0, %c0_i32, %arg1 : i32, i32, i32
  }
}

module attributes {stable_mosaic.version = 11 : i64} {
  func.func @_conv_bn_scproj_kernel(%arg0: i32, %arg1: i32, %arg2: memref<1x18x18x128xbf16, #tpu.memory_space<vmem>>, %arg3: memref<9x128x128xbf16, #tpu.memory_space<vmem>>, %arg4: memref<1x128xf32, #tpu.memory_space<vmem>>, %arg5: memref<1x256x4xbf16, #tpu.memory_space<vmem>>, %arg6: memref<4x128xbf16, #tpu.memory_space<vmem>>, %arg7: memref<1x128xf32, #tpu.memory_space<vmem>>, %arg8: memref<1x256x128xf32, #tpu.memory_space<vmem>>) attributes {dimension_semantics = [#tpu.dimension_semantics<parallel>, #tpu.dimension_semantics<parallel>], iteration_bounds = array<i64: 2, 1>, scalar_prefetch = 0 : i64, scratch_operands = 0 : i64, tpu.core_type = #tpu.core_type<tc>, window_params = [{transform_indices = @transform_0, window_bounds = array<i64: 1, 18, 18, 128>}, {transform_indices = @transform_1, window_bounds = array<i64: 9, 128, 128>}, {transform_indices = @transform_2, window_bounds = array<i64: 1, 128>}, {transform_indices = @transform_3, window_bounds = array<i64: 1, 256, 4>}, {transform_indices = @transform_4, window_bounds = array<i64: 4, 128>}, {transform_indices = @transform_5, window_bounds = array<i64: 1, 128>}, {transform_indices = @transform_6, window_bounds = array<i64: 1, 256, 128>}]} {
    %cst = arith.constant 0.000000e+00 : f32
    %0 = vector.broadcast %cst : f32 to vector<256x128xf32>
    %c0 = arith.constant 0 : index
    %c0_0 = arith.constant 0 : index
    %c0_1 = arith.constant 0 : index
    %c0_2 = arith.constant 0 : index
    %1 = vector.load %arg2[%c0, %c0_0, %c0_1, %c0_2] : memref<1x18x18x128xbf16, #tpu.memory_space<vmem>>, vector<1x16x16x128xbf16>
    %2 = vector.shape_cast %1 : vector<1x16x16x128xbf16> to vector<16x16x128xbf16>
    %3 = vector.shape_cast %2 : vector<16x16x128xbf16> to vector<256x128xbf16>
    %c0_3 = arith.constant 0 : index
    %c0_4 = arith.constant 0 : index
    %c0_5 = arith.constant 0 : index
    %4 = vector.load %arg3[%c0_3, %c0_4, %c0_5] : memref<9x128x128xbf16, #tpu.memory_space<vmem>>, vector<1x128x128xbf16>
    %5 = vector.shape_cast %4 : vector<1x128x128xbf16> to vector<128x128xbf16>
    %cst_6 = arith.constant dense<0.000000e+00> : vector<256x128xf32>
    %6 = tpu.matmul %3, %5, %cst_6 {dimension_numbers = #tpu.dot_dimension_numbers<[1], [0], [0], [1], [0, 0, 1, 1], [], []>} : vector<256x128xbf16>, vector<128x128xbf16>, vector<256x128xf32> -> vector<256x128xf32>
    %7 = arith.addf %0, %6 : vector<256x128xf32>
    %c0_7 = arith.constant 0 : index
    %c0_8 = arith.constant 0 : index
    %c1 = arith.constant 1 : index
    %c0_9 = arith.constant 0 : index
    %8 = vector.load %arg2[%c0_7, %c0_8, %c1, %c0_9] : memref<1x18x18x128xbf16, #tpu.memory_space<vmem>>, vector<1x16x16x128xbf16>
    %9 = vector.shape_cast %8 : vector<1x16x16x128xbf16> to vector<16x16x128xbf16>
    %10 = vector.shape_cast %9 : vector<16x16x128xbf16> to vector<256x128xbf16>
    %c1_10 = arith.constant 1 : index
    %c0_11 = arith.constant 0 : index
    %c0_12 = arith.constant 0 : index
    %11 = vector.load %arg3[%c1_10, %c0_11, %c0_12] : memref<9x128x128xbf16, #tpu.memory_space<vmem>>, vector<1x128x128xbf16>
    %12 = vector.shape_cast %11 : vector<1x128x128xbf16> to vector<128x128xbf16>
    %cst_13 = arith.constant dense<0.000000e+00> : vector<256x128xf32>
    %13 = tpu.matmul %10, %12, %cst_13 {dimension_numbers = #tpu.dot_dimension_numbers<[1], [0], [0], [1], [0, 0, 1, 1], [], []>} : vector<256x128xbf16>, vector<128x128xbf16>, vector<256x128xf32> -> vector<256x128xf32>
    %14 = arith.addf %7, %13 : vector<256x128xf32>
    %c0_14 = arith.constant 0 : index
    %c0_15 = arith.constant 0 : index
    %c2 = arith.constant 2 : index
    %c0_16 = arith.constant 0 : index
    %15 = vector.load %arg2[%c0_14, %c0_15, %c2, %c0_16] : memref<1x18x18x128xbf16, #tpu.memory_space<vmem>>, vector<1x16x16x128xbf16>
    %16 = vector.shape_cast %15 : vector<1x16x16x128xbf16> to vector<16x16x128xbf16>
    %17 = vector.shape_cast %16 : vector<16x16x128xbf16> to vector<256x128xbf16>
    %c2_17 = arith.constant 2 : index
    %c0_18 = arith.constant 0 : index
    %c0_19 = arith.constant 0 : index
    %18 = vector.load %arg3[%c2_17, %c0_18, %c0_19] : memref<9x128x128xbf16, #tpu.memory_space<vmem>>, vector<1x128x128xbf16>
    %19 = vector.shape_cast %18 : vector<1x128x128xbf16> to vector<128x128xbf16>
    %cst_20 = arith.constant dense<0.000000e+00> : vector<256x128xf32>
    %20 = tpu.matmul %17, %19, %cst_20 {dimension_numbers = #tpu.dot_dimension_numbers<[1], [0], [0], [1], [0, 0, 1, 1], [], []>} : vector<256x128xbf16>, vector<128x128xbf16>, vector<256x128xf32> -> vector<256x128xf32>
    %21 = arith.addf %14, %20 : vector<256x128xf32>
    %c0_21 = arith.constant 0 : index
    %c1_22 = arith.constant 1 : index
    %c0_23 = arith.constant 0 : index
    %c0_24 = arith.constant 0 : index
    %22 = vector.load %arg2[%c0_21, %c1_22, %c0_23, %c0_24] : memref<1x18x18x128xbf16, #tpu.memory_space<vmem>>, vector<1x16x16x128xbf16>
    %23 = vector.shape_cast %22 : vector<1x16x16x128xbf16> to vector<16x16x128xbf16>
    %24 = vector.shape_cast %23 : vector<16x16x128xbf16> to vector<256x128xbf16>
    %c3 = arith.constant 3 : index
    %c0_25 = arith.constant 0 : index
    %c0_26 = arith.constant 0 : index
    %25 = vector.load %arg3[%c3, %c0_25, %c0_26] : memref<9x128x128xbf16, #tpu.memory_space<vmem>>, vector<1x128x128xbf16>
    %26 = vector.shape_cast %25 : vector<1x128x128xbf16> to vector<128x128xbf16>
    %cst_27 = arith.constant dense<0.000000e+00> : vector<256x128xf32>
    %27 = tpu.matmul %24, %26, %cst_27 {dimension_numbers = #tpu.dot_dimension_numbers<[1], [0], [0], [1], [0, 0, 1, 1], [], []>} : vector<256x128xbf16>, vector<128x128xbf16>, vector<256x128xf32> -> vector<256x128xf32>
    %28 = arith.addf %21, %27 : vector<256x128xf32>
    %c0_28 = arith.constant 0 : index
    %c1_29 = arith.constant 1 : index
    %c1_30 = arith.constant 1 : index
    %c0_31 = arith.constant 0 : index
    %29 = vector.load %arg2[%c0_28, %c1_29, %c1_30, %c0_31] : memref<1x18x18x128xbf16, #tpu.memory_space<vmem>>, vector<1x16x16x128xbf16>
    %30 = vector.shape_cast %29 : vector<1x16x16x128xbf16> to vector<16x16x128xbf16>
    %31 = vector.shape_cast %30 : vector<16x16x128xbf16> to vector<256x128xbf16>
    %c4 = arith.constant 4 : index
    %c0_32 = arith.constant 0 : index
    %c0_33 = arith.constant 0 : index
    %32 = vector.load %arg3[%c4, %c0_32, %c0_33] : memref<9x128x128xbf16, #tpu.memory_space<vmem>>, vector<1x128x128xbf16>
    %33 = vector.shape_cast %32 : vector<1x128x128xbf16> to vector<128x128xbf16>
    %cst_34 = arith.constant dense<0.000000e+00> : vector<256x128xf32>
    %34 = tpu.matmul %31, %33, %cst_34 {dimension_numbers = #tpu.dot_dimension_numbers<[1], [0], [0], [1], [0, 0, 1, 1], [], []>} : vector<256x128xbf16>, vector<128x128xbf16>, vector<256x128xf32> -> vector<256x128xf32>
    %35 = arith.addf %28, %34 : vector<256x128xf32>
    %c0_35 = arith.constant 0 : index
    %c1_36 = arith.constant 1 : index
    %c2_37 = arith.constant 2 : index
    %c0_38 = arith.constant 0 : index
    %36 = vector.load %arg2[%c0_35, %c1_36, %c2_37, %c0_38] : memref<1x18x18x128xbf16, #tpu.memory_space<vmem>>, vector<1x16x16x128xbf16>
    %37 = vector.shape_cast %36 : vector<1x16x16x128xbf16> to vector<16x16x128xbf16>
    %38 = vector.shape_cast %37 : vector<16x16x128xbf16> to vector<256x128xbf16>
    %c5 = arith.constant 5 : index
    %c0_39 = arith.constant 0 : index
    %c0_40 = arith.constant 0 : index
    %39 = vector.load %arg3[%c5, %c0_39, %c0_40] : memref<9x128x128xbf16, #tpu.memory_space<vmem>>, vector<1x128x128xbf16>
    %40 = vector.shape_cast %39 : vector<1x128x128xbf16> to vector<128x128xbf16>
    %cst_41 = arith.constant dense<0.000000e+00> : vector<256x128xf32>
    %41 = tpu.matmul %38, %40, %cst_41 {dimension_numbers = #tpu.dot_dimension_numbers<[1], [0], [0], [1], [0, 0, 1, 1], [], []>} : vector<256x128xbf16>, vector<128x128xbf16>, vector<256x128xf32> -> vector<256x128xf32>
    %42 = arith.addf %35, %41 : vector<256x128xf32>
    %c0_42 = arith.constant 0 : index
    %c2_43 = arith.constant 2 : index
    %c0_44 = arith.constant 0 : index
    %c0_45 = arith.constant 0 : index
    %43 = vector.load %arg2[%c0_42, %c2_43, %c0_44, %c0_45] : memref<1x18x18x128xbf16, #tpu.memory_space<vmem>>, vector<1x16x16x128xbf16>
    %44 = vector.shape_cast %43 : vector<1x16x16x128xbf16> to vector<16x16x128xbf16>
    %45 = vector.shape_cast %44 : vector<16x16x128xbf16> to vector<256x128xbf16>
    %c6 = arith.constant 6 : index
    %c0_46 = arith.constant 0 : index
    %c0_47 = arith.constant 0 : index
    %46 = vector.load %arg3[%c6, %c0_46, %c0_47] : memref<9x128x128xbf16, #tpu.memory_space<vmem>>, vector<1x128x128xbf16>
    %47 = vector.shape_cast %46 : vector<1x128x128xbf16> to vector<128x128xbf16>
    %cst_48 = arith.constant dense<0.000000e+00> : vector<256x128xf32>
    %48 = tpu.matmul %45, %47, %cst_48 {dimension_numbers = #tpu.dot_dimension_numbers<[1], [0], [0], [1], [0, 0, 1, 1], [], []>} : vector<256x128xbf16>, vector<128x128xbf16>, vector<256x128xf32> -> vector<256x128xf32>
    %49 = arith.addf %42, %48 : vector<256x128xf32>
    %c0_49 = arith.constant 0 : index
    %c2_50 = arith.constant 2 : index
    %c1_51 = arith.constant 1 : index
    %c0_52 = arith.constant 0 : index
    %50 = vector.load %arg2[%c0_49, %c2_50, %c1_51, %c0_52] : memref<1x18x18x128xbf16, #tpu.memory_space<vmem>>, vector<1x16x16x128xbf16>
    %51 = vector.shape_cast %50 : vector<1x16x16x128xbf16> to vector<16x16x128xbf16>
    %52 = vector.shape_cast %51 : vector<16x16x128xbf16> to vector<256x128xbf16>
    %c7 = arith.constant 7 : index
    %c0_53 = arith.constant 0 : index
    %c0_54 = arith.constant 0 : index
    %53 = vector.load %arg3[%c7, %c0_53, %c0_54] : memref<9x128x128xbf16, #tpu.memory_space<vmem>>, vector<1x128x128xbf16>
    %54 = vector.shape_cast %53 : vector<1x128x128xbf16> to vector<128x128xbf16>
    %cst_55 = arith.constant dense<0.000000e+00> : vector<256x128xf32>
    %55 = tpu.matmul %52, %54, %cst_55 {dimension_numbers = #tpu.dot_dimension_numbers<[1], [0], [0], [1], [0, 0, 1, 1], [], []>} : vector<256x128xbf16>, vector<128x128xbf16>, vector<256x128xf32> -> vector<256x128xf32>
    %56 = arith.addf %49, %55 : vector<256x128xf32>
    %c0_56 = arith.constant 0 : index
    %c2_57 = arith.constant 2 : index
    %c2_58 = arith.constant 2 : index
    %c0_59 = arith.constant 0 : index
    %57 = vector.load %arg2[%c0_56, %c2_57, %c2_58, %c0_59] : memref<1x18x18x128xbf16, #tpu.memory_space<vmem>>, vector<1x16x16x128xbf16>
    %58 = vector.shape_cast %57 : vector<1x16x16x128xbf16> to vector<16x16x128xbf16>
    %59 = vector.shape_cast %58 : vector<16x16x128xbf16> to vector<256x128xbf16>
    %c8 = arith.constant 8 : index
    %c0_60 = arith.constant 0 : index
    %c0_61 = arith.constant 0 : index
    %60 = vector.load %arg3[%c8, %c0_60, %c0_61] : memref<9x128x128xbf16, #tpu.memory_space<vmem>>, vector<1x128x128xbf16>
    %61 = vector.shape_cast %60 : vector<1x128x128xbf16> to vector<128x128xbf16>
    %cst_62 = arith.constant dense<0.000000e+00> : vector<256x128xf32>
    %62 = tpu.matmul %59, %61, %cst_62 {dimension_numbers = #tpu.dot_dimension_numbers<[1], [0], [0], [1], [0, 0, 1, 1], [], []>} : vector<256x128xbf16>, vector<128x128xbf16>, vector<256x128xf32> -> vector<256x128xf32>
    %63 = arith.addf %56, %62 : vector<256x128xf32>
    %c0_63 = arith.constant 0 : index
    %c0_64 = arith.constant 0 : index
    %64 = vector.load %arg4[%c0_63, %c0_64] : memref<1x128xf32, #tpu.memory_space<vmem>>, vector<1x128xf32>
    %65 = vector.broadcast %64 : vector<1x128xf32> to vector<256x128xf32>
    %66 = arith.addf %63, %65 : vector<256x128xf32>
    %c0_65 = arith.constant 0 : index
    %c0_66 = arith.constant 0 : index
    %c0_67 = arith.constant 0 : index
    %67 = vector.load %arg5[%c0_65, %c0_66, %c0_67] : memref<1x256x4xbf16, #tpu.memory_space<vmem>>, vector<1x256x4xbf16>
    %68 = vector.shape_cast %67 : vector<1x256x4xbf16> to vector<256x4xbf16>
    %c0_68 = arith.constant 0 : index
    %c0_69 = arith.constant 0 : index
    %69 = vector.load %arg6[%c0_68, %c0_69] : memref<4x128xbf16, #tpu.memory_space<vmem>>, vector<4x128xbf16>
    %cst_70 = arith.constant dense<0.000000e+00> : vector<256x128xf32>
    %70 = tpu.matmul %68, %69, %cst_70 {dimension_numbers = #tpu.dot_dimension_numbers<[1], [0], [0], [1], [0, 0, 1, 1], [], []>} : vector<256x4xbf16>, vector<4x128xbf16>, vector<256x128xf32> -> vector<256x128xf32>
    %71 = arith.addf %66, %70 : vector<256x128xf32>
    %c0_71 = arith.constant 0 : index
    %c0_72 = arith.constant 0 : index
    %72 = vector.load %arg7[%c0_71, %c0_72] : memref<1x128xf32, #tpu.memory_space<vmem>>, vector<1x128xf32>
    %73 = vector.broadcast %72 : vector<1x128xf32> to vector<256x128xf32>
    %74 = arith.addf %71, %73 : vector<256x128xf32>
    %cst_73 = arith.constant 0.000000e+00 : f32
    %75 = vector.broadcast %cst_73 : f32 to vector<256x128xf32>
    %76 = arith.maximumf %74, %75 : vector<256x128xf32>
    %c0_74 = arith.constant 0 : index
    %c0_75 = arith.constant 0 : index
    %c0_76 = arith.constant 0 : index
    %77 = vector.load %arg8[%c0_74, %c0_75, %c0_76] : memref<1x256x128xf32, #tpu.memory_space<vmem>>, vector<1x256x128xf32>
    %78 = vector.shape_cast %77 : vector<1x256x128xf32> to vector<256x128xf32>
    %79 = vector.shape_cast %76 : vector<256x128xf32> to vector<1x256x128xf32>
    tpu.vector_store %arg8[%c0_74, %c0_75, %c0_76], %79 {strides = array<i32>} : memref<1x256x128xf32, #tpu.memory_space<vmem>>, vector<1x256x128xf32>,
    return
  }
  func.func @transform_0(%arg0: i32, %arg1: i32) -> (i32, i32, i32, i32) {
    %c0_i32 = arith.constant 0 : i32
    %c0_i32_0 = arith.constant 0 : i32
    %c0_i32_1 = arith.constant 0 : i32
    %c0_i32_2 = arith.constant 0 : i32
    return %arg0, %c0_i32, %c0_i32_0, %c0_i32_1 : i32, i32, i32, i32
  }
  func.func @transform_1(%arg0: i32, %arg1: i32) -> (i32, i32, i32) {
    %c0_i32 = arith.constant 0 : i32
    %c0_i32_0 = arith.constant 0 : i32
    %c0_i32_1 = arith.constant 0 : i32
    return %c0_i32, %c0_i32_0, %arg1 : i32, i32, i32
  }
  func.func @transform_2(%arg0: i32, %arg1: i32) -> (i32, i32) {
    %c0_i32 = arith.constant 0 : i32
    %c0_i32_0 = arith.constant 0 : i32
    return %c0_i32, %arg1 : i32, i32
  }
  func.func @transform_3(%arg0: i32, %arg1: i32) -> (i32, i32, i32) {
    %c0_i32 = arith.constant 0 : i32
    %c0_i32_0 = arith.constant 0 : i32
    %c0_i32_1 = arith.constant 0 : i32
    return %arg0, %c0_i32, %c0_i32_0 : i32, i32, i32
  }
  func.func @transform_4(%arg0: i32, %arg1: i32) -> (i32, i32) {
    %c0_i32 = arith.constant 0 : i32
    %c0_i32_0 = arith.constant 0 : i32
    return %c0_i32, %arg1 : i32, i32
  }
  func.func @transform_5(%arg0: i32, %arg1: i32) -> (i32, i32) {
    %c0_i32 = arith.constant 0 : i32
    %c0_i32_0 = arith.constant 0 : i32
    return %c0_i32, %arg1 : i32, i32
  }
  func.func @transform_6(%arg0: i32, %arg1: i32) -> (i32, i32, i32) {
    %c0_i32 = arith.constant 0 : i32
    %c0_i32_0 = arith.constant 0 : i32
    return %arg0, %c0_i32, %arg1 : i32, i32, i32
  }
}

</mosaic_0001>

<llo_original>
// kernel: basic_block_forward.2
$region0: #{basic_block_forward.2}
  #allocation0 [shape = 'u32[]', space=smem, size = 0x4, offset = 0x4, fixed_abs, tag = 'smem constant byte address 0x4 - core index']
  #allocation1 [shape = 'u32[144,128]{1,0:T(1,128)}', space=vmem, size = 0x12000, scoped, tag = 'internal scratch']
  %s0 = inlined_call_operand.vmem [shape: bf16[2,18,18,4], index: 0, kind: input, shape index: {}]
  %s1 = inlined_call_operand.vmem [shape: bf16[9,4,128], index: 1, kind: input, shape index: {}]
  %s2 = inlined_call_operand.vmem [shape: f32[1,128], index: 2, kind: input, shape index: {}]
  %s3 = inlined_call_operand.vmem [shape: bf16[2,256,128], index: 3, kind: output, shape index: {}]
  %s4 = sld [smem:[#allocation0]]
  $region45: #{basic_block_forward.2} parent=0
    _
  %s6 = ssub.s32 1, %s4
  %s7 = scalar_select 0, %s6, %s4
  loop: start=0, step=1, limit=4
  $region2: #{basic_block_forward.2} parent=0 // loop_pre_header
    _
  $region3: #{basic_block_forward.2} parent=0 // loop_header
    %s9 = sphi 0, %s13
    %p10 = scmp.ge.s32.totalorder %s9, 4
    %s16 = sphi 0, %s28
    %s17 = sphi 0, %s24
    %s18 = sphi 0, %s16
    %s19 = sphi 0, %s17
    %s20 = sphi 0, %s18
    %s21 = sphi 0, %s19
    %s31 = sphi 0, %s33
    %s34 = sphi 0, %s31
    %s35 = sphi 0, %s34
    %s51 = sphi 0, %s35
    %s57 = sphi 0, %s59
    %s60 = sphi 0, %s57
    %s61 = sphi 0, %s60
    %s77 = sphi 0, %s61
    %s83 = sphi 0, %s85
    %s86 = sphi 0, %s83
    %s87 = sphi 0, %s86
    %s103 = sphi 0, %s87
    %s111 = sphi 0, %s113
    %s114 = sphi 0, %s111
    %s115 = sphi 0, %s114
    %s131 = sphi 0, %s115
  $region4: #{basic_block_forward.2} parent=0 // loop_header_branch
    %12 = sbr.rel (%p10) target = $region8
  $region5: #{basic_block_forward.2} parent=0 // loop_body
    %s14 = ssub.s32 %s9, 1
    %s15 = ssub.s32 %s9, 2
    %s22 = sadd.s32 1, %s17
    %p23 = scmp.ge.s32.totalorder %s22, 1
    %s24 = scalar_select %p23, 0, %s22
    %s25 = sadd.s32 1, %s16
    %s26 = scalar_select %p23, %s25, %s16
    %p27 = scmp.ge.s32.totalorder %s26, 2
    %s28 = scalar_select %p27, 0, %s26
    %s29 = ssub.s32 %s16, %s28
    %p30 = scmp.eq.s32.totalorder %s29, 0
    %s32 = sadd.s32 %s31, 1
    %s33 = scalar_select %p30, %s31, %s32
    %p36 = pneg %p30
    %p37 = scmp.eq.s32.totalorder %s9, 1
    %p38 = por %p36, %p37
    %p39 = scmp.ne.s32.totalorder %s31, %s34
    %p40 = scmp.eq.s32.totalorder %s9, 0
    %p41 = por %p39, %p40
    %p42 = scmp.ne.s32.totalorder %s31, %s34
    %p43 = scmp.eq.s32.totalorder %s14, 1
    %p44 = por %p42, %p43
    %p45 = scmp.ne.s32.totalorder %s34, %s35
    %p46 = scmp.eq.s32.totalorder %s14, 0
    %p47 = por %p45, %p46
    %p48 = scmp.ne.s32.totalorder %s34, %s35
    %p49 = scmp.eq.s32.totalorder %s15, 1
    %p50 = por %p48, %p49
    %p52 = scmp.ne.s32.totalorder %s35, %s51
    %p53 = scmp.eq.s32.totalorder %s15, 0
    %p54 = por %p52, %p53
    %s55 = ssub.s32 %s17, %s24
    %p56 = scmp.eq.s32.totalorder %s55, 0
    %s58 = sadd.s32 %s57, 1
    %s59 = scalar_select %p56, %s57, %s58
    %p62 = pneg %p56
    %p63 = scmp.eq.s32.totalorder %s9, 1
    %p64 = por %p62, %p63
    %p65 = scmp.ne.s32.totalorder %s57, %s60
    %p66 = scmp.eq.s32.totalorder %s9, 0
    %p67 = por %p65, %p66
    %p68 = scmp.ne.s32.totalorder %s57, %s60
    %p69 = scmp.eq.s32.totalorder %s14, 1
    %p70 = por %p68, %p69
    %p71 = scmp.ne.s32.totalorder %s60, %s61
    %p72 = scmp.eq.s32.totalorder %s14, 0
    %p73 = por %p71, %p72
    %p74 = scmp.ne.s32.totalorder %s60, %s61
    %p75 = scmp.eq.s32.totalorder %s15, 1
    %p76 = por %p74, %p75
    %p78 = scmp.ne.s32.totalorder %s61, %s77
    %p79 = scmp.eq.s32.totalorder %s15, 0
    %p80 = por %p78, %p79
    %s81 = ssub.s32 %s17, %s24
    %p82 = scmp.eq.s32.totalorder %s81, 0
    %s84 = sadd.s32 %s83, 1
    %s85 = scalar_select %p82, %s83, %s84
    %p88 = pneg %p82
    %p89 = scmp.eq.s32.totalorder %s9, 1
    %p90 = por %p88, %p89
    %p91 = scmp.ne.s32.totalorder %s83, %s86
    %p92 = scmp.eq.s32.totalorder %s9, 0
    %p93 = por %p91, %p92
    %p94 = scmp.ne.s32.totalorder %s83, %s86
    %p95 = scmp.eq.s32.totalorder %s14, 1
    %p96 = por %p94, %p95
    %p97 = scmp.ne.s32.totalorder %s86, %s87
    %p98 = scmp.eq.s32.totalorder %s14, 0
    %p99 = por %p97, %p98
    %p100 = scmp.ne.s32.totalorder %s86, %s87
    %p101 = scmp.eq.s32.totalorder %s15, 1
    %p102 = por %p100, %p101
    %p104 = scmp.ne.s32.totalorder %s87, %s103
    %p105 = scmp.eq.s32.totalorder %s15, 0
    %p106 = por %p104, %p105
    %s107 = ssub.s32 %s16, %s28
    %s108 = ssub.s32 %s17, %s24
    %s109 = sor.u32 %s107, %s108
    %p110 = scmp.eq.s32.totalorder %s109, 0
    %s112 = sadd.s32 %s111, 1
    %s113 = scalar_select %p110, %s111, %s112
    %p116 = pneg %p110
    %p117 = scmp.eq.s32.totalorder %s9, 1
    %p118 = por %p116, %p117
    %p119 = scmp.ne.s32.totalorder %s111, %s114
    %p120 = scmp.eq.s32.totalorder %s9, 0
    %p121 = por %p119, %p120
    %p122 = scmp.ne.s32.totalorder %s111, %s114
    %p123 = scmp.eq.s32.totalorder %s14, 1
    %p124 = por %p122, %p123
    %p125 = scmp.ne.s32.totalorder %s114, %s115
    %p126 = scmp.eq.s32.totalorder %s14, 0
    %p127 = por %p125, %p126
    %p128 = scmp.ne.s32.totalorder %s114, %s115
    %p129 = scmp.eq.s32.totalorder %s15, 1
    %p130 = por %p128, %p129
    %p132 = scmp.ne.s32.totalorder %s115, %s131
    %p133 = scmp.eq.s32.totalorder %s15, 0
    %p134 = por %p132, %p133
    %p135 = scmp.le.s32.totalorder 1, %s9
    %p136 = scmp.lt.s32.totalorder %s9, 3
    %p137 = pnand %p135, %p136
    %p138 = pneg %p137
    // Predicated region
    $region9: #{basic_block_forward.2} parent=5 // pred_check
      _
    $region10: #{basic_block_forward.2} parent=5 // pred_check_branch
      %140 = sbr.rel (%p137) target = $region12
    $region11: #{basic_block_forward.2} parent=5 // pred_region
      %s141 = ssub.s32 %s9, 1
      // Predicated region
      $region13: #{basic_block_forward.2} parent=11 // pred_check
        %p142 = pneg %p73
      $region14: #{basic_block_forward.2} parent=11 // pred_check_branch
        %144 = sbr.rel (%p142) target = $region16
      $region15: #{basic_block_forward.2} parent=11 // pred_region
        %p145 = scmp.lt.s32.totalorder %s19, 0
        %s146 = scalar_select %p145, %s19, 0
        %s147 = smul.addr %s146, 2
        %s148 = scalar_lea.vmem %s1, %s147
      $region16: #{basic_block_forward.2} parent=11 // pred_fallthru
        _
      // Predicated region
      $region17: #{basic_block_forward.2} parent=11 // pred_check
        %p149 = pneg %p99
      $region18: #{basic_block_forward.2} parent=11 // pred_check_branch
        %151 = sbr.rel (%p149) target = $region20
      $region19: #{basic_block_forward.2} parent=11 // pred_region
        %p152 = scmp.lt.s32.totalorder %s19, 0
        %s153 = scalar_select %p152, %s19, 0
        %s154 = scalar_lea.vmem %s2, %s153
      $region20: #{basic_block_forward.2} parent=11 // pred_fallthru
        _
    $region12: #{basic_block_forward.2} parent=5 // pred_fallthru
      _
    %p155 = scmp.lt.s32.totalorder %s9, 2
    // Predicated region
    $region21: #{basic_block_forward.2} parent=5 // pred_check
      %p156 = pneg %p155
    $region22: #{basic_block_forward.2} parent=5 // pred_check_branch
      %158 = sbr.rel (%p156) target = $region24
    $region23: #{basic_block_forward.2} parent=5 // pred_region
      // Predicated region
      $region25: #{basic_block_forward.2} parent=23 // pred_check
        %p159 = pneg %p41
      $region26: #{basic_block_forward.2} parent=23 // pred_check_branch
        %161 = sbr.rel (%p159) target = $region28
      $region27: #{basic_block_forward.2} parent=23 // pred_region
        %p162 = scmp.lt.s32.totalorder %s16, 1
        %s163 = scalar_select %p162, %s16, 1
        %s164 = smul.addr %s163, 54
        %s165 = smul.addr %s164, 4
        %s166 = scalar_lea.vmem %s0, %s165
      $region28: #{basic_block_forward.2} parent=23 // pred_fallthru
        _
    $region24: #{basic_block_forward.2} parent=5 // pred_fallthru
      _
    %p167 = scmp.le.s32.totalorder 1, %s9
    %p168 = scmp.lt.s32.totalorder %s9, 3
    %p169 = pnand %p167, %p168
    %p170 = pneg %p169
    // Predicated region
    $region29: #{basic_block_forward.2} parent=5 // pred_check
      _
    $region30: #{basic_block_forward.2} parent=5 // pred_check_branch
      %172 = sbr.rel (%p169) target = $region32
    $region31: #{basic_block_forward.2} parent=5 // pred_region
      %s173 = ssub.s32 %s9, 1
      %p174 = scmp.lt.s32.totalorder %s18, 1
      %s175 = scalar_select %p174, %s18, 1
      %s176 = smul.addr %s175, 54
      %s177 = smul.addr %s176, 4
      %s178 = scalar_lea.vmem %s0, %s177
      %p179 = pneg %p47
      %p180 = pneg %p44
      %p181 = scmp.lt.s32.totalorder %s19, 0
      %s182 = scalar_select %p181, %s19, 0
      %s183 = smul.addr %s182, 2
      %s184 = scalar_lea.vmem %s1, %s183
      %p185 = pneg %p73
      %p186 = pneg %p70
      %p187 = scmp.lt.s32.totalorder %s19, 0
      %s188 = scalar_select %p187, %s19, 0
      %s189 = scalar_lea.vmem %s2, %s188
      %p190 = pneg %p99
      %p191 = pneg %p96
      %p192 = pneg %p127
      %p193 = pneg %p124
      %p194 = scmp.lt.s32.totalorder %s18, 1
      %s195 = scalar_select %p194, %s18, 1
      %p196 = scmp.lt.s32.totalorder %s19, 0
      %s197 = scalar_select %p196, %s19, 0
      %s198 = smul.addr %s195, 32
      %s199 = sadd.s32 %s197, %s198
      %s200 = smul.addr %s199, 4
      %s201 = scalar_lea.vmem %s3, %s200
      %p202 = scmp.lt.s32.totalorder %s18, 1
      %s203 = scalar_select %p202, %s18, 1
      %s204 = smul.addr %s203, 54
      %s205 = smul.addr %s204, 4
      %s206 = scalar_lea.vmem %s0, %s205
      %p207 = scmp.lt.s32.totalorder %s19, 0
      %s208 = scalar_select %p207, %s19, 0
      %s209 = smul.addr %s208, 2
      %s210 = scalar_lea.vmem %s1, %s209
      %p211 = scmp.lt.s32.totalorder %s19, 0
      %s212 = scalar_select %p211, %s19, 0
      %s213 = scalar_lea.vmem %s2, %s212
      %p214 = scmp.lt.s32.totalorder %s18, 1
      %s215 = scalar_select %p214, %s18, 1
      %p216 = scmp.lt.s32.totalorder %s19, 0
      %s217 = scalar_select %p216, %s19, 0
      %s218 = smul.addr %s215, 32
      %s219 = sadd.s32 %s217, %s218
      %s220 = smul.addr %s219, 4
      %s221 = scalar_lea.vmem %s3, %s220
      %v223 = vld [vmem:[%s206] sm:$0xf]
      %v224 = vld [vmem:[%s206 + $0x4] sm:$0xf]
      %v225 = vld [vmem:[%s206 + $0xc] sm:$0xf]
      %v226 = vld [vmem:[%s206 + $0x10] sm:$0xf]
      %v227 = vld [vmem:[%s206 + $0x18] sm:$0xf]
      %v228 = vld [vmem:[%s206 + $0x1c] sm:$0xf]
      %v229 = vld [vmem:[%s206 + $0x24] sm:$0xf]
      %v230 = vld [vmem:[%s206 + $0x28] sm:$0xf]
      %v231 = vld [vmem:[%s206 + $0x30] sm:$0xf]
      %v232 = vld [vmem:[%s206 + $0x34] sm:$0xf]
      %v233 = vld [vmem:[%s206 + $0x3c] sm:$0xf]
      %v234 = vld [vmem:[%s206 + $0x40] sm:$0xf]
      %v235 = vld [vmem:[%s206 + $0x48] sm:$0xf]
      %v236 = vld [vmem:[%s206 + $0x4c] sm:$0xf]
      %v237 = vld [vmem:[%s206 + $0x54] sm:$0xf]
      %v238 = vld [vmem:[%s206 + $0x58] sm:$0xf]
      %v239 = vld [vmem:[%s206 + $0x60] sm:$0xf]
      %v240 = vld [vmem:[%s206 + $0x64] sm:$0xf]
      %v241 = vld [vmem:[%s206 + $0x6c] sm:$0xf]
      %v242 = vld [vmem:[%s206 + $0x70] sm:$0xf]
      %v243 = vld [vmem:[%s206 + $0x78] sm:$0xf]
      %v244 = vld [vmem:[%s206 + $0x7c] sm:$0xf]
      %v245 = vld [vmem:[%s206 + $0x84] sm:$0xf]
      %v246 = vld [vmem:[%s206 + $0x88] sm:$0xf]
      %v247 = vld [vmem:[%s206 + $0x90] sm:$0xf]
      %v248 = vld [vmem:[%s206 + $0x94] sm:$0xf]
      %v249 = vld [vmem:[%s206 + $0x9c] sm:$0xf]
      %v250 = vld [vmem:[%s206 + $0xa0] sm:$0xf]
      %v251 = vld [vmem:[%s206 + $0xa8] sm:$0xf]
      %v252 = vld [vmem:[%s206 + $0xac] sm:$0xf]
      %v253 = vld [vmem:[%s206 + $0xb4] sm:$0xf]
      %v254 = vld [vmem:[%s206 + $0xb8] sm:$0xf]
      %v255 = vld [vmem:[%s210] sm:$0x3]
      %v256 = vld [vmem:[%s206 + $0x8] sm:$0x1]
      %v257 = vld [vmem:[%s206 + $0x14] sm:$0x1]
      %v258 = vld [vmem:[%s206 + $0x20] sm:$0x1]
      %v259 = vld [vmem:[%s206 + $0x2c] sm:$0x1]
      %v260 = vld [vmem:[%s206 + $0x38] sm:$0x1]
      %v261 = vld [vmem:[%s206 + $0x44] sm:$0x1]
      %v262 = vld [vmem:[%s206 + $0x50] sm:$0x1]
      %v263 = vld [vmem:[%s206 + $0x5c] sm:$0x1]
      %v264 = vld [vmem:[%s206 + $0x68] sm:$0x1]
      %v265 = vld [vmem:[%s206 + $0x74] sm:$0x1]
      %v266 = vld [vmem:[%s206 + $0x80] sm:$0x1]
      %v267 = vld [vmem:[%s206 + $0x8c] sm:$0x1]
      %v268 = vld [vmem:[%s206 + $0x98] sm:$0x1]
      %v269 = vld [vmem:[%s206 + $0xa4] sm:$0x1]
      %v270 = vld [vmem:[%s206 + $0xb0] sm:$0x1]
      %v271 = vld [vmem:[%s206 + $0xbc] sm:$0x1]
      %vm272 = vsmask.f32 3328
      %vm273 = vsmask.f32 7440
      %vm274 = vmor %vm272, %vm273
      %v276 = vshrl.u32 %v223, 16
      %v278 = vrot.slane %v276, 4
      %v279 = vshll.u32 %v223, 16
      %v281 = vrot.slane %v279, 5
      %v282 = vor.u32 %v278, %v281
      %v283 = vrot.slane %v282, 4
      %v285 = vshll.u32 %v224, 16
      %v287 = vrot.slane %v285, 5
      %v288 = vsel %vm274, %v283, %v287
      %v289 = vshrl.u32 %v224, 16
      %v291 = vrot.slane %v289, 4
      %v292 = vor.u32 %v291, %v287
      %v293 = vrot.slane %v292, 4
      %v295 = vshll.u32 %v256, 16
      %v297 = vrot.slane %v295, 5
      %v298 = vsel %vm274, %v293, %v297
      %v300 = vshrl.u32 %v225, 16
      %v302 = vrot.slane %v300, 4
      %v303 = vshll.u32 %v225, 16
      %v305 = vrot.slane %v303, 5
      %v306 = vor.u32 %v302, %v305
      %v307 = vrot.slane %v306, 4
      %v309 = vshll.u32 %v226, 16
      %v311 = vrot.slane %v309, 5
      %v312 = vsel %vm274, %v307, %v311
      %v313 = vshrl.u32 %v226, 16
      %v315 = vrot.slane %v313, 4
      %v316 = vor.u32 %v315, %v311
      %v317 = vrot.slane %v316, 4
      %v319 = vshll.u32 %v257, 16
      %v321 = vrot.slane %v319, 5
      %v322 = vsel %vm274, %v317, %v321
      %v324 = vshrl.u32 %v227, 16
      %v326 = vrot.slane %v324, 4
      %v327 = vshll.u32 %v227, 16
      %v329 = vrot.slane %v327, 5
      %v330 = vor.u32 %v326, %v329
      %v331 = vrot.slane %v330, 4
      %v333 = vshll.u32 %v228, 16
      %v335 = vrot.slane %v333, 5
      %v336 = vsel %vm274, %v331, %v335
      %v337 = vshrl.u32 %v228, 16
      %v339 = vrot.slane %v337, 4
      %v340 = vor.u32 %v339, %v335
      %v341 = vrot.slane %v340, 4
      %v343 = vshll.u32 %v258, 16
      %v345 = vrot.slane %v343, 5
      %v346 = vsel %vm274, %v341, %v345
      %v348 = vshrl.u32 %v229, 16
      %v350 = vrot.slane %v348, 4
      %v351 = vshll.u32 %v229, 16
      %v353 = vrot.slane %v351, 5
      %v354 = vor.u32 %v350, %v353
      %v355 = vrot.slane %v354, 4
      %v357 = vshll.u32 %v230, 16
      %v359 = vrot.slane %v357, 5
      %v360 = vsel %vm274, %v355, %v359
      %v361 = vshrl.u32 %v230, 16
      %v363 = vrot.slane %v361, 4
      %v364 = vor.u32 %v363, %v359
      %v365 = vrot.slane %v364, 4
      %v367 = vshll.u32 %v259, 16
      %v369 = vrot.slane %v367, 5
      %v370 = vsel %vm274, %v365, %v369
      %v372 = vshrl.u32 %v231, 16
      %v374 = vrot.slane %v372, 4
      %v375 = vshll.u32 %v231, 16
      %v377 = vrot.slane %v375, 5
      %v378 = vor.u32 %v374, %v377
      %v379 = vrot.slane %v378, 4
      %v381 = vshll.u32 %v232, 16
      %v383 = vrot.slane %v381, 5
      %v384 = vsel %vm274, %v379, %v383
      %v385 = vshrl.u32 %v232, 16
      %v387 = vrot.slane %v385, 4
      %v388 = vor.u32 %v387, %v383
      %v389 = vrot.slane %v388, 4
      %v391 = vshll.u32 %v260, 16
      %v393 = vrot.slane %v391, 5
      %v394 = vsel %vm274, %v389, %v393
      %v396 = vshrl.u32 %v233, 16
      %v398 = vrot.slane %v396, 4
      %v399 = vshll.u32 %v233, 16
      %v401 = vrot.slane %v399, 5
      %v402 = vor.u32 %v398, %v401
      %v403 = vrot.slane %v402, 4
      %v405 = vshll.u32 %v234, 16
      %v407 = vrot.slane %v405, 5
      %v408 = vsel %vm274, %v403, %v407
      %v409 = vshrl.u32 %v234, 16
      %v411 = vrot.slane %v409, 4
      %v412 = vor.u32 %v411, %v407
      %v413 = vrot.slane %v412, 4
      %v415 = vshll.u32 %v261, 16
      %v417 = vrot.slane %v415, 5
      %v418 = vsel %vm274, %v413, %v417
      %v420 = vshrl.u32 %v235, 16
      %v422 = vrot.slane %v420, 4
      %v423 = vshll.u32 %v235, 16
      %v425 = vrot.slane %v423, 5
      %v426 = vor.u32 %v422, %v425
      %v427 = vrot.slane %v426, 4
      %v429 = vshll.u32 %v236, 16
      %v431 = vrot.slane %v429, 5
      %v432 = vsel %vm274, %v427, %v431
      %v433 = vshrl.u32 %v236, 16
      %v435 = vrot.slane %v433, 4
      %v436 = vor.u32 %v435, %v431
      %v437 = vrot.slane %v436, 4
      %v439 = vshll.u32 %v262, 16
      %v441 = vrot.slane %v439, 5
      %v442 = vsel %vm274, %v437, %v441
      %v444 = vshrl.u32 %v237, 16
      %v446 = vrot.slane %v444, 4
      %v447 = vshll.u32 %v237, 16
      %v449 = vrot.slane %v447, 5
      %v450 = vor.u32 %v446, %v449
      %v451 = vrot.slane %v450, 4
      %v453 = vshll.u32 %v238, 16
      %v455 = vrot.slane %v453, 5
      %v456 = vsel %vm274, %v451, %v455
      %v457 = vshrl.u32 %v238, 16
      %v459 = vrot.slane %v457, 4
      %v460 = vor.u32 %v459, %v455
      %v461 = vrot.slane %v460, 4
      %v463 = vshll.u32 %v263, 16
      %v465 = vrot.slane %v463, 5
      %v466 = vsel %vm274, %v461, %v465
      %v468 = vshrl.u32 %v239, 16
      %v470 = vrot.slane %v468, 4
      %v471 = vshll.u32 %v239, 16
      %v473 = vrot.slane %v471, 5
      %v474 = vor.u32 %v470, %v473
      %v475 = vrot.slane %v474, 4
      %v477 = vshll.u32 %v240, 16
      %v479 = vrot.slane %v477, 5
      %v480 = vsel %vm274, %v475, %v479
      %v481 = vshrl.u32 %v240, 16
      %v483 = vrot.slane %v481, 4
      %v484 = vor.u32 %v483, %v479
      %v485 = vrot.slane %v484, 4
      %v487 = vshll.u32 %v264, 16
      %v489 = vrot.slane %v487, 5
      %v490 = vsel %vm274, %v485, %v489
      %v492 = vshrl.u32 %v241, 16
      %v494 = vrot.slane %v492, 4
      %v495 = vshll.u32 %v241, 16
      %v497 = vrot.slane %v495, 5
      %v498 = vor.u32 %v494, %v497
      %v499 = vrot.slane %v498, 4
      %v501 = vshll.u32 %v242, 16
      %v503 = vrot.slane %v501, 5
      %v504 = vsel %vm274, %v499, %v503
      %v505 = vshrl.u32 %v242, 16
      %v507 = vrot.slane %v505, 4
      %v508 = vor.u32 %v507, %v503
      %v509 = vrot.slane %v508, 4
      %v511 = vshll.u32 %v265, 16
      %v513 = vrot.slane %v511, 5
      %v514 = vsel %vm274, %v509, %v513
      %v516 = vshrl.u32 %v243, 16
      %v518 = vrot.slane %v516, 4
      %v519 = vshll.u32 %v243, 16
      %v521 = vrot.slane %v519, 5
      %v522 = vor.u32 %v518, %v521
      %v523 = vrot.slane %v522, 4
      %v525 = vshll.u32 %v244, 16
      %v527 = vrot.slane %v525, 5
      %v528 = vsel %vm274, %v523, %v527
      %v529 = vshrl.u32 %v244, 16
      %v531 = vrot.slane %v529, 4
      %v532 = vor.u32 %v531, %v527
      %v533 = vrot.slane %v532, 4
      %v535 = vshll.u32 %v266, 16
      %v537 = vrot.slane %v535, 5
      %v538 = vsel %vm274, %v533, %v537
      %v540 = vshrl.u32 %v245, 16
      %v542 = vrot.slane %v540, 4
      %v543 = vshll.u32 %v245, 16
      %v545 = vrot.slane %v543, 5
      %v546 = vor.u32 %v542, %v545
      %v547 = vrot.slane %v546, 4
      %v549 = vshll.u32 %v246, 16
      %v551 = vrot.slane %v549, 5
      %v552 = vsel %vm274, %v547, %v551
      %v553 = vshrl.u32 %v246, 16
      %v555 = vrot.slane %v553, 4
      %v556 = vor.u32 %v555, %v551
      %v557 = vrot.slane %v556, 4
      %v559 = vshll.u32 %v267, 16
      %v561 = vrot.slane %v559, 5
      %v562 = vsel %vm274, %v557, %v561
      %v564 = vshrl.u32 %v247, 16
      %v566 = vrot.slane %v564, 4
      %v567 = vshll.u32 %v247, 16
      %v569 = vrot.slane %v567, 5
      %v570 = vor.u32 %v566, %v569
      %v571 = vrot.slane %v570, 4
      %v573 = vshll.u32 %v248, 16
      %v575 = vrot.slane %v573, 5
      %v576 = vsel %vm274, %v571, %v575
      %v577 = vshrl.u32 %v248, 16
      %v579 = vrot.slane %v577, 4
      %v580 = vor.u32 %v579, %v575
      %v581 = vrot.slane %v580, 4
      %v583 = vshll.u32 %v268, 16
      %v585 = vrot.slane %v583, 5
      %v586 = vsel %vm274, %v581, %v585
      %v588 = vshrl.u32 %v249, 16
      %v590 = vrot.slane %v588, 4
      %v591 = vshll.u32 %v249, 16
      %v593 = vrot.slane %v591, 5
      %v594 = vor.u32 %v590, %v593
      %v595 = vrot.slane %v594, 4
      %v597 = vshll.u32 %v250, 16
      %v599 = vrot.slane %v597, 5
      %v600 = vsel %vm274, %v595, %v599
      %v601 = vshrl.u32 %v250, 16
      %v603 = vrot.slane %v601, 4
      %v604 = vor.u32 %v603, %v599
      %v605 = vrot.slane %v604, 4
      %v607 = vshll.u32 %v269, 16
      %v609 = vrot.slane %v607, 5
      %v610 = vsel %vm274, %v605, %v609
      %v612 = vshrl.u32 %v251, 16
      %v614 = vrot.slane %v612, 4
      %v615 = vshll.u32 %v251, 16
      %v617 = vrot.slane %v615, 5
      %v618 = vor.u32 %v614, %v617
      %v619 = vrot.slane %v618, 4
      %v621 = vshll.u32 %v252, 16
      %v623 = vrot.slane %v621, 5
      %v624 = vsel %vm274, %v619, %v623
      %v625 = vshrl.u32 %v252, 16
      %v627 = vrot.slane %v625, 4
      %v628 = vor.u32 %v627, %v623
      %v629 = vrot.slane %v628, 4
      %v631 = vshll.u32 %v270, 16
      %v633 = vrot.slane %v631, 5
      %v634 = vsel %vm274, %v629, %v633
      %v636 = vshrl.u32 %v253, 16
      %v638 = vrot.slane %v636, 4
      %v639 = vshll.u32 %v253, 16
      %v641 = vrot.slane %v639, 5
      %v642 = vor.u32 %v638, %v641
      %v643 = vrot.slane %v642, 4
      %v645 = vshll.u32 %v254, 16
      %v647 = vrot.slane %v645, 5
      %v648 = vsel %vm274, %v643, %v647
      %v649 = vshrl.u32 %v254, 16
      %v651 = vrot.slane %v649, 4
      %v652 = vor.u32 %v651, %v647
      %v653 = vrot.slane %v652, 4
      %v655 = vshll.u32 %v271, 16
      %v657 = vrot.slane %v655, 5
      %v658 = vsel %vm274, %v653, %v657
      %s659 = scalar_lea.vmem %s210, 2
      %v660 = vld [vmem:[%s659] sm:$0x3]
      %v661 = vunpack.c.l.b16 %v288
      %v662 = vunpack.c.l.b16 %v298
      %v663 = vunpack.c.l.b16 %v312
      %v664 = vunpack.c.l.b16 %v322
      %v665 = vunpack.c.l.b16 %v336
      %v666 = vunpack.c.l.b16 %v346
      %v667 = vunpack.c.l.b16 %v360
      %v668 = vunpack.c.l.b16 %v370
      %v669 = vunpack.c.l.b16 %v384
      %v670 = vunpack.c.l.b16 %v394
      %v671 = vunpack.c.l.b16 %v408
      %v672 = vunpack.c.l.b16 %v418
      %v673 = vunpack.c.l.b16 %v432
      %v674 = vunpack.c.l.b16 %v442
      %v675 = vunpack.c.l.b16 %v456
      %v676 = vunpack.c.l.b16 %v466
      %v677 = vunpack.c.l.b16 %v480
      %v678 = vunpack.c.l.b16 %v490
      %v679 = vunpack.c.l.b16 %v504
      %v680 = vunpack.c.l.b16 %v514
      %v681 = vunpack.c.l.b16 %v528
      %v682 = vunpack.c.l.b16 %v538
      %v683 = vunpack.c.l.b16 %v552
      %v684 = vunpack.c.l.b16 %v562
      %v685 = vunpack.c.l.b16 %v576
      %v686 = vunpack.c.l.b16 %v586
      %v687 = vunpack.c.l.b16 %v600
      %v688 = vunpack.c.l.b16 %v610
      %v689 = vunpack.c.l.b16 %v624
      %v690 = vunpack.c.l.b16 %v634
      %v691 = vunpack.c.l.b16 %v648
      %v692 = vunpack.c.l.b16 %v658
      %v693 = vpack.c.b16 %v662, %v661
      %v694 = vpack.c.b16 %v664, %v663
      %v695 = vpack.c.b16 %v666, %v665
      %v696 = vpack.c.b16 %v668, %v667
      %v697 = vpack.c.b16 %v670, %v669
      %v698 = vpack.c.b16 %v672, %v671
      %v699 = vpack.c.b16 %v674, %v673
      %v700 = vpack.c.b16 %v676, %v675
      %v701 = vpack.c.b16 %v678, %v677
      %v702 = vpack.c.b16 %v680, %v679
      %v703 = vpack.c.b16 %v682, %v681
      %v704 = vpack.c.b16 %v684, %v683
      %v705 = vpack.c.b16 %v686, %v685
      %v706 = vpack.c.b16 %v688, %v687
      %v707 = vpack.c.b16 %v690, %v689
      %v708 = vpack.c.b16 %v692, %v691
      %vm709 = vcmask 31744
      %v711 = vsel %vm709, %v693, 0
      %v714 = vsel %vm709, %v694, 0
      %v717 = vsel %vm709, %v695, 0
      %v720 = vsel %vm709, %v696, 0
      %v723 = vsel %vm709, %v697, 0
      %v726 = vsel %vm709, %v698, 0
      %v729 = vsel %vm709, %v699, 0
      %v732 = vsel %vm709, %v700, 0
      %v735 = vsel %vm709, %v701, 0
      %v738 = vsel %vm709, %v702, 0
      %v741 = vsel %vm709, %v703, 0
      %v744 = vsel %vm709, %v704, 0
      %v747 = vsel %vm709, %v705, 0
      %v750 = vsel %vm709, %v706, 0
      %v753 = vsel %vm709, %v707, 0
      %v756 = vsel %vm709, %v708, 0
      %vm758 = vcmask 1041408
      %v760 = vsel %vm758, %v660, 0
      %762 = vmatprep.subr.bf16.mxu0 0
      %763 = vmatpush1.bf16.msra.mxu0 0
      %764 = vmatprep.subr.bf16.mxu0 0
      %765 = vmatpush1.bf16.msra.mxu0 0
      %766 = vmatprep.subr.bf16.mxu0 0
      %767 = vmatpush1.bf16.msra.mxu0 0
      %768 = vmatprep.subr.bf16.mxu0 0
      %769 = vmatpush1.bf16.msra.mxu0 0
      %770 = vmatprep.subr.bf16.mxu0 0
      %771 = vmatpush1.bf16.msra.mxu0 0
      %772 = vmatprep.subr.bf16.mxu0 0
      %773 = vmatpush1.bf16.msra.mxu0 0
      %774 = vmatprep.subr.bf16.mxu0 0
      %775 = vmatpush1.bf16.msra.mxu0 0
      %776 = vmatprep.subr.bf16.mxu0 0
      %777 = vmatpush1.bf16.msra.mxu0 %v760
      %778 = vmatprep.subr.bf16.mxu0 0
      %779 = vmatpush2.bf16.msra.mxu0 0
      %780 = vmatprep.subr.bf16.mxu0 0
      %781 = vmatpush2.bf16.msra.mxu0 0
      %782 = vmatprep.subr.bf16.mxu0 0
      %783 = vmatpush2.bf16.msra.mxu0 0
      %784 = vmatprep.subr.bf16.mxu0 0
      %785 = vmatpush2.bf16.msra.mxu0 0
      %786 = vmatprep.subr.bf16.mxu0 0
      %787 = vmatpush2.bf16.msra.mxu0 0
      %788 = vmatprep.subr.bf16.mxu0 0
      %789 = vmatpush2.bf16.msra.mxu0 0
      %790 = vmatprep.subr.bf16.mxu0 0
      %791 = vmatpush2.bf16.msra.mxu0 0
      %792 = vmatprep.subr.bf16.mxu0 0
      %793 = vmatpush2.bf16.msra.mxu0 0
      %794 = vmatprep.mubr.bf16.mxu0 0
      %795 = vmatmul.mubr.bf16.gmra.mxu0 %v711
      %v796 = vpop.f32.mrf.mxu0
      %v797 = vadd.f32 0.0, %v796
      %v798 = vpop.f32.mrf.mxu0
      %v799 = vpop.f32.mrf.mxu0
      %v800 = vadd.f32 0.0, %v799
      %v801 = vpop.f32.mrf.mxu0
      %802 = vmatprep.mubr.bf16.mxu0 0
      %803 = vmatmul.mubr.bf16.gmra.mxu0 %v714
      %v804 = vpop.f32.mrf.mxu0
      %v805 = vadd.f32 0.0, %v804
      %v806 = vpop.f32.mrf.mxu0
      %v807 = vpop.f32.mrf.mxu0
      %v808 = vadd.f32 0.0, %v807
      %v809 = vpop.f32.mrf.mxu0
      %810 = vmatprep.mubr.bf16.mxu0 0
      %811 = vmatmul.mubr.bf16.gmra.mxu0 %v717
      %v812 = vpop.f32.mrf.mxu0
      %v813 = vadd.f32 0.0, %v812
      %v814 = vpop.f32.mrf.mxu0
      %v815 = vpop.f32.mrf.mxu0
      %v816 = vadd.f32 0.0, %v815
      %v817 = vpop.f32.mrf.mxu0
      %818 = vmatprep.mubr.bf16.mxu0 0
      %819 = vmatmul.mubr.bf16.gmra.mxu0 %v720
      %v820 = vpop.f32.mrf.mxu0
      %v821 = vadd.f32 0.0, %v820
      %v822 = vpop.f32.mrf.mxu0
      %v823 = vpop.f32.mrf.mxu0
      %v824 = vadd.f32 0.0, %v823
      %v825 = vpop.f32.mrf.mxu0
      %826 = vmatprep.mubr.bf16.mxu0 0
      %827 = vmatmul.mubr.bf16.gmra.mxu0 %v723
      %v828 = vpop.f32.mrf.mxu0
      %v829 = vadd.f32 0.0, %v828
      %v830 = vpop.f32.mrf.mxu0
      %v831 = vpop.f32.mrf.mxu0
      %v832 = vadd.f32 0.0, %v831
      %v833 = vpop.f32.mrf.mxu0
      %834 = vmatprep.mubr.bf16.mxu0 0
      %835 = vmatmul.mubr.bf16.gmra.mxu0 %v726
      %v836 = vpop.f32.mrf.mxu0
      %v837 = vadd.f32 0.0, %v836
      %v838 = vpop.f32.mrf.mxu0
      %v839 = vpop.f32.mrf.mxu0
      %v840 = vadd.f32 0.0, %v839
      %v841 = vpop.f32.mrf.mxu0
      %842 = vmatprep.mubr.bf16.mxu0 0
      %843 = vmatmul.mubr.bf16.gmra.mxu0 %v729
      %v844 = vpop.f32.mrf.mxu0
      %v845 = vadd.f32 0.0, %v844
      %v846 = vpop.f32.mrf.mxu0
      %v847 = vpop.f32.mrf.mxu0
      %v848 = vadd.f32 0.0, %v847
      %v849 = vpop.f32.mrf.mxu0
      %850 = vmatprep.mubr.bf16.mxu0 0
      %851 = vmatmul.mubr.bf16.gmra.mxu0 %v732
      %v852 = vpop.f32.mrf.mxu0
      %v853 = vadd.f32 0.0, %v852
      %v854 = vpop.f32.mrf.mxu0
      %v855 = vpop.f32.mrf.mxu0
      %v856 = vadd.f32 0.0, %v855
      %v857 = vpop.f32.mrf.mxu0
      %858 = vmatprep.mubr.bf16.mxu0 0
      %859 = vmatmul.mubr.bf16.gmra.mxu0 %v735
      %v860 = vpop.f32.mrf.mxu0
      %v861 = vadd.f32 0.0, %v860
      %v862 = vpop.f32.mrf.mxu0
      %v863 = vpop.f32.mrf.mxu0
      %v864 = vadd.f32 0.0, %v863
      %v865 = vpop.f32.mrf.mxu0
      %866 = vmatprep.mubr.bf16.mxu0 0
      %867 = vmatmul.mubr.bf16.gmra.mxu0 %v738
      %v868 = vpop.f32.mrf.mxu0
      %v869 = vadd.f32 0.0, %v868
      %v870 = vpop.f32.mrf.mxu0
      %v871 = vpop.f32.mrf.mxu0
      %v872 = vadd.f32 0.0, %v871
      %v873 = vpop.f32.mrf.mxu0
      %874 = vmatprep.mubr.bf16.mxu0 0
      %875 = vmatmul.mubr.bf16.gmra.mxu0 %v741
      %v876 = vpop.f32.mrf.mxu0
      %v877 = vadd.f32 0.0, %v876
      %v878 = vpop.f32.mrf.mxu0
      %v879 = vpop.f32.mrf.mxu0
      %v880 = vadd.f32 0.0, %v879
      %v881 = vpop.f32.mrf.mxu0
      %882 = vmatprep.mubr.bf16.mxu0 0
      %883 = vmatmul.mubr.bf16.gmra.mxu0 %v744
      %v884 = vpop.f32.mrf.mxu0
      %v885 = vadd.f32 0.0, %v884
      %v886 = vpop.f32.mrf.mxu0
      %v887 = vpop.f32.mrf.mxu0
      %v888 = vadd.f32 0.0, %v887
      %v889 = vpop.f32.mrf.mxu0
      %890 = vmatprep.mubr.bf16.mxu0 0
      %891 = vmatmul.mubr.bf16.gmra.mxu0 %v747
      %v892 = vpop.f32.mrf.mxu0
      %v893 = vadd.f32 0.0, %v892
      %v894 = vpop.f32.mrf.mxu0
      %v895 = vpop.f32.mrf.mxu0
      %v896 = vadd.f32 0.0, %v895
      %v897 = vpop.f32.mrf.mxu0
      %898 = vmatprep.mubr.bf16.mxu0 0
      %899 = vmatmul.mubr.bf16.gmra.mxu0 %v750
      %v900 = vpop.f32.mrf.mxu0
      %v901 = vadd.f32 0.0, %v900
      %v902 = vpop.f32.mrf.mxu0
      %v903 = vpop.f32.mrf.mxu0
      %v904 = vadd.f32 0.0, %v903
      %v905 = vpop.f32.mrf.mxu0
      %906 = vmatprep.mubr.bf16.mxu0 0
      %907 = vmatmul.mubr.bf16.gmra.mxu0 %v753
      %v908 = vpop.f32.mrf.mxu0
      %v909 = vadd.f32 0.0, %v908
      %v910 = vpop.f32.mrf.mxu0
      %v911 = vpop.f32.mrf.mxu0
      %v912 = vadd.f32 0.0, %v911
      %v913 = vpop.f32.mrf.mxu0
      %914 = vmatprep.mubr.bf16.mxu0 0
      %915 = vmatmul.mubr.bf16.gmra.mxu0 %v756
      %v916 = vpop.f32.mrf.mxu0
      %v917 = vadd.f32 0.0, %v916
      %v918 = vpop.f32.mrf.mxu0
      %v919 = vpop.f32.mrf.mxu0
      %v920 = vadd.f32 0.0, %v919
      %v921 = vpop.f32.mrf.mxu0
      %922 = vdwg.mxu0
      %v955 = vunpack.c.l.b16 %v223
      %v956 = vunpack.c.l.b16 %v224
      %v957 = vunpack.c.l.b16 %v225
      %v958 = vunpack.c.l.b16 %v226
      %v959 = vunpack.c.l.b16 %v227
      %v960 = vunpack.c.l.b16 %v228
      %v961 = vunpack.c.l.b16 %v229
      %v962 = vunpack.c.l.b16 %v230
      %v963 = vunpack.c.l.b16 %v231
      %v964 = vunpack.c.l.b16 %v232
      %v965 = vunpack.c.l.b16 %v233
      %v966 = vunpack.c.l.b16 %v234
      %v967 = vunpack.c.l.b16 %v235
      %v968 = vunpack.c.l.b16 %v236
      %v969 = vunpack.c.l.b16 %v237
      %v970 = vunpack.c.l.b16 %v238
      %v971 = vunpack.c.l.b16 %v239
      %v972 = vunpack.c.l.b16 %v240
      %v973 = vunpack.c.l.b16 %v241
      %v974 = vunpack.c.l.b16 %v242
      %v975 = vunpack.c.l.b16 %v243
      %v976 = vunpack.c.l.b16 %v244
      %v977 = vunpack.c.l.b16 %v245
      %v978 = vunpack.c.l.b16 %v246
      %v979 = vunpack.c.l.b16 %v247
      %v980 = vunpack.c.l.b16 %v248
      %v981 = vunpack.c.l.b16 %v249
      %v982 = vunpack.c.l.b16 %v250
      %v983 = vunpack.c.l.b16 %v251
      %v984 = vunpack.c.l.b16 %v252
      %v985 = vunpack.c.l.b16 %v253
      %v986 = vunpack.c.l.b16 %v254
      %v987 = vpack.c.b16 %v956, %v955
      %v988 = vpack.c.b16 %v958, %v957
      %v989 = vpack.c.b16 %v960, %v959
      %v990 = vpack.c.b16 %v962, %v961
      %v991 = vpack.c.b16 %v964, %v963
      %v992 = vpack.c.b16 %v966, %v965
      %v993 = vpack.c.b16 %v968, %v967
      %v994 = vpack.c.b16 %v970, %v969
      %v995 = vpack.c.b16 %v972, %v971
      %v996 = vpack.c.b16 %v974, %v973
      %v997 = vpack.c.b16 %v976, %v975
      %v998 = vpack.c.b16 %v978, %v977
      %v999 = vpack.c.b16 %v980, %v979
      %v1000 = vpack.c.b16 %v982, %v981
      %v1001 = vpack.c.b16 %v984, %v983
      %v1002 = vpack.c.b16 %v986, %v985
      %v1004 = vsel %vm709, %v987, 0
      %v1007 = vsel %vm709, %v988, 0
      %v1010 = vsel %vm709, %v989, 0
      %v1013 = vsel %vm709, %v990, 0
      %v1016 = vsel %vm709, %v991, 0
      %v1019 = vsel %vm709, %v992, 0
      %v1022 = vsel %vm709, %v993, 0
      %v1025 = vsel %vm709, %v994, 0
      %v1028 = vsel %vm709, %v995, 0
      %v1031 = vsel %vm709, %v996, 0
      %v1034 = vsel %vm709, %v997, 0
      %v1037 = vsel %vm709, %v998, 0
      %v1040 = vsel %vm709, %v999, 0
      %v1043 = vsel %vm709, %v1000, 0
      %v1046 = vsel %vm709, %v1001, 0
      %v1049 = vsel %vm709, %v1002, 0
      %v1052 = vsel %vm758, %v255, 0
      %1054 = vmatprep.subr.bf16.mxu0 0
      %1055 = vmatpush1.bf16.msra.mxu0 0
      %1056 = vmatprep.subr.bf16.mxu0 0
      %1057 = vmatpush1.bf16.msra.mxu0 0
      %1058 = vmatprep.subr.bf16.mxu0 0
      %1059 = vmatpush1.bf16.msra.mxu0 0
      %1060 = vmatprep.subr.bf16.mxu0 0
      %1061 = vmatpush1.bf16.msra.mxu0 0
      %1062 = vmatprep.subr.bf16.mxu0 0
      %1063 = vmatpush1.bf16.msra.mxu0 0
      %1064 = vmatprep.subr.bf16.mxu0 0
      %1065 = vmatpush1.bf16.msra.mxu0 0
      %1066 = vmatprep.subr.bf16.mxu0 0
      %1067 = vmatpush1.bf16.msra.mxu0 0
      %1068 = vmatprep.subr.bf16.mxu0 0
      %1069 = vmatpush1.bf16.msra.mxu0 %v1052
      %1070 = vmatprep.subr.bf16.mxu0 0
      %1071 = vmatpush2.bf16.msra.mxu0 0
      %1072 = vmatprep.subr.bf16.mxu0 0
      %1073 = vmatpush2.bf16.msra.mxu0 0
      %1074 = vmatprep.subr.bf16.mxu0 0
      %1075 = vmatpush2.bf16.msra.mxu0 0
      %1076 = vmatprep.subr.bf16.mxu0 0
      %1077 = vmatpush2.bf16.msra.mxu0 0
      %1078 = vmatprep.subr.bf16.mxu0 0
      %1079 = vmatpush2.bf16.msra.mxu0 0
      %1080 = vmatprep.subr.bf16.mxu0 0
      %1081 = vmatpush2.bf16.msra.mxu0 0
      %1082 = vmatprep.subr.bf16.mxu0 0
      %1083 = vmatpush2.bf16.msra.mxu0 0
      %1084 = vmatprep.subr.bf16.mxu0 0
      %1085 = vmatpush2.bf16.msra.mxu0 0
      %1086 = vmatprep.mubr.bf16.mxu0 0
      %1087 = vmatmul.mubr.bf16.gmra.mxu0 %v1004
      %v1088 = vpop.f32.mrf.mxu0
      %v1089 = vadd.f32 %v797, %v1088
      %v1090 = vpop.f32.mrf.mxu0
      %v1091 = vpop.f32.mrf.mxu0
      %v1092 = vadd.f32 %v800, %v1091
      %v1093 = vpop.f32.mrf.mxu0
      %1094 = vmatprep.mubr.bf16.mxu0 0
      %1095 = vmatmul.mubr.bf16.gmra.mxu0 %v1007
      %v1096 = vpop.f32.mrf.mxu0
      %v1097 = vadd.f32 %v805, %v1096
      %v1098 = vpop.f32.mrf.mxu0
      %v1099 = vpop.f32.mrf.mxu0
      %v1100 = vadd.f32 %v808, %v1099
      %v1101 = vpop.f32.mrf.mxu0
      %1102 = vmatprep.mubr.bf16.mxu0 0
      %1103 = vmatmul.mubr.bf16.gmra.mxu0 %v1010
      %v1104 = vpop.f32.mrf.mxu0
      %v1105 = vadd.f32 %v813, %v1104
      %v1106 = vpop.f32.mrf.mxu0
      %v1107 = vpop.f32.mrf.mxu0
      %v1108 = vadd.f32 %v816, %v1107
      %v1109 = vpop.f32.mrf.mxu0
      %1110 = vmatprep.mubr.bf16.mxu0 0
      %1111 = vmatmul.mubr.bf16.gmra.mxu0 %v1013
      %v1112 = vpop.f32.mrf.mxu0
      %v1113 = vadd.f32 %v821, %v1112
      %v1114 = vpop.f32.mrf.mxu0
      %v1115 = vpop.f32.mrf.mxu0
      %v1116 = vadd.f32 %v824, %v1115
      %v1117 = vpop.f32.mrf.mxu0
      %1118 = vmatprep.mubr.bf16.mxu0 0
      %1119 = vmatmul.mubr.bf16.gmra.mxu0 %v1016
      %v1120 = vpop.f32.mrf.mxu0
      %v1121 = vadd.f32 %v829, %v1120
      %v1122 = vpop.f32.mrf.mxu0
      %v1123 = vpop.f32.mrf.mxu0
      %v1124 = vadd.f32 %v832, %v1123
      %v1125 = vpop.f32.mrf.mxu0
      %1126 = vmatprep.mubr.bf16.mxu0 0
      %1127 = vmatmul.mubr.bf16.gmra.mxu0 %v1019
      %v1128 = vpop.f32.mrf.mxu0
      %v1129 = vadd.f32 %v837, %v1128
      %v1130 = vpop.f32.mrf.mxu0
      %v1131 = vpop.f32.mrf.mxu0
      %v1132 = vadd.f32 %v840, %v1131
      %v1133 = vpop.f32.mrf.mxu0
      %1134 = vmatprep.mubr.bf16.mxu0 0
      %1135 = vmatmul.mubr.bf16.gmra.mxu0 %v1022
      %v1136 = vpop.f32.mrf.mxu0
      %v1137 = vadd.f32 %v845, %v1136
      %v1138 = vpop.f32.mrf.mxu0
      %v1139 = vpop.f32.mrf.mxu0
      %v1140 = vadd.f32 %v848, %v1139
      %v1141 = vpop.f32.mrf.mxu0
      %1142 = vmatprep.mubr.bf16.mxu0 0
      %1143 = vmatmul.mubr.bf16.gmra.mxu0 %v1025
      %v1144 = vpop.f32.mrf.mxu0
      %v1145 = vadd.f32 %v853, %v1144
      %v1146 = vpop.f32.mrf.mxu0
      %v1147 = vpop.f32.mrf.mxu0
      %v1148 = vadd.f32 %v856, %v1147
      %v1149 = vpop.f32.mrf.mxu0
      %1150 = vmatprep.mubr.bf16.mxu0 0
      %1151 = vmatmul.mubr.bf16.gmra.mxu0 %v1028
      %v1152 = vpop.f32.mrf.mxu0
      %v1153 = vadd.f32 %v861, %v1152
      %v1154 = vpop.f32.mrf.mxu0
      %v1155 = vpop.f32.mrf.mxu0
      %v1156 = vadd.f32 %v864, %v1155
      %v1157 = vpop.f32.mrf.mxu0
      %1158 = vmatprep.mubr.bf16.mxu0 0
      %1159 = vmatmul.mubr.bf16.gmra.mxu0 %v1031
      %v1160 = vpop.f32.mrf.mxu0
      %v1161 = vadd.f32 %v869, %v1160
      %v1162 = vpop.f32.mrf.mxu0
      %v1163 = vpop.f32.mrf.mxu0
      %v1164 = vadd.f32 %v872, %v1163
      %v1165 = vpop.f32.mrf.mxu0
      %1166 = vmatprep.mubr.bf16.mxu0 0
      %1167 = vmatmul.mubr.bf16.gmra.mxu0 %v1034
      %v1168 = vpop.f32.mrf.mxu0
      %v1169 = vadd.f32 %v877, %v1168
      %v1170 = vpop.f32.mrf.mxu0
      %v1171 = vpop.f32.mrf.mxu0
      %v1172 = vadd.f32 %v880, %v1171
      %v1173 = vpop.f32.mrf.mxu0
      %1174 = vmatprep.mubr.bf16.mxu0 0
      %1175 = vmatmul.mubr.bf16.gmra.mxu0 %v1037
      %v1176 = vpop.f32.mrf.mxu0
      %v1177 = vadd.f32 %v885, %v1176
      %v1178 = vpop.f32.mrf.mxu0
      %v1179 = vpop.f32.mrf.mxu0
      %v1180 = vadd.f32 %v888, %v1179
      %v1181 = vpop.f32.mrf.mxu0
      %1182 = vmatprep.mubr.bf16.mxu0 0
      %1183 = vmatmul.mubr.bf16.gmra.mxu0 %v1040
      %v1184 = vpop.f32.mrf.mxu0
      %v1185 = vadd.f32 %v893, %v1184
      %v1186 = vpop.f32.mrf.mxu0
      %v1187 = vpop.f32.mrf.mxu0
      %v1188 = vadd.f32 %v896, %v1187
      %v1189 = vpop.f32.mrf.mxu0
      %1190 = vmatprep.mubr.bf16.mxu0 0
      %1191 = vmatmul.mubr.bf16.gmra.mxu0 %v1043
      %v1192 = vpop.f32.mrf.mxu0
      %v1193 = vadd.f32 %v901, %v1192
      %v1194 = vpop.f32.mrf.mxu0
      %v1195 = vpop.f32.mrf.mxu0
      %v1196 = vadd.f32 %v904, %v1195
      %v1197 = vpop.f32.mrf.mxu0
      %1198 = vmatprep.mubr.bf16.mxu0 0
      %1199 = vmatmul.mubr.bf16.gmra.mxu0 %v1046
      %v1200 = vpop.f32.mrf.mxu0
      %v1201 = vadd.f32 %v909, %v1200
      %v1202 = vpop.f32.mrf.mxu0
      %v1203 = vpop.f32.mrf.mxu0
      %v1204 = vadd.f32 %v912, %v1203
      %v1205 = vpop.f32.mrf.mxu0
      %1206 = vmatprep.mubr.bf16.mxu0 0
      %1207 = vmatmul.mubr.bf16.gmra.mxu0 %v1049
      %v1208 = vpop.f32.mrf.mxu0
      %v1209 = vadd.f32 %v917, %v1208
      %v1210 = vpop.f32.mrf.mxu0
      %v1211 = vpop.f32.mrf.mxu0
      %v1212 = vadd.f32 %v920, %v1211
      %v1213 = vpop.f32.mrf.mxu0
      %1214 = vdwg.mxu0
      %v1215 = vld [vmem:[%s206] sm:$0xe]
      %v1216 = vld [vmem:[%s206 + $0xc] sm:$0xe]
      %v1217 = vld [vmem:[%s206 + $0x18] sm:$0xe]
      %v1218 = vld [vmem:[%s206 + $0x24] sm:$0xe]
      %v1219 = vld [vmem:[%s206 + $0x30] sm:$0xe]
      %v1220 = vld [vmem:[%s206 + $0x3c] sm:$0xe]
      %v1221 = vld [vmem:[%s206 + $0x48] sm:$0xe]
      %v1222 = vld [vmem:[%s206 + $0x54] sm:$0xe]
      %v1223 = vld [vmem:[%s206 + $0x60] sm:$0xe]
      %v1224 = vld [vmem:[%s206 + $0x6c] sm:$0xe]
      %v1225 = vld [vmem:[%s206 + $0x78] sm:$0xe]
      %v1226 = vld [vmem:[%s206 + $0x84] sm:$0xe]
      %v1227 = vld [vmem:[%s206 + $0x90] sm:$0xe]
      %v1228 = vld [vmem:[%s206 + $0x9c] sm:$0xe]
      %v1229 = vld [vmem:[%s206 + $0xa8] sm:$0xe]
      %v1230 = vld [vmem:[%s206 + $0xb4] sm:$0xe]
      %vm1263 = vcmask 1042432
      %vm1264 = vcmask 1046532
      %vm1265 = vmor %vm1263, %vm1264
      %v1266 = vrot.slane %v1215, 5
      %v1267 = vrot.slane %v1266, 4
      %v1268 = vrot.slane %v224, 5
      %v1269 = vsel %vm1265, %v1267, %v1268
      %v1270 = vrot.slane %v1268, 4
      %v1271 = vrot.slane %v256, 5
      %v1272 = vsel %vm1265, %v1270, %v1271
      %v1273 = vrot.slane %v1216, 5
      %v1274 = vrot.slane %v1273, 4
      %v1275 = vrot.slane %v226, 5
      %v1276 = vsel %vm1265, %v1274, %v1275
      %v1277 = vrot.slane %v1275, 4
      %v1278 = vrot.slane %v257, 5
      %v1279 = vsel %vm1265, %v1277, %v1278
      %v1280 = vrot.slane %v1217, 5
      %v1281 = vrot.slane %v1280, 4
      %v1282 = vrot.slane %v228, 5
      %v1283 = vsel %vm1265, %v1281, %v1282
      %v1284 = vrot.slane %v1282, 4
      %v1285 = vrot.slane %v258, 5
      %v1286 = vsel %vm1265, %v1284, %v1285
      %v1287 = vrot.slane %v1218, 5
      %v1288 = vrot.slane %v1287, 4
      %v1289 = vrot.slane %v230, 5
      %v1290 = vsel %vm1265, %v1288, %v1289
      %v1291 = vrot.slane %v1289, 4
      %v1292 = vrot.slane %v259, 5
      %v1293 = vsel %vm1265, %v1291, %v1292
      %v1294 = vrot.slane %v1219, 5
      %v1295 = vrot.slane %v1294, 4
      %v1296 = vrot.slane %v232, 5
      %v1297 = vsel %vm1265, %v1295, %v1296
      %v1298 = vrot.slane %v1296, 4
      %v1299 = vrot.slane %v260, 5
      %v1300 = vsel %vm1265, %v1298, %v1299
      %v1301 = vrot.slane %v1220, 5
      %v1302 = vrot.slane %v1301, 4
      %v1303 = vrot.slane %v234, 5
      %v1304 = vsel %vm1265, %v1302, %v1303
      %v1305 = vrot.slane %v1303, 4
      %v1306 = vrot.slane %v261, 5
      %v1307 = vsel %vm1265, %v1305, %v1306
      %v1308 = vrot.slane %v1221, 5
      %v1309 = vrot.slane %v1308, 4
      %v1310 = vrot.slane %v236, 5
      %v1311 = vsel %vm1265, %v1309, %v1310
      %v1312 = vrot.slane %v1310, 4
      %v1313 = vrot.slane %v262, 5
      %v1314 = vsel %vm1265, %v1312, %v1313
      %v1315 = vrot.slane %v1222, 5
      %v1316 = vrot.slane %v1315, 4
      %v1317 = vrot.slane %v238, 5
      %v1318 = vsel %vm1265, %v1316, %v1317
      %v1319 = vrot.slane %v1317, 4
      %v1320 = vrot.slane %v263, 5
      %v1321 = vsel %vm1265, %v1319, %v1320
      %v1322 = vrot.slane %v1223, 5
      %v1323 = vrot.slane %v1322, 4
      %v1324 = vrot.slane %v240, 5
      %v1325 = vsel %vm1265, %v1323, %v1324
      %v1326 = vrot.slane %v1324, 4
      %v1327 = vrot.slane %v264, 5
      %v1328 = vsel %vm1265, %v1326, %v1327
      %v1329 = vrot.slane %v1224, 5
      %v1330 = vrot.slane %v1329, 4
      %v1331 = vrot.slane %v242, 5
      %v1332 = vsel %vm1265, %v1330, %v1331
      %v1333 = vrot.slane %v1331, 4
      %v1334 = vrot.slane %v265, 5
      %v1335 = vsel %vm1265, %v1333, %v1334
      %v1336 = vrot.slane %v1225, 5
      %v1337 = vrot.slane %v1336, 4
      %v1338 = vrot.slane %v244, 5
      %v1339 = vsel %vm1265, %v1337, %v1338
      %v1340 = vrot.slane %v1338, 4
      %v1341 = vrot.slane %v266, 5
      %v1342 = vsel %vm1265, %v1340, %v1341
      %v1343 = vrot.slane %v1226, 5
      %v1344 = vrot.slane %v1343, 4
      %v1345 = vrot.slane %v246, 5
      %v1346 = vsel %vm1265, %v1344, %v1345
      %v1347 = vrot.slane %v1345, 4
      %v1348 = vrot.slane %v267, 5
      %v1349 = vsel %vm1265, %v1347, %v1348
      %v1350 = vrot.slane %v1227, 5
      %v1351 = vrot.slane %v1350, 4
      %v1352 = vrot.slane %v248, 5
      %v1353 = vsel %vm1265, %v1351, %v1352
      %v1354 = vrot.slane %v1352, 4
      %v1355 = vrot.slane %v268, 5
      %v1356 = vsel %vm1265, %v1354, %v1355
      %v1357 = vrot.slane %v1228, 5
      %v1358 = vrot.slane %v1357, 4
      %v1359 = vrot.slane %v250, 5
      %v1360 = vsel %vm1265, %v1358, %v1359
      %v1361 = vrot.slane %v1359, 4
      %v1362 = vrot.slane %v269, 5
      %v1363 = vsel %vm1265, %v1361, %v1362
      %v1364 = vrot.slane %v1229, 5
      %v1365 = vrot.slane %v1364, 4
      %v1366 = vrot.slane %v252, 5
      %v1367 = vsel %vm1265, %v1365, %v1366
      %v1368 = vrot.slane %v1366, 4
      %v1369 = vrot.slane %v270, 5
      %v1370 = vsel %vm1265, %v1368, %v1369
      %v1371 = vrot.slane %v1230, 5
      %v1372 = vrot.slane %v1371, 4
      %v1373 = vrot.slane %v254, 5
      %v1374 = vsel %vm1265, %v1372, %v1373
      %v1375 = vrot.slane %v1373, 4
      %v1376 = vrot.slane %v271, 5
      %v1377 = vsel %vm1265, %v1375, %v1376
      %s1378 = scalar_lea.vmem %s210, 4
      %v1379 = vld [vmem:[%s1378] sm:$0x3]
      %v1380 = vunpack.c.l.b16 %v1269
      %v1381 = vunpack.c.l.b16 %v1272
      %v1382 = vunpack.c.l.b16 %v1276
      %v1383 = vunpack.c.l.b16 %v1279
      %v1384 = vunpack.c.l.b16 %v1283
      %v1385 = vunpack.c.l.b16 %v1286
      %v1386 = vunpack.c.l.b16 %v1290
      %v1387 = vunpack.c.l.b16 %v1293
      %v1388 = vunpack.c.l.b16 %v1297
      %v1389 = vunpack.c.l.b16 %v1300
      %v1390 = vunpack.c.l.b16 %v1304
      %v1391 = vunpack.c.l.b16 %v1307
      %v1392 = vunpack.c.l.b16 %v1311
      %v1393 = vunpack.c.l.b16 %v1314
      %v1394 = vunpack.c.l.b16 %v1318
      %v1395 = vunpack.c.l.b16 %v1321
      %v1396 = vunpack.c.l.b16 %v1325
      %v1397 = vunpack.c.l.b16 %v1328
      %v1398 = vunpack.c.l.b16 %v1332
      %v1399 = vunpack.c.l.b16 %v1335
      %v1400 = vunpack.c.l.b16 %v1339
      %v1401 = vunpack.c.l.b16 %v1342
      %v1402 = vunpack.c.l.b16 %v1346
      %v1403 = vunpack.c.l.b16 %v1349
      %v1404 = vunpack.c.l.b16 %v1353
      %v1405 = vunpack.c.l.b16 %v1356
      %v1406 = vunpack.c.l.b16 %v1360
      %v1407 = vunpack.c.l.b16 %v1363
      %v1408 = vunpack.c.l.b16 %v1367
      %v1409 = vunpack.c.l.b16 %v1370
      %v1410 = vunpack.c.l.b16 %v1374
      %v1411 = vunpack.c.l.b16 %v1377
      %v1412 = vpack.c.b16 %v1381, %v1380
      %v1413 = vpack.c.b16 %v1383, %v1382
      %v1414 = vpack.c.b16 %v1385, %v1384
      %v1415 = vpack.c.b16 %v1387, %v1386
      %v1416 = vpack.c.b16 %v1389, %v1388
      %v1417 = vpack.c.b16 %v1391, %v1390
      %v1418 = vpack.c.b16 %v1393, %v1392
      %v1419 = vpack.c.b16 %v1395, %v1394
      %v1420 = vpack.c.b16 %v1397, %v1396
      %v1421 = vpack.c.b16 %v1399, %v1398
      %v1422 = vpack.c.b16 %v1401, %v1400
      %v1423 = vpack.c.b16 %v1403, %v1402
      %v1424 = vpack.c.b16 %v1405, %v1404
      %v1425 = vpack.c.b16 %v1407, %v1406
      %v1426 = vpack.c.b16 %v1409, %v1408
      %v1427 = vpack.c.b16 %v1411, %v1410
      %v1429 = vsel %vm709, %v1412, 0
      %v1432 = vsel %vm709, %v1413, 0
      %v1435 = vsel %vm709, %v1414, 0
      %v1438 = vsel %vm709, %v1415, 0
      %v1441 = vsel %vm709, %v1416, 0
      %v1444 = vsel %vm709, %v1417, 0
      %v1447 = vsel %vm709, %v1418, 0
      %v1450 = vsel %vm709, %v1419, 0
      %v1453 = vsel %vm709, %v1420, 0
      %v1456 = vsel %vm709, %v1421, 0
      %v1459 = vsel %vm709, %v1422, 0
      %v1462 = vsel %vm709, %v1423, 0
      %v1465 = vsel %vm709, %v1424, 0
      %v1468 = vsel %vm709, %v1425, 0
      %v1471 = vsel %vm709, %v1426, 0
      %v1474 = vsel %vm709, %v1427, 0
      %v1477 = vsel %vm758, %v1379, 0
      %1479 = vmatprep.subr.bf16.mxu0 0
      %1480 = vmatpush1.bf16.msra.mxu0 0
      %1481 = vmatprep.subr.bf16.mxu0 0
      %1482 = vmatpush1.bf16.msra.mxu0 0
      %1483 = vmatprep.subr.bf16.mxu0 0
      %1484 = vmatpush1.bf16.msra.mxu0 0
      %1485 = vmatprep.subr.bf16.mxu0 0
      %1486 = vmatpush1.bf16.msra.mxu0 0
      %1487 = vmatprep.subr.bf16.mxu0 0
      %1488 = vmatpush1.bf16.msra.mxu0 0
      %1489 = vmatprep.subr.bf16.mxu0 0
      %1490 = vmatpush1.bf16.msra.mxu0 0
      %1491 = vmatprep.subr.bf16.mxu0 0
      %1492 = vmatpush1.bf16.msra.mxu0 0
      %1493 = vmatprep.subr.bf16.mxu0 0
      %1494 = vmatpush1.bf16.msra.mxu0 %v1477
      %1495 = vmatprep.subr.bf16.mxu0 0
      %1496 = vmatpush2.bf16.msra.mxu0 0
      %1497 = vmatprep.subr.bf16.mxu0 0
      %1498 = vmatpush2.bf16.msra.mxu0 0
      %1499 = vmatprep.subr.bf16.mxu0 0
      %1500 = vmatpush2.bf16.msra.mxu0 0
      %1501 = vmatprep.subr.bf16.mxu0 0
      %1502 = vmatpush2.bf16.msra.mxu0 0
      %1503 = vmatprep.subr.bf16.mxu0 0
      %1504 = vmatpush2.bf16.msra.mxu0 0
      %1505 = vmatprep.subr.bf16.mxu0 0
      %1506 = vmatpush2.bf16.msra.mxu0 0
      %1507 = vmatprep.subr.bf16.mxu0 0
      %1508 = vmatpush2.bf16.msra.mxu0 0
      %1509 = vmatprep.subr.bf16.mxu0 0
      %1510 = vmatpush2.bf16.msra.mxu0 0
      %1511 = vmatprep.mubr.bf16.mxu0 0
      %1512 = vmatmul.mubr.bf16.gmra.mxu0 %v1429
      %v1513 = vpop.f32.mrf.mxu0
      %v1514 = vadd.f32 0.0, %v1513
      %v1515 = vpop.f32.mrf.mxu0
      %v1516 = vpop.f32.mrf.mxu0
      %v1517 = vadd.f32 0.0, %v1516
      %v1518 = vpop.f32.mrf.mxu0
      %1519 = vmatprep.mubr.bf16.mxu0 0
      %1520 = vmatmul.mubr.bf16.gmra.mxu0 %v1432
      %v1521 = vpop.f32.mrf.mxu0
      %v1522 = vadd.f32 0.0, %v1521
      %v1523 = vpop.f32.mrf.mxu0
      %v1524 = vpop.f32.mrf.mxu0
      %v1525 = vadd.f32 0.0, %v1524
      %v1526 = vpop.f32.mrf.mxu0
      %1527 = vmatprep.mubr.bf16.mxu0 0
      %1528 = vmatmul.mubr.bf16.gmra.mxu0 %v1435
      %v1529 = vpop.f32.mrf.mxu0
      %v1530 = vadd.f32 0.0, %v1529
      %v1531 = vpop.f32.mrf.mxu0
      %v1532 = vpop.f32.mrf.mxu0
      %v1533 = vadd.f32 0.0, %v1532
      %v1534 = vpop.f32.mrf.mxu0
      %1535 = vmatprep.mubr.bf16.mxu0 0
      %1536 = vmatmul.mubr.bf16.gmra.mxu0 %v1438
      %v1537 = vpop.f32.mrf.mxu0
      %v1538 = vadd.f32 0.0, %v1537
      %v1539 = vpop.f32.mrf.mxu0
      %v1540 = vpop.f32.mrf.mxu0
      %v1541 = vadd.f32 0.0, %v1540
      %v1542 = vpop.f32.mrf.mxu0
      %1543 = vmatprep.mubr.bf16.mxu0 0
      %1544 = vmatmul.mubr.bf16.gmra.mxu0 %v1441
      %v1545 = vpop.f32.mrf.mxu0
      %v1546 = vadd.f32 0.0, %v1545
      %v1547 = vpop.f32.mrf.mxu0
      %v1548 = vpop.f32.mrf.mxu0
      %v1549 = vadd.f32 0.0, %v1548
      %v1550 = vpop.f32.mrf.mxu0
      %1551 = vmatprep.mubr.bf16.mxu0 0
      %1552 = vmatmul.mubr.bf16.gmra.mxu0 %v1444
      %v1553 = vpop.f32.mrf.mxu0
      %v1554 = vadd.f32 0.0, %v1553
      %v1555 = vpop.f32.mrf.mxu0
      %v1556 = vpop.f32.mrf.mxu0
      %v1557 = vadd.f32 0.0, %v1556
      %v1558 = vpop.f32.mrf.mxu0
      %1559 = vmatprep.mubr.bf16.mxu0 0
      %1560 = vmatmul.mubr.bf16.gmra.mxu0 %v1447
      %v1561 = vpop.f32.mrf.mxu0
      %v1562 = vadd.f32 0.0, %v1561
      %v1563 = vpop.f32.mrf.mxu0
      %v1564 = vpop.f32.mrf.mxu0
      %v1565 = vadd.f32 0.0, %v1564
      %v1566 = vpop.f32.mrf.mxu0
      %1567 = vmatprep.mubr.bf16.mxu0 0
      %1568 = vmatmul.mubr.bf16.gmra.mxu0 %v1450
      %v1569 = vpop.f32.mrf.mxu0
      %v1570 = vadd.f32 0.0, %v1569
      %v1571 = vpop.f32.mrf.mxu0
      %v1572 = vpop.f32.mrf.mxu0
      %v1573 = vadd.f32 0.0, %v1572
      %v1574 = vpop.f32.mrf.mxu0
      %1575 = vmatprep.mubr.bf16.mxu0 0
      %1576 = vmatmul.mubr.bf16.gmra.mxu0 %v1453
      %v1577 = vpop.f32.mrf.mxu0
      %v1578 = vadd.f32 0.0, %v1577
      %v1579 = vpop.f32.mrf.mxu0
      %v1580 = vpop.f32.mrf.mxu0
      %v1581 = vadd.f32 0.0, %v1580
      %v1582 = vpop.f32.mrf.mxu0
      %1583 = vmatprep.mubr.bf16.mxu0 0
      %1584 = vmatmul.mubr.bf16.gmra.mxu0 %v1456
      %v1585 = vpop.f32.mrf.mxu0
      %v1586 = vadd.f32 0.0, %v1585
      %v1587 = vpop.f32.mrf.mxu0
      %v1588 = vpop.f32.mrf.mxu0
      %v1589 = vadd.f32 0.0, %v1588
      %v1590 = vpop.f32.mrf.mxu0
      %1591 = vmatprep.mubr.bf16.mxu0 0
      %1592 = vmatmul.mubr.bf16.gmra.mxu0 %v1459
      %v1593 = vpop.f32.mrf.mxu0
      %v1594 = vadd.f32 0.0, %v1593
      %v1595 = vpop.f32.mrf.mxu0
      %v1596 = vpop.f32.mrf.mxu0
      %v1597 = vadd.f32 0.0, %v1596
      %v1598 = vpop.f32.mrf.mxu0
      %1599 = vmatprep.mubr.bf16.mxu0 0
      %1600 = vmatmul.mubr.bf16.gmra.mxu0 %v1462
      %v1601 = vpop.f32.mrf.mxu0
      %v1602 = vadd.f32 0.0, %v1601
      %v1603 = vpop.f32.mrf.mxu0
      %v1604 = vpop.f32.mrf.mxu0
      %v1605 = vadd.f32 0.0, %v1604
      %v1606 = vpop.f32.mrf.mxu0
      %1607 = vmatprep.mubr.bf16.mxu0 0
      %1608 = vmatmul.mubr.bf16.gmra.mxu0 %v1465
      %v1609 = vpop.f32.mrf.mxu0
      %v1610 = vadd.f32 0.0, %v1609
      %v1611 = vpop.f32.mrf.mxu0
      %v1612 = vpop.f32.mrf.mxu0
      %v1613 = vadd.f32 0.0, %v1612
      %v1614 = vpop.f32.mrf.mxu0
      %1615 = vmatprep.mubr.bf16.mxu0 0
      %1616 = vmatmul.mubr.bf16.gmra.mxu0 %v1468
      %v1617 = vpop.f32.mrf.mxu0
      %v1618 = vadd.f32 0.0, %v1617
      %v1619 = vpop.f32.mrf.mxu0
      %v1620 = vpop.f32.mrf.mxu0
      %v1621 = vadd.f32 0.0, %v1620
      %v1622 = vpop.f32.mrf.mxu0
      %1623 = vmatprep.mubr.bf16.mxu0 0
      %1624 = vmatmul.mubr.bf16.gmra.mxu0 %v1471
      %v1625 = vpop.f32.mrf.mxu0
      %v1626 = vadd.f32 0.0, %v1625
      %v1627 = vpop.f32.mrf.mxu0
      %v1628 = vpop.f32.mrf.mxu0
      %v1629 = vadd.f32 0.0, %v1628
      %v1630 = vpop.f32.mrf.mxu0
      %1631 = vmatprep.mubr.bf16.mxu0 0
      %1632 = vmatmul.mubr.bf16.gmra.mxu0 %v1474
      %v1633 = vpop.f32.mrf.mxu0
      %v1634 = vadd.f32 0.0, %v1633
      %v1635 = vpop.f32.mrf.mxu0
      %v1636 = vpop.f32.mrf.mxu0
      %v1637 = vadd.f32 0.0, %v1636
      %v1638 = vpop.f32.mrf.mxu0
      %1639 = vdwg.mxu0
      %v1640 = vadd.f32 %v1089, %v1514
      %v1641 = vadd.f32 %v1092, %v1517
      %v1642 = vadd.f32 %v1097, %v1522
      %v1643 = vadd.f32 %v1100, %v1525
      %v1644 = vadd.f32 %v1105, %v1530
      %v1645 = vadd.f32 %v1108, %v1533
      %v1646 = vadd.f32 %v1113, %v1538
      %v1647 = vadd.f32 %v1116, %v1541
      %v1648 = vadd.f32 %v1121, %v1546
      %v1649 = vadd.f32 %v1124, %v1549
      %v1650 = vadd.f32 %v1129, %v1554
      %v1651 = vadd.f32 %v1132, %v1557
      %v1652 = vadd.f32 %v1137, %v1562
      %v1653 = vadd.f32 %v1140, %v1565
      %v1654 = vadd.f32 %v1145, %v1570
      %v1655 = vadd.f32 %v1148, %v1573
      %v1656 = vadd.f32 %v1153, %v1578
      %v1657 = vadd.f32 %v1156, %v1581
      %v1658 = vadd.f32 %v1161, %v1586
      %v1659 = vadd.f32 %v1164, %v1589
      %v1660 = vadd.f32 %v1169, %v1594
      %v1661 = vadd.f32 %v1172, %v1597
      %v1662 = vadd.f32 %v1177, %v1602
      %v1663 = vadd.f32 %v1180, %v1605
      %v1664 = vadd.f32 %v1185, %v1610
      %v1665 = vadd.f32 %v1188, %v1613
      %v1666 = vadd.f32 %v1193, %v1618
      %v1667 = vadd.f32 %v1196, %v1621
      %v1668 = vadd.f32 %v1201, %v1626
      %v1669 = vadd.f32 %v1204, %v1629
      %v1670 = vadd.f32 %v1209, %v1634
      %v1671 = vadd.f32 %v1212, %v1637
      %s1672 = scalar_lea.vmem %s206, 12
      %v1673 = vld [vmem:[%s1672] sm:$0xf]
      %v1674 = vld [vmem:[%s1672 + $0x4] sm:$0xf]
      %v1675 = vld [vmem:[%s1672 + $0xc] sm:$0xf]
      %v1676 = vld [vmem:[%s1672 + $0x10] sm:$0xf]
      %v1677 = vld [vmem:[%s1672 + $0x18] sm:$0xf]
      %v1678 = vld [vmem:[%s1672 + $0x1c] sm:$0xf]
      %v1679 = vld [vmem:[%s1672 + $0x24] sm:$0xf]
      %v1680 = vld [vmem:[%s1672 + $0x28] sm:$0xf]
      %v1681 = vld [vmem:[%s1672 + $0x30] sm:$0xf]
      %v1682 = vld [vmem:[%s1672 + $0x34] sm:$0xf]
      %v1683 = vld [vmem:[%s1672 + $0x3c] sm:$0xf]
      %v1684 = vld [vmem:[%s1672 + $0x40] sm:$0xf]
      %v1685 = vld [vmem:[%s1672 + $0x48] sm:$0xf]
      %v1686 = vld [vmem:[%s1672 + $0x4c] sm:$0xf]
      %v1687 = vld [vmem:[%s1672 + $0x54] sm:$0xf]
      %v1688 = vld [vmem:[%s1672 + $0x58] sm:$0xf]
      %v1689 = vld [vmem:[%s1672 + $0x60] sm:$0xf]
      %v1690 = vld [vmem:[%s1672 + $0x64] sm:$0xf]
      %v1691 = vld [vmem:[%s1672 + $0x6c] sm:$0xf]
      %v1692 = vld [vmem:[%s1672 + $0x70] sm:$0xf]
      %v1693 = vld [vmem:[%s1672 + $0x78] sm:$0xf]
      %v1694 = vld [vmem:[%s1672 + $0x7c] sm:$0xf]
      %v1695 = vld [vmem:[%s1672 + $0x84] sm:$0xf]
      %v1696 = vld [vmem:[%s1672 + $0x88] sm:$0xf]
      %v1697 = vld [vmem:[%s1672 + $0x90] sm:$0xf]
      %v1698 = vld [vmem:[%s1672 + $0x94] sm:$0xf]
      %v1699 = vld [vmem:[%s1672 + $0x9c] sm:$0xf]
      %v1700 = vld [vmem:[%s1672 + $0xa0] sm:$0xf]
      %v1701 = vld [vmem:[%s1672 + $0xa8] sm:$0xf]
      %v1702 = vld [vmem:[%s1672 + $0xac] sm:$0xf]
      %v1703 = vld [vmem:[%s1672 + $0xb4] sm:$0xf]
      %v1704 = vld [vmem:[%s1672 + $0xb8] sm:$0xf]
      %s1705 = scalar_lea.vmem %s210, 6
      %v1706 = vld [vmem:[%s1705] sm:$0x3]
      %v1739 = vunpack.c.l.b16 %v1673
      %v1740 = vunpack.c.l.b16 %v1674
      %v1741 = vunpack.c.l.b16 %v1675
      %v1742 = vunpack.c.l.b16 %v1676
      %v1743 = vunpack.c.l.b16 %v1677
      %v1744 = vunpack.c.l.b16 %v1678
      %v1745 = vunpack.c.l.b16 %v1679
      %v1746 = vunpack.c.l.b16 %v1680
      %v1747 = vunpack.c.l.b16 %v1681
      %v1748 = vunpack.c.l.b16 %v1682
      %v1749 = vunpack.c.l.b16 %v1683
      %v1750 = vunpack.c.l.b16 %v1684
      %v1751 = vunpack.c.l.b16 %v1685
      %v1752 = vunpack.c.l.b16 %v1686
      %v1753 = vunpack.c.l.b16 %v1687
      %v1754 = vunpack.c.l.b16 %v1688
      %v1755 = vunpack.c.l.b16 %v1689
      %v1756 = vunpack.c.l.b16 %v1690
      %v1757 = vunpack.c.l.b16 %v1691
      %v1758 = vunpack.c.l.b16 %v1692
      %v1759 = vunpack.c.l.b16 %v1693
      %v1760 = vunpack.c.l.b16 %v1694
      %v1761 = vunpack.c.l.b16 %v1695
      %v1762 = vunpack.c.l.b16 %v1696
      %v1763 = vunpack.c.l.b16 %v1697
      %v1764 = vunpack.c.l.b16 %v1698
      %v1765 = vunpack.c.l.b16 %v1699
      %v1766 = vunpack.c.l.b16 %v1700
      %v1767 = vunpack.c.l.b16 %v1701
      %v1768 = vunpack.c.l.b16 %v1702
      %v1769 = vunpack.c.l.b16 %v1703
      %v1770 = vunpack.c.l.b16 %v1704
      %v1771 = vpack.c.b16 %v1740, %v1739
      %v1772 = vpack.c.b16 %v1742, %v1741
      %v1773 = vpack.c.b16 %v1744, %v1743
      %v1774 = vpack.c.b16 %v1746, %v1745
      %v1775 = vpack.c.b16 %v1748, %v1747
      %v1776 = vpack.c.b16 %v1750, %v1749
      %v1777 = vpack.c.b16 %v1752, %v1751
      %v1778 = vpack.c.b16 %v1754, %v1753
      %v1779 = vpack.c.b16 %v1756, %v1755
      %v1780 = vpack.c.b16 %v1758, %v1757
      %v1781 = vpack.c.b16 %v1760, %v1759
      %v1782 = vpack.c.b16 %v1762, %v1761
      %v1783 = vpack.c.b16 %v1764, %v1763
      %v1784 = vpack.c.b16 %v1766, %v1765
      %v1785 = vpack.c.b16 %v1768, %v1767
      %v1786 = vpack.c.b16 %v1770, %v1769
      %v1788 = vsel %vm709, %v1771, 0
      %v1791 = vsel %vm709, %v1772, 0
      %v1794 = vsel %vm709, %v1773, 0
      %v1797 = vsel %vm709, %v1774, 0
      %v1800 = vsel %vm709, %v1775, 0
      %v1803 = vsel %vm709, %v1776, 0
      %v1806 = vsel %vm709, %v1777, 0
      %v1809 = vsel %vm709, %v1778, 0
      %v1812 = vsel %vm709, %v1779, 0
      %v1815 = vsel %vm709, %v1780, 0
      %v1818 = vsel %vm709, %v1781, 0
      %v1821 = vsel %vm709, %v1782, 0
      %v1824 = vsel %vm709, %v1783, 0
      %v1827 = vsel %vm709, %v1784, 0
      %v1830 = vsel %vm709, %v1785, 0
      %v1833 = vsel %vm709, %v1786, 0
      %v1836 = vsel %vm758, %v1706, 0
      %1838 = vmatprep.subr.bf16.mxu0 0
      %1839 = vmatpush1.bf16.msra.mxu0 0
      %1840 = vmatprep.subr.bf16.mxu0 0
      %1841 = vmatpush1.bf16.msra.mxu0 0
      %1842 = vmatprep.subr.bf16.mxu0 0
      %1843 = vmatpush1.bf16.msra.mxu0 0
      %1844 = vmatprep.subr.bf16.mxu0 0
      %1845 = vmatpush1.bf16.msra.mxu0 0
      %1846 = vmatprep.subr.bf16.mxu0 0
      %1847 = vmatpush1.bf16.msra.mxu0 0
      %1848 = vmatprep.subr.bf16.mxu0 0
      %1849 = vmatpush1.bf16.msra.mxu0 0
      %1850 = vmatprep.subr.bf16.mxu0 0
      %1851 = vmatpush1.bf16.msra.mxu0 0
      %1852 = vmatprep.subr.bf16.mxu0 0
      %1853 = vmatpush1.bf16.msra.mxu0 %v1836
      %1854 = vmatprep.subr.bf16.mxu0 0
      %1855 = vmatpush2.bf16.msra.mxu0 0
      %1856 = vmatprep.subr.bf16.mxu0 0
      %1857 = vmatpush2.bf16.msra.mxu0 0
      %1858 = vmatprep.subr.bf16.mxu0 0
      %1859 = vmatpush2.bf16.msra.mxu0 0
      %1860 = vmatprep.subr.bf16.mxu0 0
      %1861 = vmatpush2.bf16.msra.mxu0 0
      %1862 = vmatprep.subr.bf16.mxu0 0
      %1863 = vmatpush2.bf16.msra.mxu0 0
      %1864 = vmatprep.subr.bf16.mxu0 0
      %1865 = vmatpush2.bf16.msra.mxu0 0
      %1866 = vmatprep.subr.bf16.mxu0 0
      %1867 = vmatpush2.bf16.msra.mxu0 0
      %1868 = vmatprep.subr.bf16.mxu0 0
      %1869 = vmatpush2.bf16.msra.mxu0 0
      %1870 = vmatprep.mubr.bf16.mxu0 0
      %1871 = vmatmul.mubr.bf16.gmra.mxu0 %v1788
      %v1872 = vpop.f32.mrf.mxu0
      %v1873 = vadd.f32 0.0, %v1872
      %v1874 = vpop.f32.mrf.mxu0
      %v1875 = vpop.f32.mrf.mxu0
      %v1876 = vadd.f32 0.0, %v1875
      %v1877 = vpop.f32.mrf.mxu0
      %1878 = vmatprep.mubr.bf16.mxu0 0
      %1879 = vmatmul.mubr.bf16.gmra.mxu0 %v1791
      %v1880 = vpop.f32.mrf.mxu0
      %v1881 = vadd.f32 0.0, %v1880
      %v1882 = vpop.f32.mrf.mxu0
      %v1883 = vpop.f32.mrf.mxu0
      %v1884 = vadd.f32 0.0, %v1883
      %v1885 = vpop.f32.mrf.mxu0
      %1886 = vmatprep.mubr.bf16.mxu0 0
      %1887 = vmatmul.mubr.bf16.gmra.mxu0 %v1794
      %v1888 = vpop.f32.mrf.mxu0
      %v1889 = vadd.f32 0.0, %v1888
      %v1890 = vpop.f32.mrf.mxu0
      %v1891 = vpop.f32.mrf.mxu0
      %v1892 = vadd.f32 0.0, %v1891
      %v1893 = vpop.f32.mrf.mxu0
      %1894 = vmatprep.mubr.bf16.mxu0 0
      %1895 = vmatmul.mubr.bf16.gmra.mxu0 %v1797
      %v1896 = vpop.f32.mrf.mxu0
      %v1897 = vadd.f32 0.0, %v1896
      %v1898 = vpop.f32.mrf.mxu0
      %v1899 = vpop.f32.mrf.mxu0
      %v1900 = vadd.f32 0.0, %v1899
      %v1901 = vpop.f32.mrf.mxu0
      %1902 = vmatprep.mubr.bf16.mxu0 0
      %1903 = vmatmul.mubr.bf16.gmra.mxu0 %v1800
      %v1904 = vpop.f32.mrf.mxu0
      %v1905 = vadd.f32 0.0, %v1904
      %v1906 = vpop.f32.mrf.mxu0
      %v1907 = vpop.f32.mrf.mxu0
      %v1908 = vadd.f32 0.0, %v1907
      %v1909 = vpop.f32.mrf.mxu0
      %1910 = vmatprep.mubr.bf16.mxu0 0
      %1911 = vmatmul.mubr.bf16.gmra.mxu0 %v1803
      %v1912 = vpop.f32.mrf.mxu0
      %v1913 = vadd.f32 0.0, %v1912
      %v1914 = vpop.f32.mrf.mxu0
      %v1915 = vpop.f32.mrf.mxu0
      %v1916 = vadd.f32 0.0, %v1915
      %v1917 = vpop.f32.mrf.mxu0
      %1918 = vmatprep.mubr.bf16.mxu0 0
      %1919 = vmatmul.mubr.bf16.gmra.mxu0 %v1806
      %v1920 = vpop.f32.mrf.mxu0
      %v1921 = vadd.f32 0.0, %v1920
      %v1922 = vpop.f32.mrf.mxu0
      %v1923 = vpop.f32.mrf.mxu0
      %v1924 = vadd.f32 0.0, %v1923
      %v1925 = vpop.f32.mrf.mxu0
      %1926 = vmatprep.mubr.bf16.mxu0 0
      %1927 = vmatmul.mubr.bf16.gmra.mxu0 %v1809
      %v1928 = vpop.f32.mrf.mxu0
      %v1929 = vadd.f32 0.0, %v1928
      %v1930 = vpop.f32.mrf.mxu0
      %v1931 = vpop.f32.mrf.mxu0
      %v1932 = vadd.f32 0.0, %v1931
      %v1933 = vpop.f32.mrf.mxu0
      %1934 = vmatprep.mubr.bf16.mxu0 0
      %1935 = vmatmul.mubr.bf16.gmra.mxu0 %v1812
      %v1936 = vpop.f32.mrf.mxu0
      %v1937 = vadd.f32 0.0, %v1936
      %v1938 = vpop.f32.mrf.mxu0
      %v1939 = vpop.f32.mrf.mxu0
      %v1940 = vadd.f32 0.0, %v1939
      %v1941 = vpop.f32.mrf.mxu0
      %1942 = vmatprep.mubr.bf16.mxu0 0
      %1943 = vmatmul.mubr.bf16.gmra.mxu0 %v1815
      %v1944 = vpop.f32.mrf.mxu0
      %v1945 = vadd.f32 0.0, %v1944
      %v1946 = vpop.f32.mrf.mxu0
      %v1947 = vpop.f32.mrf.mxu0
      %v1948 = vadd.f32 0.0, %v1947
      %v1949 = vpop.f32.mrf.mxu0
      %1950 = vmatprep.mubr.bf16.mxu0 0
      %1951 = vmatmul.mubr.bf16.gmra.mxu0 %v1818
      %v1952 = vpop.f32.mrf.mxu0
      %v1953 = vadd.f32 0.0, %v1952
      %v1954 = vpop.f32.mrf.mxu0
      %v1955 = vpop.f32.mrf.mxu0
      %v1956 = vadd.f32 0.0, %v1955
      %v1957 = vpop.f32.mrf.mxu0
      %1958 = vmatprep.mubr.bf16.mxu0 0
      %1959 = vmatmul.mubr.bf16.gmra.mxu0 %v1821
      %v1960 = vpop.f32.mrf.mxu0
      %v1961 = vadd.f32 0.0, %v1960
      %v1962 = vpop.f32.mrf.mxu0
      %v1963 = vpop.f32.mrf.mxu0
      %v1964 = vadd.f32 0.0, %v1963
      %v1965 = vpop.f32.mrf.mxu0
      %1966 = vmatprep.mubr.bf16.mxu0 0
      %1967 = vmatmul.mubr.bf16.gmra.mxu0 %v1824
      %v1968 = vpop.f32.mrf.mxu0
      %v1969 = vadd.f32 0.0, %v1968
      %v1970 = vpop.f32.mrf.mxu0
      %v1971 = vpop.f32.mrf.mxu0
      %v1972 = vadd.f32 0.0, %v1971
      %v1973 = vpop.f32.mrf.mxu0
      %1974 = vmatprep.mubr.bf16.mxu0 0
      %1975 = vmatmul.mubr.bf16.gmra.mxu0 %v1827
      %v1976 = vpop.f32.mrf.mxu0
      %v1977 = vadd.f32 0.0, %v1976
      %v1978 = vpop.f32.mrf.mxu0
      %v1979 = vpop.f32.mrf.mxu0
      %v1980 = vadd.f32 0.0, %v1979
      %v1981 = vpop.f32.mrf.mxu0
      %1982 = vmatprep.mubr.bf16.mxu0 0
      %1983 = vmatmul.mubr.bf16.gmra.mxu0 %v1830
      %v1984 = vpop.f32.mrf.mxu0
      %v1985 = vadd.f32 0.0, %v1984
      %v1986 = vpop.f32.mrf.mxu0
      %v1987 = vpop.f32.mrf.mxu0
      %v1988 = vadd.f32 0.0, %v1987
      %v1989 = vpop.f32.mrf.mxu0
      %1990 = vmatprep.mubr.bf16.mxu0 0
      %1991 = vmatmul.mubr.bf16.gmra.mxu0 %v1833
      %v1992 = vpop.f32.mrf.mxu0
      %v1993 = vadd.f32 0.0, %v1992
      %v1994 = vpop.f32.mrf.mxu0
      %v1995 = vpop.f32.mrf.mxu0
      %v1996 = vadd.f32 0.0, %v1995
      %v1997 = vpop.f32.mrf.mxu0
      %1998 = vdwg.mxu0
      %v1999 = vadd.f32 %v1640, %v1873
      %v2000 = vadd.f32 %v1641, %v1876
      %v2001 = vadd.f32 %v1642, %v1881
      %v2002 = vadd.f32 %v1643, %v1884
      %v2003 = vadd.f32 %v1644, %v1889
      %v2004 = vadd.f32 %v1645, %v1892
      %v2005 = vadd.f32 %v1646, %v1897
      %v2006 = vadd.f32 %v1647, %v1900
      %v2007 = vadd.f32 %v1648, %v1905
      %v2008 = vadd.f32 %v1649, %v1908
      %v2009 = vadd.f32 %v1650, %v1913
      %v2010 = vadd.f32 %v1651, %v1916
      %v2011 = vadd.f32 %v1652, %v1921
      %v2012 = vadd.f32 %v1653, %v1924
      %v2013 = vadd.f32 %v1654, %v1929
      %v2014 = vadd.f32 %v1655, %v1932
      %v2015 = vadd.f32 %v1656, %v1937
      %v2016 = vadd.f32 %v1657, %v1940
      %v2017 = vadd.f32 %v1658, %v1945
      %v2018 = vadd.f32 %v1659, %v1948
      %v2019 = vadd.f32 %v1660, %v1953
      %v2020 = vadd.f32 %v1661, %v1956
      %v2021 = vadd.f32 %v1662, %v1961
      %v2022 = vadd.f32 %v1663, %v1964
      %v2023 = vadd.f32 %v1664, %v1969
      %v2024 = vadd.f32 %v1665, %v1972
      %v2025 = vadd.f32 %v1666, %v1977
      %v2026 = vadd.f32 %v1667, %v1980
      %v2027 = vadd.f32 %v1668, %v1985
      %v2028 = vadd.f32 %v1669, %v1988
      %v2029 = vadd.f32 %v1670, %v1993
      %v2030 = vadd.f32 %v1671, %v1996
      %v2031 = vld [vmem:[%s1672] sm:$0xf]
      %v2032 = vld [vmem:[%s1672 + $0x4] sm:$0xf]
      %v2033 = vld [vmem:[%s1672 + $0x8] sm:$0x1]
      %v2034 = vld [vmem:[%s1672 + $0xc] sm:$0xf]
      %v2035 = vld [vmem:[%s1672 + $0x10] sm:$0xf]
      %v2036 = vld [vmem:[%s1672 + $0x14] sm:$0x1]
      %v2037 = vld [vmem:[%s1672 + $0x18] sm:$0xf]
      %v2038 = vld [vmem:[%s1672 + $0x1c] sm:$0xf]
      %v2039 = vld [vmem:[%s1672 + $0x20] sm:$0x1]
      %v2040 = vld [vmem:[%s1672 + $0x24] sm:$0xf]
      %v2041 = vld [vmem:[%s1672 + $0x28] sm:$0xf]
      %v2042 = vld [vmem:[%s1672 + $0x2c] sm:$0x1]
      %v2043 = vld [vmem:[%s1672 + $0x30] sm:$0xf]
      %v2044 = vld [vmem:[%s1672 + $0x34] sm:$0xf]
      %v2045 = vld [vmem:[%s1672 + $0x38] sm:$0x1]
      %v2046 = vld [vmem:[%s1672 + $0x3c] sm:$0xf]
      %v2047 = vld [vmem:[%s1672 + $0x40] sm:$0xf]
      %v2048 = vld [vmem:[%s1672 + $0x44] sm:$0x1]
      %v2049 = vld [vmem:[%s1672 + $0x48] sm:$0xf]
      %v2050 = vld [vmem:[%s1672 + $0x4c] sm:$0xf]
      %v2051 = vld [vmem:[%s1672 + $0x50] sm:$0x1]
      %v2052 = vld [vmem:[%s1672 + $0x54] sm:$0xf]
      %v2053 = vld [vmem:[%s1672 + $0x58] sm:$0xf]
      %v2054 = vld [vmem:[%s1672 + $0x5c] sm:$0x1]
      %v2055 = vld [vmem:[%s1672 + $0x60] sm:$0xf]
      %v2056 = vld [vmem:[%s1672 + $0x64] sm:$0xf]
      %v2057 = vld [vmem:[%s1672 + $0x68] sm:$0x1]
      %v2058 = vld [vmem:[%s1672 + $0x6c] sm:$0xf]
      %v2059 = vld [vmem:[%s1672 + $0x70] sm:$0xf]
      %v2060 = vld [vmem:[%s1672 + $0x74] sm:$0x1]
      %v2061 = vld [vmem:[%s1672 + $0x78] sm:$0xf]
      %v2062 = vld [vmem:[%s1672 + $0x7c] sm:$0xf]
      %v2063 = vld [vmem:[%s1672 + $0x80] sm:$0x1]
      %v2064 = vld [vmem:[%s1672 + $0x84] sm:$0xf]
      %v2065 = vld [vmem:[%s1672 + $0x88] sm:$0xf]
      %v2066 = vld [vmem:[%s1672 + $0x8c] sm:$0x1]
      %v2067 = vld [vmem:[%s1672 + $0x90] sm:$0xf]
      %v2068 = vld [vmem:[%s1672 + $0x94] sm:$0xf]
      %v2069 = vld [vmem:[%s1672 + $0x98] sm:$0x1]
      %v2070 = vld [vmem:[%s1672 + $0x9c] sm:$0xf]
      %v2071 = vld [vmem:[%s1672 + $0xa0] sm:$0xf]
      %v2072 = vld [vmem:[%s1672 + $0xa4] sm:$0x1]
      %v2073 = vld [vmem:[%s1672 + $0xa8] sm:$0xf]
      %v2074 = vld [vmem:[%s1672 + $0xac] sm:$0xf]
      %v2075 = vld [vmem:[%s1672 + $0xb0] sm:$0x1]
      %v2076 = vld [vmem:[%s1672 + $0xb4] sm:$0xf]
      %v2077 = vld [vmem:[%s1672 + $0xb8] sm:$0xf]
      %v2078 = vld [vmem:[%s1672 + $0xbc] sm:$0x1]
      %v2080 = vshrl.u32 %v2031, 16
      %v2082 = vrot.slane %v2080, 4
      %v2083 = vshll.u32 %v2031, 16
      %v2085 = vrot.slane %v2083, 5
      %v2086 = vor.u32 %v2082, %v2085
      %v2087 = vrot.slane %v2086, 4
      %v2089 = vshll.u32 %v2032, 16
      %v2091 = vrot.slane %v2089, 5
      %v2092 = vsel %vm274, %v2087, %v2091
      %v2093 = vshrl.u32 %v2032, 16
      %v2095 = vrot.slane %v2093, 4
      %v2096 = vor.u32 %v2095, %v2091
      %v2097 = vrot.slane %v2096, 4
      %v2099 = vshll.u32 %v2033, 16
      %v2101 = vrot.slane %v2099, 5
      %v2102 = vsel %vm274, %v2097, %v2101
      %v2104 = vshrl.u32 %v2034, 16
      %v2106 = vrot.slane %v2104, 4
      %v2107 = vshll.u32 %v2034, 16
      %v2109 = vrot.slane %v2107, 5
      %v2110 = vor.u32 %v2106, %v2109
      %v2111 = vrot.slane %v2110, 4
      %v2113 = vshll.u32 %v2035, 16
      %v2115 = vrot.slane %v2113, 5
      %v2116 = vsel %vm274, %v2111, %v2115
      %v2117 = vshrl.u32 %v2035, 16
      %v2119 = vrot.slane %v2117, 4
      %v2120 = vor.u32 %v2119, %v2115
      %v2121 = vrot.slane %v2120, 4
      %v2123 = vshll.u32 %v2036, 16
      %v2125 = vrot.slane %v2123, 5
      %v2126 = vsel %vm274, %v2121, %v2125
      %v2128 = vshrl.u32 %v2037, 16
      %v2130 = vrot.slane %v2128, 4
      %v2131 = vshll.u32 %v2037, 16
      %v2133 = vrot.slane %v2131, 5
      %v2134 = vor.u32 %v2130, %v2133
      %v2135 = vrot.slane %v2134, 4
      %v2137 = vshll.u32 %v2038, 16
      %v2139 = vrot.slane %v2137, 5
      %v2140 = vsel %vm274, %v2135, %v2139
      %v2141 = vshrl.u32 %v2038, 16
      %v2143 = vrot.slane %v2141, 4
      %v2144 = vor.u32 %v2143, %v2139
      %v2145 = vrot.slane %v2144, 4
      %v2147 = vshll.u32 %v2039, 16
      %v2149 = vrot.slane %v2147, 5
      %v2150 = vsel %vm274, %v2145, %v2149
      %v2152 = vshrl.u32 %v2040, 16
      %v2154 = vrot.slane %v2152, 4
      %v2155 = vshll.u32 %v2040, 16
      %v2157 = vrot.slane %v2155, 5
      %v2158 = vor.u32 %v2154, %v2157
      %v2159 = vrot.slane %v2158, 4
      %v2161 = vshll.u32 %v2041, 16
      %v2163 = vrot.slane %v2161, 5
      %v2164 = vsel %vm274, %v2159, %v2163
      %v2165 = vshrl.u32 %v2041, 16
      %v2167 = vrot.slane %v2165, 4
      %v2168 = vor.u32 %v2167, %v2163
      %v2169 = vrot.slane %v2168, 4
      %v2171 = vshll.u32 %v2042, 16
      %v2173 = vrot.slane %v2171, 5
      %v2174 = vsel %vm274, %v2169, %v2173
      %v2176 = vshrl.u32 %v2043, 16
      %v2178 = vrot.slane %v2176, 4
      %v2179 = vshll.u32 %v2043, 16
      %v2181 = vrot.slane %v2179, 5
      %v2182 = vor.u32 %v2178, %v2181
      %v2183 = vrot.slane %v2182, 4
      %v2185 = vshll.u32 %v2044, 16
      %v2187 = vrot.slane %v2185, 5
      %v2188 = vsel %vm274, %v2183, %v2187
      %v2189 = vshrl.u32 %v2044, 16
      %v2191 = vrot.slane %v2189, 4
      %v2192 = vor.u32 %v2191, %v2187
      %v2193 = vrot.slane %v2192, 4
      %v2195 = vshll.u32 %v2045, 16
      %v2197 = vrot.slane %v2195, 5
      %v2198 = vsel %vm274, %v2193, %v2197
      %v2200 = vshrl.u32 %v2046, 16
      %v2202 = vrot.slane %v2200, 4
      %v2203 = vshll.u32 %v2046, 16
      %v2205 = vrot.slane %v2203, 5
      %v2206 = vor.u32 %v2202, %v2205
      %v2207 = vrot.slane %v2206, 4
      %v2209 = vshll.u32 %v2047, 16
      %v2211 = vrot.slane %v2209, 5
      %v2212 = vsel %vm274, %v2207, %v2211
      %v2213 = vshrl.u32 %v2047, 16
      %v2215 = vrot.slane %v2213, 4
      %v2216 = vor.u32 %v2215, %v2211
      %v2217 = vrot.slane %v2216, 4
      %v2219 = vshll.u32 %v2048, 16
      %v2221 = vrot.slane %v2219, 5
      %v2222 = vsel %vm274, %v2217, %v2221
      %v2224 = vshrl.u32 %v2049, 16
      %v2226 = vrot.slane %v2224, 4
      %v2227 = vshll.u32 %v2049, 16
      %v2229 = vrot.slane %v2227, 5
      %v2230 = vor.u32 %v2226, %v2229
      %v2231 = vrot.slane %v2230, 4
      %v2233 = vshll.u32 %v2050, 16
      %v2235 = vrot.slane %v2233, 5
      %v2236 = vsel %vm274, %v2231, %v2235
      %v2237 = vshrl.u32 %v2050, 16
      %v2239 = vrot.slane %v2237, 4
      %v2240 = vor.u32 %v2239, %v2235
      %v2241 = vrot.slane %v2240, 4
      %v2243 = vshll.u32 %v2051, 16
      %v2245 = vrot.slane %v2243, 5
      %v2246 = vsel %vm274, %v2241, %v2245
      %v2248 = vshrl.u32 %v2052, 16
      %v2250 = vrot.slane %v2248, 4
      %v2251 = vshll.u32 %v2052, 16
      %v2253 = vrot.slane %v2251, 5
      %v2254 = vor.u32 %v2250, %v2253
      %v2255 = vrot.slane %v2254, 4
      %v2257 = vshll.u32 %v2053, 16
      %v2259 = vrot.slane %v2257, 5
      %v2260 = vsel %vm274, %v2255, %v2259
      %v2261 = vshrl.u32 %v2053, 16
      %v2263 = vrot.slane %v2261, 4
      %v2264 = vor.u32 %v2263, %v2259
      %v2265 = vrot.slane %v2264, 4
      %v2267 = vshll.u32 %v2054, 16
      %v2269 = vrot.slane %v2267, 5
      %v2270 = vsel %vm274, %v2265, %v2269
      %v2272 = vshrl.u32 %v2055, 16
      %v2274 = vrot.slane %v2272, 4
      %v2275 = vshll.u32 %v2055, 16
      %v2277 = vrot.slane %v2275, 5
      %v2278 = vor.u32 %v2274, %v2277
      %v2279 = vrot.slane %v2278, 4
      %v2281 = vshll.u32 %v2056, 16
      %v2283 = vrot.slane %v2281, 5
      %v2284 = vsel %vm274, %v2279, %v2283
      %v2285 = vshrl.u32 %v2056, 16
      %v2287 = vrot.slane %v2285, 4
      %v2288 = vor.u32 %v2287, %v2283
      %v2289 = vrot.slane %v2288, 4
      %v2291 = vshll.u32 %v2057, 16
      %v2293 = vrot.slane %v2291, 5
      %v2294 = vsel %vm274, %v2289, %v2293
      %v2296 = vshrl.u32 %v2058, 16
      %v2298 = vrot.slane %v2296, 4
      %v2299 = vshll.u32 %v2058, 16
      %v2301 = vrot.slane %v2299, 5
      %v2302 = vor.u32 %v2298, %v2301
      %v2303 = vrot.slane %v2302, 4
      %v2305 = vshll.u32 %v2059, 16
      %v2307 = vrot.slane %v2305, 5
      %v2308 = vsel %vm274, %v2303, %v2307
      %v2309 = vshrl.u32 %v2059, 16
      %v2311 = vrot.slane %v2309, 4
      %v2312 = vor.u32 %v2311, %v2307
      %v2313 = vrot.slane %v2312, 4
      %v2315 = vshll.u32 %v2060, 16
      %v2317 = vrot.slane %v2315, 5
      %v2318 = vsel %vm274, %v2313, %v2317
      %v2320 = vshrl.u32 %v2061, 16
      %v2322 = vrot.slane %v2320, 4
      %v2323 = vshll.u32 %v2061, 16
      %v2325 = vrot.slane %v2323, 5
      %v2326 = vor.u32 %v2322, %v2325
      %v2327 = vrot.slane %v2326, 4
      %v2329 = vshll.u32 %v2062, 16
      %v2331 = vrot.slane %v2329, 5
      %v2332 = vsel %vm274, %v2327, %v2331
      %v2333 = vshrl.u32 %v2062, 16
      %v2335 = vrot.slane %v2333, 4
      %v2336 = vor.u32 %v2335, %v2331
      %v2337 = vrot.slane %v2336, 4
      %v2339 = vshll.u32 %v2063, 16
      %v2341 = vrot.slane %v2339, 5
      %v2342 = vsel %vm274, %v2337, %v2341
      %v2344 = vshrl.u32 %v2064, 16
      %v2346 = vrot.slane %v2344, 4
      %v2347 = vshll.u32 %v2064, 16
      %v2349 = vrot.slane %v2347, 5
      %v2350 = vor.u32 %v2346, %v2349
      %v2351 = vrot.slane %v2350, 4
      %v2353 = vshll.u32 %v2065, 16
      %v2355 = vrot.slane %v2353, 5
      %v2356 = vsel %vm274, %v2351, %v2355
      %v2357 = vshrl.u32 %v2065, 16
      %v2359 = vrot.slane %v2357, 4
      %v2360 = vor.u32 %v2359, %v2355
      %v2361 = vrot.slane %v2360, 4
      %v2363 = vshll.u32 %v2066, 16
      %v2365 = vrot.slane %v2363, 5
      %v2366 = vsel %vm274, %v2361, %v2365
      %v2368 = vshrl.u32 %v2067, 16
      %v2370 = vrot.slane %v2368, 4
      %v2371 = vshll.u32 %v2067, 16
      %v2373 = vrot.slane %v2371, 5
      %v2374 = vor.u32 %v2370, %v2373
      %v2375 = vrot.slane %v2374, 4
      %v2377 = vshll.u32 %v2068, 16
      %v2379 = vrot.slane %v2377, 5
      %v2380 = vsel %vm274, %v2375, %v2379
      %v2381 = vshrl.u32 %v2068, 16
      %v2383 = vrot.slane %v2381, 4
      %v2384 = vor.u32 %v2383, %v2379
      %v2385 = vrot.slane %v2384, 4
      %v2387 = vshll.u32 %v2069, 16
      %v2389 = vrot.slane %v2387, 5
      %v2390 = vsel %vm274, %v2385, %v2389
      %v2392 = vshrl.u32 %v2070, 16
      %v2394 = vrot.slane %v2392, 4
      %v2395 = vshll.u32 %v2070, 16
      %v2397 = vrot.slane %v2395, 5
      %v2398 = vor.u32 %v2394, %v2397
      %v2399 = vrot.slane %v2398, 4
      %v2401 = vshll.u32 %v2071, 16
      %v2403 = vrot.slane %v2401, 5
      %v2404 = vsel %vm274, %v2399, %v2403
      %v2405 = vshrl.u32 %v2071, 16
      %v2407 = vrot.slane %v2405, 4
      %v2408 = vor.u32 %v2407, %v2403
      %v2409 = vrot.slane %v2408, 4
      %v2411 = vshll.u32 %v2072, 16
      %v2413 = vrot.slane %v2411, 5
      %v2414 = vsel %vm274, %v2409, %v2413
      %v2416 = vshrl.u32 %v2073, 16
      %v2418 = vrot.slane %v2416, 4
      %v2419 = vshll.u32 %v2073, 16
      %v2421 = vrot.slane %v2419, 5
      %v2422 = vor.u32 %v2418, %v2421
      %v2423 = vrot.slane %v2422, 4
      %v2425 = vshll.u32 %v2074, 16
      %v2427 = vrot.slane %v2425, 5
      %v2428 = vsel %vm274, %v2423, %v2427
      %v2429 = vshrl.u32 %v2074, 16
      %v2431 = vrot.slane %v2429, 4
      %v2432 = vor.u32 %v2431, %v2427
      %v2433 = vrot.slane %v2432, 4
      %v2435 = vshll.u32 %v2075, 16
      %v2437 = vrot.slane %v2435, 5
      %v2438 = vsel %vm274, %v2433, %v2437
      %v2440 = vshrl.u32 %v2076, 16
      %v2442 = vrot.slane %v2440, 4
      %v2443 = vshll.u32 %v2076, 16
      %v2445 = vrot.slane %v2443, 5
      %v2446 = vor.u32 %v2442, %v2445
      %v2447 = vrot.slane %v2446, 4
      %v2449 = vshll.u32 %v2077, 16
      %v2451 = vrot.slane %v2449, 5
      %v2452 = vsel %vm274, %v2447, %v2451
      %v2453 = vshrl.u32 %v2077, 16
      %v2455 = vrot.slane %v2453, 4
      %v2456 = vor.u32 %v2455, %v2451
      %v2457 = vrot.slane %v2456, 4
      %v2459 = vshll.u32 %v2078, 16
      %v2461 = vrot.slane %v2459, 5
      %v2462 = vsel %vm274, %v2457, %v2461
      %s2463 = scalar_lea.vmem %s210, 8
      %v2464 = vld [vmem:[%s2463] sm:$0x3]
      %v2465 = vunpack.c.l.b16 %v2092
      %v2466 = vunpack.c.l.b16 %v2102
      %v2467 = vunpack.c.l.b16 %v2116
      %v2468 = vunpack.c.l.b16 %v2126
      %v2469 = vunpack.c.l.b16 %v2140
      %v2470 = vunpack.c.l.b16 %v2150
      %v2471 = vunpack.c.l.b16 %v2164
      %v2472 = vunpack.c.l.b16 %v2174
      %v2473 = vunpack.c.l.b16 %v2188
      %v2474 = vunpack.c.l.b16 %v2198
      %v2475 = vunpack.c.l.b16 %v2212
      %v2476 = vunpack.c.l.b16 %v2222
      %v2477 = vunpack.c.l.b16 %v2236
      %v2478 = vunpack.c.l.b16 %v2246
      %v2479 = vunpack.c.l.b16 %v2260
      %v2480 = vunpack.c.l.b16 %v2270
      %v2481 = vunpack.c.l.b16 %v2284
      %v2482 = vunpack.c.l.b16 %v2294
      %v2483 = vunpack.c.l.b16 %v2308
      %v2484 = vunpack.c.l.b16 %v2318
      %v2485 = vunpack.c.l.b16 %v2332
      %v2486 = vunpack.c.l.b16 %v2342
      %v2487 = vunpack.c.l.b16 %v2356
      %v2488 = vunpack.c.l.b16 %v2366
      %v2489 = vunpack.c.l.b16 %v2380
      %v2490 = vunpack.c.l.b16 %v2390
      %v2491 = vunpack.c.l.b16 %v2404
      %v2492 = vunpack.c.l.b16 %v2414
      %v2493 = vunpack.c.l.b16 %v2428
      %v2494 = vunpack.c.l.b16 %v2438
      %v2495 = vunpack.c.l.b16 %v2452
      %v2496 = vunpack.c.l.b16 %v2462
      %v2497 = vpack.c.b16 %v2466, %v2465
      %v2498 = vpack.c.b16 %v2468, %v2467
      %v2499 = vpack.c.b16 %v2470, %v2469
      %v2500 = vpack.c.b16 %v2472, %v2471
      %v2501 = vpack.c.b16 %v2474, %v2473
      %v2502 = vpack.c.b16 %v2476, %v2475
      %v2503 = vpack.c.b16 %v2478, %v2477
      %v2504 = vpack.c.b16 %v2480, %v2479
      %v2505 = vpack.c.b16 %v2482, %v2481
      %v2506 = vpack.c.b16 %v2484, %v2483
      %v2507 = vpack.c.b16 %v2486, %v2485
      %v2508 = vpack.c.b16 %v2488, %v2487
      %v2509 = vpack.c.b16 %v2490, %v2489
      %v2510 = vpack.c.b16 %v2492, %v2491
      %v2511 = vpack.c.b16 %v2494, %v2493
      %v2512 = vpack.c.b16 %v2496, %v2495
      %v2514 = vsel %vm709, %v2497, 0
      %v2517 = vsel %vm709, %v2498, 0
      %v2520 = vsel %vm709, %v2499, 0
      %v2523 = vsel %vm709, %v2500, 0
      %v2526 = vsel %vm709, %v2501, 0
      %v2529 = vsel %vm709, %v2502, 0
      %v2532 = vsel %vm709, %v2503, 0
      %v2535 = vsel %vm709, %v2504, 0
      %v2538 = vsel %vm709, %v2505, 0
      %v2541 = vsel %vm709, %v2506, 0
      %v2544 = vsel %vm709, %v2507, 0
      %v2547 = vsel %vm709, %v2508, 0
      %v2550 = vsel %vm709, %v2509, 0
      %v2553 = vsel %vm709, %v2510, 0
      %v2556 = vsel %vm709, %v2511, 0
      %v2559 = vsel %vm709, %v2512, 0
      %v2562 = vsel %vm758, %v2464, 0
      %2564 = vmatprep.subr.bf16.mxu0 0
      %2565 = vmatpush1.bf16.msra.mxu0 0
      %2566 = vmatprep.subr.bf16.mxu0 0
      %2567 = vmatpush1.bf16.msra.mxu0 0
      %2568 = vmatprep.subr.bf16.mxu0 0
      %2569 = vmatpush1.bf16.msra.mxu0 0
      %2570 = vmatprep.subr.bf16.mxu0 0
      %2571 = vmatpush1.bf16.msra.mxu0 0
      %2572 = vmatprep.subr.bf16.mxu0 0
      %2573 = vmatpush1.bf16.msra.mxu0 0
      %2574 = vmatprep.subr.bf16.mxu0 0
      %2575 = vmatpush1.bf16.msra.mxu0 0
      %2576 = vmatprep.subr.bf16.mxu0 0
      %2577 = vmatpush1.bf16.msra.mxu0 0
      %2578 = vmatprep.subr.bf16.mxu0 0
      %2579 = vmatpush1.bf16.msra.mxu0 %v2562
      %2580 = vmatprep.subr.bf16.mxu0 0
      %2581 = vmatpush2.bf16.msra.mxu0 0
      %2582 = vmatprep.subr.bf16.mxu0 0
      %2583 = vmatpush2.bf16.msra.mxu0 0
      %2584 = vmatprep.subr.bf16.mxu0 0
      %2585 = vmatpush2.bf16.msra.mxu0 0
      %2586 = vmatprep.subr.bf16.mxu0 0
      %2587 = vmatpush2.bf16.msra.mxu0 0
      %2588 = vmatprep.subr.bf16.mxu0 0
      %2589 = vmatpush2.bf16.msra.mxu0 0
      %2590 = vmatprep.subr.bf16.mxu0 0
      %2591 = vmatpush2.bf16.msra.mxu0 0
      %2592 = vmatprep.subr.bf16.mxu0 0
      %2593 = vmatpush2.bf16.msra.mxu0 0
      %2594 = vmatprep.subr.bf16.mxu0 0
      %2595 = vmatpush2.bf16.msra.mxu0 0
      %2596 = vmatprep.mubr.bf16.mxu0 0
      %2597 = vmatmul.mubr.bf16.gmra.mxu0 %v2514
      %v2598 = vpop.f32.mrf.mxu0
      %v2599 = vadd.f32 0.0, %v2598
      %v2600 = vpop.f32.mrf.mxu0
      %v2601 = vpop.f32.mrf.mxu0
      %v2602 = vadd.f32 0.0, %v2601
      %v2603 = vpop.f32.mrf.mxu0
      %2604 = vmatprep.mubr.bf16.mxu0 0
      %2605 = vmatmul.mubr.bf16.gmra.mxu0 %v2517
      %v2606 = vpop.f32.mrf.mxu0
      %v2607 = vadd.f32 0.0, %v2606
      %v2608 = vpop.f32.mrf.mxu0
      %v2609 = vpop.f32.mrf.mxu0
      %v2610 = vadd.f32 0.0, %v2609
      %v2611 = vpop.f32.mrf.mxu0
      %2612 = vmatprep.mubr.bf16.mxu0 0
      %2613 = vmatmul.mubr.bf16.gmra.mxu0 %v2520
      %v2614 = vpop.f32.mrf.mxu0
      %v2615 = vadd.f32 0.0, %v2614
      %v2616 = vpop.f32.mrf.mxu0
      %v2617 = vpop.f32.mrf.mxu0
      %v2618 = vadd.f32 0.0, %v2617
      %v2619 = vpop.f32.mrf.mxu0
      %2620 = vmatprep.mubr.bf16.mxu0 0
      %2621 = vmatmul.mubr.bf16.gmra.mxu0 %v2523
      %v2622 = vpop.f32.mrf.mxu0
      %v2623 = vadd.f32 0.0, %v2622
      %v2624 = vpop.f32.mrf.mxu0
      %v2625 = vpop.f32.mrf.mxu0
      %v2626 = vadd.f32 0.0, %v2625
      %v2627 = vpop.f32.mrf.mxu0
      %2628 = vmatprep.mubr.bf16.mxu0 0
      %2629 = vmatmul.mubr.bf16.gmra.mxu0 %v2526
      %v2630 = vpop.f32.mrf.mxu0
      %v2631 = vadd.f32 0.0, %v2630
      %v2632 = vpop.f32.mrf.mxu0
      %v2633 = vpop.f32.mrf.mxu0
      %v2634 = vadd.f32 0.0, %v2633
      %v2635 = vpop.f32.mrf.mxu0
      %2636 = vmatprep.mubr.bf16.mxu0 0
      %2637 = vmatmul.mubr.bf16.gmra.mxu0 %v2529
      %v2638 = vpop.f32.mrf.mxu0
      %v2639 = vadd.f32 0.0, %v2638
      %v2640 = vpop.f32.mrf.mxu0
      %v2641 = vpop.f32.mrf.mxu0
      %v2642 = vadd.f32 0.0, %v2641
      %v2643 = vpop.f32.mrf.mxu0
      %2644 = vmatprep.mubr.bf16.mxu0 0
      %2645 = vmatmul.mubr.bf16.gmra.mxu0 %v2532
      %v2646 = vpop.f32.mrf.mxu0
      %v2647 = vadd.f32 0.0, %v2646
      %v2648 = vpop.f32.mrf.mxu0
      %v2649 = vpop.f32.mrf.mxu0
      %v2650 = vadd.f32 0.0, %v2649
      %v2651 = vpop.f32.mrf.mxu0
      %2652 = vmatprep.mubr.bf16.mxu0 0
      %2653 = vmatmul.mubr.bf16.gmra.mxu0 %v2535
      %v2654 = vpop.f32.mrf.mxu0
      %v2655 = vadd.f32 0.0, %v2654
      %v2656 = vpop.f32.mrf.mxu0
      %v2657 = vpop.f32.mrf.mxu0
      %v2658 = vadd.f32 0.0, %v2657
      %v2659 = vpop.f32.mrf.mxu0
      %2660 = vmatprep.mubr.bf16.mxu0 0
      %2661 = vmatmul.mubr.bf16.gmra.mxu0 %v2538
      %v2662 = vpop.f32.mrf.mxu0
      %v2663 = vadd.f32 0.0, %v2662
      %v2664 = vpop.f32.mrf.mxu0
      %v2665 = vpop.f32.mrf.mxu0
      %v2666 = vadd.f32 0.0, %v2665
      %v2667 = vpop.f32.mrf.mxu0
      %2668 = vmatprep.mubr.bf16.mxu0 0
      %2669 = vmatmul.mubr.bf16.gmra.mxu0 %v2541
      %v2670 = vpop.f32.mrf.mxu0
      %v2671 = vadd.f32 0.0, %v2670
      %v2672 = vpop.f32.mrf.mxu0
      %v2673 = vpop.f32.mrf.mxu0
      %v2674 = vadd.f32 0.0, %v2673
      %v2675 = vpop.f32.mrf.mxu0
      %2676 = vmatprep.mubr.bf16.mxu0 0
      %2677 = vmatmul.mubr.bf16.gmra.mxu0 %v2544
      %v2678 = vpop.f32.mrf.mxu0
      %v2679 = vadd.f32 0.0, %v2678
      %v2680 = vpop.f32.mrf.mxu0
      %v2681 = vpop.f32.mrf.mxu0
      %v2682 = vadd.f32 0.0, %v2681
      %v2683 = vpop.f32.mrf.mxu0
      %2684 = vmatprep.mubr.bf16.mxu0 0
      %2685 = vmatmul.mubr.bf16.gmra.mxu0 %v2547
      %v2686 = vpop.f32.mrf.mxu0
      %v2687 = vadd.f32 0.0, %v2686
      %v2688 = vpop.f32.mrf.mxu0
      %v2689 = vpop.f32.mrf.mxu0
      %v2690 = vadd.f32 0.0, %v2689
      %v2691 = vpop.f32.mrf.mxu0
      %2692 = vmatprep.mubr.bf16.mxu0 0
      %2693 = vmatmul.mubr.bf16.gmra.mxu0 %v2550
      %v2694 = vpop.f32.mrf.mxu0
      %v2695 = vadd.f32 0.0, %v2694
      %v2696 = vpop.f32.mrf.mxu0
      %v2697 = vpop.f32.mrf.mxu0
      %v2698 = vadd.f32 0.0, %v2697
      %v2699 = vpop.f32.mrf.mxu0
      %2700 = vmatprep.mubr.bf16.mxu0 0
      %2701 = vmatmul.mubr.bf16.gmra.mxu0 %v2553
      %v2702 = vpop.f32.mrf.mxu0
      %v2703 = vadd.f32 0.0, %v2702
      %v2704 = vpop.f32.mrf.mxu0
      %v2705 = vpop.f32.mrf.mxu0
      %v2706 = vadd.f32 0.0, %v2705
      %v2707 = vpop.f32.mrf.mxu0
      %2708 = vmatprep.mubr.bf16.mxu0 0
      %2709 = vmatmul.mubr.bf16.gmra.mxu0 %v2556
      %v2710 = vpop.f32.mrf.mxu0
      %v2711 = vadd.f32 0.0, %v2710
      %v2712 = vpop.f32.mrf.mxu0
      %v2713 = vpop.f32.mrf.mxu0
      %v2714 = vadd.f32 0.0, %v2713
      %v2715 = vpop.f32.mrf.mxu0
      %2716 = vmatprep.mubr.bf16.mxu0 0
      %2717 = vmatmul.mubr.bf16.gmra.mxu0 %v2559
      %v2718 = vpop.f32.mrf.mxu0
      %v2719 = vadd.f32 0.0, %v2718
      %v2720 = vpop.f32.mrf.mxu0
      %v2721 = vpop.f32.mrf.mxu0
      %v2722 = vadd.f32 0.0, %v2721
      %v2723 = vpop.f32.mrf.mxu0
      %2724 = vdwg.mxu0
      %v2725 = vadd.f32 %v1999, %v2599
      %v2726 = vadd.f32 %v2000, %v2602
      %v2727 = vadd.f32 %v2001, %v2607
      %v2728 = vadd.f32 %v2002, %v2610
      %v2729 = vadd.f32 %v2003, %v2615
      %v2730 = vadd.f32 %v2004, %v2618
      %v2731 = vadd.f32 %v2005, %v2623
      %v2732 = vadd.f32 %v2006, %v2626
      %v2733 = vadd.f32 %v2007, %v2631
      %v2734 = vadd.f32 %v2008, %v2634
      %v2735 = vadd.f32 %v2009, %v2639
      %v2736 = vadd.f32 %v2010, %v2642
      %v2737 = vadd.f32 %v2011, %v2647
      %v2738 = vadd.f32 %v2012, %v2650
      %v2739 = vadd.f32 %v2013, %v2655
      %v2740 = vadd.f32 %v2014, %v2658
      %v2741 = vadd.f32 %v2015, %v2663
      %v2742 = vadd.f32 %v2016, %v2666
      %v2743 = vadd.f32 %v2017, %v2671
      %v2744 = vadd.f32 %v2018, %v2674
      %v2745 = vadd.f32 %v2019, %v2679
      %v2746 = vadd.f32 %v2020, %v2682
      %v2747 = vadd.f32 %v2021, %v2687
      %v2748 = vadd.f32 %v2022, %v2690
      %v2749 = vadd.f32 %v2023, %v2695
      %v2750 = vadd.f32 %v2024, %v2698
      %v2751 = vadd.f32 %v2025, %v2703
      %v2752 = vadd.f32 %v2026, %v2706
      %v2753 = vadd.f32 %v2027, %v2711
      %v2754 = vadd.f32 %v2028, %v2714
      %v2755 = vadd.f32 %v2029, %v2719
      %v2756 = vadd.f32 %v2030, %v2722
      %v2757 = vld [vmem:[%s1672] sm:$0xe]
      %v2758 = vld [vmem:[%s1672 + $0xc] sm:$0xe]
      %v2759 = vld [vmem:[%s1672 + $0x18] sm:$0xe]
      %v2760 = vld [vmem:[%s1672 + $0x24] sm:$0xe]
      %v2761 = vld [vmem:[%s1672 + $0x30] sm:$0xe]
      %v2762 = vld [vmem:[%s1672 + $0x3c] sm:$0xe]
      %v2763 = vld [vmem:[%s1672 + $0x48] sm:$0xe]
      %v2764 = vld [vmem:[%s1672 + $0x54] sm:$0xe]
      %v2765 = vld [vmem:[%s1672 + $0x60] sm:$0xe]
      %v2766 = vld [vmem:[%s1672 + $0x6c] sm:$0xe]
      %v2767 = vld [vmem:[%s1672 + $0x78] sm:$0xe]
      %v2768 = vld [vmem:[%s1672 + $0x84] sm:$0xe]
      %v2769 = vld [vmem:[%s1672 + $0x90] sm:$0xe]
      %v2770 = vld [vmem:[%s1672 + $0x9c] sm:$0xe]
      %v2771 = vld [vmem:[%s1672 + $0xa8] sm:$0xe]
      %v2772 = vld [vmem:[%s1672 + $0xb4] sm:$0xe]
      %v2821 = vrot.slane %v2757, 5
      %v2822 = vrot.slane %v2821, 4
      %v2823 = vrot.slane %v2032, 5
      %v2824 = vsel %vm1265, %v2822, %v2823
      %v2825 = vrot.slane %v2823, 4
      %v2826 = vrot.slane %v2033, 5
      %v2827 = vsel %vm1265, %v2825, %v2826
      %v2828 = vrot.slane %v2758, 5
      %v2829 = vrot.slane %v2828, 4
      %v2830 = vrot.slane %v2035, 5
      %v2831 = vsel %vm1265, %v2829, %v2830
      %v2832 = vrot.slane %v2830, 4
      %v2833 = vrot.slane %v2036, 5
      %v2834 = vsel %vm1265, %v2832, %v2833
      %v2835 = vrot.slane %v2759, 5
      %v2836 = vrot.slane %v2835, 4
      %v2837 = vrot.slane %v2038, 5
      %v2838 = vsel %vm1265, %v2836, %v2837
      %v2839 = vrot.slane %v2837, 4
      %v2840 = vrot.slane %v2039, 5
      %v2841 = vsel %vm1265, %v2839, %v2840
      %v2842 = vrot.slane %v2760, 5
      %v2843 = vrot.slane %v2842, 4
      %v2844 = vrot.slane %v2041, 5
      %v2845 = vsel %vm1265, %v2843, %v2844
      %v2846 = vrot.slane %v2844, 4
      %v2847 = vrot.slane %v2042, 5
      %v2848 = vsel %vm1265, %v2846, %v2847
      %v2849 = vrot.slane %v2761, 5
      %v2850 = vrot.slane %v2849, 4
      %v2851 = vrot.slane %v2044, 5
      %v2852 = vsel %vm1265, %v2850, %v2851
      %v2853 = vrot.slane %v2851, 4
      %v2854 = vrot.slane %v2045, 5
      %v2855 = vsel %vm1265, %v2853, %v2854
      %v2856 = vrot.slane %v2762, 5
      %v2857 = vrot.slane %v2856, 4
      %v2858 = vrot.slane %v2047, 5
      %v2859 = vsel %vm1265, %v2857, %v2858
      %v2860 = vrot.slane %v2858, 4
      %v2861 = vrot.slane %v2048, 5
      %v2862 = vsel %vm1265, %v2860, %v2861
      %v2863 = vrot.slane %v2763, 5
      %v2864 = vrot.slane %v2863, 4
      %v2865 = vrot.slane %v2050, 5
      %v2866 = vsel %vm1265, %v2864, %v2865
      %v2867 = vrot.slane %v2865, 4
      %v2868 = vrot.slane %v2051, 5
      %v2869 = vsel %vm1265, %v2867, %v2868
      %v2870 = vrot.slane %v2764, 5
      %v2871 = vrot.slane %v2870, 4
      %v2872 = vrot.slane %v2053, 5
      %v2873 = vsel %vm1265, %v2871, %v2872
      %v2874 = vrot.slane %v2872, 4
      %v2875 = vrot.slane %v2054, 5
      %v2876 = vsel %vm1265, %v2874, %v2875
      %v2877 = vrot.slane %v2765, 5
      %v2878 = vrot.slane %v2877, 4
      %v2879 = vrot.slane %v2056, 5
      %v2880 = vsel %vm1265, %v2878, %v2879
      %v2881 = vrot.slane %v2879, 4
      %v2882 = vrot.slane %v2057, 5
      %v2883 = vsel %vm1265, %v2881, %v2882
      %v2884 = vrot.slane %v2766, 5
      %v2885 = vrot.slane %v2884, 4
      %v2886 = vrot.slane %v2059, 5
      %v2887 = vsel %vm1265, %v2885, %v2886
      %v2888 = vrot.slane %v2886, 4
      %v2889 = vrot.slane %v2060, 5
      %v2890 = vsel %vm1265, %v2888, %v2889
      %v2891 = vrot.slane %v2767, 5
      %v2892 = vrot.slane %v2891, 4
      %v2893 = vrot.slane %v2062, 5
      %v2894 = vsel %vm1265, %v2892, %v2893
      %v2895 = vrot.slane %v2893, 4
      %v2896 = vrot.slane %v2063, 5
      %v2897 = vsel %vm1265, %v2895, %v2896
      %v2898 = vrot.slane %v2768, 5
      %v2899 = vrot.slane %v2898, 4
      %v2900 = vrot.slane %v2065, 5
      %v2901 = vsel %vm1265, %v2899, %v2900
      %v2902 = vrot.slane %v2900, 4
      %v2903 = vrot.slane %v2066, 5
      %v2904 = vsel %vm1265, %v2902, %v2903
      %v2905 = vrot.slane %v2769, 5
      %v2906 = vrot.slane %v2905, 4
      %v2907 = vrot.slane %v2068, 5
      %v2908 = vsel %vm1265, %v2906, %v2907
      %v2909 = vrot.slane %v2907, 4
      %v2910 = vrot.slane %v2069, 5
      %v2911 = vsel %vm1265, %v2909, %v2910
      %v2912 = vrot.slane %v2770, 5
      %v2913 = vrot.slane %v2912, 4
      %v2914 = vrot.slane %v2071, 5
      %v2915 = vsel %vm1265, %v2913, %v2914
      %v2916 = vrot.slane %v2914, 4
      %v2917 = vrot.slane %v2072, 5
      %v2918 = vsel %vm1265, %v2916, %v2917
      %v2919 = vrot.slane %v2771, 5
      %v2920 = vrot.slane %v2919, 4
      %v2921 = vrot.slane %v2074, 5
      %v2922 = vsel %vm1265, %v2920, %v2921
      %v2923 = vrot.slane %v2921, 4
      %v2924 = vrot.slane %v2075, 5
      %v2925 = vsel %vm1265, %v2923, %v2924
      %v2926 = vrot.slane %v2772, 5
      %v2927 = vrot.slane %v2926, 4
      %v2928 = vrot.slane %v2077, 5
      %v2929 = vsel %vm1265, %v2927, %v2928
      %v2930 = vrot.slane %v2928, 4
      %v2931 = vrot.slane %v2078, 5
      %v2932 = vsel %vm1265, %v2930, %v2931
      %s2933 = scalar_lea.vmem %s210, 10
      %v2934 = vld [vmem:[%s2933] sm:$0x3]
      %v2935 = vunpack.c.l.b16 %v2824
      %v2936 = vunpack.c.l.b16 %v2827
      %v2937 = vunpack.c.l.b16 %v2831
      %v2938 = vunpack.c.l.b16 %v2834
      %v2939 = vunpack.c.l.b16 %v2838
      %v2940 = vunpack.c.l.b16 %v2841
      %v2941 = vunpack.c.l.b16 %v2845
      %v2942 = vunpack.c.l.b16 %v2848
      %v2943 = vunpack.c.l.b16 %v2852
      %v2944 = vunpack.c.l.b16 %v2855
      %v2945 = vunpack.c.l.b16 %v2859
      %v2946 = vunpack.c.l.b16 %v2862
      %v2947 = vunpack.c.l.b16 %v2866
      %v2948 = vunpack.c.l.b16 %v2869
      %v2949 = vunpack.c.l.b16 %v2873
      %v2950 = vunpack.c.l.b16 %v2876
      %v2951 = vunpack.c.l.b16 %v2880
      %v2952 = vunpack.c.l.b16 %v2883
      %v2953 = vunpack.c.l.b16 %v2887
      %v2954 = vunpack.c.l.b16 %v2890
      %v2955 = vunpack.c.l.b16 %v2894
      %v2956 = vunpack.c.l.b16 %v2897
      %v2957 = vunpack.c.l.b16 %v2901
      %v2958 = vunpack.c.l.b16 %v2904
      %v2959 = vunpack.c.l.b16 %v2908
      %v2960 = vunpack.c.l.b16 %v2911
      %v2961 = vunpack.c.l.b16 %v2915
      %v2962 = vunpack.c.l.b16 %v2918
      %v2963 = vunpack.c.l.b16 %v2922
      %v2964 = vunpack.c.l.b16 %v2925
      %v2965 = vunpack.c.l.b16 %v2929
      %v2966 = vunpack.c.l.b16 %v2932
      %v2967 = vpack.c.b16 %v2936, %v2935
      %v2968 = vpack.c.b16 %v2938, %v2937
      %v2969 = vpack.c.b16 %v2940, %v2939
      %v2970 = vpack.c.b16 %v2942, %v2941
      %v2971 = vpack.c.b16 %v2944, %v2943
      %v2972 = vpack.c.b16 %v2946, %v2945
      %v2973 = vpack.c.b16 %v2948, %v2947
      %v2974 = vpack.c.b16 %v2950, %v2949
      %v2975 = vpack.c.b16 %v2952, %v2951
      %v2976 = vpack.c.b16 %v2954, %v2953
      %v2977 = vpack.c.b16 %v2956, %v2955
      %v2978 = vpack.c.b16 %v2958, %v2957
      %v2979 = vpack.c.b16 %v2960, %v2959
      %v2980 = vpack.c.b16 %v2962, %v2961
      %v2981 = vpack.c.b16 %v2964, %v2963
      %v2982 = vpack.c.b16 %v2966, %v2965
      %v2984 = vsel %vm709, %v2967, 0
      %v2987 = vsel %vm709, %v2968, 0
      %v2990 = vsel %vm709, %v2969, 0
      %v2993 = vsel %vm709, %v2970, 0
      %v2996 = vsel %vm709, %v2971, 0
      %v2999 = vsel %vm709, %v2972, 0
      %v3002 = vsel %vm709, %v2973, 0
      %v3005 = vsel %vm709, %v2974, 0
      %v3008 = vsel %vm709, %v2975, 0
      %v3011 = vsel %vm709, %v2976, 0
      %v3014 = vsel %vm709, %v2977, 0
      %v3017 = vsel %vm709, %v2978, 0
      %v3020 = vsel %vm709, %v2979, 0
      %v3023 = vsel %vm709, %v2980, 0
      %v3026 = vsel %vm709, %v2981, 0
      %v3029 = vsel %vm709, %v2982, 0
      %v3032 = vsel %vm758, %v2934, 0
      %3034 = vmatprep.subr.bf16.mxu0 0
      %3035 = vmatpush1.bf16.msra.mxu0 0
      %3036 = vmatprep.subr.bf16.mxu0 0
      %3037 = vmatpush1.bf16.msra.mxu0 0
      %3038 = vmatprep.subr.bf16.mxu0 0
      %3039 = vmatpush1.bf16.msra.mxu0 0
      %3040 = vmatprep.subr.bf16.mxu0 0
      %3041 = vmatpush1.bf16.msra.mxu0 0
      %3042 = vmatprep.subr.bf16.mxu0 0
      %3043 = vmatpush1.bf16.msra.mxu0 0
      %3044 = vmatprep.subr.bf16.mxu0 0
      %3045 = vmatpush1.bf16.msra.mxu0 0
      %3046 = vmatprep.subr.bf16.mxu0 0
      %3047 = vmatpush1.bf16.msra.mxu0 0
      %3048 = vmatprep.subr.bf16.mxu0 0
      %3049 = vmatpush1.bf16.msra.mxu0 %v3032
      %3050 = vmatprep.subr.bf16.mxu0 0
      %3051 = vmatpush2.bf16.msra.mxu0 0
      %3052 = vmatprep.subr.bf16.mxu0 0
      %3053 = vmatpush2.bf16.msra.mxu0 0
      %3054 = vmatprep.subr.bf16.mxu0 0
      %3055 = vmatpush2.bf16.msra.mxu0 0
      %3056 = vmatprep.subr.bf16.mxu0 0
      %3057 = vmatpush2.bf16.msra.mxu0 0
      %3058 = vmatprep.subr.bf16.mxu0 0
      %3059 = vmatpush2.bf16.msra.mxu0 0
      %3060 = vmatprep.subr.bf16.mxu0 0
      %3061 = vmatpush2.bf16.msra.mxu0 0
      %3062 = vmatprep.subr.bf16.mxu0 0
      %3063 = vmatpush2.bf16.msra.mxu0 0
      %3064 = vmatprep.subr.bf16.mxu0 0
      %3065 = vmatpush2.bf16.msra.mxu0 0
      %3066 = vmatprep.mubr.bf16.mxu0 0
      %3067 = vmatmul.mubr.bf16.gmra.mxu0 %v2984
      %v3068 = vpop.f32.mrf.mxu0
      %v3069 = vadd.f32 0.0, %v3068
      %v3070 = vpop.f32.mrf.mxu0
      %v3071 = vpop.f32.mrf.mxu0
      %v3072 = vadd.f32 0.0, %v3071
      %v3073 = vpop.f32.mrf.mxu0
      %3074 = vmatprep.mubr.bf16.mxu0 0
      %3075 = vmatmul.mubr.bf16.gmra.mxu0 %v2987
      %v3076 = vpop.f32.mrf.mxu0
      %v3077 = vadd.f32 0.0, %v3076
      %v3078 = vpop.f32.mrf.mxu0
      %v3079 = vpop.f32.mrf.mxu0
      %v3080 = vadd.f32 0.0, %v3079
      %v3081 = vpop.f32.mrf.mxu0
      %3082 = vmatprep.mubr.bf16.mxu0 0
      %3083 = vmatmul.mubr.bf16.gmra.mxu0 %v2990
      %v3084 = vpop.f32.mrf.mxu0
      %v3085 = vadd.f32 0.0, %v3084
      %v3086 = vpop.f32.mrf.mxu0
      %v3087 = vpop.f32.mrf.mxu0
      %v3088 = vadd.f32 0.0, %v3087
      %v3089 = vpop.f32.mrf.mxu0
      %3090 = vmatprep.mubr.bf16.mxu0 0
      %3091 = vmatmul.mubr.bf16.gmra.mxu0 %v2993
      %v3092 = vpop.f32.mrf.mxu0
      %v3093 = vadd.f32 0.0, %v3092
      %v3094 = vpop.f32.mrf.mxu0
      %v3095 = vpop.f32.mrf.mxu0
      %v3096 = vadd.f32 0.0, %v3095
      %v3097 = vpop.f32.mrf.mxu0
      %3098 = vmatprep.mubr.bf16.mxu0 0
      %3099 = vmatmul.mubr.bf16.gmra.mxu0 %v2996
      %v3100 = vpop.f32.mrf.mxu0
      %v3101 = vadd.f32 0.0, %v3100
      %v3102 = vpop.f32.mrf.mxu0
      %v3103 = vpop.f32.mrf.mxu0
      %v3104 = vadd.f32 0.0, %v3103
      %v3105 = vpop.f32.mrf.mxu0
      %3106 = vmatprep.mubr.bf16.mxu0 0
      %3107 = vmatmul.mubr.bf16.gmra.mxu0 %v2999
      %v3108 = vpop.f32.mrf.mxu0
      %v3109 = vadd.f32 0.0, %v3108
      %v3110 = vpop.f32.mrf.mxu0
      %v3111 = vpop.f32.mrf.mxu0
      %v3112 = vadd.f32 0.0, %v3111
      %v3113 = vpop.f32.mrf.mxu0
      %3114 = vmatprep.mubr.bf16.mxu0 0
      %3115 = vmatmul.mubr.bf16.gmra.mxu0 %v3002
      %v3116 = vpop.f32.mrf.mxu0
      %v3117 = vadd.f32 0.0, %v3116
      %v3118 = vpop.f32.mrf.mxu0
      %v3119 = vpop.f32.mrf.mxu0
      %v3120 = vadd.f32 0.0, %v3119
      %v3121 = vpop.f32.mrf.mxu0
      %3122 = vmatprep.mubr.bf16.mxu0 0
      %3123 = vmatmul.mubr.bf16.gmra.mxu0 %v3005
      %v3124 = vpop.f32.mrf.mxu0
      %v3125 = vadd.f32 0.0, %v3124
      %v3126 = vpop.f32.mrf.mxu0
      %v3127 = vpop.f32.mrf.mxu0
      %v3128 = vadd.f32 0.0, %v3127
      %v3129 = vpop.f32.mrf.mxu0
      %3130 = vmatprep.mubr.bf16.mxu0 0
      %3131 = vmatmul.mubr.bf16.gmra.mxu0 %v3008
      %v3132 = vpop.f32.mrf.mxu0
      %v3133 = vadd.f32 0.0, %v3132
      %v3134 = vpop.f32.mrf.mxu0
      %v3135 = vpop.f32.mrf.mxu0
      %v3136 = vadd.f32 0.0, %v3135
      %v3137 = vpop.f32.mrf.mxu0
      %3138 = vmatprep.mubr.bf16.mxu0 0
      %3139 = vmatmul.mubr.bf16.gmra.mxu0 %v3011
      %v3140 = vpop.f32.mrf.mxu0
      %v3141 = vadd.f32 0.0, %v3140
      %v3142 = vpop.f32.mrf.mxu0
      %v3143 = vpop.f32.mrf.mxu0
      %v3144 = vadd.f32 0.0, %v3143
      %v3145 = vpop.f32.mrf.mxu0
      %3146 = vmatprep.mubr.bf16.mxu0 0
      %3147 = vmatmul.mubr.bf16.gmra.mxu0 %v3014
      %v3148 = vpop.f32.mrf.mxu0
      %v3149 = vadd.f32 0.0, %v3148
      %v3150 = vpop.f32.mrf.mxu0
      %v3151 = vpop.f32.mrf.mxu0
      %v3152 = vadd.f32 0.0, %v3151
      %v3153 = vpop.f32.mrf.mxu0
      %3154 = vmatprep.mubr.bf16.mxu0 0
      %3155 = vmatmul.mubr.bf16.gmra.mxu0 %v3017
      %v3156 = vpop.f32.mrf.mxu0
      %v3157 = vadd.f32 0.0, %v3156
      %v3158 = vpop.f32.mrf.mxu0
      %v3159 = vpop.f32.mrf.mxu0
      %v3160 = vadd.f32 0.0, %v3159
      %v3161 = vpop.f32.mrf.mxu0
      %3162 = vmatprep.mubr.bf16.mxu0 0
      %3163 = vmatmul.mubr.bf16.gmra.mxu0 %v3020
      %v3164 = vpop.f32.mrf.mxu0
      %v3165 = vadd.f32 0.0, %v3164
      %v3166 = vpop.f32.mrf.mxu0
      %v3167 = vpop.f32.mrf.mxu0
      %v3168 = vadd.f32 0.0, %v3167
      %v3169 = vpop.f32.mrf.mxu0
      %3170 = vmatprep.mubr.bf16.mxu0 0
      %3171 = vmatmul.mubr.bf16.gmra.mxu0 %v3023
      %v3172 = vpop.f32.mrf.mxu0
      %v3173 = vadd.f32 0.0, %v3172
      %v3174 = vpop.f32.mrf.mxu0
      %v3175 = vpop.f32.mrf.mxu0
      %v3176 = vadd.f32 0.0, %v3175
      %v3177 = vpop.f32.mrf.mxu0
      %3178 = vmatprep.mubr.bf16.mxu0 0
      %3179 = vmatmul.mubr.bf16.gmra.mxu0 %v3026
      %v3180 = vpop.f32.mrf.mxu0
      %v3181 = vadd.f32 0.0, %v3180
      %v3182 = vpop.f32.mrf.mxu0
      %v3183 = vpop.f32.mrf.mxu0
      %v3184 = vadd.f32 0.0, %v3183
      %v3185 = vpop.f32.mrf.mxu0
      %3186 = vmatprep.mubr.bf16.mxu0 0
      %3187 = vmatmul.mubr.bf16.gmra.mxu0 %v3029
      %v3188 = vpop.f32.mrf.mxu0
      %v3189 = vadd.f32 0.0, %v3188
      %v3190 = vpop.f32.mrf.mxu0
      %v3191 = vpop.f32.mrf.mxu0
      %v3192 = vadd.f32 0.0, %v3191
      %v3193 = vpop.f32.mrf.mxu0
      %3194 = vdwg.mxu0
      %v3195 = vadd.f32 %v2725, %v3069
      %v3196 = vadd.f32 %v2726, %v3072
      %v3197 = vadd.f32 %v2727, %v3077
      %v3198 = vadd.f32 %v2728, %v3080
      %v3199 = vadd.f32 %v2729, %v3085
      %v3200 = vadd.f32 %v2730, %v3088
      %v3201 = vadd.f32 %v2731, %v3093
      %v3202 = vadd.f32 %v2732, %v3096
      %v3203 = vadd.f32 %v2733, %v3101
      %v3204 = vadd.f32 %v2734, %v3104
      %v3205 = vadd.f32 %v2735, %v3109
      %v3206 = vadd.f32 %v2736, %v3112
      %v3207 = vadd.f32 %v2737, %v3117
      %v3208 = vadd.f32 %v2738, %v3120
      %v3209 = vadd.f32 %v2739, %v3125
      %v3210 = vadd.f32 %v2740, %v3128
      %v3211 = vadd.f32 %v2741, %v3133
      %v3212 = vadd.f32 %v2742, %v3136
      %v3213 = vadd.f32 %v2743, %v3141
      %v3214 = vadd.f32 %v2744, %v3144
      %v3215 = vadd.f32 %v2745, %v3149
      %v3216 = vadd.f32 %v2746, %v3152
      %v3217 = vadd.f32 %v2747, %v3157
      %v3218 = vadd.f32 %v2748, %v3160
      %v3219 = vadd.f32 %v2749, %v3165
      %v3220 = vadd.f32 %v2750, %v3168
      %v3221 = vadd.f32 %v2751, %v3173
      %v3222 = vadd.f32 %v2752, %v3176
      %v3223 = vadd.f32 %v2753, %v3181
      %v3224 = vadd.f32 %v2754, %v3184
      %v3225 = vadd.f32 %v2755, %v3189
      %v3226 = vadd.f32 %v2756, %v3192
      %s3227 = scalar_lea.vmem %s206, 24
      %v3228 = vld [vmem:[%s3227] sm:$0xf]
      %v3229 = vld [vmem:[%s3227 + $0x4] sm:$0xf]
      %v3230 = vld [vmem:[%s3227 + $0xc] sm:$0xf]
      %v3231 = vld [vmem:[%s3227 + $0x10] sm:$0xf]
      %v3232 = vld [vmem:[%s3227 + $0x18] sm:$0xf]
      %v3233 = vld [vmem:[%s3227 + $0x1c] sm:$0xf]
      %v3234 = vld [vmem:[%s3227 + $0x24] sm:$0xf]
      %v3235 = vld [vmem:[%s3227 + $0x28] sm:$0xf]
      %v3236 = vld [vmem:[%s3227 + $0x30] sm:$0xf]
      %v3237 = vld [vmem:[%s3227 + $0x34] sm:$0xf]
      %v3238 = vld [vmem:[%s3227 + $0x3c] sm:$0xf]
      %v3239 = vld [vmem:[%s3227 + $0x40] sm:$0xf]
      %v3240 = vld [vmem:[%s3227 + $0x48] sm:$0xf]
      %v3241 = vld [vmem:[%s3227 + $0x4c] sm:$0xf]
      %v3242 = vld [vmem:[%s3227 + $0x54] sm:$0xf]
      %v3243 = vld [vmem:[%s3227 + $0x58] sm:$0xf]
      %v3244 = vld [vmem:[%s3227 + $0x60] sm:$0xf]
      %v3245 = vld [vmem:[%s3227 + $0x64] sm:$0xf]
      %v3246 = vld [vmem:[%s3227 + $0x6c] sm:$0xf]
      %v3247 = vld [vmem:[%s3227 + $0x70] sm:$0xf]
      %v3248 = vld [vmem:[%s3227 + $0x78] sm:$0xf]
      %v3249 = vld [vmem:[%s3227 + $0x7c] sm:$0xf]
      %v3250 = vld [vmem:[%s3227 + $0x84] sm:$0xf]
      %v3251 = vld [vmem:[%s3227 + $0x88] sm:$0xf]
      %v3252 = vld [vmem:[%s3227 + $0x90] sm:$0xf]
      %v3253 = vld [vmem:[%s3227 + $0x94] sm:$0xf]
      %v3254 = vld [vmem:[%s3227 + $0x9c] sm:$0xf]
      %v3255 = vld [vmem:[%s3227 + $0xa0] sm:$0xf]
      %v3256 = vld [vmem:[%s3227 + $0xa8] sm:$0xf]
      %v3257 = vld [vmem:[%s3227 + $0xac] sm:$0xf]
      %v3258 = vld [vmem:[%s3227 + $0xb4] sm:$0xf]
      %v3259 = vld [vmem:[%s3227 + $0xb8] sm:$0xf]
      %s3260 = scalar_lea.vmem %s210, 12
      %v3261 = vld [vmem:[%s3260] sm:$0x3]
      %v3294 = vunpack.c.l.b16 %v3228
      %v3295 = vunpack.c.l.b16 %v3229
      %v3296 = vunpack.c.l.b16 %v3230
      %v3297 = vunpack.c.l.b16 %v3231
      %v3298 = vunpack.c.l.b16 %v3232
      %v3299 = vunpack.c.l.b16 %v3233
      %v3300 = vunpack.c.l.b16 %v3234
      %v3301 = vunpack.c.l.b16 %v3235
      %v3302 = vunpack.c.l.b16 %v3236
      %v3303 = vunpack.c.l.b16 %v3237
      %v3304 = vunpack.c.l.b16 %v3238
      %v3305 = vunpack.c.l.b16 %v3239
      %v3306 = vunpack.c.l.b16 %v3240
      %v3307 = vunpack.c.l.b16 %v3241
      %v3308 = vunpack.c.l.b16 %v3242
      %v3309 = vunpack.c.l.b16 %v3243
      %v3310 = vunpack.c.l.b16 %v3244
      %v3311 = vunpack.c.l.b16 %v3245
      %v3312 = vunpack.c.l.b16 %v3246
      %v3313 = vunpack.c.l.b16 %v3247
      %v3314 = vunpack.c.l.b16 %v3248
      %v3315 = vunpack.c.l.b16 %v3249
      %v3316 = vunpack.c.l.b16 %v3250
      %v3317 = vunpack.c.l.b16 %v3251
      %v3318 = vunpack.c.l.b16 %v3252
      %v3319 = vunpack.c.l.b16 %v3253
      %v3320 = vunpack.c.l.b16 %v3254
      %v3321 = vunpack.c.l.b16 %v3255
      %v3322 = vunpack.c.l.b16 %v3256
      %v3323 = vunpack.c.l.b16 %v3257
      %v3324 = vunpack.c.l.b16 %v3258
      %v3325 = vunpack.c.l.b16 %v3259
      %v3326 = vpack.c.b16 %v3295, %v3294
      %v3327 = vpack.c.b16 %v3297, %v3296
      %v3328 = vpack.c.b16 %v3299, %v3298
      %v3329 = vpack.c.b16 %v3301, %v3300
      %v3330 = vpack.c.b16 %v3303, %v3302
      %v3331 = vpack.c.b16 %v3305, %v3304
      %v3332 = vpack.c.b16 %v3307, %v3306
      %v3333 = vpack.c.b16 %v3309, %v3308
      %v3334 = vpack.c.b16 %v3311, %v3310
      %v3335 = vpack.c.b16 %v3313, %v3312
      %v3336 = vpack.c.b16 %v3315, %v3314
      %v3337 = vpack.c.b16 %v3317, %v3316
      %v3338 = vpack.c.b16 %v3319, %v3318
      %v3339 = vpack.c.b16 %v3321, %v3320
      %v3340 = vpack.c.b16 %v3323, %v3322
      %v3341 = vpack.c.b16 %v3325, %v3324
      %v3343 = vsel %vm709, %v3326, 0
      %v3346 = vsel %vm709, %v3327, 0
      %v3349 = vsel %vm709, %v3328, 0
      %v3352 = vsel %vm709, %v3329, 0
      %v3355 = vsel %vm709, %v3330, 0
      %v3358 = vsel %vm709, %v3331, 0
      %v3361 = vsel %vm709, %v3332, 0
      %v3364 = vsel %vm709, %v3333, 0
      %v3367 = vsel %vm709, %v3334, 0
      %v3370 = vsel %vm709, %v3335, 0
      %v3373 = vsel %vm709, %v3336, 0
      %v3376 = vsel %vm709, %v3337, 0
      %v3379 = vsel %vm709, %v3338, 0
      %v3382 = vsel %vm709, %v3339, 0
      %v3385 = vsel %vm709, %v3340, 0
      %v3388 = vsel %vm709, %v3341, 0
      %v3391 = vsel %vm758, %v3261, 0
      %3393 = vmatprep.subr.bf16.mxu0 0
      %3394 = vmatpush1.bf16.msra.mxu0 0
      %3395 = vmatprep.subr.bf16.mxu0 0
      %3396 = vmatpush1.bf16.msra.mxu0 0
      %3397 = vmatprep.subr.bf16.mxu0 0
      %3398 = vmatpush1.bf16.msra.mxu0 0
      %3399 = vmatprep.subr.bf16.mxu0 0
      %3400 = vmatpush1.bf16.msra.mxu0 0
      %3401 = vmatprep.subr.bf16.mxu0 0
      %3402 = vmatpush1.bf16.msra.mxu0 0
      %3403 = vmatprep.subr.bf16.mxu0 0
      %3404 = vmatpush1.bf16.msra.mxu0 0
      %3405 = vmatprep.subr.bf16.mxu0 0
      %3406 = vmatpush1.bf16.msra.mxu0 0
      %3407 = vmatprep.subr.bf16.mxu0 0
      %3408 = vmatpush1.bf16.msra.mxu0 %v3391
      %3409 = vmatprep.subr.bf16.mxu0 0
      %3410 = vmatpush2.bf16.msra.mxu0 0
      %3411 = vmatprep.subr.bf16.mxu0 0
      %3412 = vmatpush2.bf16.msra.mxu0 0
      %3413 = vmatprep.subr.bf16.mxu0 0
      %3414 = vmatpush2.bf16.msra.mxu0 0
      %3415 = vmatprep.subr.bf16.mxu0 0
      %3416 = vmatpush2.bf16.msra.mxu0 0
      %3417 = vmatprep.subr.bf16.mxu0 0
      %3418 = vmatpush2.bf16.msra.mxu0 0
      %3419 = vmatprep.subr.bf16.mxu0 0
      %3420 = vmatpush2.bf16.msra.mxu0 0
      %3421 = vmatprep.subr.bf16.mxu0 0
      %3422 = vmatpush2.bf16.msra.mxu0 0
      %3423 = vmatprep.subr.bf16.mxu0 0
      %3424 = vmatpush2.bf16.msra.mxu0 0
      %3425 = vmatprep.mubr.bf16.mxu0 0
      %3426 = vmatmul.mubr.bf16.gmra.mxu0 %v3343
      %v3427 = vpop.f32.mrf.mxu0
      %v3428 = vadd.f32 0.0, %v3427
      %v3429 = vpop.f32.mrf.mxu0
      %v3430 = vpop.f32.mrf.mxu0
      %v3431 = vadd.f32 0.0, %v3430
      %v3432 = vpop.f32.mrf.mxu0
      %3433 = vmatprep.mubr.bf16.mxu0 0
      %3434 = vmatmul.mubr.bf16.gmra.mxu0 %v3346
      %v3435 = vpop.f32.mrf.mxu0
      %v3436 = vadd.f32 0.0, %v3435
      %v3437 = vpop.f32.mrf.mxu0
      %v3438 = vpop.f32.mrf.mxu0
      %v3439 = vadd.f32 0.0, %v3438
      %v3440 = vpop.f32.mrf.mxu0
      %3441 = vmatprep.mubr.bf16.mxu0 0
      %3442 = vmatmul.mubr.bf16.gmra.mxu0 %v3349
      %v3443 = vpop.f32.mrf.mxu0
      %v3444 = vadd.f32 0.0, %v3443
      %v3445 = vpop.f32.mrf.mxu0
      %v3446 = vpop.f32.mrf.mxu0
      %v3447 = vadd.f32 0.0, %v3446
      %v3448 = vpop.f32.mrf.mxu0
      %3449 = vmatprep.mubr.bf16.mxu0 0
      %3450 = vmatmul.mubr.bf16.gmra.mxu0 %v3352
      %v3451 = vpop.f32.mrf.mxu0
      %v3452 = vadd.f32 0.0, %v3451
      %v3453 = vpop.f32.mrf.mxu0
      %v3454 = vpop.f32.mrf.mxu0
      %v3455 = vadd.f32 0.0, %v3454
      %v3456 = vpop.f32.mrf.mxu0
      %3457 = vmatprep.mubr.bf16.mxu0 0
      %3458 = vmatmul.mubr.bf16.gmra.mxu0 %v3355
      %v3459 = vpop.f32.mrf.mxu0
      %v3460 = vadd.f32 0.0, %v3459
      %v3461 = vpop.f32.mrf.mxu0
      %v3462 = vpop.f32.mrf.mxu0
      %v3463 = vadd.f32 0.0, %v3462
      %v3464 = vpop.f32.mrf.mxu0
      %3465 = vmatprep.mubr.bf16.mxu0 0
      %3466 = vmatmul.mubr.bf16.gmra.mxu0 %v3358
      %v3467 = vpop.f32.mrf.mxu0
      %v3468 = vadd.f32 0.0, %v3467
      %v3469 = vpop.f32.mrf.mxu0
      %v3470 = vpop.f32.mrf.mxu0
      %v3471 = vadd.f32 0.0, %v3470
      %v3472 = vpop.f32.mrf.mxu0
      %3473 = vmatprep.mubr.bf16.mxu0 0
      %3474 = vmatmul.mubr.bf16.gmra.mxu0 %v3361
      %v3475 = vpop.f32.mrf.mxu0
      %v3476 = vadd.f32 0.0, %v3475
      %v3477 = vpop.f32.mrf.mxu0
      %v3478 = vpop.f32.mrf.mxu0
      %v3479 = vadd.f32 0.0, %v3478
      %v3480 = vpop.f32.mrf.mxu0
      %3481 = vmatprep.mubr.bf16.mxu0 0
      %3482 = vmatmul.mubr.bf16.gmra.mxu0 %v3364
      %v3483 = vpop.f32.mrf.mxu0
      %v3484 = vadd.f32 0.0, %v3483
      %v3485 = vpop.f32.mrf.mxu0
      %v3486 = vpop.f32.mrf.mxu0
      %v3487 = vadd.f32 0.0, %v3486
      %v3488 = vpop.f32.mrf.mxu0
      %3489 = vmatprep.mubr.bf16.mxu0 0
      %3490 = vmatmul.mubr.bf16.gmra.mxu0 %v3367
      %v3491 = vpop.f32.mrf.mxu0
      %v3492 = vadd.f32 0.0, %v3491
      %v3493 = vpop.f32.mrf.mxu0
      %v3494 = vpop.f32.mrf.mxu0
      %v3495 = vadd.f32 0.0, %v3494
      %v3496 = vpop.f32.mrf.mxu0
      %3497 = vmatprep.mubr.bf16.mxu0 0
      %3498 = vmatmul.mubr.bf16.gmra.mxu0 %v3370
      %v3499 = vpop.f32.mrf.mxu0
      %v3500 = vadd.f32 0.0, %v3499
      %v3501 = vpop.f32.mrf.mxu0
      %v3502 = vpop.f32.mrf.mxu0
      %v3503 = vadd.f32 0.0, %v3502
      %v3504 = vpop.f32.mrf.mxu0
      %3505 = vmatprep.mubr.bf16.mxu0 0
      %3506 = vmatmul.mubr.bf16.gmra.mxu0 %v3373
      %v3507 = vpop.f32.mrf.mxu0
      %v3508 = vadd.f32 0.0, %v3507
      %v3509 = vpop.f32.mrf.mxu0
      %v3510 = vpop.f32.mrf.mxu0
      %v3511 = vadd.f32 0.0, %v3510
      %v3512 = vpop.f32.mrf.mxu0
      %3513 = vmatprep.mubr.bf16.mxu0 0
      %3514 = vmatmul.mubr.bf16.gmra.mxu0 %v3376
      %v3515 = vpop.f32.mrf.mxu0
      %v3516 = vadd.f32 0.0, %v3515
      %v3517 = vpop.f32.mrf.mxu0
      %v3518 = vpop.f32.mrf.mxu0
      %v3519 = vadd.f32 0.0, %v3518
      %v3520 = vpop.f32.mrf.mxu0
      %3521 = vmatprep.mubr.bf16.mxu0 0
      %3522 = vmatmul.mubr.bf16.gmra.mxu0 %v3379
      %v3523 = vpop.f32.mrf.mxu0
      %v3524 = vadd.f32 0.0, %v3523
      %v3525 = vpop.f32.mrf.mxu0
      %v3526 = vpop.f32.mrf.mxu0
      %v3527 = vadd.f32 0.0, %v3526
      %v3528 = vpop.f32.mrf.mxu0
      %3529 = vmatprep.mubr.bf16.mxu0 0
      %3530 = vmatmul.mubr.bf16.gmra.mxu0 %v3382
      %v3531 = vpop.f32.mrf.mxu0
      %v3532 = vadd.f32 0.0, %v3531
      %v3533 = vpop.f32.mrf.mxu0
      %v3534 = vpop.f32.mrf.mxu0
      %v3535 = vadd.f32 0.0, %v3534
      %v3536 = vpop.f32.mrf.mxu0
      %3537 = vmatprep.mubr.bf16.mxu0 0
      %3538 = vmatmul.mubr.bf16.gmra.mxu0 %v3385
      %v3539 = vpop.f32.mrf.mxu0
      %v3540 = vadd.f32 0.0, %v3539
      %v3541 = vpop.f32.mrf.mxu0
      %v3542 = vpop.f32.mrf.mxu0
      %v3543 = vadd.f32 0.0, %v3542
      %v3544 = vpop.f32.mrf.mxu0
      %3545 = vmatprep.mubr.bf16.mxu0 0
      %3546 = vmatmul.mubr.bf16.gmra.mxu0 %v3388
      %v3547 = vpop.f32.mrf.mxu0
      %v3548 = vadd.f32 0.0, %v3547
      %v3549 = vpop.f32.mrf.mxu0
      %v3550 = vpop.f32.mrf.mxu0
      %v3551 = vadd.f32 0.0, %v3550
      %v3552 = vpop.f32.mrf.mxu0
      %3553 = vdwg.mxu0
      %v3554 = vadd.f32 %v3195, %v3428
      %v3555 = vadd.f32 %v3196, %v3431
      %v3556 = vadd.f32 %v3197, %v3436
      %v3557 = vadd.f32 %v3198, %v3439
      %v3558 = vadd.f32 %v3199, %v3444
      %v3559 = vadd.f32 %v3200, %v3447
      %v3560 = vadd.f32 %v3201, %v3452
      %v3561 = vadd.f32 %v3202, %v3455
      %v3562 = vadd.f32 %v3203, %v3460
      %v3563 = vadd.f32 %v3204, %v3463
      %v3564 = vadd.f32 %v3205, %v3468
      %v3565 = vadd.f32 %v3206, %v3471
      %v3566 = vadd.f32 %v3207, %v3476
      %v3567 = vadd.f32 %v3208, %v3479
      %v3568 = vadd.f32 %v3209, %v3484
      %v3569 = vadd.f32 %v3210, %v3487
      %v3570 = vadd.f32 %v3211, %v3492
      %v3571 = vadd.f32 %v3212, %v3495
      %v3572 = vadd.f32 %v3213, %v3500
      %v3573 = vadd.f32 %v3214, %v3503
      %v3574 = vadd.f32 %v3215, %v3508
      %v3575 = vadd.f32 %v3216, %v3511
      %v3576 = vadd.f32 %v3217, %v3516
      %v3577 = vadd.f32 %v3218, %v3519
      %v3578 = vadd.f32 %v3219, %v3524
      %v3579 = vadd.f32 %v3220, %v3527
      %v3580 = vadd.f32 %v3221, %v3532
      %v3581 = vadd.f32 %v3222, %v3535
      %v3582 = vadd.f32 %v3223, %v3540
      %v3583 = vadd.f32 %v3224, %v3543
      %v3584 = vadd.f32 %v3225, %v3548
      %v3585 = vadd.f32 %v3226, %v3551
      %v3586 = vld [vmem:[%s3227] sm:$0xf]
      %v3587 = vld [vmem:[%s3227 + $0x4] sm:$0xf]
      %v3588 = vld [vmem:[%s3227 + $0x8] sm:$0x1]
      %v3589 = vld [vmem:[%s3227 + $0xc] sm:$0xf]
      %v3590 = vld [vmem:[%s3227 + $0x10] sm:$0xf]
      %v3591 = vld [vmem:[%s3227 + $0x14] sm:$0x1]
      %v3592 = vld [vmem:[%s3227 + $0x18] sm:$0xf]
      %v3593 = vld [vmem:[%s3227 + $0x1c] sm:$0xf]
      %v3594 = vld [vmem:[%s3227 + $0x20] sm:$0x1]
      %v3595 = vld [vmem:[%s3227 + $0x24] sm:$0xf]
      %v3596 = vld [vmem:[%s3227 + $0x28] sm:$0xf]
      %v3597 = vld [vmem:[%s3227 + $0x2c] sm:$0x1]
      %v3598 = vld [vmem:[%s3227 + $0x30] sm:$0xf]
      %v3599 = vld [vmem:[%s3227 + $0x34] sm:$0xf]
      %v3600 = vld [vmem:[%s3227 + $0x38] sm:$0x1]
      %v3601 = vld [vmem:[%s3227 + $0x3c] sm:$0xf]
      %v3602 = vld [vmem:[%s3227 + $0x40] sm:$0xf]
      %v3603 = vld [vmem:[%s3227 + $0x44] sm:$0x1]
      %v3604 = vld [vmem:[%s3227 + $0x48] sm:$0xf]
      %v3605 = vld [vmem:[%s3227 + $0x4c] sm:$0xf]
      %v3606 = vld [vmem:[%s3227 + $0x50] sm:$0x1]
      %v3607 = vld [vmem:[%s3227 + $0x54] sm:$0xf]
      %v3608 = vld [vmem:[%s3227 + $0x58] sm:$0xf]
      %v3609 = vld [vmem:[%s3227 + $0x5c] sm:$0x1]
      %v3610 = vld [vmem:[%s3227 + $0x60] sm:$0xf]
      %v3611 = vld [vmem:[%s3227 + $0x64] sm:$0xf]
      %v3612 = vld [vmem:[%s3227 + $0x68] sm:$0x1]
      %v3613 = vld [vmem:[%s3227 + $0x6c] sm:$0xf]
      %v3614 = vld [vmem:[%s3227 + $0x70] sm:$0xf]
      %v3615 = vld [vmem:[%s3227 + $0x74] sm:$0x1]
      %v3616 = vld [vmem:[%s3227 + $0x78] sm:$0xf]
      %v3617 = vld [vmem:[%s3227 + $0x7c] sm:$0xf]
      %v3618 = vld [vmem:[%s3227 + $0x80] sm:$0x1]
      %v3619 = vld [vmem:[%s3227 + $0x84] sm:$0xf]
      %v3620 = vld [vmem:[%s3227 + $0x88] sm:$0xf]
      %v3621 = vld [vmem:[%s3227 + $0x8c] sm:$0x1]
      %v3622 = vld [vmem:[%s3227 + $0x90] sm:$0xf]
      %v3623 = vld [vmem:[%s3227 + $0x94] sm:$0xf]
      %v3624 = vld [vmem:[%s3227 + $0x98] sm:$0x1]
      %v3625 = vld [vmem:[%s3227 + $0x9c] sm:$0xf]
      %v3626 = vld [vmem:[%s3227 + $0xa0] sm:$0xf]
      %v3627 = vld [vmem:[%s3227 + $0xa4] sm:$0x1]
      %v3628 = vld [vmem:[%s3227 + $0xa8] sm:$0xf]
      %v3629 = vld [vmem:[%s3227 + $0xac] sm:$0xf]
      %v3630 = vld [vmem:[%s3227 + $0xb0] sm:$0x1]
      %v3631 = vld [vmem:[%s3227 + $0xb4] sm:$0xf]
      %v3632 = vld [vmem:[%s3227 + $0xb8] sm:$0xf]
      %v3633 = vld [vmem:[%s3227 + $0xbc] sm:$0x1]
      %v3635 = vshrl.u32 %v3586, 16
      %v3637 = vrot.slane %v3635, 4
      %v3638 = vshll.u32 %v3586, 16
      %v3640 = vrot.slane %v3638, 5
      %v3641 = vor.u32 %v3637, %v3640
      %v3642 = vrot.slane %v3641, 4
      %v3644 = vshll.u32 %v3587, 16
      %v3646 = vrot.slane %v3644, 5
      %v3647 = vsel %vm274, %v3642, %v3646
      %v3648 = vshrl.u32 %v3587, 16
      %v3650 = vrot.slane %v3648, 4
      %v3651 = vor.u32 %v3650, %v3646
      %v3652 = vrot.slane %v3651, 4
      %v3654 = vshll.u32 %v3588, 16
      %v3656 = vrot.slane %v3654, 5
      %v3657 = vsel %vm274, %v3652, %v3656
      %v3659 = vshrl.u32 %v3589, 16
      %v3661 = vrot.slane %v3659, 4
      %v3662 = vshll.u32 %v3589, 16
      %v3664 = vrot.slane %v3662, 5
      %v3665 = vor.u32 %v3661, %v3664
      %v3666 = vrot.slane %v3665, 4
      %v3668 = vshll.u32 %v3590, 16
      %v3670 = vrot.slane %v3668, 5
      %v3671 = vsel %vm274, %v3666, %v3670
      %v3672 = vshrl.u32 %v3590, 16
      %v3674 = vrot.slane %v3672, 4
      %v3675 = vor.u32 %v3674, %v3670
      %v3676 = vrot.slane %v3675, 4
      %v3678 = vshll.u32 %v3591, 16
      %v3680 = vrot.slane %v3678, 5
      %v3681 = vsel %vm274, %v3676, %v3680
      %v3683 = vshrl.u32 %v3592, 16
      %v3685 = vrot.slane %v3683, 4
      %v3686 = vshll.u32 %v3592, 16
      %v3688 = vrot.slane %v3686, 5
      %v3689 = vor.u32 %v3685, %v3688
      %v3690 = vrot.slane %v3689, 4
      %v3692 = vshll.u32 %v3593, 16
      %v3694 = vrot.slane %v3692, 5
      %v3695 = vsel %vm274, %v3690, %v3694
      %v3696 = vshrl.u32 %v3593, 16
      %v3698 = vrot.slane %v3696, 4
      %v3699 = vor.u32 %v3698, %v3694
      %v3700 = vrot.slane %v3699, 4
      %v3702 = vshll.u32 %v3594, 16
      %v3704 = vrot.slane %v3702, 5
      %v3705 = vsel %vm274, %v3700, %v3704
      %v3707 = vshrl.u32 %v3595, 16
      %v3709 = vrot.slane %v3707, 4
      %v3710 = vshll.u32 %v3595, 16
      %v3712 = vrot.slane %v3710, 5
      %v3713 = vor.u32 %v3709, %v3712
      %v3714 = vrot.slane %v3713, 4
      %v3716 = vshll.u32 %v3596, 16
      %v3718 = vrot.slane %v3716, 5
      %v3719 = vsel %vm274, %v3714, %v3718
      %v3720 = vshrl.u32 %v3596, 16
      %v3722 = vrot.slane %v3720, 4
      %v3723 = vor.u32 %v3722, %v3718
      %v3724 = vrot.slane %v3723, 4
      %v3726 = vshll.u32 %v3597, 16
      %v3728 = vrot.slane %v3726, 5
      %v3729 = vsel %vm274, %v3724, %v3728
      %v3731 = vshrl.u32 %v3598, 16
      %v3733 = vrot.slane %v3731, 4
      %v3734 = vshll.u32 %v3598, 16
      %v3736 = vrot.slane %v3734, 5
      %v3737 = vor.u32 %v3733, %v3736
      %v3738 = vrot.slane %v3737, 4
      %v3740 = vshll.u32 %v3599, 16
      %v3742 = vrot.slane %v3740, 5
      %v3743 = vsel %vm274, %v3738, %v3742
      %v3744 = vshrl.u32 %v3599, 16
      %v3746 = vrot.slane %v3744, 4
      %v3747 = vor.u32 %v3746, %v3742
      %v3748 = vrot.slane %v3747, 4
      %v3750 = vshll.u32 %v3600, 16
      %v3752 = vrot.slane %v3750, 5
      %v3753 = vsel %vm274, %v3748, %v3752
      %v3755 = vshrl.u32 %v3601, 16
      %v3757 = vrot.slane %v3755, 4
      %v3758 = vshll.u32 %v3601, 16
      %v3760 = vrot.slane %v3758, 5
      %v3761 = vor.u32 %v3757, %v3760
      %v3762 = vrot.slane %v3761, 4
      %v3764 = vshll.u32 %v3602, 16
      %v3766 = vrot.slane %v3764, 5
      %v3767 = vsel %vm274, %v3762, %v3766
      %v3768 = vshrl.u32 %v3602, 16
      %v3770 = vrot.slane %v3768, 4
      %v3771 = vor.u32 %v3770, %v3766
      %v3772 = vrot.slane %v3771, 4
      %v3774 = vshll.u32 %v3603, 16
      %v3776 = vrot.slane %v3774, 5
      %v3777 = vsel %vm274, %v3772, %v3776
      %v3779 = vshrl.u32 %v3604, 16
      %v3781 = vrot.slane %v3779, 4
      %v3782 = vshll.u32 %v3604, 16
      %v3784 = vrot.slane %v3782, 5
      %v3785 = vor.u32 %v3781, %v3784
      %v3786 = vrot.slane %v3785, 4
      %v3788 = vshll.u32 %v3605, 16
      %v3790 = vrot.slane %v3788, 5
      %v3791 = vsel %vm274, %v3786, %v3790
      %v3792 = vshrl.u32 %v3605, 16
      %v3794 = vrot.slane %v3792, 4
      %v3795 = vor.u32 %v3794, %v3790
      %v3796 = vrot.slane %v3795, 4
      %v3798 = vshll.u32 %v3606, 16
      %v3800 = vrot.slane %v3798, 5
      %v3801 = vsel %vm274, %v3796, %v3800
      %v3803 = vshrl.u32 %v3607, 16
      %v3805 = vrot.slane %v3803, 4
      %v3806 = vshll.u32 %v3607, 16
      %v3808 = vrot.slane %v3806, 5
      %v3809 = vor.u32 %v3805, %v3808
      %v3810 = vrot.slane %v3809, 4
      %v3812 = vshll.u32 %v3608, 16
      %v3814 = vrot.slane %v3812, 5
      %v3815 = vsel %vm274, %v3810, %v3814
      %v3816 = vshrl.u32 %v3608, 16
      %v3818 = vrot.slane %v3816, 4
      %v3819 = vor.u32 %v3818, %v3814
      %v3820 = vrot.slane %v3819, 4
      %v3822 = vshll.u32 %v3609, 16
      %v3824 = vrot.slane %v3822, 5
      %v3825 = vsel %vm274, %v3820, %v3824
      %v3827 = vshrl.u32 %v3610, 16
      %v3829 = vrot.slane %v3827, 4
      %v3830 = vshll.u32 %v3610, 16
      %v3832 = vrot.slane %v3830, 5
      %v3833 = vor.u32 %v3829, %v3832
      %v3834 = vrot.slane %v3833, 4
      %v3836 = vshll.u32 %v3611, 16
      %v3838 = vrot.slane %v3836, 5
      %v3839 = vsel %vm274, %v3834, %v3838
      %v3840 = vshrl.u32 %v3611, 16
      %v3842 = vrot.slane %v3840, 4
      %v3843 = vor.u32 %v3842, %v3838
      %v3844 = vrot.slane %v3843, 4
      %v3846 = vshll.u32 %v3612, 16
      %v3848 = vrot.slane %v3846, 5
      %v3849 = vsel %vm274, %v3844, %v3848
      %v3851 = vshrl.u32 %v3613, 16
      %v3853 = vrot.slane %v3851, 4
      %v3854 = vshll.u32 %v3613, 16
      %v3856 = vrot.slane %v3854, 5
      %v3857 = vor.u32 %v3853, %v3856
      %v3858 = vrot.slane %v3857, 4
      %v3860 = vshll.u32 %v3614, 16
      %v3862 = vrot.slane %v3860, 5
      %v3863 = vsel %vm274, %v3858, %v3862
      %v3864 = vshrl.u32 %v3614, 16
      %v3866 = vrot.slane %v3864, 4
      %v3867 = vor.u32 %v3866, %v3862
      %v3868 = vrot.slane %v3867, 4
      %v3870 = vshll.u32 %v3615, 16
      %v3872 = vrot.slane %v3870, 5
      %v3873 = vsel %vm274, %v3868, %v3872
      %v3875 = vshrl.u32 %v3616, 16
      %v3877 = vrot.slane %v3875, 4
      %v3878 = vshll.u32 %v3616, 16
      %v3880 = vrot.slane %v3878, 5
      %v3881 = vor.u32 %v3877, %v3880
      %v3882 = vrot.slane %v3881, 4
      %v3884 = vshll.u32 %v3617, 16
      %v3886 = vrot.slane %v3884, 5
      %v3887 = vsel %vm274, %v3882, %v3886
      %v3888 = vshrl.u32 %v3617, 16
      %v3890 = vrot.slane %v3888, 4
      %v3891 = vor.u32 %v3890, %v3886
      %v3892 = vrot.slane %v3891, 4
      %v3894 = vshll.u32 %v3618, 16
      %v3896 = vrot.slane %v3894, 5
      %v3897 = vsel %vm274, %v3892, %v3896
      %v3899 = vshrl.u32 %v3619, 16
      %v3901 = vrot.slane %v3899, 4
      %v3902 = vshll.u32 %v3619, 16
      %v3904 = vrot.slane %v3902, 5
      %v3905 = vor.u32 %v3901, %v3904
      %v3906 = vrot.slane %v3905, 4
      %v3908 = vshll.u32 %v3620, 16
      %v3910 = vrot.slane %v3908, 5
      %v3911 = vsel %vm274, %v3906, %v3910
      %v3912 = vshrl.u32 %v3620, 16
      %v3914 = vrot.slane %v3912, 4
      %v3915 = vor.u32 %v3914, %v3910
      %v3916 = vrot.slane %v3915, 4
      %v3918 = vshll.u32 %v3621, 16
      %v3920 = vrot.slane %v3918, 5
      %v3921 = vsel %vm274, %v3916, %v3920
      %v3923 = vshrl.u32 %v3622, 16
      %v3925 = vrot.slane %v3923, 4
      %v3926 = vshll.u32 %v3622, 16
      %v3928 = vrot.slane %v3926, 5
      %v3929 = vor.u32 %v3925, %v3928
      %v3930 = vrot.slane %v3929, 4
      %v3932 = vshll.u32 %v3623, 16
      %v3934 = vrot.slane %v3932, 5
      %v3935 = vsel %vm274, %v3930, %v3934
      %v3936 = vshrl.u32 %v3623, 16
      %v3938 = vrot.slane %v3936, 4
      %v3939 = vor.u32 %v3938, %v3934
      %v3940 = vrot.slane %v3939, 4
      %v3942 = vshll.u32 %v3624, 16
      %v3944 = vrot.slane %v3942, 5
      %v3945 = vsel %vm274, %v3940, %v3944
      %v3947 = vshrl.u32 %v3625, 16
      %v3949 = vrot.slane %v3947, 4
      %v3950 = vshll.u32 %v3625, 16
      %v3952 = vrot.slane %v3950, 5
      %v3953 = vor.u32 %v3949, %v3952
      %v3954 = vrot.slane %v3953, 4
      %v3956 = vshll.u32 %v3626, 16
      %v3958 = vrot.slane %v3956, 5
      %v3959 = vsel %vm274, %v3954, %v3958
      %v3960 = vshrl.u32 %v3626, 16
      %v3962 = vrot.slane %v3960, 4
      %v3963 = vor.u32 %v3962, %v3958
      %v3964 = vrot.slane %v3963, 4
      %v3966 = vshll.u32 %v3627, 16
      %v3968 = vrot.slane %v3966, 5
      %v3969 = vsel %vm274, %v3964, %v3968
      %v3971 = vshrl.u32 %v3628, 16
      %v3973 = vrot.slane %v3971, 4
      %v3974 = vshll.u32 %v3628, 16
      %v3976 = vrot.slane %v3974, 5
      %v3977 = vor.u32 %v3973, %v3976
      %v3978 = vrot.slane %v3977, 4
      %v3980 = vshll.u32 %v3629, 16
      %v3982 = vrot.slane %v3980, 5
      %v3983 = vsel %vm274, %v3978, %v3982
      %v3984 = vshrl.u32 %v3629, 16
      %v3986 = vrot.slane %v3984, 4
      %v3987 = vor.u32 %v3986, %v3982
      %v3988 = vrot.slane %v3987, 4
      %v3990 = vshll.u32 %v3630, 16
      %v3992 = vrot.slane %v3990, 5
      %v3993 = vsel %vm274, %v3988, %v3992
      %v3995 = vshrl.u32 %v3631, 16
      %v3997 = vrot.slane %v3995, 4
      %v3998 = vshll.u32 %v3631, 16
      %v4000 = vrot.slane %v3998, 5
      %v4001 = vor.u32 %v3997, %v4000
      %v4002 = vrot.slane %v4001, 4
      %v4004 = vshll.u32 %v3632, 16
      %v4006 = vrot.slane %v4004, 5
      %v4007 = vsel %vm274, %v4002, %v4006
      %v4008 = vshrl.u32 %v3632, 16
      %v4010 = vrot.slane %v4008, 4
      %v4011 = vor.u32 %v4010, %v4006
      %v4012 = vrot.slane %v4011, 4
      %v4014 = vshll.u32 %v3633, 16
      %v4016 = vrot.slane %v4014, 5
      %v4017 = vsel %vm274, %v4012, %v4016
      %s4018 = scalar_lea.vmem %s210, 14
      %v4019 = vld [vmem:[%s4018] sm:$0x3]
      %v4020 = vunpack.c.l.b16 %v3647
      %v4021 = vunpack.c.l.b16 %v3657
      %v4022 = vunpack.c.l.b16 %v3671
      %v4023 = vunpack.c.l.b16 %v3681
      %v4024 = vunpack.c.l.b16 %v3695
      %v4025 = vunpack.c.l.b16 %v3705
      %v4026 = vunpack.c.l.b16 %v3719
      %v4027 = vunpack.c.l.b16 %v3729
      %v4028 = vunpack.c.l.b16 %v3743
      %v4029 = vunpack.c.l.b16 %v3753
      %v4030 = vunpack.c.l.b16 %v3767
      %v4031 = vunpack.c.l.b16 %v3777
      %v4032 = vunpack.c.l.b16 %v3791
      %v4033 = vunpack.c.l.b16 %v3801
      %v4034 = vunpack.c.l.b16 %v3815
      %v4035 = vunpack.c.l.b16 %v3825
      %v4036 = vunpack.c.l.b16 %v3839
      %v4037 = vunpack.c.l.b16 %v3849
      %v4038 = vunpack.c.l.b16 %v3863
      %v4039 = vunpack.c.l.b16 %v3873
      %v4040 = vunpack.c.l.b16 %v3887
      %v4041 = vunpack.c.l.b16 %v3897
      %v4042 = vunpack.c.l.b16 %v3911
      %v4043 = vunpack.c.l.b16 %v3921
      %v4044 = vunpack.c.l.b16 %v3935
      %v4045 = vunpack.c.l.b16 %v3945
      %v4046 = vunpack.c.l.b16 %v3959
      %v4047 = vunpack.c.l.b16 %v3969
      %v4048 = vunpack.c.l.b16 %v3983
      %v4049 = vunpack.c.l.b16 %v3993
      %v4050 = vunpack.c.l.b16 %v4007
      %v4051 = vunpack.c.l.b16 %v4017
      %v4052 = vpack.c.b16 %v4021, %v4020
      %v4053 = vpack.c.b16 %v4023, %v4022
      %v4054 = vpack.c.b16 %v4025, %v4024
      %v4055 = vpack.c.b16 %v4027, %v4026
      %v4056 = vpack.c.b16 %v4029, %v4028
      %v4057 = vpack.c.b16 %v4031, %v4030
      %v4058 = vpack.c.b16 %v4033, %v4032
      %v4059 = vpack.c.b16 %v4035, %v4034
      %v4060 = vpack.c.b16 %v4037, %v4036
      %v4061 = vpack.c.b16 %v4039, %v4038
      %v4062 = vpack.c.b16 %v4041, %v4040
      %v4063 = vpack.c.b16 %v4043, %v4042
      %v4064 = vpack.c.b16 %v4045, %v4044
      %v4065 = vpack.c.b16 %v4047, %v4046
      %v4066 = vpack.c.b16 %v4049, %v4048
      %v4067 = vpack.c.b16 %v4051, %v4050
      %v4069 = vsel %vm709, %v4052, 0
      %v4072 = vsel %vm709, %v4053, 0
      %v4075 = vsel %vm709, %v4054, 0
      %v4078 = vsel %vm709, %v4055, 0
      %v4081 = vsel %vm709, %v4056, 0
      %v4084 = vsel %vm709, %v4057, 0
      %v4087 = vsel %vm709, %v4058, 0
      %v4090 = vsel %vm709, %v4059, 0
      %v4093 = vsel %vm709, %v4060, 0
      %v4096 = vsel %vm709, %v4061, 0
      %v4099 = vsel %vm709, %v4062, 0
      %v4102 = vsel %vm709, %v4063, 0
      %v4105 = vsel %vm709, %v4064, 0
      %v4108 = vsel %vm709, %v4065, 0
      %v4111 = vsel %vm709, %v4066, 0
      %v4114 = vsel %vm709, %v4067, 0
      %v4117 = vsel %vm758, %v4019, 0
      %4119 = vmatprep.subr.bf16.mxu0 0
      %4120 = vmatpush1.bf16.msra.mxu0 0
      %4121 = vmatprep.subr.bf16.mxu0 0
      %4122 = vmatpush1.bf16.msra.mxu0 0
      %4123 = vmatprep.subr.bf16.mxu0 0
      %4124 = vmatpush1.bf16.msra.mxu0 0
      %4125 = vmatprep.subr.bf16.mxu0 0
      %4126 = vmatpush1.bf16.msra.mxu0 0
      %4127 = vmatprep.subr.bf16.mxu0 0
      %4128 = vmatpush1.bf16.msra.mxu0 0
      %4129 = vmatprep.subr.bf16.mxu0 0
      %4130 = vmatpush1.bf16.msra.mxu0 0
      %4131 = vmatprep.subr.bf16.mxu0 0
      %4132 = vmatpush1.bf16.msra.mxu0 0
      %4133 = vmatprep.subr.bf16.mxu0 0
      %4134 = vmatpush1.bf16.msra.mxu0 %v4117
      %4135 = vmatprep.subr.bf16.mxu0 0
      %4136 = vmatpush2.bf16.msra.mxu0 0
      %4137 = vmatprep.subr.bf16.mxu0 0
      %4138 = vmatpush2.bf16.msra.mxu0 0
      %4139 = vmatprep.subr.bf16.mxu0 0
      %4140 = vmatpush2.bf16.msra.mxu0 0
      %4141 = vmatprep.subr.bf16.mxu0 0
      %4142 = vmatpush2.bf16.msra.mxu0 0
      %4143 = vmatprep.subr.bf16.mxu0 0
      %4144 = vmatpush2.bf16.msra.mxu0 0
      %4145 = vmatprep.subr.bf16.mxu0 0
      %4146 = vmatpush2.bf16.msra.mxu0 0
      %4147 = vmatprep.subr.bf16.mxu0 0
      %4148 = vmatpush2.bf16.msra.mxu0 0
      %4149 = vmatprep.subr.bf16.mxu0 0
      %4150 = vmatpush2.bf16.msra.mxu0 0
      %4151 = vmatprep.mubr.bf16.mxu0 0
      %4152 = vmatmul.mubr.bf16.gmra.mxu0 %v4069
      %v4153 = vpop.f32.mrf.mxu0
      %v4154 = vadd.f32 0.0, %v4153
      %v4155 = vpop.f32.mrf.mxu0
      %v4156 = vpop.f32.mrf.mxu0
      %v4157 = vadd.f32 0.0, %v4156
      %v4158 = vpop.f32.mrf.mxu0
      %4159 = vmatprep.mubr.bf16.mxu0 0
      %4160 = vmatmul.mubr.bf16.gmra.mxu0 %v4072
      %v4161 = vpop.f32.mrf.mxu0
      %v4162 = vadd.f32 0.0, %v4161
      %v4163 = vpop.f32.mrf.mxu0
      %v4164 = vpop.f32.mrf.mxu0
      %v4165 = vadd.f32 0.0, %v4164
      %v4166 = vpop.f32.mrf.mxu0
      %4167 = vmatprep.mubr.bf16.mxu0 0
      %4168 = vmatmul.mubr.bf16.gmra.mxu0 %v4075
      %v4169 = vpop.f32.mrf.mxu0
      %v4170 = vadd.f32 0.0, %v4169
      %v4171 = vpop.f32.mrf.mxu0
      %v4172 = vpop.f32.mrf.mxu0
      %v4173 = vadd.f32 0.0, %v4172
      %v4174 = vpop.f32.mrf.mxu0
      %4175 = vmatprep.mubr.bf16.mxu0 0
      %4176 = vmatmul.mubr.bf16.gmra.mxu0 %v4078
      %v4177 = vpop.f32.mrf.mxu0
      %v4178 = vadd.f32 0.0, %v4177
      %v4179 = vpop.f32.mrf.mxu0
      %v4180 = vpop.f32.mrf.mxu0
      %v4181 = vadd.f32 0.0, %v4180
      %v4182 = vpop.f32.mrf.mxu0
      %4183 = vmatprep.mubr.bf16.mxu0 0
      %4184 = vmatmul.mubr.bf16.gmra.mxu0 %v4081
      %v4185 = vpop.f32.mrf.mxu0
      %v4186 = vadd.f32 0.0, %v4185
      %v4187 = vpop.f32.mrf.mxu0
      %v4188 = vpop.f32.mrf.mxu0
      %v4189 = vadd.f32 0.0, %v4188
      %v4190 = vpop.f32.mrf.mxu0
      %4191 = vmatprep.mubr.bf16.mxu0 0
      %4192 = vmatmul.mubr.bf16.gmra.mxu0 %v4084
      %v4193 = vpop.f32.mrf.mxu0
      %v4194 = vadd.f32 0.0, %v4193
      %v4195 = vpop.f32.mrf.mxu0
      %v4196 = vpop.f32.mrf.mxu0
      %v4197 = vadd.f32 0.0, %v4196
      %v4198 = vpop.f32.mrf.mxu0
      %4199 = vmatprep.mubr.bf16.mxu0 0
      %4200 = vmatmul.mubr.bf16.gmra.mxu0 %v4087
      %v4201 = vpop.f32.mrf.mxu0
      %v4202 = vadd.f32 0.0, %v4201
      %v4203 = vpop.f32.mrf.mxu0
      %v4204 = vpop.f32.mrf.mxu0
      %v4205 = vadd.f32 0.0, %v4204
      %v4206 = vpop.f32.mrf.mxu0
      %4207 = vmatprep.mubr.bf16.mxu0 0
      %4208 = vmatmul.mubr.bf16.gmra.mxu0 %v4090
      %v4209 = vpop.f32.mrf.mxu0
      %v4210 = vadd.f32 0.0, %v4209
      %v4211 = vpop.f32.mrf.mxu0
      %v4212 = vpop.f32.mrf.mxu0
      %v4213 = vadd.f32 0.0, %v4212
      %v4214 = vpop.f32.mrf.mxu0
      %4215 = vmatprep.mubr.bf16.mxu0 0
      %4216 = vmatmul.mubr.bf16.gmra.mxu0 %v4093
      %v4217 = vpop.f32.mrf.mxu0
      %v4218 = vadd.f32 0.0, %v4217
      %v4219 = vpop.f32.mrf.mxu0
      %v4220 = vpop.f32.mrf.mxu0
      %v4221 = vadd.f32 0.0, %v4220
      %v4222 = vpop.f32.mrf.mxu0
      %4223 = vmatprep.mubr.bf16.mxu0 0
      %4224 = vmatmul.mubr.bf16.gmra.mxu0 %v4096
      %v4225 = vpop.f32.mrf.mxu0
      %v4226 = vadd.f32 0.0, %v4225
      %v4227 = vpop.f32.mrf.mxu0
      %v4228 = vpop.f32.mrf.mxu0
      %v4229 = vadd.f32 0.0, %v4228
      %v4230 = vpop.f32.mrf.mxu0
      %4231 = vmatprep.mubr.bf16.mxu0 0
      %4232 = vmatmul.mubr.bf16.gmra.mxu0 %v4099
      %v4233 = vpop.f32.mrf.mxu0
      %v4234 = vadd.f32 0.0, %v4233
      %v4235 = vpop.f32.mrf.mxu0
      %v4236 = vpop.f32.mrf.mxu0
      %v4237 = vadd.f32 0.0, %v4236
      %v4238 = vpop.f32.mrf.mxu0
      %4239 = vmatprep.mubr.bf16.mxu0 0
      %4240 = vmatmul.mubr.bf16.gmra.mxu0 %v4102
      %v4241 = vpop.f32.mrf.mxu0
      %v4242 = vadd.f32 0.0, %v4241
      %v4243 = vpop.f32.mrf.mxu0
      %v4244 = vpop.f32.mrf.mxu0
      %v4245 = vadd.f32 0.0, %v4244
      %v4246 = vpop.f32.mrf.mxu0
      %4247 = vmatprep.mubr.bf16.mxu0 0
      %4248 = vmatmul.mubr.bf16.gmra.mxu0 %v4105
      %v4249 = vpop.f32.mrf.mxu0
      %v4250 = vadd.f32 0.0, %v4249
      %v4251 = vpop.f32.mrf.mxu0
      %v4252 = vpop.f32.mrf.mxu0
      %v4253 = vadd.f32 0.0, %v4252
      %v4254 = vpop.f32.mrf.mxu0
      %4255 = vmatprep.mubr.bf16.mxu0 0
      %4256 = vmatmul.mubr.bf16.gmra.mxu0 %v4108
      %v4257 = vpop.f32.mrf.mxu0
      %v4258 = vadd.f32 0.0, %v4257
      %v4259 = vpop.f32.mrf.mxu0
      %v4260 = vpop.f32.mrf.mxu0
      %v4261 = vadd.f32 0.0, %v4260
      %v4262 = vpop.f32.mrf.mxu0
      %4263 = vmatprep.mubr.bf16.mxu0 0
      %4264 = vmatmul.mubr.bf16.gmra.mxu0 %v4111
      %v4265 = vpop.f32.mrf.mxu0
      %v4266 = vadd.f32 0.0, %v4265
      %v4267 = vpop.f32.mrf.mxu0
      %v4268 = vpop.f32.mrf.mxu0
      %v4269 = vadd.f32 0.0, %v4268
      %v4270 = vpop.f32.mrf.mxu0
      %4271 = vmatprep.mubr.bf16.mxu0 0
      %4272 = vmatmul.mubr.bf16.gmra.mxu0 %v4114
      %v4273 = vpop.f32.mrf.mxu0
      %v4274 = vadd.f32 0.0, %v4273
      %v4275 = vpop.f32.mrf.mxu0
      %v4276 = vpop.f32.mrf.mxu0
      %v4277 = vadd.f32 0.0, %v4276
      %v4278 = vpop.f32.mrf.mxu0
      %4279 = vdwg.mxu0
      %v4280 = vadd.f32 %v3554, %v4154
      %v4281 = vadd.f32 %v3555, %v4157
      %v4282 = vadd.f32 %v3556, %v4162
      %v4283 = vadd.f32 %v3557, %v4165
      %v4284 = vadd.f32 %v3558, %v4170
      %v4285 = vadd.f32 %v3559, %v4173
      %v4286 = vadd.f32 %v3560, %v4178
      %v4287 = vadd.f32 %v3561, %v4181
      %v4288 = vadd.f32 %v3562, %v4186
      %v4289 = vadd.f32 %v3563, %v4189
      %v4290 = vadd.f32 %v3564, %v4194
      %v4291 = vadd.f32 %v3565, %v4197
      %v4292 = vadd.f32 %v3566, %v4202
      %v4293 = vadd.f32 %v3567, %v4205
      %v4294 = vadd.f32 %v3568, %v4210
      %v4295 = vadd.f32 %v3569, %v4213
      %v4296 = vadd.f32 %v3570, %v4218
      %v4297 = vadd.f32 %v3571, %v4221
      %v4298 = vadd.f32 %v3572, %v4226
      %v4299 = vadd.f32 %v3573, %v4229
      %v4300 = vadd.f32 %v3574, %v4234
      %v4301 = vadd.f32 %v3575, %v4237
      %v4302 = vadd.f32 %v3576, %v4242
      %v4303 = vadd.f32 %v3577, %v4245
      %v4304 = vadd.f32 %v3578, %v4250
      %v4305 = vadd.f32 %v3579, %v4253
      %v4306 = vadd.f32 %v3580, %v4258
      %v4307 = vadd.f32 %v3581, %v4261
      %v4308 = vadd.f32 %v3582, %v4266
      %v4309 = vadd.f32 %v3583, %v4269
      %v4310 = vadd.f32 %v3584, %v4274
      %v4311 = vadd.f32 %v3585, %v4277
      %v4312 = vld [vmem:[%s3227] sm:$0xe]
      %v4313 = vld [vmem:[%s3227 + $0xc] sm:$0xe]
      %v4314 = vld [vmem:[%s3227 + $0x18] sm:$0xe]
      %v4315 = vld [vmem:[%s3227 + $0x24] sm:$0xe]
      %v4316 = vld [vmem:[%s3227 + $0x30] sm:$0xe]
      %v4317 = vld [vmem:[%s3227 + $0x3c] sm:$0xe]
      %v4318 = vld [vmem:[%s3227 + $0x48] sm:$0xe]
      %v4319 = vld [vmem:[%s3227 + $0x54] sm:$0xe]
      %v4320 = vld [vmem:[%s3227 + $0x60] sm:$0xe]
      %v4321 = vld [vmem:[%s3227 + $0x6c] sm:$0xe]
      %v4322 = vld [vmem:[%s3227 + $0x78] sm:$0xe]
      %v4323 = vld [vmem:[%s3227 + $0x84] sm:$0xe]
      %v4324 = vld [vmem:[%s3227 + $0x90] sm:$0xe]
      %v4325 = vld [vmem:[%s3227 + $0x9c] sm:$0xe]
      %v4326 = vld [vmem:[%s3227 + $0xa8] sm:$0xe]
      %v4327 = vld [vmem:[%s3227 + $0xb4] sm:$0xe]
      %v4376 = vrot.slane %v4312, 5
      %v4377 = vrot.slane %v4376, 4
      %v4378 = vrot.slane %v3587, 5
      %v4379 = vsel %vm1265, %v4377, %v4378
      %v4380 = vrot.slane %v4378, 4
      %v4381 = vrot.slane %v3588, 5
      %v4382 = vsel %vm1265, %v4380, %v4381
      %v4383 = vrot.slane %v4313, 5
      %v4384 = vrot.slane %v4383, 4
      %v4385 = vrot.slane %v3590, 5
      %v4386 = vsel %vm1265, %v4384, %v4385
      %v4387 = vrot.slane %v4385, 4
      %v4388 = vrot.slane %v3591, 5
      %v4389 = vsel %vm1265, %v4387, %v4388
      %v4390 = vrot.slane %v4314, 5
      %v4391 = vrot.slane %v4390, 4
      %v4392 = vrot.slane %v3593, 5
      %v4393 = vsel %vm1265, %v4391, %v4392
      %v4394 = vrot.slane %v4392, 4
      %v4395 = vrot.slane %v3594, 5
      %v4396 = vsel %vm1265, %v4394, %v4395
      %v4397 = vrot.slane %v4315, 5
      %v4398 = vrot.slane %v4397, 4
      %v4399 = vrot.slane %v3596, 5
      %v4400 = vsel %vm1265, %v4398, %v4399
      %v4401 = vrot.slane %v4399, 4
      %v4402 = vrot.slane %v3597, 5
      %v4403 = vsel %vm1265, %v4401, %v4402
      %v4404 = vrot.slane %v4316, 5
      %v4405 = vrot.slane %v4404, 4
      %v4406 = vrot.slane %v3599, 5
      %v4407 = vsel %vm1265, %v4405, %v4406
      %v4408 = vrot.slane %v4406, 4
      %v4409 = vrot.slane %v3600, 5
      %v4410 = vsel %vm1265, %v4408, %v4409
      %v4411 = vrot.slane %v4317, 5
      %v4412 = vrot.slane %v4411, 4
      %v4413 = vrot.slane %v3602, 5
      %v4414 = vsel %vm1265, %v4412, %v4413
      %v4415 = vrot.slane %v4413, 4
      %v4416 = vrot.slane %v3603, 5
      %v4417 = vsel %vm1265, %v4415, %v4416
      %v4418 = vrot.slane %v4318, 5
      %v4419 = vrot.slane %v4418, 4
      %v4420 = vrot.slane %v3605, 5
      %v4421 = vsel %vm1265, %v4419, %v4420
      %v4422 = vrot.slane %v4420, 4
      %v4423 = vrot.slane %v3606, 5
      %v4424 = vsel %vm1265, %v4422, %v4423
      %v4425 = vrot.slane %v4319, 5
      %v4426 = vrot.slane %v4425, 4
      %v4427 = vrot.slane %v3608, 5
      %v4428 = vsel %vm1265, %v4426, %v4427
      %v4429 = vrot.slane %v4427, 4
      %v4430 = vrot.slane %v3609, 5
      %v4431 = vsel %vm1265, %v4429, %v4430
      %v4432 = vrot.slane %v4320, 5
      %v4433 = vrot.slane %v4432, 4
      %v4434 = vrot.slane %v3611, 5
      %v4435 = vsel %vm1265, %v4433, %v4434
      %v4436 = vrot.slane %v4434, 4
      %v4437 = vrot.slane %v3612, 5
      %v4438 = vsel %vm1265, %v4436, %v4437
      %v4439 = vrot.slane %v4321, 5
      %v4440 = vrot.slane %v4439, 4
      %v4441 = vrot.slane %v3614, 5
      %v4442 = vsel %vm1265, %v4440, %v4441
      %v4443 = vrot.slane %v4441, 4
      %v4444 = vrot.slane %v3615, 5
      %v4445 = vsel %vm1265, %v4443, %v4444
      %v4446 = vrot.slane %v4322, 5
      %v4447 = vrot.slane %v4446, 4
      %v4448 = vrot.slane %v3617, 5
      %v4449 = vsel %vm1265, %v4447, %v4448
      %v4450 = vrot.slane %v4448, 4
      %v4451 = vrot.slane %v3618, 5
      %v4452 = vsel %vm1265, %v4450, %v4451
      %v4453 = vrot.slane %v4323, 5
      %v4454 = vrot.slane %v4453, 4
      %v4455 = vrot.slane %v3620, 5
      %v4456 = vsel %vm1265, %v4454, %v4455
      %v4457 = vrot.slane %v4455, 4
      %v4458 = vrot.slane %v3621, 5
      %v4459 = vsel %vm1265, %v4457, %v4458
      %v4460 = vrot.slane %v4324, 5
      %v4461 = vrot.slane %v4460, 4
      %v4462 = vrot.slane %v3623, 5
      %v4463 = vsel %vm1265, %v4461, %v4462
      %v4464 = vrot.slane %v4462, 4
      %v4465 = vrot.slane %v3624, 5
      %v4466 = vsel %vm1265, %v4464, %v4465
      %v4467 = vrot.slane %v4325, 5
      %v4468 = vrot.slane %v4467, 4
      %v4469 = vrot.slane %v3626, 5
      %v4470 = vsel %vm1265, %v4468, %v4469
      %v4471 = vrot.slane %v4469, 4
      %v4472 = vrot.slane %v3627, 5
      %v4473 = vsel %vm1265, %v4471, %v4472
      %v4474 = vrot.slane %v4326, 5
      %v4475 = vrot.slane %v4474, 4
      %v4476 = vrot.slane %v3629, 5
      %v4477 = vsel %vm1265, %v4475, %v4476
      %v4478 = vrot.slane %v4476, 4
      %v4479 = vrot.slane %v3630, 5
      %v4480 = vsel %vm1265, %v4478, %v4479
      %v4481 = vrot.slane %v4327, 5
      %v4482 = vrot.slane %v4481, 4
      %v4483 = vrot.slane %v3632, 5
      %v4484 = vsel %vm1265, %v4482, %v4483
      %v4485 = vrot.slane %v4483, 4
      %v4486 = vrot.slane %v3633, 5
      %v4487 = vsel %vm1265, %v4485, %v4486
      %s4488 = scalar_lea.vmem %s210, 16
      %v4489 = vld [vmem:[%s4488] sm:$0x3]
      %v4490 = vunpack.c.l.b16 %v4379
      %v4491 = vunpack.c.l.b16 %v4382
      %v4492 = vunpack.c.l.b16 %v4386
      %v4493 = vunpack.c.l.b16 %v4389
      %v4494 = vunpack.c.l.b16 %v4393
      %v4495 = vunpack.c.l.b16 %v4396
      %v4496 = vunpack.c.l.b16 %v4400
      %v4497 = vunpack.c.l.b16 %v4403
      %v4498 = vunpack.c.l.b16 %v4407
      %v4499 = vunpack.c.l.b16 %v4410
      %v4500 = vunpack.c.l.b16 %v4414
      %v4501 = vunpack.c.l.b16 %v4417
      %v4502 = vunpack.c.l.b16 %v4421
      %v4503 = vunpack.c.l.b16 %v4424
      %v4504 = vunpack.c.l.b16 %v4428
      %v4505 = vunpack.c.l.b16 %v4431
      %v4506 = vunpack.c.l.b16 %v4435
      %v4507 = vunpack.c.l.b16 %v4438
      %v4508 = vunpack.c.l.b16 %v4442
      %v4509 = vunpack.c.l.b16 %v4445
      %v4510 = vunpack.c.l.b16 %v4449
      %v4511 = vunpack.c.l.b16 %v4452
      %v4512 = vunpack.c.l.b16 %v4456
      %v4513 = vunpack.c.l.b16 %v4459
      %v4514 = vunpack.c.l.b16 %v4463
      %v4515 = vunpack.c.l.b16 %v4466
      %v4516 = vunpack.c.l.b16 %v4470
      %v4517 = vunpack.c.l.b16 %v4473
      %v4518 = vunpack.c.l.b16 %v4477
      %v4519 = vunpack.c.l.b16 %v4480
      %v4520 = vunpack.c.l.b16 %v4484
      %v4521 = vunpack.c.l.b16 %v4487
      %v4522 = vpack.c.b16 %v4491, %v4490
      %v4523 = vpack.c.b16 %v4493, %v4492
      %v4524 = vpack.c.b16 %v4495, %v4494
      %v4525 = vpack.c.b16 %v4497, %v4496
      %v4526 = vpack.c.b16 %v4499, %v4498
      %v4527 = vpack.c.b16 %v4501, %v4500
      %v4528 = vpack.c.b16 %v4503, %v4502
      %v4529 = vpack.c.b16 %v4505, %v4504
      %v4530 = vpack.c.b16 %v4507, %v4506
      %v4531 = vpack.c.b16 %v4509, %v4508
      %v4532 = vpack.c.b16 %v4511, %v4510
      %v4533 = vpack.c.b16 %v4513, %v4512
      %v4534 = vpack.c.b16 %v4515, %v4514
      %v4535 = vpack.c.b16 %v4517, %v4516
      %v4536 = vpack.c.b16 %v4519, %v4518
      %v4537 = vpack.c.b16 %v4521, %v4520
      %v4539 = vsel %vm709, %v4522, 0
      %v4542 = vsel %vm709, %v4523, 0
      %v4545 = vsel %vm709, %v4524, 0
      %v4548 = vsel %vm709, %v4525, 0
      %v4551 = vsel %vm709, %v4526, 0
      %v4554 = vsel %vm709, %v4527, 0
      %v4557 = vsel %vm709, %v4528, 0
      %v4560 = vsel %vm709, %v4529, 0
      %v4563 = vsel %vm709, %v4530, 0
      %v4566 = vsel %vm709, %v4531, 0
      %v4569 = vsel %vm709, %v4532, 0
      %v4572 = vsel %vm709, %v4533, 0
      %v4575 = vsel %vm709, %v4534, 0
      %v4578 = vsel %vm709, %v4535, 0
      %v4581 = vsel %vm709, %v4536, 0
      %v4584 = vsel %vm709, %v4537, 0
      %v4587 = vsel %vm758, %v4489, 0
      %4589 = vmatprep.subr.bf16.mxu0 0
      %4590 = vmatpush1.bf16.msra.mxu0 0
      %4591 = vmatprep.subr.bf16.mxu0 0
      %4592 = vmatpush1.bf16.msra.mxu0 0
      %4593 = vmatprep.subr.bf16.mxu0 0
      %4594 = vmatpush1.bf16.msra.mxu0 0
      %4595 = vmatprep.subr.bf16.mxu0 0
      %4596 = vmatpush1.bf16.msra.mxu0 0
      %4597 = vmatprep.subr.bf16.mxu0 0
      %4598 = vmatpush1.bf16.msra.mxu0 0
      %4599 = vmatprep.subr.bf16.mxu0 0
      %4600 = vmatpush1.bf16.msra.mxu0 0
      %4601 = vmatprep.subr.bf16.mxu0 0
      %4602 = vmatpush1.bf16.msra.mxu0 0
      %4603 = vmatprep.subr.bf16.mxu0 0
      %4604 = vmatpush1.bf16.msra.mxu0 %v4587
      %4605 = vmatprep.subr.bf16.mxu0 0
      %4606 = vmatpush2.bf16.msra.mxu0 0
      %4607 = vmatprep.subr.bf16.mxu0 0
      %4608 = vmatpush2.bf16.msra.mxu0 0
      %4609 = vmatprep.subr.bf16.mxu0 0
      %4610 = vmatpush2.bf16.msra.mxu0 0
      %4611 = vmatprep.subr.bf16.mxu0 0
      %4612 = vmatpush2.bf16.msra.mxu0 0
      %4613 = vmatprep.subr.bf16.mxu0 0
      %4614 = vmatpush2.bf16.msra.mxu0 0
      %4615 = vmatprep.subr.bf16.mxu0 0
      %4616 = vmatpush2.bf16.msra.mxu0 0
      %4617 = vmatprep.subr.bf16.mxu0 0
      %4618 = vmatpush2.bf16.msra.mxu0 0
      %4619 = vmatprep.subr.bf16.mxu0 0
      %4620 = vmatpush2.bf16.msra.mxu0 0
      %4621 = vmatprep.mubr.bf16.mxu0 0
      %4622 = vmatmul.mubr.bf16.gmra.mxu0 %v4539
      %v4623 = vpop.f32.mrf.mxu0
      %v4624 = vadd.f32 0.0, %v4623
      %v4625 = vpop.f32.mrf.mxu0
      %v4626 = vpop.f32.mrf.mxu0
      %v4627 = vadd.f32 0.0, %v4626
      %v4628 = vpop.f32.mrf.mxu0
      %4629 = vmatprep.mubr.bf16.mxu0 0
      %4630 = vmatmul.mubr.bf16.gmra.mxu0 %v4542
      %v4631 = vpop.f32.mrf.mxu0
      %v4632 = vadd.f32 0.0, %v4631
      %v4633 = vpop.f32.mrf.mxu0
      %v4634 = vpop.f32.mrf.mxu0
      %v4635 = vadd.f32 0.0, %v4634
      %v4636 = vpop.f32.mrf.mxu0
      %4637 = vmatprep.mubr.bf16.mxu0 0
      %4638 = vmatmul.mubr.bf16.gmra.mxu0 %v4545
      %v4639 = vpop.f32.mrf.mxu0
      %v4640 = vadd.f32 0.0, %v4639
      %v4641 = vpop.f32.mrf.mxu0
      %v4642 = vpop.f32.mrf.mxu0
      %v4643 = vadd.f32 0.0, %v4642
      %v4644 = vpop.f32.mrf.mxu0
      %4645 = vmatprep.mubr.bf16.mxu0 0
      %4646 = vmatmul.mubr.bf16.gmra.mxu0 %v4548
      %v4647 = vpop.f32.mrf.mxu0
      %v4648 = vadd.f32 0.0, %v4647
      %v4649 = vpop.f32.mrf.mxu0
      %v4650 = vpop.f32.mrf.mxu0
      %v4651 = vadd.f32 0.0, %v4650
      %v4652 = vpop.f32.mrf.mxu0
      %4653 = vmatprep.mubr.bf16.mxu0 0
      %4654 = vmatmul.mubr.bf16.gmra.mxu0 %v4551
      %v4655 = vpop.f32.mrf.mxu0
      %v4656 = vadd.f32 0.0, %v4655
      %v4657 = vpop.f32.mrf.mxu0
      %v4658 = vpop.f32.mrf.mxu0
      %v4659 = vadd.f32 0.0, %v4658
      %v4660 = vpop.f32.mrf.mxu0
      %4661 = vmatprep.mubr.bf16.mxu0 0
      %4662 = vmatmul.mubr.bf16.gmra.mxu0 %v4554
      %v4663 = vpop.f32.mrf.mxu0
      %v4664 = vadd.f32 0.0, %v4663
      %v4665 = vpop.f32.mrf.mxu0
      %v4666 = vpop.f32.mrf.mxu0
      %v4667 = vadd.f32 0.0, %v4666
      %v4668 = vpop.f32.mrf.mxu0
      %4669 = vmatprep.mubr.bf16.mxu0 0
      %4670 = vmatmul.mubr.bf16.gmra.mxu0 %v4557
      %v4671 = vpop.f32.mrf.mxu0
      %v4672 = vadd.f32 0.0, %v4671
      %v4673 = vpop.f32.mrf.mxu0
      %v4674 = vpop.f32.mrf.mxu0
      %v4675 = vadd.f32 0.0, %v4674
      %v4676 = vpop.f32.mrf.mxu0
      %4677 = vmatprep.mubr.bf16.mxu0 0
      %4678 = vmatmul.mubr.bf16.gmra.mxu0 %v4560
      %v4679 = vpop.f32.mrf.mxu0
      %v4680 = vadd.f32 0.0, %v4679
      %v4681 = vpop.f32.mrf.mxu0
      %v4682 = vpop.f32.mrf.mxu0
      %v4683 = vadd.f32 0.0, %v4682
      %v4684 = vpop.f32.mrf.mxu0
      %4685 = vmatprep.mubr.bf16.mxu0 0
      %4686 = vmatmul.mubr.bf16.gmra.mxu0 %v4563
      %v4687 = vpop.f32.mrf.mxu0
      %v4688 = vadd.f32 0.0, %v4687
      %v4689 = vpop.f32.mrf.mxu0
      %v4690 = vpop.f32.mrf.mxu0
      %v4691 = vadd.f32 0.0, %v4690
      %v4692 = vpop.f32.mrf.mxu0
      %4693 = vmatprep.mubr.bf16.mxu0 0
      %4694 = vmatmul.mubr.bf16.gmra.mxu0 %v4566
      %v4695 = vpop.f32.mrf.mxu0
      %v4696 = vadd.f32 0.0, %v4695
      %v4697 = vpop.f32.mrf.mxu0
      %v4698 = vpop.f32.mrf.mxu0
      %v4699 = vadd.f32 0.0, %v4698
      %v4700 = vpop.f32.mrf.mxu0
      %4701 = vmatprep.mubr.bf16.mxu0 0
      %4702 = vmatmul.mubr.bf16.gmra.mxu0 %v4569
      %v4703 = vpop.f32.mrf.mxu0
      %v4704 = vadd.f32 0.0, %v4703
      %v4705 = vpop.f32.mrf.mxu0
      %v4706 = vpop.f32.mrf.mxu0
      %v4707 = vadd.f32 0.0, %v4706
      %v4708 = vpop.f32.mrf.mxu0
      %4709 = vmatprep.mubr.bf16.mxu0 0
      %4710 = vmatmul.mubr.bf16.gmra.mxu0 %v4572
      %v4711 = vpop.f32.mrf.mxu0
      %v4712 = vadd.f32 0.0, %v4711
      %v4713 = vpop.f32.mrf.mxu0
      %v4714 = vpop.f32.mrf.mxu0
      %v4715 = vadd.f32 0.0, %v4714
      %v4716 = vpop.f32.mrf.mxu0
      %4717 = vmatprep.mubr.bf16.mxu0 0
      %4718 = vmatmul.mubr.bf16.gmra.mxu0 %v4575
      %v4719 = vpop.f32.mrf.mxu0
      %v4720 = vadd.f32 0.0, %v4719
      %v4721 = vpop.f32.mrf.mxu0
      %v4722 = vpop.f32.mrf.mxu0
      %v4723 = vadd.f32 0.0, %v4722
      %v4724 = vpop.f32.mrf.mxu0
      %4725 = vmatprep.mubr.bf16.mxu0 0
      %4726 = vmatmul.mubr.bf16.gmra.mxu0 %v4578
      %v4727 = vpop.f32.mrf.mxu0
      %v4728 = vadd.f32 0.0, %v4727
      %v4729 = vpop.f32.mrf.mxu0
      %v4730 = vpop.f32.mrf.mxu0
      %v4731 = vadd.f32 0.0, %v4730
      %v4732 = vpop.f32.mrf.mxu0
      %4733 = vmatprep.mubr.bf16.mxu0 0
      %4734 = vmatmul.mubr.bf16.gmra.mxu0 %v4581
      %v4735 = vpop.f32.mrf.mxu0
      %v4736 = vadd.f32 0.0, %v4735
      %v4737 = vpop.f32.mrf.mxu0
      %v4738 = vpop.f32.mrf.mxu0
      %v4739 = vadd.f32 0.0, %v4738
      %v4740 = vpop.f32.mrf.mxu0
      %4741 = vmatprep.mubr.bf16.mxu0 0
      %4742 = vmatmul.mubr.bf16.gmra.mxu0 %v4584
      %v4743 = vpop.f32.mrf.mxu0
      %v4744 = vadd.f32 0.0, %v4743
      %v4745 = vpop.f32.mrf.mxu0
      %v4746 = vpop.f32.mrf.mxu0
      %v4747 = vadd.f32 0.0, %v4746
      %v4748 = vpop.f32.mrf.mxu0
      %4749 = vdwg.mxu0
      %v4750 = vadd.f32 %v4280, %v4624
      %v4751 = vadd.f32 %v4281, %v4627
      %v4752 = vadd.f32 %v4282, %v4632
      %v4753 = vadd.f32 %v4283, %v4635
      %v4754 = vadd.f32 %v4284, %v4640
      %v4755 = vadd.f32 %v4285, %v4643
      %v4756 = vadd.f32 %v4286, %v4648
      %v4757 = vadd.f32 %v4287, %v4651
      %v4758 = vadd.f32 %v4288, %v4656
      %v4759 = vadd.f32 %v4289, %v4659
      %v4760 = vadd.f32 %v4290, %v4664
      %v4761 = vadd.f32 %v4291, %v4667
      %v4762 = vadd.f32 %v4292, %v4672
      %v4763 = vadd.f32 %v4293, %v4675
      %v4764 = vadd.f32 %v4294, %v4680
      %v4765 = vadd.f32 %v4295, %v4683
      %v4766 = vadd.f32 %v4296, %v4688
      %v4767 = vadd.f32 %v4297, %v4691
      %v4768 = vadd.f32 %v4298, %v4696
      %v4769 = vadd.f32 %v4299, %v4699
      %v4770 = vadd.f32 %v4300, %v4704
      %v4771 = vadd.f32 %v4301, %v4707
      %v4772 = vadd.f32 %v4302, %v4712
      %v4773 = vadd.f32 %v4303, %v4715
      %v4774 = vadd.f32 %v4304, %v4720
      %v4775 = vadd.f32 %v4305, %v4723
      %v4776 = vadd.f32 %v4306, %v4728
      %v4777 = vadd.f32 %v4307, %v4731
      %v4778 = vadd.f32 %v4308, %v4736
      %v4779 = vadd.f32 %v4309, %v4739
      %v4780 = vadd.f32 %v4310, %v4744
      %v4781 = vadd.f32 %v4311, %v4747
      %v4782 = vld [vmem:[%s213] sm:$0x1]
      %v4784 = vlaneseq
      %v4785 = vshrl.u32 %v4784, 7
      %v4786 = vsub.s32 0, %v4785
      %v4787 = vrot.slane %v4782, %v4786
      %v4789 = vadd.f32 %v4750, %v4787
      %v4790 = vadd.f32 %v4751, %v4787
      %v4791 = vadd.f32 %v4752, %v4787
      %v4792 = vadd.f32 %v4753, %v4787
      %v4793 = vadd.f32 %v4754, %v4787
      %v4794 = vadd.f32 %v4755, %v4787
      %v4795 = vadd.f32 %v4756, %v4787
      %v4796 = vadd.f32 %v4757, %v4787
      %v4797 = vadd.f32 %v4758, %v4787
      %v4798 = vadd.f32 %v4759, %v4787
      %v4799 = vadd.f32 %v4760, %v4787
      %v4800 = vadd.f32 %v4761, %v4787
      %v4801 = vadd.f32 %v4762, %v4787
      %v4802 = vadd.f32 %v4763, %v4787
      %v4803 = vadd.f32 %v4764, %v4787
      %v4804 = vadd.f32 %v4765, %v4787
      %v4805 = vadd.f32 %v4766, %v4787
      %v4806 = vadd.f32 %v4767, %v4787
      %v4807 = vadd.f32 %v4768, %v4787
      %v4808 = vadd.f32 %v4769, %v4787
      %v4809 = vadd.f32 %v4770, %v4787
      %v4810 = vadd.f32 %v4771, %v4787
      %v4811 = vadd.f32 %v4772, %v4787
      %v4812 = vadd.f32 %v4773, %v4787
      %v4813 = vadd.f32 %v4774, %v4787
      %v4814 = vadd.f32 %v4775, %v4787
      %v4815 = vadd.f32 %v4776, %v4787
      %v4816 = vadd.f32 %v4777, %v4787
      %v4817 = vadd.f32 %v4778, %v4787
      %v4818 = vadd.f32 %v4779, %v4787
      %v4819 = vadd.f32 %v4780, %v4787
      %v4820 = vadd.f32 %v4781, %v4787
      %v4821 = vmax.f32 %v4789, 0.0
      %v4822 = vmax.f32 %v4790, 0.0
      %v4823 = vmax.f32 %v4791, 0.0
      %v4824 = vmax.f32 %v4792, 0.0
      %v4825 = vmax.f32 %v4793, 0.0
      %v4826 = vmax.f32 %v4794, 0.0
      %v4827 = vmax.f32 %v4795, 0.0
      %v4828 = vmax.f32 %v4796, 0.0
      %v4829 = vmax.f32 %v4797, 0.0
      %v4830 = vmax.f32 %v4798, 0.0
      %v4831 = vmax.f32 %v4799, 0.0
      %v4832 = vmax.f32 %v4800, 0.0
      %v4833 = vmax.f32 %v4801, 0.0
      %v4834 = vmax.f32 %v4802, 0.0
      %v4835 = vmax.f32 %v4803, 0.0
      %v4836 = vmax.f32 %v4804, 0.0
      %v4837 = vmax.f32 %v4805, 0.0
      %v4838 = vmax.f32 %v4806, 0.0
      %v4839 = vmax.f32 %v4807, 0.0
      %v4840 = vmax.f32 %v4808, 0.0
      %v4841 = vmax.f32 %v4809, 0.0
      %v4842 = vmax.f32 %v4810, 0.0
      %v4843 = vmax.f32 %v4811, 0.0
      %v4844 = vmax.f32 %v4812, 0.0
      %v4845 = vmax.f32 %v4813, 0.0
      %v4846 = vmax.f32 %v4814, 0.0
      %v4847 = vmax.f32 %v4815, 0.0
      %v4848 = vmax.f32 %v4816, 0.0
      %v4849 = vmax.f32 %v4817, 0.0
      %v4850 = vmax.f32 %v4818, 0.0
      %v4851 = vmax.f32 %v4819, 0.0
      %v4852 = vmax.f32 %v4820, 0.0
      %v4853 = vpack.c.bf16 %v4822, %v4821
      %v4854 = vpack.c.bf16 %v4824, %v4823
      %v4855 = vpack.c.bf16 %v4826, %v4825
      %v4856 = vpack.c.bf16 %v4828, %v4827
      %v4857 = vpack.c.bf16 %v4830, %v4829
      %v4858 = vpack.c.bf16 %v4832, %v4831
      %v4859 = vpack.c.bf16 %v4834, %v4833
      %v4860 = vpack.c.bf16 %v4836, %v4835
      %v4861 = vpack.c.bf16 %v4838, %v4837
      %v4862 = vpack.c.bf16 %v4840, %v4839
      %v4863 = vpack.c.bf16 %v4842, %v4841
      %v4864 = vpack.c.bf16 %v4844, %v4843
      %v4865 = vpack.c.bf16 %v4846, %v4845
      %v4866 = vpack.c.bf16 %v4848, %v4847
      %v4867 = vpack.c.bf16 %v4850, %v4849
      %v4868 = vpack.c.bf16 %v4852, %v4851
      %v4885 = vunpack.c.l.b16 %v4853
      %v4886 = vunpack.c.h.b16 %v4853
      %v4887 = vunpack.c.l.b16 %v4854
      %v4888 = vunpack.c.h.b16 %v4854
      %v4889 = vunpack.c.l.b16 %v4855
      %v4890 = vunpack.c.h.b16 %v4855
      %v4891 = vunpack.c.l.b16 %v4856
      %v4892 = vunpack.c.h.b16 %v4856
      %v4893 = vunpack.c.l.b16 %v4857
      %v4894 = vunpack.c.h.b16 %v4857
      %v4895 = vunpack.c.l.b16 %v4858
      %v4896 = vunpack.c.h.b16 %v4858
      %v4897 = vunpack.c.l.b16 %v4859
      %v4898 = vunpack.c.h.b16 %v4859
      %v4899 = vunpack.c.l.b16 %v4860
      %v4900 = vunpack.c.h.b16 %v4860
      %v4901 = vunpack.c.l.b16 %v4861
      %v4902 = vunpack.c.h.b16 %v4861
      %v4903 = vunpack.c.l.b16 %v4862
      %v4904 = vunpack.c.h.b16 %v4862
      %v4905 = vunpack.c.l.b16 %v4863
      %v4906 = vunpack.c.h.b16 %v4863
      %v4907 = vunpack.c.l.b16 %v4864
      %v4908 = vunpack.c.h.b16 %v4864
      %v4909 = vunpack.c.l.b16 %v4865
      %v4910 = vunpack.c.h.b16 %v4865
      %v4911 = vunpack.c.l.b16 %v4866
      %v4912 = vunpack.c.h.b16 %v4866
      %v4913 = vunpack.c.l.b16 %v4867
      %v4914 = vunpack.c.h.b16 %v4867
      %v4915 = vunpack.c.l.b16 %v4868
      %v4916 = vunpack.c.h.b16 %v4868
      %v4917 = vpack.c.b16 %v4885, %v4885
      %v4918 = vpack.c.b16 %v4886, %v4886
      %v4919 = vpack.c.b16 %v4887, %v4887
      %v4920 = vpack.c.b16 %v4888, %v4888
      %v4921 = vpack.c.b16 %v4889, %v4889
      %v4922 = vpack.c.b16 %v4890, %v4890
      %v4923 = vpack.c.b16 %v4891, %v4891
      %v4924 = vpack.c.b16 %v4892, %v4892
      %v4925 = vpack.c.b16 %v4893, %v4893
      %v4926 = vpack.c.b16 %v4894, %v4894
      %v4927 = vpack.c.b16 %v4895, %v4895
      %v4928 = vpack.c.b16 %v4896, %v4896
      %v4929 = vpack.c.b16 %v4897, %v4897
      %v4930 = vpack.c.b16 %v4898, %v4898
      %v4931 = vpack.c.b16 %v4899, %v4899
      %v4932 = vpack.c.b16 %v4900, %v4900
      %v4933 = vpack.c.b16 %v4901, %v4901
      %v4934 = vpack.c.b16 %v4902, %v4902
      %v4935 = vpack.c.b16 %v4903, %v4903
      %v4936 = vpack.c.b16 %v4904, %v4904
      %v4937 = vpack.c.b16 %v4905, %v4905
      %v4938 = vpack.c.b16 %v4906, %v4906
      %v4939 = vpack.c.b16 %v4907, %v4907
      %v4940 = vpack.c.b16 %v4908, %v4908
      %v4941 = vpack.c.b16 %v4909, %v4909
      %v4942 = vpack.c.b16 %v4910, %v4910
      %v4943 = vpack.c.b16 %v4911, %v4911
      %v4944 = vpack.c.b16 %v4912, %v4912
      %v4945 = vpack.c.b16 %v4913, %v4913
      %v4946 = vpack.c.b16 %v4914, %v4914
      %v4947 = vpack.c.b16 %v4915, %v4915
      %v4948 = vpack.c.b16 %v4916, %v4916
      %4981 = vst [vmem:[%s221] sm:$0xf] %v4917
      %4982 = vst [vmem:[%s221 + $0x4] sm:$0xf] %v4918
      %4983 = vst [vmem:[%s221 + $0x8] sm:$0xf] %v4919
      %4984 = vst [vmem:[%s221 + $0xc] sm:$0xf] %v4920
      %4985 = vst [vmem:[%s221 + $0x10] sm:$0xf] %v4921
      %4986 = vst [vmem:[%s221 + $0x14] sm:$0xf] %v4922
      %4987 = vst [vmem:[%s221 + $0x18] sm:$0xf] %v4923
      %4988 = vst [vmem:[%s221 + $0x1c] sm:$0xf] %v4924
      %4989 = vst [vmem:[%s221 + $0x20] sm:$0xf] %v4925
      %4990 = vst [vmem:[%s221 + $0x24] sm:$0xf] %v4926
      %4991 = vst [vmem:[%s221 + $0x28] sm:$0xf] %v4927
      %4992 = vst [vmem:[%s221 + $0x2c] sm:$0xf] %v4928
      %4993 = vst [vmem:[%s221 + $0x30] sm:$0xf] %v4929
      %4994 = vst [vmem:[%s221 + $0x34] sm:$0xf] %v4930
      %4995 = vst [vmem:[%s221 + $0x38] sm:$0xf] %v4931
      %4996 = vst [vmem:[%s221 + $0x3c] sm:$0xf] %v4932
      %4997 = vst [vmem:[%s221 + $0x40] sm:$0xf] %v4933
      %4998 = vst [vmem:[%s221 + $0x44] sm:$0xf] %v4934
      %4999 = vst [vmem:[%s221 + $0x48] sm:$0xf] %v4935
      %5000 = vst [vmem:[%s221 + $0x4c] sm:$0xf] %v4936
      %5001 = vst [vmem:[%s221 + $0x50] sm:$0xf] %v4937
      %5002 = vst [vmem:[%s221 + $0x54] sm:$0xf] %v4938
      %5003 = vst [vmem:[%s221 + $0x58] sm:$0xf] %v4939
      %5004 = vst [vmem:[%s221 + $0x5c] sm:$0xf] %v4940
      %5005 = vst [vmem:[%s221 + $0x60] sm:$0xf] %v4941
      %5006 = vst [vmem:[%s221 + $0x64] sm:$0xf] %v4942
      %5007 = vst [vmem:[%s221 + $0x68] sm:$0xf] %v4943
      %5008 = vst [vmem:[%s221 + $0x6c] sm:$0xf] %v4944
      %5009 = vst [vmem:[%s221 + $0x70] sm:$0xf] %v4945
      %5010 = vst [vmem:[%s221 + $0x74] sm:$0xf] %v4946
      %5011 = vst [vmem:[%s221 + $0x78] sm:$0xf] %v4947
      %5012 = vst [vmem:[%s221 + $0x7c] sm:$0xf] %v4948
      %p5013 = scmp.lt.s32.totalorder %s18, 1
      %s5014 = scalar_select %p5013, %s18, 1
      %p5015 = scmp.lt.s32.totalorder %s19, 0
      %s5016 = scalar_select %p5015, %s19, 0
      %s5017 = smul.addr %s5014, 32
      %s5018 = sadd.s32 %s5016, %s5017
      %s5019 = smul.addr %s5018, 4
      %s5020 = scalar_lea.vmem %s3, %s5019
      // Predicated region
      $region33: #{basic_block_forward.2} parent=31 // pred_check
        %p5021 = pneg %p124
      $region34: #{basic_block_forward.2} parent=31 // pred_check_branch
        %5023 = sbr.rel (%p5021) target = $region36
      $region35: #{basic_block_forward.2} parent=31 // pred_region
        _
      $region36: #{basic_block_forward.2} parent=31 // pred_fallthru
        _
    $region32: #{basic_block_forward.2} parent=5 // pred_fallthru
      _
    %p5024 = scmp.le.s32.totalorder 2, %s9
    // Predicated region
    $region37: #{basic_block_forward.2} parent=5 // pred_check
      %p5025 = pneg %p5024
    $region38: #{basic_block_forward.2} parent=5 // pred_check_branch
      %5027 = sbr.rel (%p5025) target = $region40
    $region39: #{basic_block_forward.2} parent=5 // pred_region
      %s5028 = ssub.s32 %s9, 2
      // Predicated region
      $region41: #{basic_block_forward.2} parent=39 // pred_check
        %p5029 = pneg %p130
      $region42: #{basic_block_forward.2} parent=39 // pred_check_branch
        %5031 = sbr.rel (%p5029) target = $region44
      $region43: #{basic_block_forward.2} parent=39 // pred_region
        %p5032 = scmp.lt.s32.totalorder %s20, 1
        %s5033 = scalar_select %p5032, %s20, 1
        %p5034 = scmp.lt.s32.totalorder %s21, 0
        %s5035 = scalar_select %p5034, %s21, 0
        %s5036 = smul.addr %s5033, 32
        %s5037 = sadd.s32 %s5035, %s5036
        %s5038 = smul.addr %s5037, 4
        %s5039 = scalar_lea.vmem %s3, %s5038
      $region44: #{basic_block_forward.2} parent=39 // pred_fallthru
        _
    $region40: #{basic_block_forward.2} parent=5 // pred_fallthru
      _
  $region6: #{basic_block_forward.2} parent=0 // loop_footer
    %s13 = sadd.s32 1, %s9
  $region7: #{basic_block_forward.2} parent=0 // loop_footer_branch
    %8 = sbr.rel target = $region3
  $region8: #{basic_block_forward.2} parent=0 // loop_exit
    _

// kernel: basic_block_forward.3
$region0: #{basic_block_forward.3}
  #allocation0 [shape = 'u32[]', space=smem, size = 0x4, offset = 0x4, fixed_abs, tag = 'smem constant byte address 0x4 - core index']
  #allocation1 [shape = 'u32[144,128]{1,0:T(1,128)}', space=vmem, size = 0x12000, scoped, tag = 'internal scratch']
  %s0 = inlined_call_operand.vmem [shape: bf16[2,18,18,128], index: 0, kind: input, shape index: {}]
  %s1 = inlined_call_operand.vmem [shape: bf16[9,128,128], index: 1, kind: input, shape index: {}]
  %s2 = inlined_call_operand.vmem [shape: f32[1,128], index: 2, kind: input, shape index: {}]
  %s3 = inlined_call_operand.vmem [shape: bf16[2,256,4], index: 3, kind: input, shape index: {}]
  %s4 = inlined_call_operand.vmem [shape: bf16[4,128], index: 4, kind: input, shape index: {}]
  %s5 = inlined_call_operand.vmem [shape: f32[1,128], index: 5, kind: input, shape index: {}]
  %s6 = inlined_call_operand.vmem [shape: f32[2,256,128], index: 6, kind: output, shape index: {}]
  %s7 = sld [smem:[#allocation0]]
  $region57: #{basic_block_forward.3} parent=0
    _
  %s9 = ssub.s32 1, %s7
  %s10 = scalar_select 0, %s9, %s7
  loop: start=0, step=1, limit=4
  $region2: #{basic_block_forward.3} parent=0 // loop_pre_header
    _
  $region3: #{basic_block_forward.3} parent=0 // loop_header
    %s12 = sphi 0, %s16
    %p13 = scmp.ge.s32.totalorder %s12, 4
    %s19 = sphi 0, %s31
    %s20 = sphi 0, %s27
    %s21 = sphi 0, %s19
    %s22 = sphi 0, %s20
    %s23 = sphi 0, %s21
    %s24 = sphi 0, %s22
    %s34 = sphi 0, %s36
    %s37 = sphi 0, %s34
    %s38 = sphi 0, %s37
    %s54 = sphi 0, %s38
    %s60 = sphi 0, %s62
    %s63 = sphi 0, %s60
    %s64 = sphi 0, %s63
    %s80 = sphi 0, %s64
    %s86 = sphi 0, %s88
    %s89 = sphi 0, %s86
    %s90 = sphi 0, %s89
    %s106 = sphi 0, %s90
    %s112 = sphi 0, %s114
    %s115 = sphi 0, %s112
    %s116 = sphi 0, %s115
    %s132 = sphi 0, %s116
    %s138 = sphi 0, %s140
    %s141 = sphi 0, %s138
    %s142 = sphi 0, %s141
    %s158 = sphi 0, %s142
    %s164 = sphi 0, %s166
    %s167 = sphi 0, %s164
    %s168 = sphi 0, %s167
    %s184 = sphi 0, %s168
    %s192 = sphi 0, %s194
    %s195 = sphi 0, %s192
    %s196 = sphi 0, %s195
    %s212 = sphi 0, %s196
  $region4: #{basic_block_forward.3} parent=0 // loop_header_branch
    %15 = sbr.rel (%p13) target = $region8
  $region5: #{basic_block_forward.3} parent=0 // loop_body
    %s17 = ssub.s32 %s12, 1
    %s18 = ssub.s32 %s12, 2
    %s25 = sadd.s32 1, %s20
    %p26 = scmp.ge.s32.totalorder %s25, 1
    %s27 = scalar_select %p26, 0, %s25
    %s28 = sadd.s32 1, %s19
    %s29 = scalar_select %p26, %s28, %s19
    %p30 = scmp.ge.s32.totalorder %s29, 2
    %s31 = scalar_select %p30, 0, %s29
    %s32 = ssub.s32 %s19, %s31
    %p33 = scmp.eq.s32.totalorder %s32, 0
    %s35 = sadd.s32 %s34, 1
    %s36 = scalar_select %p33, %s34, %s35
    %p39 = pneg %p33
    %p40 = scmp.eq.s32.totalorder %s12, 1
    %p41 = por %p39, %p40
    %p42 = scmp.ne.s32.totalorder %s34, %s37
    %p43 = scmp.eq.s32.totalorder %s12, 0
    %p44 = por %p42, %p43
    %p45 = scmp.ne.s32.totalorder %s34, %s37
    %p46 = scmp.eq.s32.totalorder %s17, 1
    %p47 = por %p45, %p46
    %p48 = scmp.ne.s32.totalorder %s37, %s38
    %p49 = scmp.eq.s32.totalorder %s17, 0
    %p50 = por %p48, %p49
    %p51 = scmp.ne.s32.totalorder %s37, %s38
    %p52 = scmp.eq.s32.totalorder %s18, 1
    %p53 = por %p51, %p52
    %p55 = scmp.ne.s32.totalorder %s38, %s54
    %p56 = scmp.eq.s32.totalorder %s18, 0
    %p57 = por %p55, %p56
    %s58 = ssub.s32 %s20, %s27
    %p59 = scmp.eq.s32.totalorder %s58, 0
    %s61 = sadd.s32 %s60, 1
    %s62 = scalar_select %p59, %s60, %s61
    %p65 = pneg %p59
    %p66 = scmp.eq.s32.totalorder %s12, 1
    %p67 = por %p65, %p66
    %p68 = scmp.ne.s32.totalorder %s60, %s63
    %p69 = scmp.eq.s32.totalorder %s12, 0
    %p70 = por %p68, %p69
    %p71 = scmp.ne.s32.totalorder %s60, %s63
    %p72 = scmp.eq.s32.totalorder %s17, 1
    %p73 = por %p71, %p72
    %p74 = scmp.ne.s32.totalorder %s63, %s64
    %p75 = scmp.eq.s32.totalorder %s17, 0
    %p76 = por %p74, %p75
    %p77 = scmp.ne.s32.totalorder %s63, %s64
    %p78 = scmp.eq.s32.totalorder %s18, 1
    %p79 = por %p77, %p78
    %p81 = scmp.ne.s32.totalorder %s64, %s80
    %p82 = scmp.eq.s32.totalorder %s18, 0
    %p83 = por %p81, %p82
    %s84 = ssub.s32 %s20, %s27
    %p85 = scmp.eq.s32.totalorder %s84, 0
    %s87 = sadd.s32 %s86, 1
    %s88 = scalar_select %p85, %s86, %s87
    %p91 = pneg %p85
    %p92 = scmp.eq.s32.totalorder %s12, 1
    %p93 = por %p91, %p92
    %p94 = scmp.ne.s32.totalorder %s86, %s89
    %p95 = scmp.eq.s32.totalorder %s12, 0
    %p96 = por %p94, %p95
    %p97 = scmp.ne.s32.totalorder %s86, %s89
    %p98 = scmp.eq.s32.totalorder %s17, 1
    %p99 = por %p97, %p98
    %p100 = scmp.ne.s32.totalorder %s89, %s90
    %p101 = scmp.eq.s32.totalorder %s17, 0
    %p102 = por %p100, %p101
    %p103 = scmp.ne.s32.totalorder %s89, %s90
    %p104 = scmp.eq.s32.totalorder %s18, 1
    %p105 = por %p103, %p104
    %p107 = scmp.ne.s32.totalorder %s90, %s106
    %p108 = scmp.eq.s32.totalorder %s18, 0
    %p109 = por %p107, %p108
    %s110 = ssub.s32 %s19, %s31
    %p111 = scmp.eq.s32.totalorder %s110, 0
    %s113 = sadd.s32 %s112, 1
    %s114 = scalar_select %p111, %s112, %s113
    %p117 = pneg %p111
    %p118 = scmp.eq.s32.totalorder %s12, 1
    %p119 = por %p117, %p118
    %p120 = scmp.ne.s32.totalorder %s112, %s115
    %p121 = scmp.eq.s32.totalorder %s12, 0
    %p122 = por %p120, %p121
    %p123 = scmp.ne.s32.totalorder %s112, %s115
    %p124 = scmp.eq.s32.totalorder %s17, 1
    %p125 = por %p123, %p124
    %p126 = scmp.ne.s32.totalorder %s115, %s116
    %p127 = scmp.eq.s32.totalorder %s17, 0
    %p128 = por %p126, %p127
    %p129 = scmp.ne.s32.totalorder %s115, %s116
    %p130 = scmp.eq.s32.totalorder %s18, 1
    %p131 = por %p129, %p130
    %p133 = scmp.ne.s32.totalorder %s116, %s132
    %p134 = scmp.eq.s32.totalorder %s18, 0
    %p135 = por %p133, %p134
    %s136 = ssub.s32 %s20, %s27
    %p137 = scmp.eq.s32.totalorder %s136, 0
    %s139 = sadd.s32 %s138, 1
    %s140 = scalar_select %p137, %s138, %s139
    %p143 = pneg %p137
    %p144 = scmp.eq.s32.totalorder %s12, 1
    %p145 = por %p143, %p144
    %p146 = scmp.ne.s32.totalorder %s138, %s141
    %p147 = scmp.eq.s32.totalorder %s12, 0
    %p148 = por %p146, %p147
    %p149 = scmp.ne.s32.totalorder %s138, %s141
    %p150 = scmp.eq.s32.totalorder %s17, 1
    %p151 = por %p149, %p150
    %p152 = scmp.ne.s32.totalorder %s141, %s142
    %p153 = scmp.eq.s32.totalorder %s17, 0
    %p154 = por %p152, %p153
    %p155 = scmp.ne.s32.totalorder %s141, %s142
    %p156 = scmp.eq.s32.totalorder %s18, 1
    %p157 = por %p155, %p156
    %p159 = scmp.ne.s32.totalorder %s142, %s158
    %p160 = scmp.eq.s32.totalorder %s18, 0
    %p161 = por %p159, %p160
    %s162 = ssub.s32 %s20, %s27
    %p163 = scmp.eq.s32.totalorder %s162, 0
    %s165 = sadd.s32 %s164, 1
    %s166 = scalar_select %p163, %s164, %s165
    %p169 = pneg %p163
    %p170 = scmp.eq.s32.totalorder %s12, 1
    %p171 = por %p169, %p170
    %p172 = scmp.ne.s32.totalorder %s164, %s167
    %p173 = scmp.eq.s32.totalorder %s12, 0
    %p174 = por %p172, %p173
    %p175 = scmp.ne.s32.totalorder %s164, %s167
    %p176 = scmp.eq.s32.totalorder %s17, 1
    %p177 = por %p175, %p176
    %p178 = scmp.ne.s32.totalorder %s167, %s168
    %p179 = scmp.eq.s32.totalorder %s17, 0
    %p180 = por %p178, %p179
    %p181 = scmp.ne.s32.totalorder %s167, %s168
    %p182 = scmp.eq.s32.totalorder %s18, 1
    %p183 = por %p181, %p182
    %p185 = scmp.ne.s32.totalorder %s168, %s184
    %p186 = scmp.eq.s32.totalorder %s18, 0
    %p187 = por %p185, %p186
    %s188 = ssub.s32 %s19, %s31
    %s189 = ssub.s32 %s20, %s27
    %s190 = sor.u32 %s188, %s189
    %p191 = scmp.eq.s32.totalorder %s190, 0
    %s193 = sadd.s32 %s192, 1
    %s194 = scalar_select %p191, %s192, %s193
    %p197 = pneg %p191
    %p198 = scmp.eq.s32.totalorder %s12, 1
    %p199 = por %p197, %p198
    %p200 = scmp.ne.s32.totalorder %s192, %s195
    %p201 = scmp.eq.s32.totalorder %s12, 0
    %p202 = por %p200, %p201
    %p203 = scmp.ne.s32.totalorder %s192, %s195
    %p204 = scmp.eq.s32.totalorder %s17, 1
    %p205 = por %p203, %p204
    %p206 = scmp.ne.s32.totalorder %s195, %s196
    %p207 = scmp.eq.s32.totalorder %s17, 0
    %p208 = por %p206, %p207
    %p209 = scmp.ne.s32.totalorder %s195, %s196
    %p210 = scmp.eq.s32.totalorder %s18, 1
    %p211 = por %p209, %p210
    %p213 = scmp.ne.s32.totalorder %s196, %s212
    %p214 = scmp.eq.s32.totalorder %s18, 0
    %p215 = por %p213, %p214
    %p216 = scmp.le.s32.totalorder 1, %s12
    %p217 = scmp.lt.s32.totalorder %s12, 3
    %p218 = pnand %p216, %p217
    %p219 = pneg %p218
    // Predicated region
    $region9: #{basic_block_forward.3} parent=5 // pred_check
      _
    $region10: #{basic_block_forward.3} parent=5 // pred_check_branch
      %221 = sbr.rel (%p218) target = $region12
    $region11: #{basic_block_forward.3} parent=5 // pred_region
      %s222 = ssub.s32 %s12, 1
      // Predicated region
      $region13: #{basic_block_forward.3} parent=11 // pred_check
        %p223 = pneg %p76
      $region14: #{basic_block_forward.3} parent=11 // pred_check_branch
        %225 = sbr.rel (%p223) target = $region16
      $region15: #{basic_block_forward.3} parent=11 // pred_region
        %p226 = scmp.lt.s32.totalorder %s22, 0
        %s227 = scalar_select %p226, %s22, 0
        %s228 = smul.addr %s227, 4
        %s229 = scalar_lea.vmem %s1, %s228
      $region16: #{basic_block_forward.3} parent=11 // pred_fallthru
        _
      // Predicated region
      $region17: #{basic_block_forward.3} parent=11 // pred_check
        %p230 = pneg %p102
      $region18: #{basic_block_forward.3} parent=11 // pred_check_branch
        %232 = sbr.rel (%p230) target = $region20
      $region19: #{basic_block_forward.3} parent=11 // pred_region
        %p233 = scmp.lt.s32.totalorder %s22, 0
        %s234 = scalar_select %p233, %s22, 0
        %s235 = scalar_lea.vmem %s2, %s234
      $region20: #{basic_block_forward.3} parent=11 // pred_fallthru
        _
      // Predicated region
      $region21: #{basic_block_forward.3} parent=11 // pred_check
        %p236 = pneg %p154
      $region22: #{basic_block_forward.3} parent=11 // pred_check_branch
        %238 = sbr.rel (%p236) target = $region24
      $region23: #{basic_block_forward.3} parent=11 // pred_region
        %p239 = scmp.lt.s32.totalorder %s22, 0
        %s240 = scalar_select %p239, %s22, 0
        %s241 = smul.addr %s240, 2
        %s242 = scalar_lea.vmem %s4, %s241
      $region24: #{basic_block_forward.3} parent=11 // pred_fallthru
        _
      // Predicated region
      $region25: #{basic_block_forward.3} parent=11 // pred_check
        %p243 = pneg %p180
      $region26: #{basic_block_forward.3} parent=11 // pred_check_branch
        %245 = sbr.rel (%p243) target = $region28
      $region27: #{basic_block_forward.3} parent=11 // pred_region
        %p246 = scmp.lt.s32.totalorder %s22, 0
        %s247 = scalar_select %p246, %s22, 0
        %s248 = scalar_lea.vmem %s5, %s247
      $region28: #{basic_block_forward.3} parent=11 // pred_fallthru
        _
    $region12: #{basic_block_forward.3} parent=5 // pred_fallthru
      _
    %p249 = scmp.lt.s32.totalorder %s12, 2
    // Predicated region
    $region29: #{basic_block_forward.3} parent=5 // pred_check
      %p250 = pneg %p249
    $region30: #{basic_block_forward.3} parent=5 // pred_check_branch
      %252 = sbr.rel (%p250) target = $region32
    $region31: #{basic_block_forward.3} parent=5 // pred_region
      // Predicated region
      $region33: #{basic_block_forward.3} parent=31 // pred_check
        %p253 = pneg %p44
      $region34: #{basic_block_forward.3} parent=31 // pred_check_branch
        %255 = sbr.rel (%p253) target = $region36
      $region35: #{basic_block_forward.3} parent=31 // pred_region
        %p256 = scmp.lt.s32.totalorder %s19, 1
        %s257 = scalar_select %p256, %s19, 1
        %s258 = smul.addr %s257, 54
        %s259 = smul.addr %s258, 4
        %s260 = scalar_lea.vmem %s0, %s259
      $region36: #{basic_block_forward.3} parent=31 // pred_fallthru
        _
      // Predicated region
      $region37: #{basic_block_forward.3} parent=31 // pred_check
        %p261 = pneg %p122
      $region38: #{basic_block_forward.3} parent=31 // pred_check_branch
        %263 = sbr.rel (%p261) target = $region40
      $region39: #{basic_block_forward.3} parent=31 // pred_region
        %p264 = scmp.lt.s32.totalorder %s19, 1
        %s265 = scalar_select %p264, %s19, 1
        %s266 = smul.addr %s265, 32
        %s267 = smul.addr %s266, 4
        %s268 = scalar_lea.vmem %s3, %s267
      $region40: #{basic_block_forward.3} parent=31 // pred_fallthru
        _
    $region32: #{basic_block_forward.3} parent=5 // pred_fallthru
      _
    %p269 = scmp.le.s32.totalorder 1, %s12
    %p270 = scmp.lt.s32.totalorder %s12, 3
    %p271 = pnand %p269, %p270
    %p272 = pneg %p271
    // Predicated region
    $region41: #{basic_block_forward.3} parent=5 // pred_check
      _
    $region42: #{basic_block_forward.3} parent=5 // pred_check_branch
      %274 = sbr.rel (%p271) target = $region44
    $region43: #{basic_block_forward.3} parent=5 // pred_region
      %s275 = ssub.s32 %s12, 1
      %p276 = scmp.lt.s32.totalorder %s21, 1
      %s277 = scalar_select %p276, %s21, 1
      %s278 = smul.addr %s277, 54
      %s279 = smul.addr %s278, 4
      %s280 = scalar_lea.vmem %s0, %s279
      %p281 = pneg %p50
      %p282 = pneg %p47
      %p283 = scmp.lt.s32.totalorder %s22, 0
      %s284 = scalar_select %p283, %s22, 0
      %s285 = smul.addr %s284, 4
      %s286 = scalar_lea.vmem %s1, %s285
      %p287 = pneg %p76
      %p288 = pneg %p73
      %p289 = scmp.lt.s32.totalorder %s22, 0
      %s290 = scalar_select %p289, %s22, 0
      %s291 = scalar_lea.vmem %s2, %s290
      %p292 = pneg %p102
      %p293 = pneg %p99
      %p294 = scmp.lt.s32.totalorder %s21, 1
      %s295 = scalar_select %p294, %s21, 1
      %s296 = smul.addr %s295, 32
      %s297 = smul.addr %s296, 4
      %s298 = scalar_lea.vmem %s3, %s297
      %p299 = pneg %p128
      %p300 = pneg %p125
      %p301 = scmp.lt.s32.totalorder %s22, 0
      %s302 = scalar_select %p301, %s22, 0
      %s303 = smul.addr %s302, 2
      %s304 = scalar_lea.vmem %s4, %s303
      %p305 = pneg %p154
      %p306 = pneg %p151
      %p307 = scmp.lt.s32.totalorder %s22, 0
      %s308 = scalar_select %p307, %s22, 0
      %s309 = scalar_lea.vmem %s5, %s308
      %p310 = pneg %p180
      %p311 = pneg %p177
      %p312 = pneg %p208
      %p313 = pneg %p205
      %p314 = scmp.lt.s32.totalorder %s21, 1
      %s315 = scalar_select %p314, %s21, 1
      %p316 = scmp.lt.s32.totalorder %s22, 0
      %s317 = scalar_select %p316, %s22, 0
      %s318 = smul.addr %s315, 32
      %s319 = sadd.s32 %s317, %s318
      %s320 = smul.addr %s319, 8
      %s321 = scalar_lea.vmem %s6, %s320
      %p322 = scmp.lt.s32.totalorder %s21, 1
      %s323 = scalar_select %p322, %s21, 1
      %s324 = smul.addr %s323, 54
      %s325 = smul.addr %s324, 4
      %s326 = scalar_lea.vmem %s0, %s325
      %p327 = scmp.lt.s32.totalorder %s22, 0
      %s328 = scalar_select %p327, %s22, 0
      %s329 = smul.addr %s328, 4
      %s330 = scalar_lea.vmem %s1, %s329
      %p331 = scmp.lt.s32.totalorder %s22, 0
      %s332 = scalar_select %p331, %s22, 0
      %s333 = scalar_lea.vmem %s2, %s332
      %p334 = scmp.lt.s32.totalorder %s21, 1
      %s335 = scalar_select %p334, %s21, 1
      %s336 = smul.addr %s335, 32
      %s337 = smul.addr %s336, 4
      %s338 = scalar_lea.vmem %s3, %s337
      %p339 = scmp.lt.s32.totalorder %s22, 0
      %s340 = scalar_select %p339, %s22, 0
      %s341 = smul.addr %s340, 2
      %s342 = scalar_lea.vmem %s4, %s341
      %p343 = scmp.lt.s32.totalorder %s22, 0
      %s344 = scalar_select %p343, %s22, 0
      %s345 = scalar_lea.vmem %s5, %s344
      %p346 = scmp.lt.s32.totalorder %s21, 1
      %s347 = scalar_select %p346, %s21, 1
      %p348 = scmp.lt.s32.totalorder %s22, 0
      %s349 = scalar_select %p348, %s22, 0
      %s350 = smul.addr %s347, 32
      %s351 = sadd.s32 %s349, %s350
      %s352 = smul.addr %s351, 8
      %s353 = scalar_lea.vmem %s6, %s352
      %v355 = vld [vmem:[%s326] sm:$0xf]
      %v356 = vld [vmem:[%s326 + $0x4] sm:$0xf]
      %v357 = vld [vmem:[%s326 + $0xc] sm:$0xf]
      %v358 = vld [vmem:[%s326 + $0x10] sm:$0xf]
      %v359 = vld [vmem:[%s326 + $0x18] sm:$0xf]
      %v360 = vld [vmem:[%s326 + $0x1c] sm:$0xf]
      %v361 = vld [vmem:[%s326 + $0x24] sm:$0xf]
      %v362 = vld [vmem:[%s326 + $0x28] sm:$0xf]
      %v363 = vld [vmem:[%s326 + $0x30] sm:$0xf]
      %v364 = vld [vmem:[%s326 + $0x34] sm:$0xf]
      %v365 = vld [vmem:[%s326 + $0x3c] sm:$0xf]
      %v366 = vld [vmem:[%s326 + $0x40] sm:$0xf]
      %v367 = vld [vmem:[%s326 + $0x48] sm:$0xf]
      %v368 = vld [vmem:[%s326 + $0x4c] sm:$0xf]
      %v369 = vld [vmem:[%s326 + $0x54] sm:$0xf]
      %v370 = vld [vmem:[%s326 + $0x58] sm:$0xf]
      %v371 = vld [vmem:[%s326 + $0x60] sm:$0xf]
      %v372 = vld [vmem:[%s326 + $0x64] sm:$0xf]
      %v373 = vld [vmem:[%s326 + $0x6c] sm:$0xf]
      %v374 = vld [vmem:[%s326 + $0x70] sm:$0xf]
      %v375 = vld [vmem:[%s326 + $0x78] sm:$0xf]
      %v376 = vld [vmem:[%s326 + $0x7c] sm:$0xf]
      %v377 = vld [vmem:[%s326 + $0x84] sm:$0xf]
      %v378 = vld [vmem:[%s326 + $0x88] sm:$0xf]
      %v379 = vld [vmem:[%s326 + $0x90] sm:$0xf]
      %v380 = vld [vmem:[%s326 + $0x94] sm:$0xf]
      %v381 = vld [vmem:[%s326 + $0x9c] sm:$0xf]
      %v382 = vld [vmem:[%s326 + $0xa0] sm:$0xf]
      %v383 = vld [vmem:[%s326 + $0xa8] sm:$0xf]
      %v384 = vld [vmem:[%s326 + $0xac] sm:$0xf]
      %v385 = vld [vmem:[%s326 + $0xb4] sm:$0xf]
      %v386 = vld [vmem:[%s326 + $0xb8] sm:$0xf]
      %v387 = vld [vmem:[%s330] sm:$0xf]
      %v388 = vld [vmem:[%s330 + $0x4] sm:$0xf]
      %v389 = vld [vmem:[%s330 + $0x8] sm:$0xf]
      %v390 = vld [vmem:[%s330 + $0xc] sm:$0xf]
      %v391 = vld [vmem:[%s330 + $0x10] sm:$0xf]
      %v392 = vld [vmem:[%s330 + $0x14] sm:$0xf]
      %v393 = vld [vmem:[%s330 + $0x18] sm:$0xf]
      %v394 = vld [vmem:[%s330 + $0x1c] sm:$0xf]
      %v395 = vld [vmem:[%s330 + $0x20] sm:$0xf]
      %v396 = vld [vmem:[%s330 + $0x24] sm:$0xf]
      %v397 = vld [vmem:[%s330 + $0x28] sm:$0xf]
      %v398 = vld [vmem:[%s330 + $0x2c] sm:$0xf]
      %v399 = vld [vmem:[%s330 + $0x30] sm:$0xf]
      %v400 = vld [vmem:[%s330 + $0x34] sm:$0xf]
      %v401 = vld [vmem:[%s330 + $0x38] sm:$0xf]
      %v402 = vld [vmem:[%s330 + $0x3c] sm:$0xf]
      %v403 = vld [vmem:[%s326 + $0x8] sm:$0x1]
      %v404 = vld [vmem:[%s326 + $0x14] sm:$0x1]
      %v405 = vld [vmem:[%s326 + $0x20] sm:$0x1]
      %v406 = vld [vmem:[%s326 + $0x2c] sm:$0x1]
      %v407 = vld [vmem:[%s326 + $0x38] sm:$0x1]
      %v408 = vld [vmem:[%s326 + $0x44] sm:$0x1]
      %v409 = vld [vmem:[%s326 + $0x50] sm:$0x1]
      %v410 = vld [vmem:[%s326 + $0x5c] sm:$0x1]
      %v411 = vld [vmem:[%s326 + $0x68] sm:$0x1]
      %v412 = vld [vmem:[%s326 + $0x74] sm:$0x1]
      %v413 = vld [vmem:[%s326 + $0x80] sm:$0x1]
      %v414 = vld [vmem:[%s326 + $0x8c] sm:$0x1]
      %v415 = vld [vmem:[%s326 + $0x98] sm:$0x1]
      %v416 = vld [vmem:[%s326 + $0xa4] sm:$0x1]
      %v417 = vld [vmem:[%s326 + $0xb0] sm:$0x1]
      %v418 = vld [vmem:[%s326 + $0xbc] sm:$0x1]
      %vm419 = vsmask.f32 3328
      %vm420 = vsmask.f32 7440
      %vm421 = vmor %vm419, %vm420
      %v423 = vshrl.u32 %v355, 16
      %v425 = vrot.slane %v423, 4
      %v426 = vshll.u32 %v355, 16
      %v428 = vrot.slane %v426, 5
      %v429 = vor.u32 %v425, %v428
      %v430 = vrot.slane %v429, 4
      %v432 = vshll.u32 %v356, 16
      %v434 = vrot.slane %v432, 5
      %v435 = vsel %vm421, %v430, %v434
      %v436 = vshrl.u32 %v356, 16
      %v438 = vrot.slane %v436, 4
      %v439 = vor.u32 %v438, %v434
      %v440 = vrot.slane %v439, 4
      %v442 = vshll.u32 %v403, 16
      %v444 = vrot.slane %v442, 5
      %v445 = vsel %vm421, %v440, %v444
      %v447 = vshrl.u32 %v357, 16
      %v449 = vrot.slane %v447, 4
      %v450 = vshll.u32 %v357, 16
      %v452 = vrot.slane %v450, 5
      %v453 = vor.u32 %v449, %v452
      %v454 = vrot.slane %v453, 4
      %v456 = vshll.u32 %v358, 16
      %v458 = vrot.slane %v456, 5
      %v459 = vsel %vm421, %v454, %v458
      %v460 = vshrl.u32 %v358, 16
      %v462 = vrot.slane %v460, 4
      %v463 = vor.u32 %v462, %v458
      %v464 = vrot.slane %v463, 4
      %v466 = vshll.u32 %v404, 16
      %v468 = vrot.slane %v466, 5
      %v469 = vsel %vm421, %v464, %v468
      %v471 = vshrl.u32 %v359, 16
      %v473 = vrot.slane %v471, 4
      %v474 = vshll.u32 %v359, 16
      %v476 = vrot.slane %v474, 5
      %v477 = vor.u32 %v473, %v476
      %v478 = vrot.slane %v477, 4
      %v480 = vshll.u32 %v360, 16
      %v482 = vrot.slane %v480, 5
      %v483 = vsel %vm421, %v478, %v482
      %v484 = vshrl.u32 %v360, 16
      %v486 = vrot.slane %v484, 4
      %v487 = vor.u32 %v486, %v482
      %v488 = vrot.slane %v487, 4
      %v490 = vshll.u32 %v405, 16
      %v492 = vrot.slane %v490, 5
      %v493 = vsel %vm421, %v488, %v492
      %v495 = vshrl.u32 %v361, 16
      %v497 = vrot.slane %v495, 4
      %v498 = vshll.u32 %v361, 16
      %v500 = vrot.slane %v498, 5
      %v501 = vor.u32 %v497, %v500
      %v502 = vrot.slane %v501, 4
      %v504 = vshll.u32 %v362, 16
      %v506 = vrot.slane %v504, 5
      %v507 = vsel %vm421, %v502, %v506
      %v508 = vshrl.u32 %v362, 16
      %v510 = vrot.slane %v508, 4
      %v511 = vor.u32 %v510, %v506
      %v512 = vrot.slane %v511, 4
      %v514 = vshll.u32 %v406, 16
      %v516 = vrot.slane %v514, 5
      %v517 = vsel %vm421, %v512, %v516
      %v519 = vshrl.u32 %v363, 16
      %v521 = vrot.slane %v519, 4
      %v522 = vshll.u32 %v363, 16
      %v524 = vrot.slane %v522, 5
      %v525 = vor.u32 %v521, %v524
      %v526 = vrot.slane %v525, 4
      %v528 = vshll.u32 %v364, 16
      %v530 = vrot.slane %v528, 5
      %v531 = vsel %vm421, %v526, %v530
      %v532 = vshrl.u32 %v364, 16
      %v534 = vrot.slane %v532, 4
      %v535 = vor.u32 %v534, %v530
      %v536 = vrot.slane %v535, 4
      %v538 = vshll.u32 %v407, 16
      %v540 = vrot.slane %v538, 5
      %v541 = vsel %vm421, %v536, %v540
      %v543 = vshrl.u32 %v365, 16
      %v545 = vrot.slane %v543, 4
      %v546 = vshll.u32 %v365, 16
      %v548 = vrot.slane %v546, 5
      %v549 = vor.u32 %v545, %v548
      %v550 = vrot.slane %v549, 4
      %v552 = vshll.u32 %v366, 16
      %v554 = vrot.slane %v552, 5
      %v555 = vsel %vm421, %v550, %v554
      %v556 = vshrl.u32 %v366, 16
      %v558 = vrot.slane %v556, 4
      %v559 = vor.u32 %v558, %v554
      %v560 = vrot.slane %v559, 4
      %v562 = vshll.u32 %v408, 16
      %v564 = vrot.slane %v562, 5
      %v565 = vsel %vm421, %v560, %v564
      %v567 = vshrl.u32 %v367, 16
      %v569 = vrot.slane %v567, 4
      %v570 = vshll.u32 %v367, 16
      %v572 = vrot.slane %v570, 5
      %v573 = vor.u32 %v569, %v572
      %v574 = vrot.slane %v573, 4
      %v576 = vshll.u32 %v368, 16
      %v578 = vrot.slane %v576, 5
      %v579 = vsel %vm421, %v574, %v578
      %v580 = vshrl.u32 %v368, 16
      %v582 = vrot.slane %v580, 4
      %v583 = vor.u32 %v582, %v578
      %v584 = vrot.slane %v583, 4
      %v586 = vshll.u32 %v409, 16
      %v588 = vrot.slane %v586, 5
      %v589 = vsel %vm421, %v584, %v588
      %v591 = vshrl.u32 %v369, 16
      %v593 = vrot.slane %v591, 4
      %v594 = vshll.u32 %v369, 16
      %v596 = vrot.slane %v594, 5
      %v597 = vor.u32 %v593, %v596
      %v598 = vrot.slane %v597, 4
      %v600 = vshll.u32 %v370, 16
      %v602 = vrot.slane %v600, 5
      %v603 = vsel %vm421, %v598, %v602
      %v604 = vshrl.u32 %v370, 16
      %v606 = vrot.slane %v604, 4
      %v607 = vor.u32 %v606, %v602
      %v608 = vrot.slane %v607, 4
      %v610 = vshll.u32 %v410, 16
      %v612 = vrot.slane %v610, 5
      %v613 = vsel %vm421, %v608, %v612
      %v615 = vshrl.u32 %v371, 16
      %v617 = vrot.slane %v615, 4
      %v618 = vshll.u32 %v371, 16
      %v620 = vrot.slane %v618, 5
      %v621 = vor.u32 %v617, %v620
      %v622 = vrot.slane %v621, 4
      %v624 = vshll.u32 %v372, 16
      %v626 = vrot.slane %v624, 5
      %v627 = vsel %vm421, %v622, %v626
      %v628 = vshrl.u32 %v372, 16
      %v630 = vrot.slane %v628, 4
      %v631 = vor.u32 %v630, %v626
      %v632 = vrot.slane %v631, 4
      %v634 = vshll.u32 %v411, 16
      %v636 = vrot.slane %v634, 5
      %v637 = vsel %vm421, %v632, %v636
      %v639 = vshrl.u32 %v373, 16
      %v641 = vrot.slane %v639, 4
      %v642 = vshll.u32 %v373, 16
      %v644 = vrot.slane %v642, 5
      %v645 = vor.u32 %v641, %v644
      %v646 = vrot.slane %v645, 4
      %v648 = vshll.u32 %v374, 16
      %v650 = vrot.slane %v648, 5
      %v651 = vsel %vm421, %v646, %v650
      %v652 = vshrl.u32 %v374, 16
      %v654 = vrot.slane %v652, 4
      %v655 = vor.u32 %v654, %v650
      %v656 = vrot.slane %v655, 4
      %v658 = vshll.u32 %v412, 16
      %v660 = vrot.slane %v658, 5
      %v661 = vsel %vm421, %v656, %v660
      %v663 = vshrl.u32 %v375, 16
      %v665 = vrot.slane %v663, 4
      %v666 = vshll.u32 %v375, 16
      %v668 = vrot.slane %v666, 5
      %v669 = vor.u32 %v665, %v668
      %v670 = vrot.slane %v669, 4
      %v672 = vshll.u32 %v376, 16
      %v674 = vrot.slane %v672, 5
      %v675 = vsel %vm421, %v670, %v674
      %v676 = vshrl.u32 %v376, 16
      %v678 = vrot.slane %v676, 4
      %v679 = vor.u32 %v678, %v674
      %v680 = vrot.slane %v679, 4
      %v682 = vshll.u32 %v413, 16
      %v684 = vrot.slane %v682, 5
      %v685 = vsel %vm421, %v680, %v684
      %v687 = vshrl.u32 %v377, 16
      %v689 = vrot.slane %v687, 4
      %v690 = vshll.u32 %v377, 16
      %v692 = vrot.slane %v690, 5
      %v693 = vor.u32 %v689, %v692
      %v694 = vrot.slane %v693, 4
      %v696 = vshll.u32 %v378, 16
      %v698 = vrot.slane %v696, 5
      %v699 = vsel %vm421, %v694, %v698
      %v700 = vshrl.u32 %v378, 16
      %v702 = vrot.slane %v700, 4
      %v703 = vor.u32 %v702, %v698
      %v704 = vrot.slane %v703, 4
      %v706 = vshll.u32 %v414, 16
      %v708 = vrot.slane %v706, 5
      %v709 = vsel %vm421, %v704, %v708
      %v711 = vshrl.u32 %v379, 16
      %v713 = vrot.slane %v711, 4
      %v714 = vshll.u32 %v379, 16
      %v716 = vrot.slane %v714, 5
      %v717 = vor.u32 %v713, %v716
      %v718 = vrot.slane %v717, 4
      %v720 = vshll.u32 %v380, 16
      %v722 = vrot.slane %v720, 5
      %v723 = vsel %vm421, %v718, %v722
      %v724 = vshrl.u32 %v380, 16
      %v726 = vrot.slane %v724, 4
      %v727 = vor.u32 %v726, %v722
      %v728 = vrot.slane %v727, 4
      %v730 = vshll.u32 %v415, 16
      %v732 = vrot.slane %v730, 5
      %v733 = vsel %vm421, %v728, %v732
      %v735 = vshrl.u32 %v381, 16
      %v737 = vrot.slane %v735, 4
      %v738 = vshll.u32 %v381, 16
      %v740 = vrot.slane %v738, 5
      %v741 = vor.u32 %v737, %v740
      %v742 = vrot.slane %v741, 4
      %v744 = vshll.u32 %v382, 16
      %v746 = vrot.slane %v744, 5
      %v747 = vsel %vm421, %v742, %v746
      %v748 = vshrl.u32 %v382, 16
      %v750 = vrot.slane %v748, 4
      %v751 = vor.u32 %v750, %v746
      %v752 = vrot.slane %v751, 4
      %v754 = vshll.u32 %v416, 16
      %v756 = vrot.slane %v754, 5
      %v757 = vsel %vm421, %v752, %v756
      %v759 = vshrl.u32 %v383, 16
      %v761 = vrot.slane %v759, 4
      %v762 = vshll.u32 %v383, 16
      %v764 = vrot.slane %v762, 5
      %v765 = vor.u32 %v761, %v764
      %v766 = vrot.slane %v765, 4
      %v768 = vshll.u32 %v384, 16
      %v770 = vrot.slane %v768, 5
      %v771 = vsel %vm421, %v766, %v770
      %v772 = vshrl.u32 %v384, 16
      %v774 = vrot.slane %v772, 4
      %v775 = vor.u32 %v774, %v770
      %v776 = vrot.slane %v775, 4
      %v778 = vshll.u32 %v417, 16
      %v780 = vrot.slane %v778, 5
      %v781 = vsel %vm421, %v776, %v780
      %v783 = vshrl.u32 %v385, 16
      %v785 = vrot.slane %v783, 4
      %v786 = vshll.u32 %v385, 16
      %v788 = vrot.slane %v786, 5
      %v789 = vor.u32 %v785, %v788
      %v790 = vrot.slane %v789, 4
      %v792 = vshll.u32 %v386, 16
      %v794 = vrot.slane %v792, 5
      %v795 = vsel %vm421, %v790, %v794
      %v796 = vshrl.u32 %v386, 16
      %v798 = vrot.slane %v796, 4
      %v799 = vor.u32 %v798, %v794
      %v800 = vrot.slane %v799, 4
      %v802 = vshll.u32 %v418, 16
      %v804 = vrot.slane %v802, 5
      %v805 = vsel %vm421, %v800, %v804
      %s806 = scalar_lea.vmem %s330, 64
      %v807 = vld [vmem:[%s806] sm:$0xf]
      %v808 = vld [vmem:[%s806 + $0x4] sm:$0xf]
      %v809 = vld [vmem:[%s806 + $0x8] sm:$0xf]
      %v810 = vld [vmem:[%s806 + $0xc] sm:$0xf]
      %v811 = vld [vmem:[%s806 + $0x10] sm:$0xf]
      %v812 = vld [vmem:[%s806 + $0x14] sm:$0xf]
      %v813 = vld [vmem:[%s806 + $0x18] sm:$0xf]
      %v814 = vld [vmem:[%s806 + $0x1c] sm:$0xf]
      %v815 = vld [vmem:[%s806 + $0x20] sm:$0xf]
      %v816 = vld [vmem:[%s806 + $0x24] sm:$0xf]
      %v817 = vld [vmem:[%s806 + $0x28] sm:$0xf]
      %v818 = vld [vmem:[%s806 + $0x2c] sm:$0xf]
      %v819 = vld [vmem:[%s806 + $0x30] sm:$0xf]
      %v820 = vld [vmem:[%s806 + $0x34] sm:$0xf]
      %v821 = vld [vmem:[%s806 + $0x38] sm:$0xf]
      %v822 = vld [vmem:[%s806 + $0x3c] sm:$0xf]
      %v823 = vunpack.c.l.b16 %v435
      %v824 = vunpack.c.l.b16 %v445
      %v825 = vunpack.c.l.b16 %v459
      %v826 = vunpack.c.l.b16 %v469
      %v827 = vunpack.c.l.b16 %v483
      %v828 = vunpack.c.l.b16 %v493
      %v829 = vunpack.c.l.b16 %v507
      %v830 = vunpack.c.l.b16 %v517
      %v831 = vunpack.c.l.b16 %v531
      %v832 = vunpack.c.l.b16 %v541
      %v833 = vunpack.c.l.b16 %v555
      %v834 = vunpack.c.l.b16 %v565
      %v835 = vunpack.c.l.b16 %v579
      %v836 = vunpack.c.l.b16 %v589
      %v837 = vunpack.c.l.b16 %v603
      %v838 = vunpack.c.l.b16 %v613
      %v839 = vunpack.c.l.b16 %v627
      %v840 = vunpack.c.l.b16 %v637
      %v841 = vunpack.c.l.b16 %v651
      %v842 = vunpack.c.l.b16 %v661
      %v843 = vunpack.c.l.b16 %v675
      %v844 = vunpack.c.l.b16 %v685
      %v845 = vunpack.c.l.b16 %v699
      %v846 = vunpack.c.l.b16 %v709
      %v847 = vunpack.c.l.b16 %v723
      %v848 = vunpack.c.l.b16 %v733
      %v849 = vunpack.c.l.b16 %v747
      %v850 = vunpack.c.l.b16 %v757
      %v851 = vunpack.c.l.b16 %v771
      %v852 = vunpack.c.l.b16 %v781
      %v853 = vunpack.c.l.b16 %v795
      %v854 = vunpack.c.l.b16 %v805
      %v855 = vpack.c.b16 %v824, %v823
      %v856 = vpack.c.b16 %v826, %v825
      %v857 = vpack.c.b16 %v828, %v827
      %v858 = vpack.c.b16 %v830, %v829
      %v859 = vpack.c.b16 %v832, %v831
      %v860 = vpack.c.b16 %v834, %v833
      %v861 = vpack.c.b16 %v836, %v835
      %v862 = vpack.c.b16 %v838, %v837
      %v863 = vpack.c.b16 %v840, %v839
      %v864 = vpack.c.b16 %v842, %v841
      %v865 = vpack.c.b16 %v844, %v843
      %v866 = vpack.c.b16 %v846, %v845
      %v867 = vpack.c.b16 %v848, %v847
      %v868 = vpack.c.b16 %v850, %v849
      %v869 = vpack.c.b16 %v852, %v851
      %v870 = vpack.c.b16 %v854, %v853
      %v903 = vunpack.c.l.b16 %v807
      %v904 = vunpack.c.l.b16 %v808
      %v905 = vunpack.c.l.b16 %v809
      %v906 = vunpack.c.l.b16 %v810
      %v907 = vunpack.c.l.b16 %v811
      %v908 = vunpack.c.l.b16 %v812
      %v909 = vunpack.c.l.b16 %v813
      %v910 = vunpack.c.l.b16 %v814
      %v911 = vunpack.c.l.b16 %v815
      %v912 = vunpack.c.l.b16 %v816
      %v913 = vunpack.c.l.b16 %v817
      %v914 = vunpack.c.l.b16 %v818
      %v915 = vunpack.c.l.b16 %v819
      %v916 = vunpack.c.l.b16 %v820
      %v917 = vunpack.c.l.b16 %v821
      %v918 = vunpack.c.l.b16 %v822
      %v919 = vpack.c.b16 %v904, %v903
      %v920 = vpack.c.b16 %v906, %v905
      %v921 = vpack.c.b16 %v908, %v907
      %v922 = vpack.c.b16 %v910, %v909
      %v923 = vpack.c.b16 %v912, %v911
      %v924 = vpack.c.b16 %v914, %v913
      %v925 = vpack.c.b16 %v916, %v915
      %v926 = vpack.c.b16 %v918, %v917
      %935 = vmatprep.subr.bf16.mxu0 0
      %936 = vmatpush1.bf16.msra.mxu0 %v926
      %937 = vmatprep.subr.bf16.mxu0 0
      %938 = vmatpush1.bf16.msra.mxu0 %v925
      %939 = vmatprep.subr.bf16.mxu0 0
      %940 = vmatpush1.bf16.msra.mxu0 %v924
      %941 = vmatprep.subr.bf16.mxu0 0
      %942 = vmatpush1.bf16.msra.mxu0 %v923
      %943 = vmatprep.subr.bf16.mxu0 0
      %944 = vmatpush1.bf16.msra.mxu0 %v922
      %945 = vmatprep.subr.bf16.mxu0 0
      %946 = vmatpush1.bf16.msra.mxu0 %v921
      %947 = vmatprep.subr.bf16.mxu0 0
      %948 = vmatpush1.bf16.msra.mxu0 %v920
      %949 = vmatprep.subr.bf16.mxu0 0
      %950 = vmatpush1.bf16.msra.mxu0 %v919
      %951 = vmatprep.subr.bf16.mxu0 0
      %952 = vmatpush2.bf16.msra.mxu0 0
      %953 = vmatprep.subr.bf16.mxu0 0
      %954 = vmatpush2.bf16.msra.mxu0 0
      %955 = vmatprep.subr.bf16.mxu0 0
      %956 = vmatpush2.bf16.msra.mxu0 0
      %957 = vmatprep.subr.bf16.mxu0 0
      %958 = vmatpush2.bf16.msra.mxu0 0
      %959 = vmatprep.subr.bf16.mxu0 0
      %960 = vmatpush2.bf16.msra.mxu0 0
      %961 = vmatprep.subr.bf16.mxu0 0
      %962 = vmatpush2.bf16.msra.mxu0 0
      %963 = vmatprep.subr.bf16.mxu0 0
      %964 = vmatpush2.bf16.msra.mxu0 0
      %965 = vmatprep.subr.bf16.mxu0 0
      %966 = vmatpush2.bf16.msra.mxu0 0
      %967 = vmatprep.mubr.bf16.mxu0 0
      %968 = vmatmul.mubr.bf16.gmra.mxu0 %v855
      %v969 = vpop.f32.mrf.mxu0
      %v970 = vadd.f32 0.0, %v969
      %v971 = vpop.f32.mrf.mxu0
      %v972 = vpop.f32.mrf.mxu0
      %v973 = vadd.f32 0.0, %v972
      %v974 = vpop.f32.mrf.mxu0
      %975 = vmatprep.mubr.bf16.mxu0 0
      %976 = vmatmul.mubr.bf16.gmra.mxu0 %v856
      %v977 = vpop.f32.mrf.mxu0
      %v978 = vadd.f32 0.0, %v977
      %v979 = vpop.f32.mrf.mxu0
      %v980 = vpop.f32.mrf.mxu0
      %v981 = vadd.f32 0.0, %v980
      %v982 = vpop.f32.mrf.mxu0
      %983 = vmatprep.mubr.bf16.mxu0 0
      %984 = vmatmul.mubr.bf16.gmra.mxu0 %v857
      %v985 = vpop.f32.mrf.mxu0
      %v986 = vadd.f32 0.0, %v985
      %v987 = vpop.f32.mrf.mxu0
      %v988 = vpop.f32.mrf.mxu0
      %v989 = vadd.f32 0.0, %v988
      %v990 = vpop.f32.mrf.mxu0
      %991 = vmatprep.mubr.bf16.mxu0 0
      %992 = vmatmul.mubr.bf16.gmra.mxu0 %v858
      %v993 = vpop.f32.mrf.mxu0
      %v994 = vadd.f32 0.0, %v993
      %v995 = vpop.f32.mrf.mxu0
      %v996 = vpop.f32.mrf.mxu0
      %v997 = vadd.f32 0.0, %v996
      %v998 = vpop.f32.mrf.mxu0
      %999 = vmatprep.mubr.bf16.mxu0 0
      %1000 = vmatmul.mubr.bf16.gmra.mxu0 %v859
      %v1001 = vpop.f32.mrf.mxu0
      %v1002 = vadd.f32 0.0, %v1001
      %v1003 = vpop.f32.mrf.mxu0
      %v1004 = vpop.f32.mrf.mxu0
      %v1005 = vadd.f32 0.0, %v1004
      %v1006 = vpop.f32.mrf.mxu0
      %1007 = vmatprep.mubr.bf16.mxu0 0
      %1008 = vmatmul.mubr.bf16.gmra.mxu0 %v860
      %v1009 = vpop.f32.mrf.mxu0
      %v1010 = vadd.f32 0.0, %v1009
      %v1011 = vpop.f32.mrf.mxu0
      %v1012 = vpop.f32.mrf.mxu0
      %v1013 = vadd.f32 0.0, %v1012
      %v1014 = vpop.f32.mrf.mxu0
      %1015 = vmatprep.mubr.bf16.mxu0 0
      %1016 = vmatmul.mubr.bf16.gmra.mxu0 %v861
      %v1017 = vpop.f32.mrf.mxu0
      %v1018 = vadd.f32 0.0, %v1017
      %v1019 = vpop.f32.mrf.mxu0
      %v1020 = vpop.f32.mrf.mxu0
      %v1021 = vadd.f32 0.0, %v1020
      %v1022 = vpop.f32.mrf.mxu0
      %1023 = vmatprep.mubr.bf16.mxu0 0
      %1024 = vmatmul.mubr.bf16.gmra.mxu0 %v862
      %v1025 = vpop.f32.mrf.mxu0
      %v1026 = vadd.f32 0.0, %v1025
      %v1027 = vpop.f32.mrf.mxu0
      %v1028 = vpop.f32.mrf.mxu0
      %v1029 = vadd.f32 0.0, %v1028
      %v1030 = vpop.f32.mrf.mxu0
      %1031 = vmatprep.mubr.bf16.mxu0 0
      %1032 = vmatmul.mubr.bf16.gmra.mxu0 %v863
      %v1033 = vpop.f32.mrf.mxu0
      %v1034 = vadd.f32 0.0, %v1033
      %v1035 = vpop.f32.mrf.mxu0
      %v1036 = vpop.f32.mrf.mxu0
      %v1037 = vadd.f32 0.0, %v1036
      %v1038 = vpop.f32.mrf.mxu0
      %1039 = vmatprep.mubr.bf16.mxu0 0
      %1040 = vmatmul.mubr.bf16.gmra.mxu0 %v864
      %v1041 = vpop.f32.mrf.mxu0
      %v1042 = vadd.f32 0.0, %v1041
      %v1043 = vpop.f32.mrf.mxu0
      %v1044 = vpop.f32.mrf.mxu0
      %v1045 = vadd.f32 0.0, %v1044
      %v1046 = vpop.f32.mrf.mxu0
      %1047 = vmatprep.mubr.bf16.mxu0 0
      %1048 = vmatmul.mubr.bf16.gmra.mxu0 %v865
      %v1049 = vpop.f32.mrf.mxu0
      %v1050 = vadd.f32 0.0, %v1049
      %v1051 = vpop.f32.mrf.mxu0
      %v1052 = vpop.f32.mrf.mxu0
      %v1053 = vadd.f32 0.0, %v1052
      %v1054 = vpop.f32.mrf.mxu0
      %1055 = vmatprep.mubr.bf16.mxu0 0
      %1056 = vmatmul.mubr.bf16.gmra.mxu0 %v866
      %v1057 = vpop.f32.mrf.mxu0
      %v1058 = vadd.f32 0.0, %v1057
      %v1059 = vpop.f32.mrf.mxu0
      %v1060 = vpop.f32.mrf.mxu0
      %v1061 = vadd.f32 0.0, %v1060
      %v1062 = vpop.f32.mrf.mxu0
      %1063 = vmatprep.mubr.bf16.mxu0 0
      %1064 = vmatmul.mubr.bf16.gmra.mxu0 %v867
      %v1065 = vpop.f32.mrf.mxu0
      %v1066 = vadd.f32 0.0, %v1065
      %v1067 = vpop.f32.mrf.mxu0
      %v1068 = vpop.f32.mrf.mxu0
      %v1069 = vadd.f32 0.0, %v1068
      %v1070 = vpop.f32.mrf.mxu0
      %1071 = vmatprep.mubr.bf16.mxu0 0
      %1072 = vmatmul.mubr.bf16.gmra.mxu0 %v868
      %v1073 = vpop.f32.mrf.mxu0
      %v1074 = vadd.f32 0.0, %v1073
      %v1075 = vpop.f32.mrf.mxu0
      %v1076 = vpop.f32.mrf.mxu0
      %v1077 = vadd.f32 0.0, %v1076
      %v1078 = vpop.f32.mrf.mxu0
      %1079 = vmatprep.mubr.bf16.mxu0 0
      %1080 = vmatmul.mubr.bf16.gmra.mxu0 %v869
      %v1081 = vpop.f32.mrf.mxu0
      %v1082 = vadd.f32 0.0, %v1081
      %v1083 = vpop.f32.mrf.mxu0
      %v1084 = vpop.f32.mrf.mxu0
      %v1085 = vadd.f32 0.0, %v1084
      %v1086 = vpop.f32.mrf.mxu0
      %1087 = vmatprep.mubr.bf16.mxu0 0
      %1088 = vmatmul.mubr.bf16.gmra.mxu0 %v870
      %v1089 = vpop.f32.mrf.mxu0
      %v1090 = vadd.f32 0.0, %v1089
      %v1091 = vpop.f32.mrf.mxu0
      %v1092 = vpop.f32.mrf.mxu0
      %v1093 = vadd.f32 0.0, %v1092
      %v1094 = vpop.f32.mrf.mxu0
      %1095 = vdwg.mxu0
      %v1128 = vunpack.c.l.b16 %v355
      %v1129 = vunpack.c.l.b16 %v356
      %v1130 = vunpack.c.l.b16 %v357
      %v1131 = vunpack.c.l.b16 %v358
      %v1132 = vunpack.c.l.b16 %v359
      %v1133 = vunpack.c.l.b16 %v360
      %v1134 = vunpack.c.l.b16 %v361
      %v1135 = vunpack.c.l.b16 %v362
      %v1136 = vunpack.c.l.b16 %v363
      %v1137 = vunpack.c.l.b16 %v364
      %v1138 = vunpack.c.l.b16 %v365
      %v1139 = vunpack.c.l.b16 %v366
      %v1140 = vunpack.c.l.b16 %v367
      %v1141 = vunpack.c.l.b16 %v368
      %v1142 = vunpack.c.l.b16 %v369
      %v1143 = vunpack.c.l.b16 %v370
      %v1144 = vunpack.c.l.b16 %v371
      %v1145 = vunpack.c.l.b16 %v372
      %v1146 = vunpack.c.l.b16 %v373
      %v1147 = vunpack.c.l.b16 %v374
      %v1148 = vunpack.c.l.b16 %v375
      %v1149 = vunpack.c.l.b16 %v376
      %v1150 = vunpack.c.l.b16 %v377
      %v1151 = vunpack.c.l.b16 %v378
      %v1152 = vunpack.c.l.b16 %v379
      %v1153 = vunpack.c.l.b16 %v380
      %v1154 = vunpack.c.l.b16 %v381
      %v1155 = vunpack.c.l.b16 %v382
      %v1156 = vunpack.c.l.b16 %v383
      %v1157 = vunpack.c.l.b16 %v384
      %v1158 = vunpack.c.l.b16 %v385
      %v1159 = vunpack.c.l.b16 %v386
      %v1160 = vpack.c.b16 %v1129, %v1128
      %v1161 = vpack.c.b16 %v1131, %v1130
      %v1162 = vpack.c.b16 %v1133, %v1132
      %v1163 = vpack.c.b16 %v1135, %v1134
      %v1164 = vpack.c.b16 %v1137, %v1136
      %v1165 = vpack.c.b16 %v1139, %v1138
      %v1166 = vpack.c.b16 %v1141, %v1140
      %v1167 = vpack.c.b16 %v1143, %v1142
      %v1168 = vpack.c.b16 %v1145, %v1144
      %v1169 = vpack.c.b16 %v1147, %v1146
      %v1170 = vpack.c.b16 %v1149, %v1148
      %v1171 = vpack.c.b16 %v1151, %v1150
      %v1172 = vpack.c.b16 %v1153, %v1152
      %v1173 = vpack.c.b16 %v1155, %v1154
      %v1174 = vpack.c.b16 %v1157, %v1156
      %v1175 = vpack.c.b16 %v1159, %v1158
      %v1208 = vunpack.c.l.b16 %v387
      %v1209 = vunpack.c.l.b16 %v388
      %v1210 = vunpack.c.l.b16 %v389
      %v1211 = vunpack.c.l.b16 %v390
      %v1212 = vunpack.c.l.b16 %v391
      %v1213 = vunpack.c.l.b16 %v392
      %v1214 = vunpack.c.l.b16 %v393
      %v1215 = vunpack.c.l.b16 %v394
      %v1216 = vunpack.c.l.b16 %v395
      %v1217 = vunpack.c.l.b16 %v396
      %v1218 = vunpack.c.l.b16 %v397
      %v1219 = vunpack.c.l.b16 %v398
      %v1220 = vunpack.c.l.b16 %v399
      %v1221 = vunpack.c.l.b16 %v400
      %v1222 = vunpack.c.l.b16 %v401
      %v1223 = vunpack.c.l.b16 %v402
      %v1224 = vpack.c.b16 %v1209, %v1208
      %v1225 = vpack.c.b16 %v1211, %v1210
      %v1226 = vpack.c.b16 %v1213, %v1212
      %v1227 = vpack.c.b16 %v1215, %v1214
      %v1228 = vpack.c.b16 %v1217, %v1216
      %v1229 = vpack.c.b16 %v1219, %v1218
      %v1230 = vpack.c.b16 %v1221, %v1220
      %v1231 = vpack.c.b16 %v1223, %v1222
      %1240 = vmatprep.subr.bf16.mxu0 0
      %1241 = vmatpush1.bf16.msra.mxu0 %v1231
      %1242 = vmatprep.subr.bf16.mxu0 0
      %1243 = vmatpush1.bf16.msra.mxu0 %v1230
      %1244 = vmatprep.subr.bf16.mxu0 0
      %1245 = vmatpush1.bf16.msra.mxu0 %v1229
      %1246 = vmatprep.subr.bf16.mxu0 0
      %1247 = vmatpush1.bf16.msra.mxu0 %v1228
      %1248 = vmatprep.subr.bf16.mxu0 0
      %1249 = vmatpush1.bf16.msra.mxu0 %v1227
      %1250 = vmatprep.subr.bf16.mxu0 0
      %1251 = vmatpush1.bf16.msra.mxu0 %v1226
      %1252 = vmatprep.subr.bf16.mxu0 0
      %1253 = vmatpush1.bf16.msra.mxu0 %v1225
      %1254 = vmatprep.subr.bf16.mxu0 0
      %1255 = vmatpush1.bf16.msra.mxu0 %v1224
      %1256 = vmatprep.subr.bf16.mxu0 0
      %1257 = vmatpush2.bf16.msra.mxu0 0
      %1258 = vmatprep.subr.bf16.mxu0 0
      %1259 = vmatpush2.bf16.msra.mxu0 0
      %1260 = vmatprep.subr.bf16.mxu0 0
      %1261 = vmatpush2.bf16.msra.mxu0 0
      %1262 = vmatprep.subr.bf16.mxu0 0
      %1263 = vmatpush2.bf16.msra.mxu0 0
      %1264 = vmatprep.subr.bf16.mxu0 0
      %1265 = vmatpush2.bf16.msra.mxu0 0
      %1266 = vmatprep.subr.bf16.mxu0 0
      %1267 = vmatpush2.bf16.msra.mxu0 0
      %1268 = vmatprep.subr.bf16.mxu0 0
      %1269 = vmatpush2.bf16.msra.mxu0 0
      %1270 = vmatprep.subr.bf16.mxu0 0
      %1271 = vmatpush2.bf16.msra.mxu0 0
      %1272 = vmatprep.mubr.bf16.mxu0 0
      %1273 = vmatmul.mubr.bf16.gmra.mxu0 %v1160
      %v1274 = vpop.f32.mrf.mxu0
      %v1275 = vadd.f32 %v970, %v1274
      %v1276 = vpop.f32.mrf.mxu0
      %v1277 = vpop.f32.mrf.mxu0
      %v1278 = vadd.f32 %v973, %v1277
      %v1279 = vpop.f32.mrf.mxu0
      %1280 = vmatprep.mubr.bf16.mxu0 0
      %1281 = vmatmul.mubr.bf16.gmra.mxu0 %v1161
      %v1282 = vpop.f32.mrf.mxu0
      %v1283 = vadd.f32 %v978, %v1282
      %v1284 = vpop.f32.mrf.mxu0
      %v1285 = vpop.f32.mrf.mxu0
      %v1286 = vadd.f32 %v981, %v1285
      %v1287 = vpop.f32.mrf.mxu0
      %1288 = vmatprep.mubr.bf16.mxu0 0
      %1289 = vmatmul.mubr.bf16.gmra.mxu0 %v1162
      %v1290 = vpop.f32.mrf.mxu0
      %v1291 = vadd.f32 %v986, %v1290
      %v1292 = vpop.f32.mrf.mxu0
      %v1293 = vpop.f32.mrf.mxu0
      %v1294 = vadd.f32 %v989, %v1293
      %v1295 = vpop.f32.mrf.mxu0
      %1296 = vmatprep.mubr.bf16.mxu0 0
      %1297 = vmatmul.mubr.bf16.gmra.mxu0 %v1163
      %v1298 = vpop.f32.mrf.mxu0
      %v1299 = vadd.f32 %v994, %v1298
      %v1300 = vpop.f32.mrf.mxu0
      %v1301 = vpop.f32.mrf.mxu0
      %v1302 = vadd.f32 %v997, %v1301
      %v1303 = vpop.f32.mrf.mxu0
      %1304 = vmatprep.mubr.bf16.mxu0 0
      %1305 = vmatmul.mubr.bf16.gmra.mxu0 %v1164
      %v1306 = vpop.f32.mrf.mxu0
      %v1307 = vadd.f32 %v1002, %v1306
      %v1308 = vpop.f32.mrf.mxu0
      %v1309 = vpop.f32.mrf.mxu0
      %v1310 = vadd.f32 %v1005, %v1309
      %v1311 = vpop.f32.mrf.mxu0
      %1312 = vmatprep.mubr.bf16.mxu0 0
      %1313 = vmatmul.mubr.bf16.gmra.mxu0 %v1165
      %v1314 = vpop.f32.mrf.mxu0
      %v1315 = vadd.f32 %v1010, %v1314
      %v1316 = vpop.f32.mrf.mxu0
      %v1317 = vpop.f32.mrf.mxu0
      %v1318 = vadd.f32 %v1013, %v1317
      %v1319 = vpop.f32.mrf.mxu0
      %1320 = vmatprep.mubr.bf16.mxu0 0
      %1321 = vmatmul.mubr.bf16.gmra.mxu0 %v1166
      %v1322 = vpop.f32.mrf.mxu0
      %v1323 = vadd.f32 %v1018, %v1322
      %v1324 = vpop.f32.mrf.mxu0
      %v1325 = vpop.f32.mrf.mxu0
      %v1326 = vadd.f32 %v1021, %v1325
      %v1327 = vpop.f32.mrf.mxu0
      %1328 = vmatprep.mubr.bf16.mxu0 0
      %1329 = vmatmul.mubr.bf16.gmra.mxu0 %v1167
      %v1330 = vpop.f32.mrf.mxu0
      %v1331 = vadd.f32 %v1026, %v1330
      %v1332 = vpop.f32.mrf.mxu0
      %v1333 = vpop.f32.mrf.mxu0
      %v1334 = vadd.f32 %v1029, %v1333
      %v1335 = vpop.f32.mrf.mxu0
      %1336 = vmatprep.mubr.bf16.mxu0 0
      %1337 = vmatmul.mubr.bf16.gmra.mxu0 %v1168
      %v1338 = vpop.f32.mrf.mxu0
      %v1339 = vadd.f32 %v1034, %v1338
      %v1340 = vpop.f32.mrf.mxu0
      %v1341 = vpop.f32.mrf.mxu0
      %v1342 = vadd.f32 %v1037, %v1341
      %v1343 = vpop.f32.mrf.mxu0
      %1344 = vmatprep.mubr.bf16.mxu0 0
      %1345 = vmatmul.mubr.bf16.gmra.mxu0 %v1169
      %v1346 = vpop.f32.mrf.mxu0
      %v1347 = vadd.f32 %v1042, %v1346
      %v1348 = vpop.f32.mrf.mxu0
      %v1349 = vpop.f32.mrf.mxu0
      %v1350 = vadd.f32 %v1045, %v1349
      %v1351 = vpop.f32.mrf.mxu0
      %1352 = vmatprep.mubr.bf16.mxu0 0
      %1353 = vmatmul.mubr.bf16.gmra.mxu0 %v1170
      %v1354 = vpop.f32.mrf.mxu0
      %v1355 = vadd.f32 %v1050, %v1354
      %v1356 = vpop.f32.mrf.mxu0
      %v1357 = vpop.f32.mrf.mxu0
      %v1358 = vadd.f32 %v1053, %v1357
      %v1359 = vpop.f32.mrf.mxu0
      %1360 = vmatprep.mubr.bf16.mxu0 0
      %1361 = vmatmul.mubr.bf16.gmra.mxu0 %v1171
      %v1362 = vpop.f32.mrf.mxu0
      %v1363 = vadd.f32 %v1058, %v1362
      %v1364 = vpop.f32.mrf.mxu0
      %v1365 = vpop.f32.mrf.mxu0
      %v1366 = vadd.f32 %v1061, %v1365
      %v1367 = vpop.f32.mrf.mxu0
      %1368 = vmatprep.mubr.bf16.mxu0 0
      %1369 = vmatmul.mubr.bf16.gmra.mxu0 %v1172
      %v1370 = vpop.f32.mrf.mxu0
      %v1371 = vadd.f32 %v1066, %v1370
      %v1372 = vpop.f32.mrf.mxu0
      %v1373 = vpop.f32.mrf.mxu0
      %v1374 = vadd.f32 %v1069, %v1373
      %v1375 = vpop.f32.mrf.mxu0
      %1376 = vmatprep.mubr.bf16.mxu0 0
      %1377 = vmatmul.mubr.bf16.gmra.mxu0 %v1173
      %v1378 = vpop.f32.mrf.mxu0
      %v1379 = vadd.f32 %v1074, %v1378
      %v1380 = vpop.f32.mrf.mxu0
      %v1381 = vpop.f32.mrf.mxu0
      %v1382 = vadd.f32 %v1077, %v1381
      %v1383 = vpop.f32.mrf.mxu0
      %1384 = vmatprep.mubr.bf16.mxu0 0
      %1385 = vmatmul.mubr.bf16.gmra.mxu0 %v1174
      %v1386 = vpop.f32.mrf.mxu0
      %v1387 = vadd.f32 %v1082, %v1386
      %v1388 = vpop.f32.mrf.mxu0
      %v1389 = vpop.f32.mrf.mxu0
      %v1390 = vadd.f32 %v1085, %v1389
      %v1391 = vpop.f32.mrf.mxu0
      %1392 = vmatprep.mubr.bf16.mxu0 0
      %1393 = vmatmul.mubr.bf16.gmra.mxu0 %v1175
      %v1394 = vpop.f32.mrf.mxu0
      %v1395 = vadd.f32 %v1090, %v1394
      %v1396 = vpop.f32.mrf.mxu0
      %v1397 = vpop.f32.mrf.mxu0
      %v1398 = vadd.f32 %v1093, %v1397
      %v1399 = vpop.f32.mrf.mxu0
      %1400 = vdwg.mxu0
      %v1401 = vld [vmem:[%s326] sm:$0xe]
      %v1402 = vld [vmem:[%s326 + $0xc] sm:$0xe]
      %v1403 = vld [vmem:[%s326 + $0x18] sm:$0xe]
      %v1404 = vld [vmem:[%s326 + $0x24] sm:$0xe]
      %v1405 = vld [vmem:[%s326 + $0x30] sm:$0xe]
      %v1406 = vld [vmem:[%s326 + $0x3c] sm:$0xe]
      %v1407 = vld [vmem:[%s326 + $0x48] sm:$0xe]
      %v1408 = vld [vmem:[%s326 + $0x54] sm:$0xe]
      %v1409 = vld [vmem:[%s326 + $0x60] sm:$0xe]
      %v1410 = vld [vmem:[%s326 + $0x6c] sm:$0xe]
      %v1411 = vld [vmem:[%s326 + $0x78] sm:$0xe]
      %v1412 = vld [vmem:[%s326 + $0x84] sm:$0xe]
      %v1413 = vld [vmem:[%s326 + $0x90] sm:$0xe]
      %v1414 = vld [vmem:[%s326 + $0x9c] sm:$0xe]
      %v1415 = vld [vmem:[%s326 + $0xa8] sm:$0xe]
      %v1416 = vld [vmem:[%s326 + $0xb4] sm:$0xe]
      %vm1449 = vcmask 1042432
      %vm1450 = vcmask 1046532
      %vm1451 = vmor %vm1449, %vm1450
      %v1452 = vrot.slane %v1401, 5
      %v1453 = vrot.slane %v1452, 4
      %v1454 = vrot.slane %v356, 5
      %v1455 = vsel %vm1451, %v1453, %v1454
      %v1456 = vrot.slane %v1454, 4
      %v1457 = vrot.slane %v403, 5
      %v1458 = vsel %vm1451, %v1456, %v1457
      %v1459 = vrot.slane %v1402, 5
      %v1460 = vrot.slane %v1459, 4
      %v1461 = vrot.slane %v358, 5
      %v1462 = vsel %vm1451, %v1460, %v1461
      %v1463 = vrot.slane %v1461, 4
      %v1464 = vrot.slane %v404, 5
      %v1465 = vsel %vm1451, %v1463, %v1464
      %v1466 = vrot.slane %v1403, 5
      %v1467 = vrot.slane %v1466, 4
      %v1468 = vrot.slane %v360, 5
      %v1469 = vsel %vm1451, %v1467, %v1468
      %v1470 = vrot.slane %v1468, 4
      %v1471 = vrot.slane %v405, 5
      %v1472 = vsel %vm1451, %v1470, %v1471
      %v1473 = vrot.slane %v1404, 5
      %v1474 = vrot.slane %v1473, 4
      %v1475 = vrot.slane %v362, 5
      %v1476 = vsel %vm1451, %v1474, %v1475
      %v1477 = vrot.slane %v1475, 4
      %v1478 = vrot.slane %v406, 5
      %v1479 = vsel %vm1451, %v1477, %v1478
      %v1480 = vrot.slane %v1405, 5
      %v1481 = vrot.slane %v1480, 4
      %v1482 = vrot.slane %v364, 5
      %v1483 = vsel %vm1451, %v1481, %v1482
      %v1484 = vrot.slane %v1482, 4
      %v1485 = vrot.slane %v407, 5
      %v1486 = vsel %vm1451, %v1484, %v1485
      %v1487 = vrot.slane %v1406, 5
      %v1488 = vrot.slane %v1487, 4
      %v1489 = vrot.slane %v366, 5
      %v1490 = vsel %vm1451, %v1488, %v1489
      %v1491 = vrot.slane %v1489, 4
      %v1492 = vrot.slane %v408, 5
      %v1493 = vsel %vm1451, %v1491, %v1492
      %v1494 = vrot.slane %v1407, 5
      %v1495 = vrot.slane %v1494, 4
      %v1496 = vrot.slane %v368, 5
      %v1497 = vsel %vm1451, %v1495, %v1496
      %v1498 = vrot.slane %v1496, 4
      %v1499 = vrot.slane %v409, 5
      %v1500 = vsel %vm1451, %v1498, %v1499
      %v1501 = vrot.slane %v1408, 5
      %v1502 = vrot.slane %v1501, 4
      %v1503 = vrot.slane %v370, 5
      %v1504 = vsel %vm1451, %v1502, %v1503
      %v1505 = vrot.slane %v1503, 4
      %v1506 = vrot.slane %v410, 5
      %v1507 = vsel %vm1451, %v1505, %v1506
      %v1508 = vrot.slane %v1409, 5
      %v1509 = vrot.slane %v1508, 4
      %v1510 = vrot.slane %v372, 5
      %v1511 = vsel %vm1451, %v1509, %v1510
      %v1512 = vrot.slane %v1510, 4
      %v1513 = vrot.slane %v411, 5
      %v1514 = vsel %vm1451, %v1512, %v1513
      %v1515 = vrot.slane %v1410, 5
      %v1516 = vrot.slane %v1515, 4
      %v1517 = vrot.slane %v374, 5
      %v1518 = vsel %vm1451, %v1516, %v1517
      %v1519 = vrot.slane %v1517, 4
      %v1520 = vrot.slane %v412, 5
      %v1521 = vsel %vm1451, %v1519, %v1520
      %v1522 = vrot.slane %v1411, 5
      %v1523 = vrot.slane %v1522, 4
      %v1524 = vrot.slane %v376, 5
      %v1525 = vsel %vm1451, %v1523, %v1524
      %v1526 = vrot.slane %v1524, 4
      %v1527 = vrot.slane %v413, 5
      %v1528 = vsel %vm1451, %v1526, %v1527
      %v1529 = vrot.slane %v1412, 5
      %v1530 = vrot.slane %v1529, 4
      %v1531 = vrot.slane %v378, 5
      %v1532 = vsel %vm1451, %v1530, %v1531
      %v1533 = vrot.slane %v1531, 4
      %v1534 = vrot.slane %v414, 5
      %v1535 = vsel %vm1451, %v1533, %v1534
      %v1536 = vrot.slane %v1413, 5
      %v1537 = vrot.slane %v1536, 4
      %v1538 = vrot.slane %v380, 5
      %v1539 = vsel %vm1451, %v1537, %v1538
      %v1540 = vrot.slane %v1538, 4
      %v1541 = vrot.slane %v415, 5
      %v1542 = vsel %vm1451, %v1540, %v1541
      %v1543 = vrot.slane %v1414, 5
      %v1544 = vrot.slane %v1543, 4
      %v1545 = vrot.slane %v382, 5
      %v1546 = vsel %vm1451, %v1544, %v1545
      %v1547 = vrot.slane %v1545, 4
      %v1548 = vrot.slane %v416, 5
      %v1549 = vsel %vm1451, %v1547, %v1548
      %v1550 = vrot.slane %v1415, 5
      %v1551 = vrot.slane %v1550, 4
      %v1552 = vrot.slane %v384, 5
      %v1553 = vsel %vm1451, %v1551, %v1552
      %v1554 = vrot.slane %v1552, 4
      %v1555 = vrot.slane %v417, 5
      %v1556 = vsel %vm1451, %v1554, %v1555
      %v1557 = vrot.slane %v1416, 5
      %v1558 = vrot.slane %v1557, 4
      %v1559 = vrot.slane %v386, 5
      %v1560 = vsel %vm1451, %v1558, %v1559
      %v1561 = vrot.slane %v1559, 4
      %v1562 = vrot.slane %v418, 5
      %v1563 = vsel %vm1451, %v1561, %v1562
      %s1564 = scalar_lea.vmem %s330, 128
      %v1565 = vld [vmem:[%s1564] sm:$0xf]
      %v1566 = vld [vmem:[%s1564 + $0x4] sm:$0xf]
      %v1567 = vld [vmem:[%s1564 + $0x8] sm:$0xf]
      %v1568 = vld [vmem:[%s1564 + $0xc] sm:$0xf]
      %v1569 = vld [vmem:[%s1564 + $0x10] sm:$0xf]
      %v1570 = vld [vmem:[%s1564 + $0x14] sm:$0xf]
      %v1571 = vld [vmem:[%s1564 + $0x18] sm:$0xf]
      %v1572 = vld [vmem:[%s1564 + $0x1c] sm:$0xf]
      %v1573 = vld [vmem:[%s1564 + $0x20] sm:$0xf]
      %v1574 = vld [vmem:[%s1564 + $0x24] sm:$0xf]
      %v1575 = vld [vmem:[%s1564 + $0x28] sm:$0xf]
      %v1576 = vld [vmem:[%s1564 + $0x2c] sm:$0xf]
      %v1577 = vld [vmem:[%s1564 + $0x30] sm:$0xf]
      %v1578 = vld [vmem:[%s1564 + $0x34] sm:$0xf]
      %v1579 = vld [vmem:[%s1564 + $0x38] sm:$0xf]
      %v1580 = vld [vmem:[%s1564 + $0x3c] sm:$0xf]
      %v1581 = vunpack.c.l.b16 %v1455
      %v1582 = vunpack.c.l.b16 %v1458
      %v1583 = vunpack.c.l.b16 %v1462
      %v1584 = vunpack.c.l.b16 %v1465
      %v1585 = vunpack.c.l.b16 %v1469
      %v1586 = vunpack.c.l.b16 %v1472
      %v1587 = vunpack.c.l.b16 %v1476
      %v1588 = vunpack.c.l.b16 %v1479
      %v1589 = vunpack.c.l.b16 %v1483
      %v1590 = vunpack.c.l.b16 %v1486
      %v1591 = vunpack.c.l.b16 %v1490
      %v1592 = vunpack.c.l.b16 %v1493
      %v1593 = vunpack.c.l.b16 %v1497
      %v1594 = vunpack.c.l.b16 %v1500
      %v1595 = vunpack.c.l.b16 %v1504
      %v1596 = vunpack.c.l.b16 %v1507
      %v1597 = vunpack.c.l.b16 %v1511
      %v1598 = vunpack.c.l.b16 %v1514
      %v1599 = vunpack.c.l.b16 %v1518
      %v1600 = vunpack.c.l.b16 %v1521
      %v1601 = vunpack.c.l.b16 %v1525
      %v1602 = vunpack.c.l.b16 %v1528
      %v1603 = vunpack.c.l.b16 %v1532
      %v1604 = vunpack.c.l.b16 %v1535
      %v1605 = vunpack.c.l.b16 %v1539
      %v1606 = vunpack.c.l.b16 %v1542
      %v1607 = vunpack.c.l.b16 %v1546
      %v1608 = vunpack.c.l.b16 %v1549
      %v1609 = vunpack.c.l.b16 %v1553
      %v1610 = vunpack.c.l.b16 %v1556
      %v1611 = vunpack.c.l.b16 %v1560
      %v1612 = vunpack.c.l.b16 %v1563
      %v1613 = vpack.c.b16 %v1582, %v1581
      %v1614 = vpack.c.b16 %v1584, %v1583
      %v1615 = vpack.c.b16 %v1586, %v1585
      %v1616 = vpack.c.b16 %v1588, %v1587
      %v1617 = vpack.c.b16 %v1590, %v1589
      %v1618 = vpack.c.b16 %v1592, %v1591
      %v1619 = vpack.c.b16 %v1594, %v1593
      %v1620 = vpack.c.b16 %v1596, %v1595
      %v1621 = vpack.c.b16 %v1598, %v1597
      %v1622 = vpack.c.b16 %v1600, %v1599
      %v1623 = vpack.c.b16 %v1602, %v1601
      %v1624 = vpack.c.b16 %v1604, %v1603
      %v1625 = vpack.c.b16 %v1606, %v1605
      %v1626 = vpack.c.b16 %v1608, %v1607
      %v1627 = vpack.c.b16 %v1610, %v1609
      %v1628 = vpack.c.b16 %v1612, %v1611
      %v1661 = vunpack.c.l.b16 %v1565
      %v1662 = vunpack.c.l.b16 %v1566
      %v1663 = vunpack.c.l.b16 %v1567
      %v1664 = vunpack.c.l.b16 %v1568
      %v1665 = vunpack.c.l.b16 %v1569
      %v1666 = vunpack.c.l.b16 %v1570
      %v1667 = vunpack.c.l.b16 %v1571
      %v1668 = vunpack.c.l.b16 %v1572
      %v1669 = vunpack.c.l.b16 %v1573
      %v1670 = vunpack.c.l.b16 %v1574
      %v1671 = vunpack.c.l.b16 %v1575
      %v1672 = vunpack.c.l.b16 %v1576
      %v1673 = vunpack.c.l.b16 %v1577
      %v1674 = vunpack.c.l.b16 %v1578
      %v1675 = vunpack.c.l.b16 %v1579
      %v1676 = vunpack.c.l.b16 %v1580
      %v1677 = vpack.c.b16 %v1662, %v1661
      %v1678 = vpack.c.b16 %v1664, %v1663
      %v1679 = vpack.c.b16 %v1666, %v1665
      %v1680 = vpack.c.b16 %v1668, %v1667
      %v1681 = vpack.c.b16 %v1670, %v1669
      %v1682 = vpack.c.b16 %v1672, %v1671
      %v1683 = vpack.c.b16 %v1674, %v1673
      %v1684 = vpack.c.b16 %v1676, %v1675
      %1693 = vmatprep.subr.bf16.mxu0 0
      %1694 = vmatpush1.bf16.msra.mxu0 %v1684
      %1695 = vmatprep.subr.bf16.mxu0 0
      %1696 = vmatpush1.bf16.msra.mxu0 %v1683
      %1697 = vmatprep.subr.bf16.mxu0 0
      %1698 = vmatpush1.bf16.msra.mxu0 %v1682
      %1699 = vmatprep.subr.bf16.mxu0 0
      %1700 = vmatpush1.bf16.msra.mxu0 %v1681
      %1701 = vmatprep.subr.bf16.mxu0 0
      %1702 = vmatpush1.bf16.msra.mxu0 %v1680
      %1703 = vmatprep.subr.bf16.mxu0 0
      %1704 = vmatpush1.bf16.msra.mxu0 %v1679
      %1705 = vmatprep.subr.bf16.mxu0 0
      %1706 = vmatpush1.bf16.msra.mxu0 %v1678
      %1707 = vmatprep.subr.bf16.mxu0 0
      %1708 = vmatpush1.bf16.msra.mxu0 %v1677
      %1709 = vmatprep.subr.bf16.mxu0 0
      %1710 = vmatpush2.bf16.msra.mxu0 0
      %1711 = vmatprep.subr.bf16.mxu0 0
      %1712 = vmatpush2.bf16.msra.mxu0 0
      %1713 = vmatprep.subr.bf16.mxu0 0
      %1714 = vmatpush2.bf16.msra.mxu0 0
      %1715 = vmatprep.subr.bf16.mxu0 0
      %1716 = vmatpush2.bf16.msra.mxu0 0
      %1717 = vmatprep.subr.bf16.mxu0 0
      %1718 = vmatpush2.bf16.msra.mxu0 0
      %1719 = vmatprep.subr.bf16.mxu0 0
      %1720 = vmatpush2.bf16.msra.mxu0 0
      %1721 = vmatprep.subr.bf16.mxu0 0
      %1722 = vmatpush2.bf16.msra.mxu0 0
      %1723 = vmatprep.subr.bf16.mxu0 0
      %1724 = vmatpush2.bf16.msra.mxu0 0
      %1725 = vmatprep.mubr.bf16.mxu0 0
      %1726 = vmatmul.mubr.bf16.gmra.mxu0 %v1613
      %v1727 = vpop.f32.mrf.mxu0
      %v1728 = vadd.f32 0.0, %v1727
      %v1729 = vpop.f32.mrf.mxu0
      %v1730 = vpop.f32.mrf.mxu0
      %v1731 = vadd.f32 0.0, %v1730
      %v1732 = vpop.f32.mrf.mxu0
      %1733 = vmatprep.mubr.bf16.mxu0 0
      %1734 = vmatmul.mubr.bf16.gmra.mxu0 %v1614
      %v1735 = vpop.f32.mrf.mxu0
      %v1736 = vadd.f32 0.0, %v1735
      %v1737 = vpop.f32.mrf.mxu0
      %v1738 = vpop.f32.mrf.mxu0
      %v1739 = vadd.f32 0.0, %v1738
      %v1740 = vpop.f32.mrf.mxu0
      %1741 = vmatprep.mubr.bf16.mxu0 0
      %1742 = vmatmul.mubr.bf16.gmra.mxu0 %v1615
      %v1743 = vpop.f32.mrf.mxu0
      %v1744 = vadd.f32 0.0, %v1743
      %v1745 = vpop.f32.mrf.mxu0
      %v1746 = vpop.f32.mrf.mxu0
      %v1747 = vadd.f32 0.0, %v1746
      %v1748 = vpop.f32.mrf.mxu0
      %1749 = vmatprep.mubr.bf16.mxu0 0
      %1750 = vmatmul.mubr.bf16.gmra.mxu0 %v1616
      %v1751 = vpop.f32.mrf.mxu0
      %v1752 = vadd.f32 0.0, %v1751
      %v1753 = vpop.f32.mrf.mxu0
      %v1754 = vpop.f32.mrf.mxu0
      %v1755 = vadd.f32 0.0, %v1754
      %v1756 = vpop.f32.mrf.mxu0
      %1757 = vmatprep.mubr.bf16.mxu0 0
      %1758 = vmatmul.mubr.bf16.gmra.mxu0 %v1617
      %v1759 = vpop.f32.mrf.mxu0
      %v1760 = vadd.f32 0.0, %v1759
      %v1761 = vpop.f32.mrf.mxu0
      %v1762 = vpop.f32.mrf.mxu0
      %v1763 = vadd.f32 0.0, %v1762
      %v1764 = vpop.f32.mrf.mxu0
      %1765 = vmatprep.mubr.bf16.mxu0 0
      %1766 = vmatmul.mubr.bf16.gmra.mxu0 %v1618
      %v1767 = vpop.f32.mrf.mxu0
      %v1768 = vadd.f32 0.0, %v1767
      %v1769 = vpop.f32.mrf.mxu0
      %v1770 = vpop.f32.mrf.mxu0
      %v1771 = vadd.f32 0.0, %v1770
      %v1772 = vpop.f32.mrf.mxu0
      %1773 = vmatprep.mubr.bf16.mxu0 0
      %1774 = vmatmul.mubr.bf16.gmra.mxu0 %v1619
      %v1775 = vpop.f32.mrf.mxu0
      %v1776 = vadd.f32 0.0, %v1775
      %v1777 = vpop.f32.mrf.mxu0
      %v1778 = vpop.f32.mrf.mxu0
      %v1779 = vadd.f32 0.0, %v1778
      %v1780 = vpop.f32.mrf.mxu0
      %1781 = vmatprep.mubr.bf16.mxu0 0
      %1782 = vmatmul.mubr.bf16.gmra.mxu0 %v1620
      %v1783 = vpop.f32.mrf.mxu0
      %v1784 = vadd.f32 0.0, %v1783
      %v1785 = vpop.f32.mrf.mxu0
      %v1786 = vpop.f32.mrf.mxu0
      %v1787 = vadd.f32 0.0, %v1786
      %v1788 = vpop.f32.mrf.mxu0
      %1789 = vmatprep.mubr.bf16.mxu0 0
      %1790 = vmatmul.mubr.bf16.gmra.mxu0 %v1621
      %v1791 = vpop.f32.mrf.mxu0
      %v1792 = vadd.f32 0.0, %v1791
      %v1793 = vpop.f32.mrf.mxu0
      %v1794 = vpop.f32.mrf.mxu0
      %v1795 = vadd.f32 0.0, %v1794
      %v1796 = vpop.f32.mrf.mxu0
      %1797 = vmatprep.mubr.bf16.mxu0 0
      %1798 = vmatmul.mubr.bf16.gmra.mxu0 %v1622
      %v1799 = vpop.f32.mrf.mxu0
      %v1800 = vadd.f32 0.0, %v1799
      %v1801 = vpop.f32.mrf.mxu0
      %v1802 = vpop.f32.mrf.mxu0
      %v1803 = vadd.f32 0.0, %v1802
      %v1804 = vpop.f32.mrf.mxu0
      %1805 = vmatprep.mubr.bf16.mxu0 0
      %1806 = vmatmul.mubr.bf16.gmra.mxu0 %v1623
      %v1807 = vpop.f32.mrf.mxu0
      %v1808 = vadd.f32 0.0, %v1807
      %v1809 = vpop.f32.mrf.mxu0
      %v1810 = vpop.f32.mrf.mxu0
      %v1811 = vadd.f32 0.0, %v1810
      %v1812 = vpop.f32.mrf.mxu0
      %1813 = vmatprep.mubr.bf16.mxu0 0
      %1814 = vmatmul.mubr.bf16.gmra.mxu0 %v1624
      %v1815 = vpop.f32.mrf.mxu0
      %v1816 = vadd.f32 0.0, %v1815
      %v1817 = vpop.f32.mrf.mxu0
      %v1818 = vpop.f32.mrf.mxu0
      %v1819 = vadd.f32 0.0, %v1818
      %v1820 = vpop.f32.mrf.mxu0
      %1821 = vmatprep.mubr.bf16.mxu0 0
      %1822 = vmatmul.mubr.bf16.gmra.mxu0 %v1625
      %v1823 = vpop.f32.mrf.mxu0
      %v1824 = vadd.f32 0.0, %v1823
      %v1825 = vpop.f32.mrf.mxu0
      %v1826 = vpop.f32.mrf.mxu0
      %v1827 = vadd.f32 0.0, %v1826
      %v1828 = vpop.f32.mrf.mxu0
      %1829 = vmatprep.mubr.bf16.mxu0 0
      %1830 = vmatmul.mubr.bf16.gmra.mxu0 %v1626
      %v1831 = vpop.f32.mrf.mxu0
      %v1832 = vadd.f32 0.0, %v1831
      %v1833 = vpop.f32.mrf.mxu0
      %v1834 = vpop.f32.mrf.mxu0
      %v1835 = vadd.f32 0.0, %v1834
      %v1836 = vpop.f32.mrf.mxu0
      %1837 = vmatprep.mubr.bf16.mxu0 0
      %1838 = vmatmul.mubr.bf16.gmra.mxu0 %v1627
      %v1839 = vpop.f32.mrf.mxu0
      %v1840 = vadd.f32 0.0, %v1839
      %v1841 = vpop.f32.mrf.mxu0
      %v1842 = vpop.f32.mrf.mxu0
      %v1843 = vadd.f32 0.0, %v1842
      %v1844 = vpop.f32.mrf.mxu0
      %1845 = vmatprep.mubr.bf16.mxu0 0
      %1846 = vmatmul.mubr.bf16.gmra.mxu0 %v1628
      %v1847 = vpop.f32.mrf.mxu0
      %v1848 = vadd.f32 0.0, %v1847
      %v1849 = vpop.f32.mrf.mxu0
      %v1850 = vpop.f32.mrf.mxu0
      %v1851 = vadd.f32 0.0, %v1850
      %v1852 = vpop.f32.mrf.mxu0
      %1853 = vdwg.mxu0
      %v1854 = vadd.f32 %v1275, %v1728
      %v1855 = vadd.f32 %v1278, %v1731
      %v1856 = vadd.f32 %v1283, %v1736
      %v1857 = vadd.f32 %v1286, %v1739
      %v1858 = vadd.f32 %v1291, %v1744
      %v1859 = vadd.f32 %v1294, %v1747
      %v1860 = vadd.f32 %v1299, %v1752
      %v1861 = vadd.f32 %v1302, %v1755
      %v1862 = vadd.f32 %v1307, %v1760
      %v1863 = vadd.f32 %v1310, %v1763
      %v1864 = vadd.f32 %v1315, %v1768
      %v1865 = vadd.f32 %v1318, %v1771
      %v1866 = vadd.f32 %v1323, %v1776
      %v1867 = vadd.f32 %v1326, %v1779
      %v1868 = vadd.f32 %v1331, %v1784
      %v1869 = vadd.f32 %v1334, %v1787
      %v1870 = vadd.f32 %v1339, %v1792
      %v1871 = vadd.f32 %v1342, %v1795
      %v1872 = vadd.f32 %v1347, %v1800
      %v1873 = vadd.f32 %v1350, %v1803
      %v1874 = vadd.f32 %v1355, %v1808
      %v1875 = vadd.f32 %v1358, %v1811
      %v1876 = vadd.f32 %v1363, %v1816
      %v1877 = vadd.f32 %v1366, %v1819
      %v1878 = vadd.f32 %v1371, %v1824
      %v1879 = vadd.f32 %v1374, %v1827
      %v1880 = vadd.f32 %v1379, %v1832
      %v1881 = vadd.f32 %v1382, %v1835
      %v1882 = vadd.f32 %v1387, %v1840
      %v1883 = vadd.f32 %v1390, %v1843
      %v1884 = vadd.f32 %v1395, %v1848
      %v1885 = vadd.f32 %v1398, %v1851
      %s1886 = scalar_lea.vmem %s326, 12
      %v1887 = vld [vmem:[%s1886] sm:$0xf]
      %v1888 = vld [vmem:[%s1886 + $0x4] sm:$0xf]
      %v1889 = vld [vmem:[%s1886 + $0xc] sm:$0xf]
      %v1890 = vld [vmem:[%s1886 + $0x10] sm:$0xf]
      %v1891 = vld [vmem:[%s1886 + $0x18] sm:$0xf]
      %v1892 = vld [vmem:[%s1886 + $0x1c] sm:$0xf]
      %v1893 = vld [vmem:[%s1886 + $0x24] sm:$0xf]
      %v1894 = vld [vmem:[%s1886 + $0x28] sm:$0xf]
      %v1895 = vld [vmem:[%s1886 + $0x30] sm:$0xf]
      %v1896 = vld [vmem:[%s1886 + $0x34] sm:$0xf]
      %v1897 = vld [vmem:[%s1886 + $0x3c] sm:$0xf]
      %v1898 = vld [vmem:[%s1886 + $0x40] sm:$0xf]
      %v1899 = vld [vmem:[%s1886 + $0x48] sm:$0xf]
      %v1900 = vld [vmem:[%s1886 + $0x4c] sm:$0xf]
      %v1901 = vld [vmem:[%s1886 + $0x54] sm:$0xf]
      %v1902 = vld [vmem:[%s1886 + $0x58] sm:$0xf]
      %v1903 = vld [vmem:[%s1886 + $0x60] sm:$0xf]
      %v1904 = vld [vmem:[%s1886 + $0x64] sm:$0xf]
      %v1905 = vld [vmem:[%s1886 + $0x6c] sm:$0xf]
      %v1906 = vld [vmem:[%s1886 + $0x70] sm:$0xf]
      %v1907 = vld [vmem:[%s1886 + $0x78] sm:$0xf]
      %v1908 = vld [vmem:[%s1886 + $0x7c] sm:$0xf]
      %v1909 = vld [vmem:[%s1886 + $0x84] sm:$0xf]
      %v1910 = vld [vmem:[%s1886 + $0x88] sm:$0xf]
      %v1911 = vld [vmem:[%s1886 + $0x90] sm:$0xf]
      %v1912 = vld [vmem:[%s1886 + $0x94] sm:$0xf]
      %v1913 = vld [vmem:[%s1886 + $0x9c] sm:$0xf]
      %v1914 = vld [vmem:[%s1886 + $0xa0] sm:$0xf]
      %v1915 = vld [vmem:[%s1886 + $0xa8] sm:$0xf]
      %v1916 = vld [vmem:[%s1886 + $0xac] sm:$0xf]
      %v1917 = vld [vmem:[%s1886 + $0xb4] sm:$0xf]
      %v1918 = vld [vmem:[%s1886 + $0xb8] sm:$0xf]
      %s1919 = scalar_lea.vmem %s330, 192
      %v1920 = vld [vmem:[%s1919] sm:$0xf]
      %v1921 = vld [vmem:[%s1919 + $0x4] sm:$0xf]
      %v1922 = vld [vmem:[%s1919 + $0x8] sm:$0xf]
      %v1923 = vld [vmem:[%s1919 + $0xc] sm:$0xf]
      %v1924 = vld [vmem:[%s1919 + $0x10] sm:$0xf]
      %v1925 = vld [vmem:[%s1919 + $0x14] sm:$0xf]
      %v1926 = vld [vmem:[%s1919 + $0x18] sm:$0xf]
      %v1927 = vld [vmem:[%s1919 + $0x1c] sm:$0xf]
      %v1928 = vld [vmem:[%s1919 + $0x20] sm:$0xf]
      %v1929 = vld [vmem:[%s1919 + $0x24] sm:$0xf]
      %v1930 = vld [vmem:[%s1919 + $0x28] sm:$0xf]
      %v1931 = vld [vmem:[%s1919 + $0x2c] sm:$0xf]
      %v1932 = vld [vmem:[%s1919 + $0x30] sm:$0xf]
      %v1933 = vld [vmem:[%s1919 + $0x34] sm:$0xf]
      %v1934 = vld [vmem:[%s1919 + $0x38] sm:$0xf]
      %v1935 = vld [vmem:[%s1919 + $0x3c] sm:$0xf]
      %v1968 = vunpack.c.l.b16 %v1887
      %v1969 = vunpack.c.l.b16 %v1888
      %v1970 = vunpack.c.l.b16 %v1889
      %v1971 = vunpack.c.l.b16 %v1890
      %v1972 = vunpack.c.l.b16 %v1891
      %v1973 = vunpack.c.l.b16 %v1892
      %v1974 = vunpack.c.l.b16 %v1893
      %v1975 = vunpack.c.l.b16 %v1894
      %v1976 = vunpack.c.l.b16 %v1895
      %v1977 = vunpack.c.l.b16 %v1896
      %v1978 = vunpack.c.l.b16 %v1897
      %v1979 = vunpack.c.l.b16 %v1898
      %v1980 = vunpack.c.l.b16 %v1899
      %v1981 = vunpack.c.l.b16 %v1900
      %v1982 = vunpack.c.l.b16 %v1901
      %v1983 = vunpack.c.l.b16 %v1902
      %v1984 = vunpack.c.l.b16 %v1903
      %v1985 = vunpack.c.l.b16 %v1904
      %v1986 = vunpack.c.l.b16 %v1905
      %v1987 = vunpack.c.l.b16 %v1906
      %v1988 = vunpack.c.l.b16 %v1907
      %v1989 = vunpack.c.l.b16 %v1908
      %v1990 = vunpack.c.l.b16 %v1909
      %v1991 = vunpack.c.l.b16 %v1910
      %v1992 = vunpack.c.l.b16 %v1911
      %v1993 = vunpack.c.l.b16 %v1912
      %v1994 = vunpack.c.l.b16 %v1913
      %v1995 = vunpack.c.l.b16 %v1914
      %v1996 = vunpack.c.l.b16 %v1915
      %v1997 = vunpack.c.l.b16 %v1916
      %v1998 = vunpack.c.l.b16 %v1917
      %v1999 = vunpack.c.l.b16 %v1918
      %v2000 = vpack.c.b16 %v1969, %v1968
      %v2001 = vpack.c.b16 %v1971, %v1970
      %v2002 = vpack.c.b16 %v1973, %v1972
      %v2003 = vpack.c.b16 %v1975, %v1974
      %v2004 = vpack.c.b16 %v1977, %v1976
      %v2005 = vpack.c.b16 %v1979, %v1978
      %v2006 = vpack.c.b16 %v1981, %v1980
      %v2007 = vpack.c.b16 %v1983, %v1982
      %v2008 = vpack.c.b16 %v1985, %v1984
      %v2009 = vpack.c.b16 %v1987, %v1986
      %v2010 = vpack.c.b16 %v1989, %v1988
      %v2011 = vpack.c.b16 %v1991, %v1990
      %v2012 = vpack.c.b16 %v1993, %v1992
      %v2013 = vpack.c.b16 %v1995, %v1994
      %v2014 = vpack.c.b16 %v1997, %v1996
      %v2015 = vpack.c.b16 %v1999, %v1998
      %v2048 = vunpack.c.l.b16 %v1920
      %v2049 = vunpack.c.l.b16 %v1921
      %v2050 = vunpack.c.l.b16 %v1922
      %v2051 = vunpack.c.l.b16 %v1923
      %v2052 = vunpack.c.l.b16 %v1924
      %v2053 = vunpack.c.l.b16 %v1925
      %v2054 = vunpack.c.l.b16 %v1926
      %v2055 = vunpack.c.l.b16 %v1927
      %v2056 = vunpack.c.l.b16 %v1928
      %v2057 = vunpack.c.l.b16 %v1929
      %v2058 = vunpack.c.l.b16 %v1930
      %v2059 = vunpack.c.l.b16 %v1931
      %v2060 = vunpack.c.l.b16 %v1932
      %v2061 = vunpack.c.l.b16 %v1933
      %v2062 = vunpack.c.l.b16 %v1934
      %v2063 = vunpack.c.l.b16 %v1935
      %v2064 = vpack.c.b16 %v2049, %v2048
      %v2065 = vpack.c.b16 %v2051, %v2050
      %v2066 = vpack.c.b16 %v2053, %v2052
      %v2067 = vpack.c.b16 %v2055, %v2054
      %v2068 = vpack.c.b16 %v2057, %v2056
      %v2069 = vpack.c.b16 %v2059, %v2058
      %v2070 = vpack.c.b16 %v2061, %v2060
      %v2071 = vpack.c.b16 %v2063, %v2062
      %2080 = vmatprep.subr.bf16.mxu0 0
      %2081 = vmatpush1.bf16.msra.mxu0 %v2071
      %2082 = vmatprep.subr.bf16.mxu0 0
      %2083 = vmatpush1.bf16.msra.mxu0 %v2070
      %2084 = vmatprep.subr.bf16.mxu0 0
      %2085 = vmatpush1.bf16.msra.mxu0 %v2069
      %2086 = vmatprep.subr.bf16.mxu0 0
      %2087 = vmatpush1.bf16.msra.mxu0 %v2068
      %2088 = vmatprep.subr.bf16.mxu0 0
      %2089 = vmatpush1.bf16.msra.mxu0 %v2067
      %2090 = vmatprep.subr.bf16.mxu0 0
      %2091 = vmatpush1.bf16.msra.mxu0 %v2066
      %2092 = vmatprep.subr.bf16.mxu0 0
      %2093 = vmatpush1.bf16.msra.mxu0 %v2065
      %2094 = vmatprep.subr.bf16.mxu0 0
      %2095 = vmatpush1.bf16.msra.mxu0 %v2064
      %2096 = vmatprep.subr.bf16.mxu0 0
      %2097 = vmatpush2.bf16.msra.mxu0 0
      %2098 = vmatprep.subr.bf16.mxu0 0
      %2099 = vmatpush2.bf16.msra.mxu0 0
      %2100 = vmatprep.subr.bf16.mxu0 0
      %2101 = vmatpush2.bf16.msra.mxu0 0
      %2102 = vmatprep.subr.bf16.mxu0 0
      %2103 = vmatpush2.bf16.msra.mxu0 0
      %2104 = vmatprep.subr.bf16.mxu0 0
      %2105 = vmatpush2.bf16.msra.mxu0 0
      %2106 = vmatprep.subr.bf16.mxu0 0
      %2107 = vmatpush2.bf16.msra.mxu0 0
      %2108 = vmatprep.subr.bf16.mxu0 0
      %2109 = vmatpush2.bf16.msra.mxu0 0
      %2110 = vmatprep.subr.bf16.mxu0 0
      %2111 = vmatpush2.bf16.msra.mxu0 0
      %2112 = vmatprep.mubr.bf16.mxu0 0
      %2113 = vmatmul.mubr.bf16.gmra.mxu0 %v2000
      %v2114 = vpop.f32.mrf.mxu0
      %v2115 = vadd.f32 0.0, %v2114
      %v2116 = vpop.f32.mrf.mxu0
      %v2117 = vpop.f32.mrf.mxu0
      %v2118 = vadd.f32 0.0, %v2117
      %v2119 = vpop.f32.mrf.mxu0
      %2120 = vmatprep.mubr.bf16.mxu0 0
      %2121 = vmatmul.mubr.bf16.gmra.mxu0 %v2001
      %v2122 = vpop.f32.mrf.mxu0
      %v2123 = vadd.f32 0.0, %v2122
      %v2124 = vpop.f32.mrf.mxu0
      %v2125 = vpop.f32.mrf.mxu0
      %v2126 = vadd.f32 0.0, %v2125
      %v2127 = vpop.f32.mrf.mxu0
      %2128 = vmatprep.mubr.bf16.mxu0 0
      %2129 = vmatmul.mubr.bf16.gmra.mxu0 %v2002
      %v2130 = vpop.f32.mrf.mxu0
      %v2131 = vadd.f32 0.0, %v2130
      %v2132 = vpop.f32.mrf.mxu0
      %v2133 = vpop.f32.mrf.mxu0
      %v2134 = vadd.f32 0.0, %v2133
      %v2135 = vpop.f32.mrf.mxu0
      %2136 = vmatprep.mubr.bf16.mxu0 0
      %2137 = vmatmul.mubr.bf16.gmra.mxu0 %v2003
      %v2138 = vpop.f32.mrf.mxu0
      %v2139 = vadd.f32 0.0, %v2138
      %v2140 = vpop.f32.mrf.mxu0
      %v2141 = vpop.f32.mrf.mxu0
      %v2142 = vadd.f32 0.0, %v2141
      %v2143 = vpop.f32.mrf.mxu0
      %2144 = vmatprep.mubr.bf16.mxu0 0
      %2145 = vmatmul.mubr.bf16.gmra.mxu0 %v2004
      %v2146 = vpop.f32.mrf.mxu0
      %v2147 = vadd.f32 0.0, %v2146
      %v2148 = vpop.f32.mrf.mxu0
      %v2149 = vpop.f32.mrf.mxu0
      %v2150 = vadd.f32 0.0, %v2149
      %v2151 = vpop.f32.mrf.mxu0
      %2152 = vmatprep.mubr.bf16.mxu0 0
      %2153 = vmatmul.mubr.bf16.gmra.mxu0 %v2005
      %v2154 = vpop.f32.mrf.mxu0
      %v2155 = vadd.f32 0.0, %v2154
      %v2156 = vpop.f32.mrf.mxu0
      %v2157 = vpop.f32.mrf.mxu0
      %v2158 = vadd.f32 0.0, %v2157
      %v2159 = vpop.f32.mrf.mxu0
      %2160 = vmatprep.mubr.bf16.mxu0 0
      %2161 = vmatmul.mubr.bf16.gmra.mxu0 %v2006
      %v2162 = vpop.f32.mrf.mxu0
      %v2163 = vadd.f32 0.0, %v2162
      %v2164 = vpop.f32.mrf.mxu0
      %v2165 = vpop.f32.mrf.mxu0
      %v2166 = vadd.f32 0.0, %v2165
      %v2167 = vpop.f32.mrf.mxu0
      %2168 = vmatprep.mubr.bf16.mxu0 0
      %2169 = vmatmul.mubr.bf16.gmra.mxu0 %v2007
      %v2170 = vpop.f32.mrf.mxu0
      %v2171 = vadd.f32 0.0, %v2170
      %v2172 = vpop.f32.mrf.mxu0
      %v2173 = vpop.f32.mrf.mxu0
      %v2174 = vadd.f32 0.0, %v2173
      %v2175 = vpop.f32.mrf.mxu0
      %2176 = vmatprep.mubr.bf16.mxu0 0
      %2177 = vmatmul.mubr.bf16.gmra.mxu0 %v2008
      %v2178 = vpop.f32.mrf.mxu0
      %v2179 = vadd.f32 0.0, %v2178
      %v2180 = vpop.f32.mrf.mxu0
      %v2181 = vpop.f32.mrf.mxu0
      %v2182 = vadd.f32 0.0, %v2181
      %v2183 = vpop.f32.mrf.mxu0
      %2184 = vmatprep.mubr.bf16.mxu0 0
      %2185 = vmatmul.mubr.bf16.gmra.mxu0 %v2009
      %v2186 = vpop.f32.mrf.mxu0
      %v2187 = vadd.f32 0.0, %v2186
      %v2188 = vpop.f32.mrf.mxu0
      %v2189 = vpop.f32.mrf.mxu0
      %v2190 = vadd.f32 0.0, %v2189
      %v2191 = vpop.f32.mrf.mxu0
      %2192 = vmatprep.mubr.bf16.mxu0 0
      %2193 = vmatmul.mubr.bf16.gmra.mxu0 %v2010
      %v2194 = vpop.f32.mrf.mxu0
      %v2195 = vadd.f32 0.0, %v2194
      %v2196 = vpop.f32.mrf.mxu0
      %v2197 = vpop.f32.mrf.mxu0
      %v2198 = vadd.f32 0.0, %v2197
      %v2199 = vpop.f32.mrf.mxu0
      %2200 = vmatprep.mubr.bf16.mxu0 0
      %2201 = vmatmul.mubr.bf16.gmra.mxu0 %v2011
      %v2202 = vpop.f32.mrf.mxu0
      %v2203 = vadd.f32 0.0, %v2202
      %v2204 = vpop.f32.mrf.mxu0
      %v2205 = vpop.f32.mrf.mxu0
      %v2206 = vadd.f32 0.0, %v2205
      %v2207 = vpop.f32.mrf.mxu0
      %2208 = vmatprep.mubr.bf16.mxu0 0
      %2209 = vmatmul.mubr.bf16.gmra.mxu0 %v2012
      %v2210 = vpop.f32.mrf.mxu0
      %v2211 = vadd.f32 0.0, %v2210
      %v2212 = vpop.f32.mrf.mxu0
      %v2213 = vpop.f32.mrf.mxu0
      %v2214 = vadd.f32 0.0, %v2213
      %v2215 = vpop.f32.mrf.mxu0
      %2216 = vmatprep.mubr.bf16.mxu0 0
      %2217 = vmatmul.mubr.bf16.gmra.mxu0 %v2013
      %v2218 = vpop.f32.mrf.mxu0
      %v2219 = vadd.f32 0.0, %v2218
      %v2220 = vpop.f32.mrf.mxu0
      %v2221 = vpop.f32.mrf.mxu0
      %v2222 = vadd.f32 0.0, %v2221
      %v2223 = vpop.f32.mrf.mxu0
      %2224 = vmatprep.mubr.bf16.mxu0 0
      %2225 = vmatmul.mubr.bf16.gmra.mxu0 %v2014
      %v2226 = vpop.f32.mrf.mxu0
      %v2227 = vadd.f32 0.0, %v2226
      %v2228 = vpop.f32.mrf.mxu0
      %v2229 = vpop.f32.mrf.mxu0
      %v2230 = vadd.f32 0.0, %v2229
      %v2231 = vpop.f32.mrf.mxu0
      %2232 = vmatprep.mubr.bf16.mxu0 0
      %2233 = vmatmul.mubr.bf16.gmra.mxu0 %v2015
      %v2234 = vpop.f32.mrf.mxu0
      %v2235 = vadd.f32 0.0, %v2234
      %v2236 = vpop.f32.mrf.mxu0
      %v2237 = vpop.f32.mrf.mxu0
      %v2238 = vadd.f32 0.0, %v2237
      %v2239 = vpop.f32.mrf.mxu0
      %2240 = vdwg.mxu0
      %v2241 = vadd.f32 %v1854, %v2115
      %v2242 = vadd.f32 %v1855, %v2118
      %v2243 = vadd.f32 %v1856, %v2123
      %v2244 = vadd.f32 %v1857, %v2126
      %v2245 = vadd.f32 %v1858, %v2131
      %v2246 = vadd.f32 %v1859, %v2134
      %v2247 = vadd.f32 %v1860, %v2139
      %v2248 = vadd.f32 %v1861, %v2142
      %v2249 = vadd.f32 %v1862, %v2147
      %v2250 = vadd.f32 %v1863, %v2150
      %v2251 = vadd.f32 %v1864, %v2155
      %v2252 = vadd.f32 %v1865, %v2158
      %v2253 = vadd.f32 %v1866, %v2163
      %v2254 = vadd.f32 %v1867, %v2166
      %v2255 = vadd.f32 %v1868, %v2171
      %v2256 = vadd.f32 %v1869, %v2174
      %v2257 = vadd.f32 %v1870, %v2179
      %v2258 = vadd.f32 %v1871, %v2182
      %v2259 = vadd.f32 %v1872, %v2187
      %v2260 = vadd.f32 %v1873, %v2190
      %v2261 = vadd.f32 %v1874, %v2195
      %v2262 = vadd.f32 %v1875, %v2198
      %v2263 = vadd.f32 %v1876, %v2203
      %v2264 = vadd.f32 %v1877, %v2206
      %v2265 = vadd.f32 %v1878, %v2211
      %v2266 = vadd.f32 %v1879, %v2214
      %v2267 = vadd.f32 %v1880, %v2219
      %v2268 = vadd.f32 %v1881, %v2222
      %v2269 = vadd.f32 %v1882, %v2227
      %v2270 = vadd.f32 %v1883, %v2230
      %v2271 = vadd.f32 %v1884, %v2235
      %v2272 = vadd.f32 %v1885, %v2238
      %v2273 = vld [vmem:[%s1886] sm:$0xf]
      %v2274 = vld [vmem:[%s1886 + $0x4] sm:$0xf]
      %v2275 = vld [vmem:[%s1886 + $0x8] sm:$0x1]
      %v2276 = vld [vmem:[%s1886 + $0xc] sm:$0xf]
      %v2277 = vld [vmem:[%s1886 + $0x10] sm:$0xf]
      %v2278 = vld [vmem:[%s1886 + $0x14] sm:$0x1]
      %v2279 = vld [vmem:[%s1886 + $0x18] sm:$0xf]
      %v2280 = vld [vmem:[%s1886 + $0x1c] sm:$0xf]
      %v2281 = vld [vmem:[%s1886 + $0x20] sm:$0x1]
      %v2282 = vld [vmem:[%s1886 + $0x24] sm:$0xf]
      %v2283 = vld [vmem:[%s1886 + $0x28] sm:$0xf]
      %v2284 = vld [vmem:[%s1886 + $0x2c] sm:$0x1]
      %v2285 = vld [vmem:[%s1886 + $0x30] sm:$0xf]
      %v2286 = vld [vmem:[%s1886 + $0x34] sm:$0xf]
      %v2287 = vld [vmem:[%s1886 + $0x38] sm:$0x1]
      %v2288 = vld [vmem:[%s1886 + $0x3c] sm:$0xf]
      %v2289 = vld [vmem:[%s1886 + $0x40] sm:$0xf]
      %v2290 = vld [vmem:[%s1886 + $0x44] sm:$0x1]
      %v2291 = vld [vmem:[%s1886 + $0x48] sm:$0xf]
      %v2292 = vld [vmem:[%s1886 + $0x4c] sm:$0xf]
      %v2293 = vld [vmem:[%s1886 + $0x50] sm:$0x1]
      %v2294 = vld [vmem:[%s1886 + $0x54] sm:$0xf]
      %v2295 = vld [vmem:[%s1886 + $0x58] sm:$0xf]
      %v2296 = vld [vmem:[%s1886 + $0x5c] sm:$0x1]
      %v2297 = vld [vmem:[%s1886 + $0x60] sm:$0xf]
      %v2298 = vld [vmem:[%s1886 + $0x64] sm:$0xf]
      %v2299 = vld [vmem:[%s1886 + $0x68] sm:$0x1]
      %v2300 = vld [vmem:[%s1886 + $0x6c] sm:$0xf]
      %v2301 = vld [vmem:[%s1886 + $0x70] sm:$0xf]
      %v2302 = vld [vmem:[%s1886 + $0x74] sm:$0x1]
      %v2303 = vld [vmem:[%s1886 + $0x78] sm:$0xf]
      %v2304 = vld [vmem:[%s1886 + $0x7c] sm:$0xf]
      %v2305 = vld [vmem:[%s1886 + $0x80] sm:$0x1]
      %v2306 = vld [vmem:[%s1886 + $0x84] sm:$0xf]
      %v2307 = vld [vmem:[%s1886 + $0x88] sm:$0xf]
      %v2308 = vld [vmem:[%s1886 + $0x8c] sm:$0x1]
      %v2309 = vld [vmem:[%s1886 + $0x90] sm:$0xf]
      %v2310 = vld [vmem:[%s1886 + $0x94] sm:$0xf]
      %v2311 = vld [vmem:[%s1886 + $0x98] sm:$0x1]
      %v2312 = vld [vmem:[%s1886 + $0x9c] sm:$0xf]
      %v2313 = vld [vmem:[%s1886 + $0xa0] sm:$0xf]
      %v2314 = vld [vmem:[%s1886 + $0xa4] sm:$0x1]
      %v2315 = vld [vmem:[%s1886 + $0xa8] sm:$0xf]
      %v2316 = vld [vmem:[%s1886 + $0xac] sm:$0xf]
      %v2317 = vld [vmem:[%s1886 + $0xb0] sm:$0x1]
      %v2318 = vld [vmem:[%s1886 + $0xb4] sm:$0xf]
      %v2319 = vld [vmem:[%s1886 + $0xb8] sm:$0xf]
      %v2320 = vld [vmem:[%s1886 + $0xbc] sm:$0x1]
      %v2322 = vshrl.u32 %v2273, 16
      %v2324 = vrot.slane %v2322, 4
      %v2325 = vshll.u32 %v2273, 16
      %v2327 = vrot.slane %v2325, 5
      %v2328 = vor.u32 %v2324, %v2327
      %v2329 = vrot.slane %v2328, 4
      %v2331 = vshll.u32 %v2274, 16
      %v2333 = vrot.slane %v2331, 5
      %v2334 = vsel %vm421, %v2329, %v2333
      %v2335 = vshrl.u32 %v2274, 16
      %v2337 = vrot.slane %v2335, 4
      %v2338 = vor.u32 %v2337, %v2333
      %v2339 = vrot.slane %v2338, 4
      %v2341 = vshll.u32 %v2275, 16
      %v2343 = vrot.slane %v2341, 5
      %v2344 = vsel %vm421, %v2339, %v2343
      %v2346 = vshrl.u32 %v2276, 16
      %v2348 = vrot.slane %v2346, 4
      %v2349 = vshll.u32 %v2276, 16
      %v2351 = vrot.slane %v2349, 5
      %v2352 = vor.u32 %v2348, %v2351
      %v2353 = vrot.slane %v2352, 4
      %v2355 = vshll.u32 %v2277, 16
      %v2357 = vrot.slane %v2355, 5
      %v2358 = vsel %vm421, %v2353, %v2357
      %v2359 = vshrl.u32 %v2277, 16
      %v2361 = vrot.slane %v2359, 4
      %v2362 = vor.u32 %v2361, %v2357
      %v2363 = vrot.slane %v2362, 4
      %v2365 = vshll.u32 %v2278, 16
      %v2367 = vrot.slane %v2365, 5
      %v2368 = vsel %vm421, %v2363, %v2367
      %v2370 = vshrl.u32 %v2279, 16
      %v2372 = vrot.slane %v2370, 4
      %v2373 = vshll.u32 %v2279, 16
      %v2375 = vrot.slane %v2373, 5
      %v2376 = vor.u32 %v2372, %v2375
      %v2377 = vrot.slane %v2376, 4
      %v2379 = vshll.u32 %v2280, 16
      %v2381 = vrot.slane %v2379, 5
      %v2382 = vsel %vm421, %v2377, %v2381
      %v2383 = vshrl.u32 %v2280, 16
      %v2385 = vrot.slane %v2383, 4
      %v2386 = vor.u32 %v2385, %v2381
      %v2387 = vrot.slane %v2386, 4
      %v2389 = vshll.u32 %v2281, 16
      %v2391 = vrot.slane %v2389, 5
      %v2392 = vsel %vm421, %v2387, %v2391
      %v2394 = vshrl.u32 %v2282, 16
      %v2396 = vrot.slane %v2394, 4
      %v2397 = vshll.u32 %v2282, 16
      %v2399 = vrot.slane %v2397, 5
      %v2400 = vor.u32 %v2396, %v2399
      %v2401 = vrot.slane %v2400, 4
      %v2403 = vshll.u32 %v2283, 16
      %v2405 = vrot.slane %v2403, 5
      %v2406 = vsel %vm421, %v2401, %v2405
      %v2407 = vshrl.u32 %v2283, 16
      %v2409 = vrot.slane %v2407, 4
      %v2410 = vor.u32 %v2409, %v2405
      %v2411 = vrot.slane %v2410, 4
      %v2413 = vshll.u32 %v2284, 16
      %v2415 = vrot.slane %v2413, 5
      %v2416 = vsel %vm421, %v2411, %v2415
      %v2418 = vshrl.u32 %v2285, 16
      %v2420 = vrot.slane %v2418, 4
      %v2421 = vshll.u32 %v2285, 16
      %v2423 = vrot.slane %v2421, 5
      %v2424 = vor.u32 %v2420, %v2423
      %v2425 = vrot.slane %v2424, 4
      %v2427 = vshll.u32 %v2286, 16
      %v2429 = vrot.slane %v2427, 5
      %v2430 = vsel %vm421, %v2425, %v2429
      %v2431 = vshrl.u32 %v2286, 16
      %v2433 = vrot.slane %v2431, 4
      %v2434 = vor.u32 %v2433, %v2429
      %v2435 = vrot.slane %v2434, 4
      %v2437 = vshll.u32 %v2287, 16
      %v2439 = vrot.slane %v2437, 5
      %v2440 = vsel %vm421, %v2435, %v2439
      %v2442 = vshrl.u32 %v2288, 16
      %v2444 = vrot.slane %v2442, 4
      %v2445 = vshll.u32 %v2288, 16
      %v2447 = vrot.slane %v2445, 5
      %v2448 = vor.u32 %v2444, %v2447
      %v2449 = vrot.slane %v2448, 4
      %v2451 = vshll.u32 %v2289, 16
      %v2453 = vrot.slane %v2451, 5
      %v2454 = vsel %vm421, %v2449, %v2453
      %v2455 = vshrl.u32 %v2289, 16
      %v2457 = vrot.slane %v2455, 4
      %v2458 = vor.u32 %v2457, %v2453
      %v2459 = vrot.slane %v2458, 4
      %v2461 = vshll.u32 %v2290, 16
      %v2463 = vrot.slane %v2461, 5
      %v2464 = vsel %vm421, %v2459, %v2463
      %v2466 = vshrl.u32 %v2291, 16
      %v2468 = vrot.slane %v2466, 4
      %v2469 = vshll.u32 %v2291, 16
      %v2471 = vrot.slane %v2469, 5
      %v2472 = vor.u32 %v2468, %v2471
      %v2473 = vrot.slane %v2472, 4
      %v2475 = vshll.u32 %v2292, 16
      %v2477 = vrot.slane %v2475, 5
      %v2478 = vsel %vm421, %v2473, %v2477
      %v2479 = vshrl.u32 %v2292, 16
      %v2481 = vrot.slane %v2479, 4
      %v2482 = vor.u32 %v2481, %v2477
      %v2483 = vrot.slane %v2482, 4
      %v2485 = vshll.u32 %v2293, 16
      %v2487 = vrot.slane %v2485, 5
      %v2488 = vsel %vm421, %v2483, %v2487
      %v2490 = vshrl.u32 %v2294, 16
      %v2492 = vrot.slane %v2490, 4
      %v2493 = vshll.u32 %v2294, 16
      %v2495 = vrot.slane %v2493, 5
      %v2496 = vor.u32 %v2492, %v2495
      %v2497 = vrot.slane %v2496, 4
      %v2499 = vshll.u32 %v2295, 16
      %v2501 = vrot.slane %v2499, 5
      %v2502 = vsel %vm421, %v2497, %v2501
      %v2503 = vshrl.u32 %v2295, 16
      %v2505 = vrot.slane %v2503, 4
      %v2506 = vor.u32 %v2505, %v2501
      %v2507 = vrot.slane %v2506, 4
      %v2509 = vshll.u32 %v2296, 16
      %v2511 = vrot.slane %v2509, 5
      %v2512 = vsel %vm421, %v2507, %v2511
      %v2514 = vshrl.u32 %v2297, 16
      %v2516 = vrot.slane %v2514, 4
      %v2517 = vshll.u32 %v2297, 16
      %v2519 = vrot.slane %v2517, 5
      %v2520 = vor.u32 %v2516, %v2519
      %v2521 = vrot.slane %v2520, 4
      %v2523 = vshll.u32 %v2298, 16
      %v2525 = vrot.slane %v2523, 5
      %v2526 = vsel %vm421, %v2521, %v2525
      %v2527 = vshrl.u32 %v2298, 16
      %v2529 = vrot.slane %v2527, 4
      %v2530 = vor.u32 %v2529, %v2525
      %v2531 = vrot.slane %v2530, 4
      %v2533 = vshll.u32 %v2299, 16
      %v2535 = vrot.slane %v2533, 5
      %v2536 = vsel %vm421, %v2531, %v2535
      %v2538 = vshrl.u32 %v2300, 16
      %v2540 = vrot.slane %v2538, 4
      %v2541 = vshll.u32 %v2300, 16
      %v2543 = vrot.slane %v2541, 5
      %v2544 = vor.u32 %v2540, %v2543
      %v2545 = vrot.slane %v2544, 4
      %v2547 = vshll.u32 %v2301, 16
      %v2549 = vrot.slane %v2547, 5
      %v2550 = vsel %vm421, %v2545, %v2549
      %v2551 = vshrl.u32 %v2301, 16
      %v2553 = vrot.slane %v2551, 4
      %v2554 = vor.u32 %v2553, %v2549
      %v2555 = vrot.slane %v2554, 4
      %v2557 = vshll.u32 %v2302, 16
      %v2559 = vrot.slane %v2557, 5
      %v2560 = vsel %vm421, %v2555, %v2559
      %v2562 = vshrl.u32 %v2303, 16
      %v2564 = vrot.slane %v2562, 4
      %v2565 = vshll.u32 %v2303, 16
      %v2567 = vrot.slane %v2565, 5
      %v2568 = vor.u32 %v2564, %v2567
      %v2569 = vrot.slane %v2568, 4
      %v2571 = vshll.u32 %v2304, 16
      %v2573 = vrot.slane %v2571, 5
      %v2574 = vsel %vm421, %v2569, %v2573
      %v2575 = vshrl.u32 %v2304, 16
      %v2577 = vrot.slane %v2575, 4
      %v2578 = vor.u32 %v2577, %v2573
      %v2579 = vrot.slane %v2578, 4
      %v2581 = vshll.u32 %v2305, 16
      %v2583 = vrot.slane %v2581, 5
      %v2584 = vsel %vm421, %v2579, %v2583
      %v2586 = vshrl.u32 %v2306, 16
      %v2588 = vrot.slane %v2586, 4
      %v2589 = vshll.u32 %v2306, 16
      %v2591 = vrot.slane %v2589, 5
      %v2592 = vor.u32 %v2588, %v2591
      %v2593 = vrot.slane %v2592, 4
      %v2595 = vshll.u32 %v2307, 16
      %v2597 = vrot.slane %v2595, 5
      %v2598 = vsel %vm421, %v2593, %v2597
      %v2599 = vshrl.u32 %v2307, 16
      %v2601 = vrot.slane %v2599, 4
      %v2602 = vor.u32 %v2601, %v2597
      %v2603 = vrot.slane %v2602, 4
      %v2605 = vshll.u32 %v2308, 16
      %v2607 = vrot.slane %v2605, 5
      %v2608 = vsel %vm421, %v2603, %v2607
      %v2610 = vshrl.u32 %v2309, 16
      %v2612 = vrot.slane %v2610, 4
      %v2613 = vshll.u32 %v2309, 16
      %v2615 = vrot.slane %v2613, 5
      %v2616 = vor.u32 %v2612, %v2615
      %v2617 = vrot.slane %v2616, 4
      %v2619 = vshll.u32 %v2310, 16
      %v2621 = vrot.slane %v2619, 5
      %v2622 = vsel %vm421, %v2617, %v2621
      %v2623 = vshrl.u32 %v2310, 16
      %v2625 = vrot.slane %v2623, 4
      %v2626 = vor.u32 %v2625, %v2621
      %v2627 = vrot.slane %v2626, 4
      %v2629 = vshll.u32 %v2311, 16
      %v2631 = vrot.slane %v2629, 5
      %v2632 = vsel %vm421, %v2627, %v2631
      %v2634 = vshrl.u32 %v2312, 16
      %v2636 = vrot.slane %v2634, 4
      %v2637 = vshll.u32 %v2312, 16
      %v2639 = vrot.slane %v2637, 5
      %v2640 = vor.u32 %v2636, %v2639
      %v2641 = vrot.slane %v2640, 4
      %v2643 = vshll.u32 %v2313, 16
      %v2645 = vrot.slane %v2643, 5
      %v2646 = vsel %vm421, %v2641, %v2645
      %v2647 = vshrl.u32 %v2313, 16
      %v2649 = vrot.slane %v2647, 4
      %v2650 = vor.u32 %v2649, %v2645
      %v2651 = vrot.slane %v2650, 4
      %v2653 = vshll.u32 %v2314, 16
      %v2655 = vrot.slane %v2653, 5
      %v2656 = vsel %vm421, %v2651, %v2655
      %v2658 = vshrl.u32 %v2315, 16
      %v2660 = vrot.slane %v2658, 4
      %v2661 = vshll.u32 %v2315, 16
      %v2663 = vrot.slane %v2661, 5
      %v2664 = vor.u32 %v2660, %v2663
      %v2665 = vrot.slane %v2664, 4
      %v2667 = vshll.u32 %v2316, 16
      %v2669 = vrot.slane %v2667, 5
      %v2670 = vsel %vm421, %v2665, %v2669
      %v2671 = vshrl.u32 %v2316, 16
      %v2673 = vrot.slane %v2671, 4
      %v2674 = vor.u32 %v2673, %v2669
      %v2675 = vrot.slane %v2674, 4
      %v2677 = vshll.u32 %v2317, 16
      %v2679 = vrot.slane %v2677, 5
      %v2680 = vsel %vm421, %v2675, %v2679
      %v2682 = vshrl.u32 %v2318, 16
      %v2684 = vrot.slane %v2682, 4
      %v2685 = vshll.u32 %v2318, 16
      %v2687 = vrot.slane %v2685, 5
      %v2688 = vor.u32 %v2684, %v2687
      %v2689 = vrot.slane %v2688, 4
      %v2691 = vshll.u32 %v2319, 16
      %v2693 = vrot.slane %v2691, 5
      %v2694 = vsel %vm421, %v2689, %v2693
      %v2695 = vshrl.u32 %v2319, 16
      %v2697 = vrot.slane %v2695, 4
      %v2698 = vor.u32 %v2697, %v2693
      %v2699 = vrot.slane %v2698, 4
      %v2701 = vshll.u32 %v2320, 16
      %v2703 = vrot.slane %v2701, 5
      %v2704 = vsel %vm421, %v2699, %v2703
      %s2705 = scalar_lea.vmem %s330, 256
      %v2706 = vld [vmem:[%s2705] sm:$0xf]
      %v2707 = vld [vmem:[%s2705 + $0x4] sm:$0xf]
      %v2708 = vld [vmem:[%s2705 + $0x8] sm:$0xf]
      %v2709 = vld [vmem:[%s2705 + $0xc] sm:$0xf]
      %v2710 = vld [vmem:[%s2705 + $0x10] sm:$0xf]
      %v2711 = vld [vmem:[%s2705 + $0x14] sm:$0xf]
      %v2712 = vld [vmem:[%s2705 + $0x18] sm:$0xf]
      %v2713 = vld [vmem:[%s2705 + $0x1c] sm:$0xf]
      %v2714 = vld [vmem:[%s2705 + $0x20] sm:$0xf]
      %v2715 = vld [vmem:[%s2705 + $0x24] sm:$0xf]
      %v2716 = vld [vmem:[%s2705 + $0x28] sm:$0xf]
      %v2717 = vld [vmem:[%s2705 + $0x2c] sm:$0xf]
      %v2718 = vld [vmem:[%s2705 + $0x30] sm:$0xf]
      %v2719 = vld [vmem:[%s2705 + $0x34] sm:$0xf]
      %v2720 = vld [vmem:[%s2705 + $0x38] sm:$0xf]
      %v2721 = vld [vmem:[%s2705 + $0x3c] sm:$0xf]
      %v2722 = vunpack.c.l.b16 %v2334
      %v2723 = vunpack.c.l.b16 %v2344
      %v2724 = vunpack.c.l.b16 %v2358
      %v2725 = vunpack.c.l.b16 %v2368
      %v2726 = vunpack.c.l.b16 %v2382
      %v2727 = vunpack.c.l.b16 %v2392
      %v2728 = vunpack.c.l.b16 %v2406
      %v2729 = vunpack.c.l.b16 %v2416
      %v2730 = vunpack.c.l.b16 %v2430
      %v2731 = vunpack.c.l.b16 %v2440
      %v2732 = vunpack.c.l.b16 %v2454
      %v2733 = vunpack.c.l.b16 %v2464
      %v2734 = vunpack.c.l.b16 %v2478
      %v2735 = vunpack.c.l.b16 %v2488
      %v2736 = vunpack.c.l.b16 %v2502
      %v2737 = vunpack.c.l.b16 %v2512
      %v2738 = vunpack.c.l.b16 %v2526
      %v2739 = vunpack.c.l.b16 %v2536
      %v2740 = vunpack.c.l.b16 %v2550
      %v2741 = vunpack.c.l.b16 %v2560
      %v2742 = vunpack.c.l.b16 %v2574
      %v2743 = vunpack.c.l.b16 %v2584
      %v2744 = vunpack.c.l.b16 %v2598
      %v2745 = vunpack.c.l.b16 %v2608
      %v2746 = vunpack.c.l.b16 %v2622
      %v2747 = vunpack.c.l.b16 %v2632
      %v2748 = vunpack.c.l.b16 %v2646
      %v2749 = vunpack.c.l.b16 %v2656
      %v2750 = vunpack.c.l.b16 %v2670
      %v2751 = vunpack.c.l.b16 %v2680
      %v2752 = vunpack.c.l.b16 %v2694
      %v2753 = vunpack.c.l.b16 %v2704
      %v2754 = vpack.c.b16 %v2723, %v2722
      %v2755 = vpack.c.b16 %v2725, %v2724
      %v2756 = vpack.c.b16 %v2727, %v2726
      %v2757 = vpack.c.b16 %v2729, %v2728
      %v2758 = vpack.c.b16 %v2731, %v2730
      %v2759 = vpack.c.b16 %v2733, %v2732
      %v2760 = vpack.c.b16 %v2735, %v2734
      %v2761 = vpack.c.b16 %v2737, %v2736
      %v2762 = vpack.c.b16 %v2739, %v2738
      %v2763 = vpack.c.b16 %v2741, %v2740
      %v2764 = vpack.c.b16 %v2743, %v2742
      %v2765 = vpack.c.b16 %v2745, %v2744
      %v2766 = vpack.c.b16 %v2747, %v2746
      %v2767 = vpack.c.b16 %v2749, %v2748
      %v2768 = vpack.c.b16 %v2751, %v2750
      %v2769 = vpack.c.b16 %v2753, %v2752
      %v2802 = vunpack.c.l.b16 %v2706
      %v2803 = vunpack.c.l.b16 %v2707
      %v2804 = vunpack.c.l.b16 %v2708
      %v2805 = vunpack.c.l.b16 %v2709
      %v2806 = vunpack.c.l.b16 %v2710
      %v2807 = vunpack.c.l.b16 %v2711
      %v2808 = vunpack.c.l.b16 %v2712
      %v2809 = vunpack.c.l.b16 %v2713
      %v2810 = vunpack.c.l.b16 %v2714
      %v2811 = vunpack.c.l.b16 %v2715
      %v2812 = vunpack.c.l.b16 %v2716
      %v2813 = vunpack.c.l.b16 %v2717
      %v2814 = vunpack.c.l.b16 %v2718
      %v2815 = vunpack.c.l.b16 %v2719
      %v2816 = vunpack.c.l.b16 %v2720
      %v2817 = vunpack.c.l.b16 %v2721
      %v2818 = vpack.c.b16 %v2803, %v2802
      %v2819 = vpack.c.b16 %v2805, %v2804
      %v2820 = vpack.c.b16 %v2807, %v2806
      %v2821 = vpack.c.b16 %v2809, %v2808
      %v2822 = vpack.c.b16 %v2811, %v2810
      %v2823 = vpack.c.b16 %v2813, %v2812
      %v2824 = vpack.c.b16 %v2815, %v2814
      %v2825 = vpack.c.b16 %v2817, %v2816
      %2834 = vmatprep.subr.bf16.mxu0 0
      %2835 = vmatpush1.bf16.msra.mxu0 %v2825
      %2836 = vmatprep.subr.bf16.mxu0 0
      %2837 = vmatpush1.bf16.msra.mxu0 %v2824
      %2838 = vmatprep.subr.bf16.mxu0 0
      %2839 = vmatpush1.bf16.msra.mxu0 %v2823
      %2840 = vmatprep.subr.bf16.mxu0 0
      %2841 = vmatpush1.bf16.msra.mxu0 %v2822
      %2842 = vmatprep.subr.bf16.mxu0 0
      %2843 = vmatpush1.bf16.msra.mxu0 %v2821
      %2844 = vmatprep.subr.bf16.mxu0 0
      %2845 = vmatpush1.bf16.msra.mxu0 %v2820
      %2846 = vmatprep.subr.bf16.mxu0 0
      %2847 = vmatpush1.bf16.msra.mxu0 %v2819
      %2848 = vmatprep.subr.bf16.mxu0 0
      %2849 = vmatpush1.bf16.msra.mxu0 %v2818
      %2850 = vmatprep.subr.bf16.mxu0 0
      %2851 = vmatpush2.bf16.msra.mxu0 0
      %2852 = vmatprep.subr.bf16.mxu0 0
      %2853 = vmatpush2.bf16.msra.mxu0 0
      %2854 = vmatprep.subr.bf16.mxu0 0
      %2855 = vmatpush2.bf16.msra.mxu0 0
      %2856 = vmatprep.subr.bf16.mxu0 0
      %2857 = vmatpush2.bf16.msra.mxu0 0
      %2858 = vmatprep.subr.bf16.mxu0 0
      %2859 = vmatpush2.bf16.msra.mxu0 0
      %2860 = vmatprep.subr.bf16.mxu0 0
      %2861 = vmatpush2.bf16.msra.mxu0 0
      %2862 = vmatprep.subr.bf16.mxu0 0
      %2863 = vmatpush2.bf16.msra.mxu0 0
      %2864 = vmatprep.subr.bf16.mxu0 0
      %2865 = vmatpush2.bf16.msra.mxu0 0
      %2866 = vmatprep.mubr.bf16.mxu0 0
      %2867 = vmatmul.mubr.bf16.gmra.mxu0 %v2754
      %v2868 = vpop.f32.mrf.mxu0
      %v2869 = vadd.f32 0.0, %v2868
      %v2870 = vpop.f32.mrf.mxu0
      %v2871 = vpop.f32.mrf.mxu0
      %v2872 = vadd.f32 0.0, %v2871
      %v2873 = vpop.f32.mrf.mxu0
      %2874 = vmatprep.mubr.bf16.mxu0 0
      %2875 = vmatmul.mubr.bf16.gmra.mxu0 %v2755
      %v2876 = vpop.f32.mrf.mxu0
      %v2877 = vadd.f32 0.0, %v2876
      %v2878 = vpop.f32.mrf.mxu0
      %v2879 = vpop.f32.mrf.mxu0
      %v2880 = vadd.f32 0.0, %v2879
      %v2881 = vpop.f32.mrf.mxu0
      %2882 = vmatprep.mubr.bf16.mxu0 0
      %2883 = vmatmul.mubr.bf16.gmra.mxu0 %v2756
      %v2884 = vpop.f32.mrf.mxu0
      %v2885 = vadd.f32 0.0, %v2884
      %v2886 = vpop.f32.mrf.mxu0
      %v2887 = vpop.f32.mrf.mxu0
      %v2888 = vadd.f32 0.0, %v2887
      %v2889 = vpop.f32.mrf.mxu0
      %2890 = vmatprep.mubr.bf16.mxu0 0
      %2891 = vmatmul.mubr.bf16.gmra.mxu0 %v2757
      %v2892 = vpop.f32.mrf.mxu0
      %v2893 = vadd.f32 0.0, %v2892
      %v2894 = vpop.f32.mrf.mxu0
      %v2895 = vpop.f32.mrf.mxu0
      %v2896 = vadd.f32 0.0, %v2895
      %v2897 = vpop.f32.mrf.mxu0
      %2898 = vmatprep.mubr.bf16.mxu0 0
      %2899 = vmatmul.mubr.bf16.gmra.mxu0 %v2758
      %v2900 = vpop.f32.mrf.mxu0
      %v2901 = vadd.f32 0.0, %v2900
      %v2902 = vpop.f32.mrf.mxu0
      %v2903 = vpop.f32.mrf.mxu0
      %v2904 = vadd.f32 0.0, %v2903
      %v2905 = vpop.f32.mrf.mxu0
      %2906 = vmatprep.mubr.bf16.mxu0 0
      %2907 = vmatmul.mubr.bf16.gmra.mxu0 %v2759
      %v2908 = vpop.f32.mrf.mxu0
      %v2909 = vadd.f32 0.0, %v2908
      %v2910 = vpop.f32.mrf.mxu0
      %v2911 = vpop.f32.mrf.mxu0
      %v2912 = vadd.f32 0.0, %v2911
      %v2913 = vpop.f32.mrf.mxu0
      %2914 = vmatprep.mubr.bf16.mxu0 0
      %2915 = vmatmul.mubr.bf16.gmra.mxu0 %v2760
      %v2916 = vpop.f32.mrf.mxu0
      %v2917 = vadd.f32 0.0, %v2916
      %v2918 = vpop.f32.mrf.mxu0
      %v2919 = vpop.f32.mrf.mxu0
      %v2920 = vadd.f32 0.0, %v2919
      %v2921 = vpop.f32.mrf.mxu0
      %2922 = vmatprep.mubr.bf16.mxu0 0
      %2923 = vmatmul.mubr.bf16.gmra.mxu0 %v2761
      %v2924 = vpop.f32.mrf.mxu0
      %v2925 = vadd.f32 0.0, %v2924
      %v2926 = vpop.f32.mrf.mxu0
      %v2927 = vpop.f32.mrf.mxu0
      %v2928 = vadd.f32 0.0, %v2927
      %v2929 = vpop.f32.mrf.mxu0
      %2930 = vmatprep.mubr.bf16.mxu0 0
      %2931 = vmatmul.mubr.bf16.gmra.mxu0 %v2762
      %v2932 = vpop.f32.mrf.mxu0
      %v2933 = vadd.f32 0.0, %v2932
      %v2934 = vpop.f32.mrf.mxu0
      %v2935 = vpop.f32.mrf.mxu0
      %v2936 = vadd.f32 0.0, %v2935
      %v2937 = vpop.f32.mrf.mxu0
      %2938 = vmatprep.mubr.bf16.mxu0 0
      %2939 = vmatmul.mubr.bf16.gmra.mxu0 %v2763
      %v2940 = vpop.f32.mrf.mxu0
      %v2941 = vadd.f32 0.0, %v2940
      %v2942 = vpop.f32.mrf.mxu0
      %v2943 = vpop.f32.mrf.mxu0
      %v2944 = vadd.f32 0.0, %v2943
      %v2945 = vpop.f32.mrf.mxu0
      %2946 = vmatprep.mubr.bf16.mxu0 0
      %2947 = vmatmul.mubr.bf16.gmra.mxu0 %v2764
      %v2948 = vpop.f32.mrf.mxu0
      %v2949 = vadd.f32 0.0, %v2948
      %v2950 = vpop.f32.mrf.mxu0
      %v2951 = vpop.f32.mrf.mxu0
      %v2952 = vadd.f32 0.0, %v2951
      %v2953 = vpop.f32.mrf.mxu0
      %2954 = vmatprep.mubr.bf16.mxu0 0
      %2955 = vmatmul.mubr.bf16.gmra.mxu0 %v2765
      %v2956 = vpop.f32.mrf.mxu0
      %v2957 = vadd.f32 0.0, %v2956
      %v2958 = vpop.f32.mrf.mxu0
      %v2959 = vpop.f32.mrf.mxu0
      %v2960 = vadd.f32 0.0, %v2959
      %v2961 = vpop.f32.mrf.mxu0
      %2962 = vmatprep.mubr.bf16.mxu0 0
      %2963 = vmatmul.mubr.bf16.gmra.mxu0 %v2766
      %v2964 = vpop.f32.mrf.mxu0
      %v2965 = vadd.f32 0.0, %v2964
      %v2966 = vpop.f32.mrf.mxu0
      %v2967 = vpop.f32.mrf.mxu0
      %v2968 = vadd.f32 0.0, %v2967
      %v2969 = vpop.f32.mrf.mxu0
      %2970 = vmatprep.mubr.bf16.mxu0 0
      %2971 = vmatmul.mubr.bf16.gmra.mxu0 %v2767
      %v2972 = vpop.f32.mrf.mxu0
      %v2973 = vadd.f32 0.0, %v2972
      %v2974 = vpop.f32.mrf.mxu0
      %v2975 = vpop.f32.mrf.mxu0
      %v2976 = vadd.f32 0.0, %v2975
      %v2977 = vpop.f32.mrf.mxu0
      %2978 = vmatprep.mubr.bf16.mxu0 0
      %2979 = vmatmul.mubr.bf16.gmra.mxu0 %v2768
      %v2980 = vpop.f32.mrf.mxu0
      %v2981 = vadd.f32 0.0, %v2980
      %v2982 = vpop.f32.mrf.mxu0
      %v2983 = vpop.f32.mrf.mxu0
      %v2984 = vadd.f32 0.0, %v2983
      %v2985 = vpop.f32.mrf.mxu0
      %2986 = vmatprep.mubr.bf16.mxu0 0
      %2987 = vmatmul.mubr.bf16.gmra.mxu0 %v2769
      %v2988 = vpop.f32.mrf.mxu0
      %v2989 = vadd.f32 0.0, %v2988
      %v2990 = vpop.f32.mrf.mxu0
      %v2991 = vpop.f32.mrf.mxu0
      %v2992 = vadd.f32 0.0, %v2991
      %v2993 = vpop.f32.mrf.mxu0
      %2994 = vdwg.mxu0
      %v2995 = vadd.f32 %v2241, %v2869
      %v2996 = vadd.f32 %v2242, %v2872
      %v2997 = vadd.f32 %v2243, %v2877
      %v2998 = vadd.f32 %v2244, %v2880
      %v2999 = vadd.f32 %v2245, %v2885
      %v3000 = vadd.f32 %v2246, %v2888
      %v3001 = vadd.f32 %v2247, %v2893
      %v3002 = vadd.f32 %v2248, %v2896
      %v3003 = vadd.f32 %v2249, %v2901
      %v3004 = vadd.f32 %v2250, %v2904
      %v3005 = vadd.f32 %v2251, %v2909
      %v3006 = vadd.f32 %v2252, %v2912
      %v3007 = vadd.f32 %v2253, %v2917
      %v3008 = vadd.f32 %v2254, %v2920
      %v3009 = vadd.f32 %v2255, %v2925
      %v3010 = vadd.f32 %v2256, %v2928
      %v3011 = vadd.f32 %v2257, %v2933
      %v3012 = vadd.f32 %v2258, %v2936
      %v3013 = vadd.f32 %v2259, %v2941
      %v3014 = vadd.f32 %v2260, %v2944
      %v3015 = vadd.f32 %v2261, %v2949
      %v3016 = vadd.f32 %v2262, %v2952
      %v3017 = vadd.f32 %v2263, %v2957
      %v3018 = vadd.f32 %v2264, %v2960
      %v3019 = vadd.f32 %v2265, %v2965
      %v3020 = vadd.f32 %v2266, %v2968
      %v3021 = vadd.f32 %v2267, %v2973
      %v3022 = vadd.f32 %v2268, %v2976
      %v3023 = vadd.f32 %v2269, %v2981
      %v3024 = vadd.f32 %v2270, %v2984
      %v3025 = vadd.f32 %v2271, %v2989
      %v3026 = vadd.f32 %v2272, %v2992
      %v3027 = vld [vmem:[%s1886] sm:$0xe]
      %v3028 = vld [vmem:[%s1886 + $0xc] sm:$0xe]
      %v3029 = vld [vmem:[%s1886 + $0x18] sm:$0xe]
      %v3030 = vld [vmem:[%s1886 + $0x24] sm:$0xe]
      %v3031 = vld [vmem:[%s1886 + $0x30] sm:$0xe]
      %v3032 = vld [vmem:[%s1886 + $0x3c] sm:$0xe]
      %v3033 = vld [vmem:[%s1886 + $0x48] sm:$0xe]
      %v3034 = vld [vmem:[%s1886 + $0x54] sm:$0xe]
      %v3035 = vld [vmem:[%s1886 + $0x60] sm:$0xe]
      %v3036 = vld [vmem:[%s1886 + $0x6c] sm:$0xe]
      %v3037 = vld [vmem:[%s1886 + $0x78] sm:$0xe]
      %v3038 = vld [vmem:[%s1886 + $0x84] sm:$0xe]
      %v3039 = vld [vmem:[%s1886 + $0x90] sm:$0xe]
      %v3040 = vld [vmem:[%s1886 + $0x9c] sm:$0xe]
      %v3041 = vld [vmem:[%s1886 + $0xa8] sm:$0xe]
      %v3042 = vld [vmem:[%s1886 + $0xb4] sm:$0xe]
      %v3091 = vrot.slane %v3027, 5
      %v3092 = vrot.slane %v3091, 4
      %v3093 = vrot.slane %v2274, 5
      %v3094 = vsel %vm1451, %v3092, %v3093
      %v3095 = vrot.slane %v3093, 4
      %v3096 = vrot.slane %v2275, 5
      %v3097 = vsel %vm1451, %v3095, %v3096
      %v3098 = vrot.slane %v3028, 5
      %v3099 = vrot.slane %v3098, 4
      %v3100 = vrot.slane %v2277, 5
      %v3101 = vsel %vm1451, %v3099, %v3100
      %v3102 = vrot.slane %v3100, 4
      %v3103 = vrot.slane %v2278, 5
      %v3104 = vsel %vm1451, %v3102, %v3103
      %v3105 = vrot.slane %v3029, 5
      %v3106 = vrot.slane %v3105, 4
      %v3107 = vrot.slane %v2280, 5
      %v3108 = vsel %vm1451, %v3106, %v3107
      %v3109 = vrot.slane %v3107, 4
      %v3110 = vrot.slane %v2281, 5
      %v3111 = vsel %vm1451, %v3109, %v3110
      %v3112 = vrot.slane %v3030, 5
      %v3113 = vrot.slane %v3112, 4
      %v3114 = vrot.slane %v2283, 5
      %v3115 = vsel %vm1451, %v3113, %v3114
      %v3116 = vrot.slane %v3114, 4
      %v3117 = vrot.slane %v2284, 5
      %v3118 = vsel %vm1451, %v3116, %v3117
      %v3119 = vrot.slane %v3031, 5
      %v3120 = vrot.slane %v3119, 4
      %v3121 = vrot.slane %v2286, 5
      %v3122 = vsel %vm1451, %v3120, %v3121
      %v3123 = vrot.slane %v3121, 4
      %v3124 = vrot.slane %v2287, 5
      %v3125 = vsel %vm1451, %v3123, %v3124
      %v3126 = vrot.slane %v3032, 5
      %v3127 = vrot.slane %v3126, 4
      %v3128 = vrot.slane %v2289, 5
      %v3129 = vsel %vm1451, %v3127, %v3128
      %v3130 = vrot.slane %v3128, 4
      %v3131 = vrot.slane %v2290, 5
      %v3132 = vsel %vm1451, %v3130, %v3131
      %v3133 = vrot.slane %v3033, 5
      %v3134 = vrot.slane %v3133, 4
      %v3135 = vrot.slane %v2292, 5
      %v3136 = vsel %vm1451, %v3134, %v3135
      %v3137 = vrot.slane %v3135, 4
      %v3138 = vrot.slane %v2293, 5
      %v3139 = vsel %vm1451, %v3137, %v3138
      %v3140 = vrot.slane %v3034, 5
      %v3141 = vrot.slane %v3140, 4
      %v3142 = vrot.slane %v2295, 5
      %v3143 = vsel %vm1451, %v3141, %v3142
      %v3144 = vrot.slane %v3142, 4
      %v3145 = vrot.slane %v2296, 5
      %v3146 = vsel %vm1451, %v3144, %v3145
      %v3147 = vrot.slane %v3035, 5
      %v3148 = vrot.slane %v3147, 4
      %v3149 = vrot.slane %v2298, 5
      %v3150 = vsel %vm1451, %v3148, %v3149
      %v3151 = vrot.slane %v3149, 4
      %v3152 = vrot.slane %v2299, 5
      %v3153 = vsel %vm1451, %v3151, %v3152
      %v3154 = vrot.slane %v3036, 5
      %v3155 = vrot.slane %v3154, 4
      %v3156 = vrot.slane %v2301, 5
      %v3157 = vsel %vm1451, %v3155, %v3156
      %v3158 = vrot.slane %v3156, 4
      %v3159 = vrot.slane %v2302, 5
      %v3160 = vsel %vm1451, %v3158, %v3159
      %v3161 = vrot.slane %v3037, 5
      %v3162 = vrot.slane %v3161, 4
      %v3163 = vrot.slane %v2304, 5
      %v3164 = vsel %vm1451, %v3162, %v3163
      %v3165 = vrot.slane %v3163, 4
      %v3166 = vrot.slane %v2305, 5
      %v3167 = vsel %vm1451, %v3165, %v3166
      %v3168 = vrot.slane %v3038, 5
      %v3169 = vrot.slane %v3168, 4
      %v3170 = vrot.slane %v2307, 5
      %v3171 = vsel %vm1451, %v3169, %v3170
      %v3172 = vrot.slane %v3170, 4
      %v3173 = vrot.slane %v2308, 5
      %v3174 = vsel %vm1451, %v3172, %v3173
      %v3175 = vrot.slane %v3039, 5
      %v3176 = vrot.slane %v3175, 4
      %v3177 = vrot.slane %v2310, 5
      %v3178 = vsel %vm1451, %v3176, %v3177
      %v3179 = vrot.slane %v3177, 4
      %v3180 = vrot.slane %v2311, 5
      %v3181 = vsel %vm1451, %v3179, %v3180
      %v3182 = vrot.slane %v3040, 5
      %v3183 = vrot.slane %v3182, 4
      %v3184 = vrot.slane %v2313, 5
      %v3185 = vsel %vm1451, %v3183, %v3184
      %v3186 = vrot.slane %v3184, 4
      %v3187 = vrot.slane %v2314, 5
      %v3188 = vsel %vm1451, %v3186, %v3187
      %v3189 = vrot.slane %v3041, 5
      %v3190 = vrot.slane %v3189, 4
      %v3191 = vrot.slane %v2316, 5
      %v3192 = vsel %vm1451, %v3190, %v3191
      %v3193 = vrot.slane %v3191, 4
      %v3194 = vrot.slane %v2317, 5
      %v3195 = vsel %vm1451, %v3193, %v3194
      %v3196 = vrot.slane %v3042, 5
      %v3197 = vrot.slane %v3196, 4
      %v3198 = vrot.slane %v2319, 5
      %v3199 = vsel %vm1451, %v3197, %v3198
      %v3200 = vrot.slane %v3198, 4
      %v3201 = vrot.slane %v2320, 5
      %v3202 = vsel %vm1451, %v3200, %v3201
      %s3203 = scalar_lea.vmem %s330, 320
      %v3204 = vld [vmem:[%s3203] sm:$0xf]
      %v3205 = vld [vmem:[%s3203 + $0x4] sm:$0xf]
      %v3206 = vld [vmem:[%s3203 + $0x8] sm:$0xf]
      %v3207 = vld [vmem:[%s3203 + $0xc] sm:$0xf]
      %v3208 = vld [vmem:[%s3203 + $0x10] sm:$0xf]
      %v3209 = vld [vmem:[%s3203 + $0x14] sm:$0xf]
      %v3210 = vld [vmem:[%s3203 + $0x18] sm:$0xf]
      %v3211 = vld [vmem:[%s3203 + $0x1c] sm:$0xf]
      %v3212 = vld [vmem:[%s3203 + $0x20] sm:$0xf]
      %v3213 = vld [vmem:[%s3203 + $0x24] sm:$0xf]
      %v3214 = vld [vmem:[%s3203 + $0x28] sm:$0xf]
      %v3215 = vld [vmem:[%s3203 + $0x2c] sm:$0xf]
      %v3216 = vld [vmem:[%s3203 + $0x30] sm:$0xf]
      %v3217 = vld [vmem:[%s3203 + $0x34] sm:$0xf]
      %v3218 = vld [vmem:[%s3203 + $0x38] sm:$0xf]
      %v3219 = vld [vmem:[%s3203 + $0x3c] sm:$0xf]
      %v3220 = vunpack.c.l.b16 %v3094
      %v3221 = vunpack.c.l.b16 %v3097
      %v3222 = vunpack.c.l.b16 %v3101
      %v3223 = vunpack.c.l.b16 %v3104
      %v3224 = vunpack.c.l.b16 %v3108
      %v3225 = vunpack.c.l.b16 %v3111
      %v3226 = vunpack.c.l.b16 %v3115
      %v3227 = vunpack.c.l.b16 %v3118
      %v3228 = vunpack.c.l.b16 %v3122
      %v3229 = vunpack.c.l.b16 %v3125
      %v3230 = vunpack.c.l.b16 %v3129
      %v3231 = vunpack.c.l.b16 %v3132
      %v3232 = vunpack.c.l.b16 %v3136
      %v3233 = vunpack.c.l.b16 %v3139
      %v3234 = vunpack.c.l.b16 %v3143
      %v3235 = vunpack.c.l.b16 %v3146
      %v3236 = vunpack.c.l.b16 %v3150
      %v3237 = vunpack.c.l.b16 %v3153
      %v3238 = vunpack.c.l.b16 %v3157
      %v3239 = vunpack.c.l.b16 %v3160
      %v3240 = vunpack.c.l.b16 %v3164
      %v3241 = vunpack.c.l.b16 %v3167
      %v3242 = vunpack.c.l.b16 %v3171
      %v3243 = vunpack.c.l.b16 %v3174
      %v3244 = vunpack.c.l.b16 %v3178
      %v3245 = vunpack.c.l.b16 %v3181
      %v3246 = vunpack.c.l.b16 %v3185
      %v3247 = vunpack.c.l.b16 %v3188
      %v3248 = vunpack.c.l.b16 %v3192
      %v3249 = vunpack.c.l.b16 %v3195
      %v3250 = vunpack.c.l.b16 %v3199
      %v3251 = vunpack.c.l.b16 %v3202
      %v3252 = vpack.c.b16 %v3221, %v3220
      %v3253 = vpack.c.b16 %v3223, %v3222
      %v3254 = vpack.c.b16 %v3225, %v3224
      %v3255 = vpack.c.b16 %v3227, %v3226
      %v3256 = vpack.c.b16 %v3229, %v3228
      %v3257 = vpack.c.b16 %v3231, %v3230
      %v3258 = vpack.c.b16 %v3233, %v3232
      %v3259 = vpack.c.b16 %v3235, %v3234
      %v3260 = vpack.c.b16 %v3237, %v3236
      %v3261 = vpack.c.b16 %v3239, %v3238
      %v3262 = vpack.c.b16 %v3241, %v3240
      %v3263 = vpack.c.b16 %v3243, %v3242
      %v3264 = vpack.c.b16 %v3245, %v3244
      %v3265 = vpack.c.b16 %v3247, %v3246
      %v3266 = vpack.c.b16 %v3249, %v3248
      %v3267 = vpack.c.b16 %v3251, %v3250
      %v3300 = vunpack.c.l.b16 %v3204
      %v3301 = vunpack.c.l.b16 %v3205
      %v3302 = vunpack.c.l.b16 %v3206
      %v3303 = vunpack.c.l.b16 %v3207
      %v3304 = vunpack.c.l.b16 %v3208
      %v3305 = vunpack.c.l.b16 %v3209
      %v3306 = vunpack.c.l.b16 %v3210
      %v3307 = vunpack.c.l.b16 %v3211
      %v3308 = vunpack.c.l.b16 %v3212
      %v3309 = vunpack.c.l.b16 %v3213
      %v3310 = vunpack.c.l.b16 %v3214
      %v3311 = vunpack.c.l.b16 %v3215
      %v3312 = vunpack.c.l.b16 %v3216
      %v3313 = vunpack.c.l.b16 %v3217
      %v3314 = vunpack.c.l.b16 %v3218
      %v3315 = vunpack.c.l.b16 %v3219
      %v3316 = vpack.c.b16 %v3301, %v3300
      %v3317 = vpack.c.b16 %v3303, %v3302
      %v3318 = vpack.c.b16 %v3305, %v3304
      %v3319 = vpack.c.b16 %v3307, %v3306
      %v3320 = vpack.c.b16 %v3309, %v3308
      %v3321 = vpack.c.b16 %v3311, %v3310
      %v3322 = vpack.c.b16 %v3313, %v3312
      %v3323 = vpack.c.b16 %v3315, %v3314
      %3332 = vmatprep.subr.bf16.mxu0 0
      %3333 = vmatpush1.bf16.msra.mxu0 %v3323
      %3334 = vmatprep.subr.bf16.mxu0 0
      %3335 = vmatpush1.bf16.msra.mxu0 %v3322
      %3336 = vmatprep.subr.bf16.mxu0 0
      %3337 = vmatpush1.bf16.msra.mxu0 %v3321
      %3338 = vmatprep.subr.bf16.mxu0 0
      %3339 = vmatpush1.bf16.msra.mxu0 %v3320
      %3340 = vmatprep.subr.bf16.mxu0 0
      %3341 = vmatpush1.bf16.msra.mxu0 %v3319
      %3342 = vmatprep.subr.bf16.mxu0 0
      %3343 = vmatpush1.bf16.msra.mxu0 %v3318
      %3344 = vmatprep.subr.bf16.mxu0 0
      %3345 = vmatpush1.bf16.msra.mxu0 %v3317
      %3346 = vmatprep.subr.bf16.mxu0 0
      %3347 = vmatpush1.bf16.msra.mxu0 %v3316
      %3348 = vmatprep.subr.bf16.mxu0 0
      %3349 = vmatpush2.bf16.msra.mxu0 0
      %3350 = vmatprep.subr.bf16.mxu0 0
      %3351 = vmatpush2.bf16.msra.mxu0 0
      %3352 = vmatprep.subr.bf16.mxu0 0
      %3353 = vmatpush2.bf16.msra.mxu0 0
      %3354 = vmatprep.subr.bf16.mxu0 0
      %3355 = vmatpush2.bf16.msra.mxu0 0
      %3356 = vmatprep.subr.bf16.mxu0 0
      %3357 = vmatpush2.bf16.msra.mxu0 0
      %3358 = vmatprep.subr.bf16.mxu0 0
      %3359 = vmatpush2.bf16.msra.mxu0 0
      %3360 = vmatprep.subr.bf16.mxu0 0
      %3361 = vmatpush2.bf16.msra.mxu0 0
      %3362 = vmatprep.subr.bf16.mxu0 0
      %3363 = vmatpush2.bf16.msra.mxu0 0
      %3364 = vmatprep.mubr.bf16.mxu0 0
      %3365 = vmatmul.mubr.bf16.gmra.mxu0 %v3252
      %v3366 = vpop.f32.mrf.mxu0
      %v3367 = vadd.f32 0.0, %v3366
      %v3368 = vpop.f32.mrf.mxu0
      %v3369 = vpop.f32.mrf.mxu0
      %v3370 = vadd.f32 0.0, %v3369
      %v3371 = vpop.f32.mrf.mxu0
      %3372 = vmatprep.mubr.bf16.mxu0 0
      %3373 = vmatmul.mubr.bf16.gmra.mxu0 %v3253
      %v3374 = vpop.f32.mrf.mxu0
      %v3375 = vadd.f32 0.0, %v3374
      %v3376 = vpop.f32.mrf.mxu0
      %v3377 = vpop.f32.mrf.mxu0
      %v3378 = vadd.f32 0.0, %v3377
      %v3379 = vpop.f32.mrf.mxu0
      %3380 = vmatprep.mubr.bf16.mxu0 0
      %3381 = vmatmul.mubr.bf16.gmra.mxu0 %v3254
      %v3382 = vpop.f32.mrf.mxu0
      %v3383 = vadd.f32 0.0, %v3382
      %v3384 = vpop.f32.mrf.mxu0
      %v3385 = vpop.f32.mrf.mxu0
      %v3386 = vadd.f32 0.0, %v3385
      %v3387 = vpop.f32.mrf.mxu0
      %3388 = vmatprep.mubr.bf16.mxu0 0
      %3389 = vmatmul.mubr.bf16.gmra.mxu0 %v3255
      %v3390 = vpop.f32.mrf.mxu0
      %v3391 = vadd.f32 0.0, %v3390
      %v3392 = vpop.f32.mrf.mxu0
      %v3393 = vpop.f32.mrf.mxu0
      %v3394 = vadd.f32 0.0, %v3393
      %v3395 = vpop.f32.mrf.mxu0
      %3396 = vmatprep.mubr.bf16.mxu0 0
      %3397 = vmatmul.mubr.bf16.gmra.mxu0 %v3256
      %v3398 = vpop.f32.mrf.mxu0
      %v3399 = vadd.f32 0.0, %v3398
      %v3400 = vpop.f32.mrf.mxu0
      %v3401 = vpop.f32.mrf.mxu0
      %v3402 = vadd.f32 0.0, %v3401
      %v3403 = vpop.f32.mrf.mxu0
      %3404 = vmatprep.mubr.bf16.mxu0 0
      %3405 = vmatmul.mubr.bf16.gmra.mxu0 %v3257
      %v3406 = vpop.f32.mrf.mxu0
      %v3407 = vadd.f32 0.0, %v3406
      %v3408 = vpop.f32.mrf.mxu0
      %v3409 = vpop.f32.mrf.mxu0
      %v3410 = vadd.f32 0.0, %v3409
      %v3411 = vpop.f32.mrf.mxu0
      %3412 = vmatprep.mubr.bf16.mxu0 0
      %3413 = vmatmul.mubr.bf16.gmra.mxu0 %v3258
      %v3414 = vpop.f32.mrf.mxu0
      %v3415 = vadd.f32 0.0, %v3414
      %v3416 = vpop.f32.mrf.mxu0
      %v3417 = vpop.f32.mrf.mxu0
      %v3418 = vadd.f32 0.0, %v3417
      %v3419 = vpop.f32.mrf.mxu0
      %3420 = vmatprep.mubr.bf16.mxu0 0
      %3421 = vmatmul.mubr.bf16.gmra.mxu0 %v3259
      %v3422 = vpop.f32.mrf.mxu0
      %v3423 = vadd.f32 0.0, %v3422
      %v3424 = vpop.f32.mrf.mxu0
      %v3425 = vpop.f32.mrf.mxu0
      %v3426 = vadd.f32 0.0, %v3425
      %v3427 = vpop.f32.mrf.mxu0
      %3428 = vmatprep.mubr.bf16.mxu0 0
      %3429 = vmatmul.mubr.bf16.gmra.mxu0 %v3260
      %v3430 = vpop.f32.mrf.mxu0
      %v3431 = vadd.f32 0.0, %v3430
      %v3432 = vpop.f32.mrf.mxu0
      %v3433 = vpop.f32.mrf.mxu0
      %v3434 = vadd.f32 0.0, %v3433
      %v3435 = vpop.f32.mrf.mxu0
      %3436 = vmatprep.mubr.bf16.mxu0 0
      %3437 = vmatmul.mubr.bf16.gmra.mxu0 %v3261
      %v3438 = vpop.f32.mrf.mxu0
      %v3439 = vadd.f32 0.0, %v3438
      %v3440 = vpop.f32.mrf.mxu0
      %v3441 = vpop.f32.mrf.mxu0
      %v3442 = vadd.f32 0.0, %v3441
      %v3443 = vpop.f32.mrf.mxu0
      %3444 = vmatprep.mubr.bf16.mxu0 0
      %3445 = vmatmul.mubr.bf16.gmra.mxu0 %v3262
      %v3446 = vpop.f32.mrf.mxu0
      %v3447 = vadd.f32 0.0, %v3446
      %v3448 = vpop.f32.mrf.mxu0
      %v3449 = vpop.f32.mrf.mxu0
      %v3450 = vadd.f32 0.0, %v3449
      %v3451 = vpop.f32.mrf.mxu0
      %3452 = vmatprep.mubr.bf16.mxu0 0
      %3453 = vmatmul.mubr.bf16.gmra.mxu0 %v3263
      %v3454 = vpop.f32.mrf.mxu0
      %v3455 = vadd.f32 0.0, %v3454
      %v3456 = vpop.f32.mrf.mxu0
      %v3457 = vpop.f32.mrf.mxu0
      %v3458 = vadd.f32 0.0, %v3457
      %v3459 = vpop.f32.mrf.mxu0
      %3460 = vmatprep.mubr.bf16.mxu0 0
      %3461 = vmatmul.mubr.bf16.gmra.mxu0 %v3264
      %v3462 = vpop.f32.mrf.mxu0
      %v3463 = vadd.f32 0.0, %v3462
      %v3464 = vpop.f32.mrf.mxu0
      %v3465 = vpop.f32.mrf.mxu0
      %v3466 = vadd.f32 0.0, %v3465
      %v3467 = vpop.f32.mrf.mxu0
      %3468 = vmatprep.mubr.bf16.mxu0 0
      %3469 = vmatmul.mubr.bf16.gmra.mxu0 %v3265
      %v3470 = vpop.f32.mrf.mxu0
      %v3471 = vadd.f32 0.0, %v3470
      %v3472 = vpop.f32.mrf.mxu0
      %v3473 = vpop.f32.mrf.mxu0
      %v3474 = vadd.f32 0.0, %v3473
      %v3475 = vpop.f32.mrf.mxu0
      %3476 = vmatprep.mubr.bf16.mxu0 0
      %3477 = vmatmul.mubr.bf16.gmra.mxu0 %v3266
      %v3478 = vpop.f32.mrf.mxu0
      %v3479 = vadd.f32 0.0, %v3478
      %v3480 = vpop.f32.mrf.mxu0
      %v3481 = vpop.f32.mrf.mxu0
      %v3482 = vadd.f32 0.0, %v3481
      %v3483 = vpop.f32.mrf.mxu0
      %3484 = vmatprep.mubr.bf16.mxu0 0
      %3485 = vmatmul.mubr.bf16.gmra.mxu0 %v3267
      %v3486 = vpop.f32.mrf.mxu0
      %v3487 = vadd.f32 0.0, %v3486
      %v3488 = vpop.f32.mrf.mxu0
      %v3489 = vpop.f32.mrf.mxu0
      %v3490 = vadd.f32 0.0, %v3489
      %v3491 = vpop.f32.mrf.mxu0
      %3492 = vdwg.mxu0
      %v3493 = vadd.f32 %v2995, %v3367
      %v3494 = vadd.f32 %v2996, %v3370
      %v3495 = vadd.f32 %v2997, %v3375
      %v3496 = vadd.f32 %v2998, %v3378
      %v3497 = vadd.f32 %v2999, %v3383
      %v3498 = vadd.f32 %v3000, %v3386
      %v3499 = vadd.f32 %v3001, %v3391
      %v3500 = vadd.f32 %v3002, %v3394
      %v3501 = vadd.f32 %v3003, %v3399
      %v3502 = vadd.f32 %v3004, %v3402
      %v3503 = vadd.f32 %v3005, %v3407
      %v3504 = vadd.f32 %v3006, %v3410
      %v3505 = vadd.f32 %v3007, %v3415
      %v3506 = vadd.f32 %v3008, %v3418
      %v3507 = vadd.f32 %v3009, %v3423
      %v3508 = vadd.f32 %v3010, %v3426
      %v3509 = vadd.f32 %v3011, %v3431
      %v3510 = vadd.f32 %v3012, %v3434
      %v3511 = vadd.f32 %v3013, %v3439
      %v3512 = vadd.f32 %v3014, %v3442
      %v3513 = vadd.f32 %v3015, %v3447
      %v3514 = vadd.f32 %v3016, %v3450
      %v3515 = vadd.f32 %v3017, %v3455
      %v3516 = vadd.f32 %v3018, %v3458
      %v3517 = vadd.f32 %v3019, %v3463
      %v3518 = vadd.f32 %v3020, %v3466
      %v3519 = vadd.f32 %v3021, %v3471
      %v3520 = vadd.f32 %v3022, %v3474
      %v3521 = vadd.f32 %v3023, %v3479
      %v3522 = vadd.f32 %v3024, %v3482
      %v3523 = vadd.f32 %v3025, %v3487
      %v3524 = vadd.f32 %v3026, %v3490
      %s3525 = scalar_lea.vmem %s326, 24
      %v3526 = vld [vmem:[%s3525] sm:$0xf]
      %v3527 = vld [vmem:[%s3525 + $0x4] sm:$0xf]
      %v3528 = vld [vmem:[%s3525 + $0xc] sm:$0xf]
      %v3529 = vld [vmem:[%s3525 + $0x10] sm:$0xf]
      %v3530 = vld [vmem:[%s3525 + $0x18] sm:$0xf]
      %v3531 = vld [vmem:[%s3525 + $0x1c] sm:$0xf]
      %v3532 = vld [vmem:[%s3525 + $0x24] sm:$0xf]
      %v3533 = vld [vmem:[%s3525 + $0x28] sm:$0xf]
      %v3534 = vld [vmem:[%s3525 + $0x30] sm:$0xf]
      %v3535 = vld [vmem:[%s3525 + $0x34] sm:$0xf]
      %v3536 = vld [vmem:[%s3525 + $0x3c] sm:$0xf]
      %v3537 = vld [vmem:[%s3525 + $0x40] sm:$0xf]
      %v3538 = vld [vmem:[%s3525 + $0x48] sm:$0xf]
      %v3539 = vld [vmem:[%s3525 + $0x4c] sm:$0xf]
      %v3540 = vld [vmem:[%s3525 + $0x54] sm:$0xf]
      %v3541 = vld [vmem:[%s3525 + $0x58] sm:$0xf]
      %v3542 = vld [vmem:[%s3525 + $0x60] sm:$0xf]
      %v3543 = vld [vmem:[%s3525 + $0x64] sm:$0xf]
      %v3544 = vld [vmem:[%s3525 + $0x6c] sm:$0xf]
      %v3545 = vld [vmem:[%s3525 + $0x70] sm:$0xf]
      %v3546 = vld [vmem:[%s3525 + $0x78] sm:$0xf]
      %v3547 = vld [vmem:[%s3525 + $0x7c] sm:$0xf]
      %v3548 = vld [vmem:[%s3525 + $0x84] sm:$0xf]
      %v3549 = vld [vmem:[%s3525 + $0x88] sm:$0xf]
      %v3550 = vld [vmem:[%s3525 + $0x90] sm:$0xf]
      %v3551 = vld [vmem:[%s3525 + $0x94] sm:$0xf]
      %v3552 = vld [vmem:[%s3525 + $0x9c] sm:$0xf]
      %v3553 = vld [vmem:[%s3525 + $0xa0] sm:$0xf]
      %v3554 = vld [vmem:[%s3525 + $0xa8] sm:$0xf]
      %v3555 = vld [vmem:[%s3525 + $0xac] sm:$0xf]
      %v3556 = vld [vmem:[%s3525 + $0xb4] sm:$0xf]
      %v3557 = vld [vmem:[%s3525 + $0xb8] sm:$0xf]
      %s3558 = scalar_lea.vmem %s330, 384
      %v3559 = vld [vmem:[%s3558] sm:$0xf]
      %v3560 = vld [vmem:[%s3558 + $0x4] sm:$0xf]
      %v3561 = vld [vmem:[%s3558 + $0x8] sm:$0xf]
      %v3562 = vld [vmem:[%s3558 + $0xc] sm:$0xf]
      %v3563 = vld [vmem:[%s3558 + $0x10] sm:$0xf]
      %v3564 = vld [vmem:[%s3558 + $0x14] sm:$0xf]
      %v3565 = vld [vmem:[%s3558 + $0x18] sm:$0xf]
      %v3566 = vld [vmem:[%s3558 + $0x1c] sm:$0xf]
      %v3567 = vld [vmem:[%s3558 + $0x20] sm:$0xf]
      %v3568 = vld [vmem:[%s3558 + $0x24] sm:$0xf]
      %v3569 = vld [vmem:[%s3558 + $0x28] sm:$0xf]
      %v3570 = vld [vmem:[%s3558 + $0x2c] sm:$0xf]
      %v3571 = vld [vmem:[%s3558 + $0x30] sm:$0xf]
      %v3572 = vld [vmem:[%s3558 + $0x34] sm:$0xf]
      %v3573 = vld [vmem:[%s3558 + $0x38] sm:$0xf]
      %v3574 = vld [vmem:[%s3558 + $0x3c] sm:$0xf]
      %v3607 = vunpack.c.l.b16 %v3526
      %v3608 = vunpack.c.l.b16 %v3527
      %v3609 = vunpack.c.l.b16 %v3528
      %v3610 = vunpack.c.l.b16 %v3529
      %v3611 = vunpack.c.l.b16 %v3530
      %v3612 = vunpack.c.l.b16 %v3531
      %v3613 = vunpack.c.l.b16 %v3532
      %v3614 = vunpack.c.l.b16 %v3533
      %v3615 = vunpack.c.l.b16 %v3534
      %v3616 = vunpack.c.l.b16 %v3535
      %v3617 = vunpack.c.l.b16 %v3536
      %v3618 = vunpack.c.l.b16 %v3537
      %v3619 = vunpack.c.l.b16 %v3538
      %v3620 = vunpack.c.l.b16 %v3539
      %v3621 = vunpack.c.l.b16 %v3540
      %v3622 = vunpack.c.l.b16 %v3541
      %v3623 = vunpack.c.l.b16 %v3542
      %v3624 = vunpack.c.l.b16 %v3543
      %v3625 = vunpack.c.l.b16 %v3544
      %v3626 = vunpack.c.l.b16 %v3545
      %v3627 = vunpack.c.l.b16 %v3546
      %v3628 = vunpack.c.l.b16 %v3547
      %v3629 = vunpack.c.l.b16 %v3548
      %v3630 = vunpack.c.l.b16 %v3549
      %v3631 = vunpack.c.l.b16 %v3550
      %v3632 = vunpack.c.l.b16 %v3551
      %v3633 = vunpack.c.l.b16 %v3552
      %v3634 = vunpack.c.l.b16 %v3553
      %v3635 = vunpack.c.l.b16 %v3554
      %v3636 = vunpack.c.l.b16 %v3555
      %v3637 = vunpack.c.l.b16 %v3556
      %v3638 = vunpack.c.l.b16 %v3557
      %v3639 = vpack.c.b16 %v3608, %v3607
      %v3640 = vpack.c.b16 %v3610, %v3609
      %v3641 = vpack.c.b16 %v3612, %v3611
      %v3642 = vpack.c.b16 %v3614, %v3613
      %v3643 = vpack.c.b16 %v3616, %v3615
      %v3644 = vpack.c.b16 %v3618, %v3617
      %v3645 = vpack.c.b16 %v3620, %v3619
      %v3646 = vpack.c.b16 %v3622, %v3621
      %v3647 = vpack.c.b16 %v3624, %v3623
      %v3648 = vpack.c.b16 %v3626, %v3625
      %v3649 = vpack.c.b16 %v3628, %v3627
      %v3650 = vpack.c.b16 %v3630, %v3629
      %v3651 = vpack.c.b16 %v3632, %v3631
      %v3652 = vpack.c.b16 %v3634, %v3633
      %v3653 = vpack.c.b16 %v3636, %v3635
      %v3654 = vpack.c.b16 %v3638, %v3637
      %v3687 = vunpack.c.l.b16 %v3559
      %v3688 = vunpack.c.l.b16 %v3560
      %v3689 = vunpack.c.l.b16 %v3561
      %v3690 = vunpack.c.l.b16 %v3562
      %v3691 = vunpack.c.l.b16 %v3563
      %v3692 = vunpack.c.l.b16 %v3564
      %v3693 = vunpack.c.l.b16 %v3565
      %v3694 = vunpack.c.l.b16 %v3566
      %v3695 = vunpack.c.l.b16 %v3567
      %v3696 = vunpack.c.l.b16 %v3568
      %v3697 = vunpack.c.l.b16 %v3569
      %v3698 = vunpack.c.l.b16 %v3570
      %v3699 = vunpack.c.l.b16 %v3571
      %v3700 = vunpack.c.l.b16 %v3572
      %v3701 = vunpack.c.l.b16 %v3573
      %v3702 = vunpack.c.l.b16 %v3574
      %v3703 = vpack.c.b16 %v3688, %v3687
      %v3704 = vpack.c.b16 %v3690, %v3689
      %v3705 = vpack.c.b16 %v3692, %v3691
      %v3706 = vpack.c.b16 %v3694, %v3693
      %v3707 = vpack.c.b16 %v3696, %v3695
      %v3708 = vpack.c.b16 %v3698, %v3697
      %v3709 = vpack.c.b16 %v3700, %v3699
      %v3710 = vpack.c.b16 %v3702, %v3701
      %3719 = vmatprep.subr.bf16.mxu0 0
      %3720 = vmatpush1.bf16.msra.mxu0 %v3710
      %3721 = vmatprep.subr.bf16.mxu0 0
      %3722 = vmatpush1.bf16.msra.mxu0 %v3709
      %3723 = vmatprep.subr.bf16.mxu0 0
      %3724 = vmatpush1.bf16.msra.mxu0 %v3708
      %3725 = vmatprep.subr.bf16.mxu0 0
      %3726 = vmatpush1.bf16.msra.mxu0 %v3707
      %3727 = vmatprep.subr.bf16.mxu0 0
      %3728 = vmatpush1.bf16.msra.mxu0 %v3706
      %3729 = vmatprep.subr.bf16.mxu0 0
      %3730 = vmatpush1.bf16.msra.mxu0 %v3705
      %3731 = vmatprep.subr.bf16.mxu0 0
      %3732 = vmatpush1.bf16.msra.mxu0 %v3704
      %3733 = vmatprep.subr.bf16.mxu0 0
      %3734 = vmatpush1.bf16.msra.mxu0 %v3703
      %3735 = vmatprep.subr.bf16.mxu0 0
      %3736 = vmatpush2.bf16.msra.mxu0 0
      %3737 = vmatprep.subr.bf16.mxu0 0
      %3738 = vmatpush2.bf16.msra.mxu0 0
      %3739 = vmatprep.subr.bf16.mxu0 0
      %3740 = vmatpush2.bf16.msra.mxu0 0
      %3741 = vmatprep.subr.bf16.mxu0 0
      %3742 = vmatpush2.bf16.msra.mxu0 0
      %3743 = vmatprep.subr.bf16.mxu0 0
      %3744 = vmatpush2.bf16.msra.mxu0 0
      %3745 = vmatprep.subr.bf16.mxu0 0
      %3746 = vmatpush2.bf16.msra.mxu0 0
      %3747 = vmatprep.subr.bf16.mxu0 0
      %3748 = vmatpush2.bf16.msra.mxu0 0
      %3749 = vmatprep.subr.bf16.mxu0 0
      %3750 = vmatpush2.bf16.msra.mxu0 0
      %3751 = vmatprep.mubr.bf16.mxu0 0
      %3752 = vmatmul.mubr.bf16.gmra.mxu0 %v3639
      %v3753 = vpop.f32.mrf.mxu0
      %v3754 = vadd.f32 0.0, %v3753
      %v3755 = vpop.f32.mrf.mxu0
      %v3756 = vpop.f32.mrf.mxu0
      %v3757 = vadd.f32 0.0, %v3756
      %v3758 = vpop.f32.mrf.mxu0
      %3759 = vmatprep.mubr.bf16.mxu0 0
      %3760 = vmatmul.mubr.bf16.gmra.mxu0 %v3640
      %v3761 = vpop.f32.mrf.mxu0
      %v3762 = vadd.f32 0.0, %v3761
      %v3763 = vpop.f32.mrf.mxu0
      %v3764 = vpop.f32.mrf.mxu0
      %v3765 = vadd.f32 0.0, %v3764
      %v3766 = vpop.f32.mrf.mxu0
      %3767 = vmatprep.mubr.bf16.mxu0 0
      %3768 = vmatmul.mubr.bf16.gmra.mxu0 %v3641
      %v3769 = vpop.f32.mrf.mxu0
      %v3770 = vadd.f32 0.0, %v3769
      %v3771 = vpop.f32.mrf.mxu0
      %v3772 = vpop.f32.mrf.mxu0
      %v3773 = vadd.f32 0.0, %v3772
      %v3774 = vpop.f32.mrf.mxu0
      %3775 = vmatprep.mubr.bf16.mxu0 0
      %3776 = vmatmul.mubr.bf16.gmra.mxu0 %v3642
      %v3777 = vpop.f32.mrf.mxu0
      %v3778 = vadd.f32 0.0, %v3777
      %v3779 = vpop.f32.mrf.mxu0
      %v3780 = vpop.f32.mrf.mxu0
      %v3781 = vadd.f32 0.0, %v3780
      %v3782 = vpop.f32.mrf.mxu0
      %3783 = vmatprep.mubr.bf16.mxu0 0
      %3784 = vmatmul.mubr.bf16.gmra.mxu0 %v3643
      %v3785 = vpop.f32.mrf.mxu0
      %v3786 = vadd.f32 0.0, %v3785
      %v3787 = vpop.f32.mrf.mxu0
      %v3788 = vpop.f32.mrf.mxu0
      %v3789 = vadd.f32 0.0, %v3788
      %v3790 = vpop.f32.mrf.mxu0
      %3791 = vmatprep.mubr.bf16.mxu0 0
      %3792 = vmatmul.mubr.bf16.gmra.mxu0 %v3644
      %v3793 = vpop.f32.mrf.mxu0
      %v3794 = vadd.f32 0.0, %v3793
      %v3795 = vpop.f32.mrf.mxu0
      %v3796 = vpop.f32.mrf.mxu0
      %v3797 = vadd.f32 0.0, %v3796
      %v3798 = vpop.f32.mrf.mxu0
      %3799 = vmatprep.mubr.bf16.mxu0 0
      %3800 = vmatmul.mubr.bf16.gmra.mxu0 %v3645
      %v3801 = vpop.f32.mrf.mxu0
      %v3802 = vadd.f32 0.0, %v3801
      %v3803 = vpop.f32.mrf.mxu0
      %v3804 = vpop.f32.mrf.mxu0
      %v3805 = vadd.f32 0.0, %v3804
      %v3806 = vpop.f32.mrf.mxu0
      %3807 = vmatprep.mubr.bf16.mxu0 0
      %3808 = vmatmul.mubr.bf16.gmra.mxu0 %v3646
      %v3809 = vpop.f32.mrf.mxu0
      %v3810 = vadd.f32 0.0, %v3809
      %v3811 = vpop.f32.mrf.mxu0
      %v3812 = vpop.f32.mrf.mxu0
      %v3813 = vadd.f32 0.0, %v3812
      %v3814 = vpop.f32.mrf.mxu0
      %3815 = vmatprep.mubr.bf16.mxu0 0
      %3816 = vmatmul.mubr.bf16.gmra.mxu0 %v3647
      %v3817 = vpop.f32.mrf.mxu0
      %v3818 = vadd.f32 0.0, %v3817
      %v3819 = vpop.f32.mrf.mxu0
      %v3820 = vpop.f32.mrf.mxu0
      %v3821 = vadd.f32 0.0, %v3820
      %v3822 = vpop.f32.mrf.mxu0
      %3823 = vmatprep.mubr.bf16.mxu0 0
      %3824 = vmatmul.mubr.bf16.gmra.mxu0 %v3648
      %v3825 = vpop.f32.mrf.mxu0
      %v3826 = vadd.f32 0.0, %v3825
      %v3827 = vpop.f32.mrf.mxu0
      %v3828 = vpop.f32.mrf.mxu0
      %v3829 = vadd.f32 0.0, %v3828
      %v3830 = vpop.f32.mrf.mxu0
      %3831 = vmatprep.mubr.bf16.mxu0 0
      %3832 = vmatmul.mubr.bf16.gmra.mxu0 %v3649
      %v3833 = vpop.f32.mrf.mxu0
      %v3834 = vadd.f32 0.0, %v3833
      %v3835 = vpop.f32.mrf.mxu0
      %v3836 = vpop.f32.mrf.mxu0
      %v3837 = vadd.f32 0.0, %v3836
      %v3838 = vpop.f32.mrf.mxu0
      %3839 = vmatprep.mubr.bf16.mxu0 0
      %3840 = vmatmul.mubr.bf16.gmra.mxu0 %v3650
      %v3841 = vpop.f32.mrf.mxu0
      %v3842 = vadd.f32 0.0, %v3841
      %v3843 = vpop.f32.mrf.mxu0
      %v3844 = vpop.f32.mrf.mxu0
      %v3845 = vadd.f32 0.0, %v3844
      %v3846 = vpop.f32.mrf.mxu0
      %3847 = vmatprep.mubr.bf16.mxu0 0
      %3848 = vmatmul.mubr.bf16.gmra.mxu0 %v3651
      %v3849 = vpop.f32.mrf.mxu0
      %v3850 = vadd.f32 0.0, %v3849
      %v3851 = vpop.f32.mrf.mxu0
      %v3852 = vpop.f32.mrf.mxu0
      %v3853 = vadd.f32 0.0, %v3852
      %v3854 = vpop.f32.mrf.mxu0
      %3855 = vmatprep.mubr.bf16.mxu0 0
      %3856 = vmatmul.mubr.bf16.gmra.mxu0 %v3652
      %v3857 = vpop.f32.mrf.mxu0
      %v3858 = vadd.f32 0.0, %v3857
      %v3859 = vpop.f32.mrf.mxu0
      %v3860 = vpop.f32.mrf.mxu0
      %v3861 = vadd.f32 0.0, %v3860
      %v3862 = vpop.f32.mrf.mxu0
      %3863 = vmatprep.mubr.bf16.mxu0 0
      %3864 = vmatmul.mubr.bf16.gmra.mxu0 %v3653
      %v3865 = vpop.f32.mrf.mxu0
      %v3866 = vadd.f32 0.0, %v3865
      %v3867 = vpop.f32.mrf.mxu0
      %v3868 = vpop.f32.mrf.mxu0
      %v3869 = vadd.f32 0.0, %v3868
      %v3870 = vpop.f32.mrf.mxu0
      %3871 = vmatprep.mubr.bf16.mxu0 0
      %3872 = vmatmul.mubr.bf16.gmra.mxu0 %v3654
      %v3873 = vpop.f32.mrf.mxu0
      %v3874 = vadd.f32 0.0, %v3873
      %v3875 = vpop.f32.mrf.mxu0
      %v3876 = vpop.f32.mrf.mxu0
      %v3877 = vadd.f32 0.0, %v3876
      %v3878 = vpop.f32.mrf.mxu0
      %3879 = vdwg.mxu0
      %v3880 = vadd.f32 %v3493, %v3754
      %v3881 = vadd.f32 %v3494, %v3757
      %v3882 = vadd.f32 %v3495, %v3762
      %v3883 = vadd.f32 %v3496, %v3765
      %v3884 = vadd.f32 %v3497, %v3770
      %v3885 = vadd.f32 %v3498, %v3773
      %v3886 = vadd.f32 %v3499, %v3778
      %v3887 = vadd.f32 %v3500, %v3781
      %v3888 = vadd.f32 %v3501, %v3786
      %v3889 = vadd.f32 %v3502, %v3789
      %v3890 = vadd.f32 %v3503, %v3794
      %v3891 = vadd.f32 %v3504, %v3797
      %v3892 = vadd.f32 %v3505, %v3802
      %v3893 = vadd.f32 %v3506, %v3805
      %v3894 = vadd.f32 %v3507, %v3810
      %v3895 = vadd.f32 %v3508, %v3813
      %v3896 = vadd.f32 %v3509, %v3818
      %v3897 = vadd.f32 %v3510, %v3821
      %v3898 = vadd.f32 %v3511, %v3826
      %v3899 = vadd.f32 %v3512, %v3829
      %v3900 = vadd.f32 %v3513, %v3834
      %v3901 = vadd.f32 %v3514, %v3837
      %v3902 = vadd.f32 %v3515, %v3842
      %v3903 = vadd.f32 %v3516, %v3845
      %v3904 = vadd.f32 %v3517, %v3850
      %v3905 = vadd.f32 %v3518, %v3853
      %v3906 = vadd.f32 %v3519, %v3858
      %v3907 = vadd.f32 %v3520, %v3861
      %v3908 = vadd.f32 %v3521, %v3866
      %v3909 = vadd.f32 %v3522, %v3869
      %v3910 = vadd.f32 %v3523, %v3874
      %v3911 = vadd.f32 %v3524, %v3877
      %v3912 = vld [vmem:[%s3525] sm:$0xf]
      %v3913 = vld [vmem:[%s3525 + $0x4] sm:$0xf]
      %v3914 = vld [vmem:[%s3525 + $0x8] sm:$0x1]
      %v3915 = vld [vmem:[%s3525 + $0xc] sm:$0xf]
      %v3916 = vld [vmem:[%s3525 + $0x10] sm:$0xf]
      %v3917 = vld [vmem:[%s3525 + $0x14] sm:$0x1]
      %v3918 = vld [vmem:[%s3525 + $0x18] sm:$0xf]
      %v3919 = vld [vmem:[%s3525 + $0x1c] sm:$0xf]
      %v3920 = vld [vmem:[%s3525 + $0x20] sm:$0x1]
      %v3921 = vld [vmem:[%s3525 + $0x24] sm:$0xf]
      %v3922 = vld [vmem:[%s3525 + $0x28] sm:$0xf]
      %v3923 = vld [vmem:[%s3525 + $0x2c] sm:$0x1]
      %v3924 = vld [vmem:[%s3525 + $0x30] sm:$0xf]
      %v3925 = vld [vmem:[%s3525 + $0x34] sm:$0xf]
      %v3926 = vld [vmem:[%s3525 + $0x38] sm:$0x1]
      %v3927 = vld [vmem:[%s3525 + $0x3c] sm:$0xf]
      %v3928 = vld [vmem:[%s3525 + $0x40] sm:$0xf]
      %v3929 = vld [vmem:[%s3525 + $0x44] sm:$0x1]
      %v3930 = vld [vmem:[%s3525 + $0x48] sm:$0xf]
      %v3931 = vld [vmem:[%s3525 + $0x4c] sm:$0xf]
      %v3932 = vld [vmem:[%s3525 + $0x50] sm:$0x1]
      %v3933 = vld [vmem:[%s3525 + $0x54] sm:$0xf]
      %v3934 = vld [vmem:[%s3525 + $0x58] sm:$0xf]
      %v3935 = vld [vmem:[%s3525 + $0x5c] sm:$0x1]
      %v3936 = vld [vmem:[%s3525 + $0x60] sm:$0xf]
      %v3937 = vld [vmem:[%s3525 + $0x64] sm:$0xf]
      %v3938 = vld [vmem:[%s3525 + $0x68] sm:$0x1]
      %v3939 = vld [vmem:[%s3525 + $0x6c] sm:$0xf]
      %v3940 = vld [vmem:[%s3525 + $0x70] sm:$0xf]
      %v3941 = vld [vmem:[%s3525 + $0x74] sm:$0x1]
      %v3942 = vld [vmem:[%s3525 + $0x78] sm:$0xf]
      %v3943 = vld [vmem:[%s3525 + $0x7c] sm:$0xf]
      %v3944 = vld [vmem:[%s3525 + $0x80] sm:$0x1]
      %v3945 = vld [vmem:[%s3525 + $0x84] sm:$0xf]
      %v3946 = vld [vmem:[%s3525 + $0x88] sm:$0xf]
      %v3947 = vld [vmem:[%s3525 + $0x8c] sm:$0x1]
      %v3948 = vld [vmem:[%s3525 + $0x90] sm:$0xf]
      %v3949 = vld [vmem:[%s3525 + $0x94] sm:$0xf]
      %v3950 = vld [vmem:[%s3525 + $0x98] sm:$0x1]
      %v3951 = vld [vmem:[%s3525 + $0x9c] sm:$0xf]
      %v3952 = vld [vmem:[%s3525 + $0xa0] sm:$0xf]
      %v3953 = vld [vmem:[%s3525 + $0xa4] sm:$0x1]
      %v3954 = vld [vmem:[%s3525 + $0xa8] sm:$0xf]
      %v3955 = vld [vmem:[%s3525 + $0xac] sm:$0xf]
      %v3956 = vld [vmem:[%s3525 + $0xb0] sm:$0x1]
      %v3957 = vld [vmem:[%s3525 + $0xb4] sm:$0xf]
      %v3958 = vld [vmem:[%s3525 + $0xb8] sm:$0xf]
      %v3959 = vld [vmem:[%s3525 + $0xbc] sm:$0x1]
      %v3961 = vshrl.u32 %v3912, 16
      %v3963 = vrot.slane %v3961, 4
      %v3964 = vshll.u32 %v3912, 16
      %v3966 = vrot.slane %v3964, 5
      %v3967 = vor.u32 %v3963, %v3966
      %v3968 = vrot.slane %v3967, 4
      %v3970 = vshll.u32 %v3913, 16
      %v3972 = vrot.slane %v3970, 5
      %v3973 = vsel %vm421, %v3968, %v3972
      %v3974 = vshrl.u32 %v3913, 16
      %v3976 = vrot.slane %v3974, 4
      %v3977 = vor.u32 %v3976, %v3972
      %v3978 = vrot.slane %v3977, 4
      %v3980 = vshll.u32 %v3914, 16
      %v3982 = vrot.slane %v3980, 5
      %v3983 = vsel %vm421, %v3978, %v3982
      %v3985 = vshrl.u32 %v3915, 16
      %v3987 = vrot.slane %v3985, 4
      %v3988 = vshll.u32 %v3915, 16
      %v3990 = vrot.slane %v3988, 5
      %v3991 = vor.u32 %v3987, %v3990
      %v3992 = vrot.slane %v3991, 4
      %v3994 = vshll.u32 %v3916, 16
      %v3996 = vrot.slane %v3994, 5
      %v3997 = vsel %vm421, %v3992, %v3996
      %v3998 = vshrl.u32 %v3916, 16
      %v4000 = vrot.slane %v3998, 4
      %v4001 = vor.u32 %v4000, %v3996
      %v4002 = vrot.slane %v4001, 4
      %v4004 = vshll.u32 %v3917, 16
      %v4006 = vrot.slane %v4004, 5
      %v4007 = vsel %vm421, %v4002, %v4006
      %v4009 = vshrl.u32 %v3918, 16
      %v4011 = vrot.slane %v4009, 4
      %v4012 = vshll.u32 %v3918, 16
      %v4014 = vrot.slane %v4012, 5
      %v4015 = vor.u32 %v4011, %v4014
      %v4016 = vrot.slane %v4015, 4
      %v4018 = vshll.u32 %v3919, 16
      %v4020 = vrot.slane %v4018, 5
      %v4021 = vsel %vm421, %v4016, %v4020
      %v4022 = vshrl.u32 %v3919, 16
      %v4024 = vrot.slane %v4022, 4
      %v4025 = vor.u32 %v4024, %v4020
      %v4026 = vrot.slane %v4025, 4
      %v4028 = vshll.u32 %v3920, 16
      %v4030 = vrot.slane %v4028, 5
      %v4031 = vsel %vm421, %v4026, %v4030
      %v4033 = vshrl.u32 %v3921, 16
      %v4035 = vrot.slane %v4033, 4
      %v4036 = vshll.u32 %v3921, 16
      %v4038 = vrot.slane %v4036, 5
      %v4039 = vor.u32 %v4035, %v4038
      %v4040 = vrot.slane %v4039, 4
      %v4042 = vshll.u32 %v3922, 16
      %v4044 = vrot.slane %v4042, 5
      %v4045 = vsel %vm421, %v4040, %v4044
      %v4046 = vshrl.u32 %v3922, 16
      %v4048 = vrot.slane %v4046, 4
      %v4049 = vor.u32 %v4048, %v4044
      %v4050 = vrot.slane %v4049, 4
      %v4052 = vshll.u32 %v3923, 16
      %v4054 = vrot.slane %v4052, 5
      %v4055 = vsel %vm421, %v4050, %v4054
      %v4057 = vshrl.u32 %v3924, 16
      %v4059 = vrot.slane %v4057, 4
      %v4060 = vshll.u32 %v3924, 16
      %v4062 = vrot.slane %v4060, 5
      %v4063 = vor.u32 %v4059, %v4062
      %v4064 = vrot.slane %v4063, 4
      %v4066 = vshll.u32 %v3925, 16
      %v4068 = vrot.slane %v4066, 5
      %v4069 = vsel %vm421, %v4064, %v4068
      %v4070 = vshrl.u32 %v3925, 16
      %v4072 = vrot.slane %v4070, 4
      %v4073 = vor.u32 %v4072, %v4068
      %v4074 = vrot.slane %v4073, 4
      %v4076 = vshll.u32 %v3926, 16
      %v4078 = vrot.slane %v4076, 5
      %v4079 = vsel %vm421, %v4074, %v4078
      %v4081 = vshrl.u32 %v3927, 16
      %v4083 = vrot.slane %v4081, 4
      %v4084 = vshll.u32 %v3927, 16
      %v4086 = vrot.slane %v4084, 5
      %v4087 = vor.u32 %v4083, %v4086
      %v4088 = vrot.slane %v4087, 4
      %v4090 = vshll.u32 %v3928, 16
      %v4092 = vrot.slane %v4090, 5
      %v4093 = vsel %vm421, %v4088, %v4092
      %v4094 = vshrl.u32 %v3928, 16
      %v4096 = vrot.slane %v4094, 4
      %v4097 = vor.u32 %v4096, %v4092
      %v4098 = vrot.slane %v4097, 4
      %v4100 = vshll.u32 %v3929, 16
      %v4102 = vrot.slane %v4100, 5
      %v4103 = vsel %vm421, %v4098, %v4102
      %v4105 = vshrl.u32 %v3930, 16
      %v4107 = vrot.slane %v4105, 4
      %v4108 = vshll.u32 %v3930, 16
      %v4110 = vrot.slane %v4108, 5
      %v4111 = vor.u32 %v4107, %v4110
      %v4112 = vrot.slane %v4111, 4
      %v4114 = vshll.u32 %v3931, 16
      %v4116 = vrot.slane %v4114, 5
      %v4117 = vsel %vm421, %v4112, %v4116
      %v4118 = vshrl.u32 %v3931, 16
      %v4120 = vrot.slane %v4118, 4
      %v4121 = vor.u32 %v4120, %v4116
      %v4122 = vrot.slane %v4121, 4
      %v4124 = vshll.u32 %v3932, 16
      %v4126 = vrot.slane %v4124, 5
      %v4127 = vsel %vm421, %v4122, %v4126
      %v4129 = vshrl.u32 %v3933, 16
      %v4131 = vrot.slane %v4129, 4
      %v4132 = vshll.u32 %v3933, 16
      %v4134 = vrot.slane %v4132, 5
      %v4135 = vor.u32 %v4131, %v4134
      %v4136 = vrot.slane %v4135, 4
      %v4138 = vshll.u32 %v3934, 16
      %v4140 = vrot.slane %v4138, 5
      %v4141 = vsel %vm421, %v4136, %v4140
      %v4142 = vshrl.u32 %v3934, 16
      %v4144 = vrot.slane %v4142, 4
      %v4145 = vor.u32 %v4144, %v4140
      %v4146 = vrot.slane %v4145, 4
      %v4148 = vshll.u32 %v3935, 16
      %v4150 = vrot.slane %v4148, 5
      %v4151 = vsel %vm421, %v4146, %v4150
      %v4153 = vshrl.u32 %v3936, 16
      %v4155 = vrot.slane %v4153, 4
      %v4156 = vshll.u32 %v3936, 16
      %v4158 = vrot.slane %v4156, 5
      %v4159 = vor.u32 %v4155, %v4158
      %v4160 = vrot.slane %v4159, 4
      %v4162 = vshll.u32 %v3937, 16
      %v4164 = vrot.slane %v4162, 5
      %v4165 = vsel %vm421, %v4160, %v4164
      %v4166 = vshrl.u32 %v3937, 16
      %v4168 = vrot.slane %v4166, 4
      %v4169 = vor.u32 %v4168, %v4164
      %v4170 = vrot.slane %v4169, 4
      %v4172 = vshll.u32 %v3938, 16
      %v4174 = vrot.slane %v4172, 5
      %v4175 = vsel %vm421, %v4170, %v4174
      %v4177 = vshrl.u32 %v3939, 16
      %v4179 = vrot.slane %v4177, 4
      %v4180 = vshll.u32 %v3939, 16
      %v4182 = vrot.slane %v4180, 5
      %v4183 = vor.u32 %v4179, %v4182
      %v4184 = vrot.slane %v4183, 4
      %v4186 = vshll.u32 %v3940, 16
      %v4188 = vrot.slane %v4186, 5
      %v4189 = vsel %vm421, %v4184, %v4188
      %v4190 = vshrl.u32 %v3940, 16
      %v4192 = vrot.slane %v4190, 4
      %v4193 = vor.u32 %v4192, %v4188
      %v4194 = vrot.slane %v4193, 4
      %v4196 = vshll.u32 %v3941, 16
      %v4198 = vrot.slane %v4196, 5
      %v4199 = vsel %vm421, %v4194, %v4198
      %v4201 = vshrl.u32 %v3942, 16
      %v4203 = vrot.slane %v4201, 4
      %v4204 = vshll.u32 %v3942, 16
      %v4206 = vrot.slane %v4204, 5
      %v4207 = vor.u32 %v4203, %v4206
      %v4208 = vrot.slane %v4207, 4
      %v4210 = vshll.u32 %v3943, 16
      %v4212 = vrot.slane %v4210, 5
      %v4213 = vsel %vm421, %v4208, %v4212
      %v4214 = vshrl.u32 %v3943, 16
      %v4216 = vrot.slane %v4214, 4
      %v4217 = vor.u32 %v4216, %v4212
      %v4218 = vrot.slane %v4217, 4
      %v4220 = vshll.u32 %v3944, 16
      %v4222 = vrot.slane %v4220, 5
      %v4223 = vsel %vm421, %v4218, %v4222
      %v4225 = vshrl.u32 %v3945, 16
      %v4227 = vrot.slane %v4225, 4
      %v4228 = vshll.u32 %v3945, 16
      %v4230 = vrot.slane %v4228, 5
      %v4231 = vor.u32 %v4227, %v4230
      %v4232 = vrot.slane %v4231, 4
      %v4234 = vshll.u32 %v3946, 16
      %v4236 = vrot.slane %v4234, 5
      %v4237 = vsel %vm421, %v4232, %v4236
      %v4238 = vshrl.u32 %v3946, 16
      %v4240 = vrot.slane %v4238, 4
      %v4241 = vor.u32 %v4240, %v4236
      %v4242 = vrot.slane %v4241, 4
      %v4244 = vshll.u32 %v3947, 16
      %v4246 = vrot.slane %v4244, 5
      %v4247 = vsel %vm421, %v4242, %v4246
      %v4249 = vshrl.u32 %v3948, 16
      %v4251 = vrot.slane %v4249, 4
      %v4252 = vshll.u32 %v3948, 16
      %v4254 = vrot.slane %v4252, 5
      %v4255 = vor.u32 %v4251, %v4254
      %v4256 = vrot.slane %v4255, 4
      %v4258 = vshll.u32 %v3949, 16
      %v4260 = vrot.slane %v4258, 5
      %v4261 = vsel %vm421, %v4256, %v4260
      %v4262 = vshrl.u32 %v3949, 16
      %v4264 = vrot.slane %v4262, 4
      %v4265 = vor.u32 %v4264, %v4260
      %v4266 = vrot.slane %v4265, 4
      %v4268 = vshll.u32 %v3950, 16
      %v4270 = vrot.slane %v4268, 5
      %v4271 = vsel %vm421, %v4266, %v4270
      %v4273 = vshrl.u32 %v3951, 16
      %v4275 = vrot.slane %v4273, 4
      %v4276 = vshll.u32 %v3951, 16
      %v4278 = vrot.slane %v4276, 5
      %v4279 = vor.u32 %v4275, %v4278
      %v4280 = vrot.slane %v4279, 4
      %v4282 = vshll.u32 %v3952, 16
      %v4284 = vrot.slane %v4282, 5
      %v4285 = vsel %vm421, %v4280, %v4284
      %v4286 = vshrl.u32 %v3952, 16
      %v4288 = vrot.slane %v4286, 4
      %v4289 = vor.u32 %v4288, %v4284
      %v4290 = vrot.slane %v4289, 4
      %v4292 = vshll.u32 %v3953, 16
      %v4294 = vrot.slane %v4292, 5
      %v4295 = vsel %vm421, %v4290, %v4294
      %v4297 = vshrl.u32 %v3954, 16
      %v4299 = vrot.slane %v4297, 4
      %v4300 = vshll.u32 %v3954, 16
      %v4302 = vrot.slane %v4300, 5
      %v4303 = vor.u32 %v4299, %v4302
      %v4304 = vrot.slane %v4303, 4
      %v4306 = vshll.u32 %v3955, 16
      %v4308 = vrot.slane %v4306, 5
      %v4309 = vsel %vm421, %v4304, %v4308
      %v4310 = vshrl.u32 %v3955, 16
      %v4312 = vrot.slane %v4310, 4
      %v4313 = vor.u32 %v4312, %v4308
      %v4314 = vrot.slane %v4313, 4
      %v4316 = vshll.u32 %v3956, 16
      %v4318 = vrot.slane %v4316, 5
      %v4319 = vsel %vm421, %v4314, %v4318
      %v4321 = vshrl.u32 %v3957, 16
      %v4323 = vrot.slane %v4321, 4
      %v4324 = vshll.u32 %v3957, 16
      %v4326 = vrot.slane %v4324, 5
      %v4327 = vor.u32 %v4323, %v4326
      %v4328 = vrot.slane %v4327, 4
      %v4330 = vshll.u32 %v3958, 16
      %v4332 = vrot.slane %v4330, 5
      %v4333 = vsel %vm421, %v4328, %v4332
      %v4334 = vshrl.u32 %v3958, 16
      %v4336 = vrot.slane %v4334, 4
      %v4337 = vor.u32 %v4336, %v4332
      %v4338 = vrot.slane %v4337, 4
      %v4340 = vshll.u32 %v3959, 16
      %v4342 = vrot.slane %v4340, 5
      %v4343 = vsel %vm421, %v4338, %v4342
      %s4344 = scalar_lea.vmem %s330, 448
      %v4345 = vld [vmem:[%s4344] sm:$0xf]
      %v4346 = vld [vmem:[%s4344 + $0x4] sm:$0xf]
      %v4347 = vld [vmem:[%s4344 + $0x8] sm:$0xf]
      %v4348 = vld [vmem:[%s4344 + $0xc] sm:$0xf]
      %v4349 = vld [vmem:[%s4344 + $0x10] sm:$0xf]
      %v4350 = vld [vmem:[%s4344 + $0x14] sm:$0xf]
      %v4351 = vld [vmem:[%s4344 + $0x18] sm:$0xf]
      %v4352 = vld [vmem:[%s4344 + $0x1c] sm:$0xf]
      %v4353 = vld [vmem:[%s4344 + $0x20] sm:$0xf]
      %v4354 = vld [vmem:[%s4344 + $0x24] sm:$0xf]
      %v4355 = vld [vmem:[%s4344 + $0x28] sm:$0xf]
      %v4356 = vld [vmem:[%s4344 + $0x2c] sm:$0xf]
      %v4357 = vld [vmem:[%s4344 + $0x30] sm:$0xf]
      %v4358 = vld [vmem:[%s4344 + $0x34] sm:$0xf]
      %v4359 = vld [vmem:[%s4344 + $0x38] sm:$0xf]
      %v4360 = vld [vmem:[%s4344 + $0x3c] sm:$0xf]
      %v4361 = vunpack.c.l.b16 %v3973
      %v4362 = vunpack.c.l.b16 %v3983
      %v4363 = vunpack.c.l.b16 %v3997
      %v4364 = vunpack.c.l.b16 %v4007
      %v4365 = vunpack.c.l.b16 %v4021
      %v4366 = vunpack.c.l.b16 %v4031
      %v4367 = vunpack.c.l.b16 %v4045
      %v4368 = vunpack.c.l.b16 %v4055
      %v4369 = vunpack.c.l.b16 %v4069
      %v4370 = vunpack.c.l.b16 %v4079
      %v4371 = vunpack.c.l.b16 %v4093
      %v4372 = vunpack.c.l.b16 %v4103
      %v4373 = vunpack.c.l.b16 %v4117
      %v4374 = vunpack.c.l.b16 %v4127
      %v4375 = vunpack.c.l.b16 %v4141
      %v4376 = vunpack.c.l.b16 %v4151
      %v4377 = vunpack.c.l.b16 %v4165
      %v4378 = vunpack.c.l.b16 %v4175
      %v4379 = vunpack.c.l.b16 %v4189
      %v4380 = vunpack.c.l.b16 %v4199
      %v4381 = vunpack.c.l.b16 %v4213
      %v4382 = vunpack.c.l.b16 %v4223
      %v4383 = vunpack.c.l.b16 %v4237
      %v4384 = vunpack.c.l.b16 %v4247
      %v4385 = vunpack.c.l.b16 %v4261
      %v4386 = vunpack.c.l.b16 %v4271
      %v4387 = vunpack.c.l.b16 %v4285
      %v4388 = vunpack.c.l.b16 %v4295
      %v4389 = vunpack.c.l.b16 %v4309
      %v4390 = vunpack.c.l.b16 %v4319
      %v4391 = vunpack.c.l.b16 %v4333
      %v4392 = vunpack.c.l.b16 %v4343
      %v4393 = vpack.c.b16 %v4362, %v4361
      %v4394 = vpack.c.b16 %v4364, %v4363
      %v4395 = vpack.c.b16 %v4366, %v4365
      %v4396 = vpack.c.b16 %v4368, %v4367
      %v4397 = vpack.c.b16 %v4370, %v4369
      %v4398 = vpack.c.b16 %v4372, %v4371
      %v4399 = vpack.c.b16 %v4374, %v4373
      %v4400 = vpack.c.b16 %v4376, %v4375
      %v4401 = vpack.c.b16 %v4378, %v4377
      %v4402 = vpack.c.b16 %v4380, %v4379
      %v4403 = vpack.c.b16 %v4382, %v4381
      %v4404 = vpack.c.b16 %v4384, %v4383
      %v4405 = vpack.c.b16 %v4386, %v4385
      %v4406 = vpack.c.b16 %v4388, %v4387
      %v4407 = vpack.c.b16 %v4390, %v4389
      %v4408 = vpack.c.b16 %v4392, %v4391
      %v4441 = vunpack.c.l.b16 %v4345
      %v4442 = vunpack.c.l.b16 %v4346
      %v4443 = vunpack.c.l.b16 %v4347
      %v4444 = vunpack.c.l.b16 %v4348
      %v4445 = vunpack.c.l.b16 %v4349
      %v4446 = vunpack.c.l.b16 %v4350
      %v4447 = vunpack.c.l.b16 %v4351
      %v4448 = vunpack.c.l.b16 %v4352
      %v4449 = vunpack.c.l.b16 %v4353
      %v4450 = vunpack.c.l.b16 %v4354
      %v4451 = vunpack.c.l.b16 %v4355
      %v4452 = vunpack.c.l.b16 %v4356
      %v4453 = vunpack.c.l.b16 %v4357
      %v4454 = vunpack.c.l.b16 %v4358
      %v4455 = vunpack.c.l.b16 %v4359
      %v4456 = vunpack.c.l.b16 %v4360
      %v4457 = vpack.c.b16 %v4442, %v4441
      %v4458 = vpack.c.b16 %v4444, %v4443
      %v4459 = vpack.c.b16 %v4446, %v4445
      %v4460 = vpack.c.b16 %v4448, %v4447
      %v4461 = vpack.c.b16 %v4450, %v4449
      %v4462 = vpack.c.b16 %v4452, %v4451
      %v4463 = vpack.c.b16 %v4454, %v4453
      %v4464 = vpack.c.b16 %v4456, %v4455
      %4473 = vmatprep.subr.bf16.mxu0 0
      %4474 = vmatpush1.bf16.msra.mxu0 %v4464
      %4475 = vmatprep.subr.bf16.mxu0 0
      %4476 = vmatpush1.bf16.msra.mxu0 %v4463
      %4477 = vmatprep.subr.bf16.mxu0 0
      %4478 = vmatpush1.bf16.msra.mxu0 %v4462
      %4479 = vmatprep.subr.bf16.mxu0 0
      %4480 = vmatpush1.bf16.msra.mxu0 %v4461
      %4481 = vmatprep.subr.bf16.mxu0 0
      %4482 = vmatpush1.bf16.msra.mxu0 %v4460
      %4483 = vmatprep.subr.bf16.mxu0 0
      %4484 = vmatpush1.bf16.msra.mxu0 %v4459
      %4485 = vmatprep.subr.bf16.mxu0 0
      %4486 = vmatpush1.bf16.msra.mxu0 %v4458
      %4487 = vmatprep.subr.bf16.mxu0 0
      %4488 = vmatpush1.bf16.msra.mxu0 %v4457
      %4489 = vmatprep.subr.bf16.mxu0 0
      %4490 = vmatpush2.bf16.msra.mxu0 0
      %4491 = vmatprep.subr.bf16.mxu0 0
      %4492 = vmatpush2.bf16.msra.mxu0 0
      %4493 = vmatprep.subr.bf16.mxu0 0
      %4494 = vmatpush2.bf16.msra.mxu0 0
      %4495 = vmatprep.subr.bf16.mxu0 0
      %4496 = vmatpush2.bf16.msra.mxu0 0
      %4497 = vmatprep.subr.bf16.mxu0 0
      %4498 = vmatpush2.bf16.msra.mxu0 0
      %4499 = vmatprep.subr.bf16.mxu0 0
      %4500 = vmatpush2.bf16.msra.mxu0 0
      %4501 = vmatprep.subr.bf16.mxu0 0
      %4502 = vmatpush2.bf16.msra.mxu0 0
      %4503 = vmatprep.subr.bf16.mxu0 0
      %4504 = vmatpush2.bf16.msra.mxu0 0
      %4505 = vmatprep.mubr.bf16.mxu0 0
      %4506 = vmatmul.mubr.bf16.gmra.mxu0 %v4393
      %v4507 = vpop.f32.mrf.mxu0
      %v4508 = vadd.f32 0.0, %v4507
      %v4509 = vpop.f32.mrf.mxu0
      %v4510 = vpop.f32.mrf.mxu0
      %v4511 = vadd.f32 0.0, %v4510
      %v4512 = vpop.f32.mrf.mxu0
      %4513 = vmatprep.mubr.bf16.mxu0 0
      %4514 = vmatmul.mubr.bf16.gmra.mxu0 %v4394
      %v4515 = vpop.f32.mrf.mxu0
      %v4516 = vadd.f32 0.0, %v4515
      %v4517 = vpop.f32.mrf.mxu0
      %v4518 = vpop.f32.mrf.mxu0
      %v4519 = vadd.f32 0.0, %v4518
      %v4520 = vpop.f32.mrf.mxu0
      %4521 = vmatprep.mubr.bf16.mxu0 0
      %4522 = vmatmul.mubr.bf16.gmra.mxu0 %v4395
      %v4523 = vpop.f32.mrf.mxu0
      %v4524 = vadd.f32 0.0, %v4523
      %v4525 = vpop.f32.mrf.mxu0
      %v4526 = vpop.f32.mrf.mxu0
      %v4527 = vadd.f32 0.0, %v4526
      %v4528 = vpop.f32.mrf.mxu0
      %4529 = vmatprep.mubr.bf16.mxu0 0
      %4530 = vmatmul.mubr.bf16.gmra.mxu0 %v4396
      %v4531 = vpop.f32.mrf.mxu0
      %v4532 = vadd.f32 0.0, %v4531
      %v4533 = vpop.f32.mrf.mxu0
      %v4534 = vpop.f32.mrf.mxu0
      %v4535 = vadd.f32 0.0, %v4534
      %v4536 = vpop.f32.mrf.mxu0
      %4537 = vmatprep.mubr.bf16.mxu0 0
      %4538 = vmatmul.mubr.bf16.gmra.mxu0 %v4397
      %v4539 = vpop.f32.mrf.mxu0
      %v4540 = vadd.f32 0.0, %v4539
      %v4541 = vpop.f32.mrf.mxu0
      %v4542 = vpop.f32.mrf.mxu0
      %v4543 = vadd.f32 0.0, %v4542
      %v4544 = vpop.f32.mrf.mxu0
      %4545 = vmatprep.mubr.bf16.mxu0 0
      %4546 = vmatmul.mubr.bf16.gmra.mxu0 %v4398
      %v4547 = vpop.f32.mrf.mxu0
      %v4548 = vadd.f32 0.0, %v4547
      %v4549 = vpop.f32.mrf.mxu0
      %v4550 = vpop.f32.mrf.mxu0
      %v4551 = vadd.f32 0.0, %v4550
      %v4552 = vpop.f32.mrf.mxu0
      %4553 = vmatprep.mubr.bf16.mxu0 0
      %4554 = vmatmul.mubr.bf16.gmra.mxu0 %v4399
      %v4555 = vpop.f32.mrf.mxu0
      %v4556 = vadd.f32 0.0, %v4555
      %v4557 = vpop.f32.mrf.mxu0
      %v4558 = vpop.f32.mrf.mxu0
      %v4559 = vadd.f32 0.0, %v4558
      %v4560 = vpop.f32.mrf.mxu0
      %4561 = vmatprep.mubr.bf16.mxu0 0
      %4562 = vmatmul.mubr.bf16.gmra.mxu0 %v4400
      %v4563 = vpop.f32.mrf.mxu0
      %v4564 = vadd.f32 0.0, %v4563
      %v4565 = vpop.f32.mrf.mxu0
      %v4566 = vpop.f32.mrf.mxu0
      %v4567 = vadd.f32 0.0, %v4566
      %v4568 = vpop.f32.mrf.mxu0
      %4569 = vmatprep.mubr.bf16.mxu0 0
      %4570 = vmatmul.mubr.bf16.gmra.mxu0 %v4401
      %v4571 = vpop.f32.mrf.mxu0
      %v4572 = vadd.f32 0.0, %v4571
      %v4573 = vpop.f32.mrf.mxu0
      %v4574 = vpop.f32.mrf.mxu0
      %v4575 = vadd.f32 0.0, %v4574
      %v4576 = vpop.f32.mrf.mxu0
      %4577 = vmatprep.mubr.bf16.mxu0 0
      %4578 = vmatmul.mubr.bf16.gmra.mxu0 %v4402
      %v4579 = vpop.f32.mrf.mxu0
      %v4580 = vadd.f32 0.0, %v4579
      %v4581 = vpop.f32.mrf.mxu0
      %v4582 = vpop.f32.mrf.mxu0
      %v4583 = vadd.f32 0.0, %v4582
      %v4584 = vpop.f32.mrf.mxu0
      %4585 = vmatprep.mubr.bf16.mxu0 0
      %4586 = vmatmul.mubr.bf16.gmra.mxu0 %v4403
      %v4587 = vpop.f32.mrf.mxu0
      %v4588 = vadd.f32 0.0, %v4587
      %v4589 = vpop.f32.mrf.mxu0
      %v4590 = vpop.f32.mrf.mxu0
      %v4591 = vadd.f32 0.0, %v4590
      %v4592 = vpop.f32.mrf.mxu0
      %4593 = vmatprep.mubr.bf16.mxu0 0
      %4594 = vmatmul.mubr.bf16.gmra.mxu0 %v4404
      %v4595 = vpop.f32.mrf.mxu0
      %v4596 = vadd.f32 0.0, %v4595
      %v4597 = vpop.f32.mrf.mxu0
      %v4598 = vpop.f32.mrf.mxu0
      %v4599 = vadd.f32 0.0, %v4598
      %v4600 = vpop.f32.mrf.mxu0
      %4601 = vmatprep.mubr.bf16.mxu0 0
      %4602 = vmatmul.mubr.bf16.gmra.mxu0 %v4405
      %v4603 = vpop.f32.mrf.mxu0
      %v4604 = vadd.f32 0.0, %v4603
      %v4605 = vpop.f32.mrf.mxu0
      %v4606 = vpop.f32.mrf.mxu0
      %v4607 = vadd.f32 0.0, %v4606
      %v4608 = vpop.f32.mrf.mxu0
      %4609 = vmatprep.mubr.bf16.mxu0 0
      %4610 = vmatmul.mubr.bf16.gmra.mxu0 %v4406
      %v4611 = vpop.f32.mrf.mxu0
      %v4612 = vadd.f32 0.0, %v4611
      %v4613 = vpop.f32.mrf.mxu0
      %v4614 = vpop.f32.mrf.mxu0
      %v4615 = vadd.f32 0.0, %v4614
      %v4616 = vpop.f32.mrf.mxu0
      %4617 = vmatprep.mubr.bf16.mxu0 0
      %4618 = vmatmul.mubr.bf16.gmra.mxu0 %v4407
      %v4619 = vpop.f32.mrf.mxu0
      %v4620 = vadd.f32 0.0, %v4619
      %v4621 = vpop.f32.mrf.mxu0
      %v4622 = vpop.f32.mrf.mxu0
      %v4623 = vadd.f32 0.0, %v4622
      %v4624 = vpop.f32.mrf.mxu0
      %4625 = vmatprep.mubr.bf16.mxu0 0
      %4626 = vmatmul.mubr.bf16.gmra.mxu0 %v4408
      %v4627 = vpop.f32.mrf.mxu0
      %v4628 = vadd.f32 0.0, %v4627
      %v4629 = vpop.f32.mrf.mxu0
      %v4630 = vpop.f32.mrf.mxu0
      %v4631 = vadd.f32 0.0, %v4630
      %v4632 = vpop.f32.mrf.mxu0
      %4633 = vdwg.mxu0
      %v4634 = vadd.f32 %v3880, %v4508
      %v4635 = vadd.f32 %v3881, %v4511
      %v4636 = vadd.f32 %v3882, %v4516
      %v4637 = vadd.f32 %v3883, %v4519
      %v4638 = vadd.f32 %v3884, %v4524
      %v4639 = vadd.f32 %v3885, %v4527
      %v4640 = vadd.f32 %v3886, %v4532
      %v4641 = vadd.f32 %v3887, %v4535
      %v4642 = vadd.f32 %v3888, %v4540
      %v4643 = vadd.f32 %v3889, %v4543
      %v4644 = vadd.f32 %v3890, %v4548
      %v4645 = vadd.f32 %v3891, %v4551
      %v4646 = vadd.f32 %v3892, %v4556
      %v4647 = vadd.f32 %v3893, %v4559
      %v4648 = vadd.f32 %v3894, %v4564
      %v4649 = vadd.f32 %v3895, %v4567
      %v4650 = vadd.f32 %v3896, %v4572
      %v4651 = vadd.f32 %v3897, %v4575
      %v4652 = vadd.f32 %v3898, %v4580
      %v4653 = vadd.f32 %v3899, %v4583
      %v4654 = vadd.f32 %v3900, %v4588
      %v4655 = vadd.f32 %v3901, %v4591
      %v4656 = vadd.f32 %v3902, %v4596
      %v4657 = vadd.f32 %v3903, %v4599
      %v4658 = vadd.f32 %v3904, %v4604
      %v4659 = vadd.f32 %v3905, %v4607
      %v4660 = vadd.f32 %v3906, %v4612
      %v4661 = vadd.f32 %v3907, %v4615
      %v4662 = vadd.f32 %v3908, %v4620
      %v4663 = vadd.f32 %v3909, %v4623
      %v4664 = vadd.f32 %v3910, %v4628
      %v4665 = vadd.f32 %v3911, %v4631
      %v4666 = vld [vmem:[%s3525] sm:$0xe]
      %v4667 = vld [vmem:[%s3525 + $0xc] sm:$0xe]
      %v4668 = vld [vmem:[%s3525 + $0x18] sm:$0xe]
      %v4669 = vld [vmem:[%s3525 + $0x24] sm:$0xe]
      %v4670 = vld [vmem:[%s3525 + $0x30] sm:$0xe]
      %v4671 = vld [vmem:[%s3525 + $0x3c] sm:$0xe]
      %v4672 = vld [vmem:[%s3525 + $0x48] sm:$0xe]
      %v4673 = vld [vmem:[%s3525 + $0x54] sm:$0xe]
      %v4674 = vld [vmem:[%s3525 + $0x60] sm:$0xe]
      %v4675 = vld [vmem:[%s3525 + $0x6c] sm:$0xe]
      %v4676 = vld [vmem:[%s3525 + $0x78] sm:$0xe]
      %v4677 = vld [vmem:[%s3525 + $0x84] sm:$0xe]
      %v4678 = vld [vmem:[%s3525 + $0x90] sm:$0xe]
      %v4679 = vld [vmem:[%s3525 + $0x9c] sm:$0xe]
      %v4680 = vld [vmem:[%s3525 + $0xa8] sm:$0xe]
      %v4681 = vld [vmem:[%s3525 + $0xb4] sm:$0xe]
      %v4730 = vrot.slane %v4666, 5
      %v4731 = vrot.slane %v4730, 4
      %v4732 = vrot.slane %v3913, 5
      %v4733 = vsel %vm1451, %v4731, %v4732
      %v4734 = vrot.slane %v4732, 4
      %v4735 = vrot.slane %v3914, 5
      %v4736 = vsel %vm1451, %v4734, %v4735
      %v4737 = vrot.slane %v4667, 5
      %v4738 = vrot.slane %v4737, 4
      %v4739 = vrot.slane %v3916, 5
      %v4740 = vsel %vm1451, %v4738, %v4739
      %v4741 = vrot.slane %v4739, 4
      %v4742 = vrot.slane %v3917, 5
      %v4743 = vsel %vm1451, %v4741, %v4742
      %v4744 = vrot.slane %v4668, 5
      %v4745 = vrot.slane %v4744, 4
      %v4746 = vrot.slane %v3919, 5
      %v4747 = vsel %vm1451, %v4745, %v4746
      %v4748 = vrot.slane %v4746, 4
      %v4749 = vrot.slane %v3920, 5
      %v4750 = vsel %vm1451, %v4748, %v4749
      %v4751 = vrot.slane %v4669, 5
      %v4752 = vrot.slane %v4751, 4
      %v4753 = vrot.slane %v3922, 5
      %v4754 = vsel %vm1451, %v4752, %v4753
      %v4755 = vrot.slane %v4753, 4
      %v4756 = vrot.slane %v3923, 5
      %v4757 = vsel %vm1451, %v4755, %v4756
      %v4758 = vrot.slane %v4670, 5
      %v4759 = vrot.slane %v4758, 4
      %v4760 = vrot.slane %v3925, 5
      %v4761 = vsel %vm1451, %v4759, %v4760
      %v4762 = vrot.slane %v4760, 4
      %v4763 = vrot.slane %v3926, 5
      %v4764 = vsel %vm1451, %v4762, %v4763
      %v4765 = vrot.slane %v4671, 5
      %v4766 = vrot.slane %v4765, 4
      %v4767 = vrot.slane %v3928, 5
      %v4768 = vsel %vm1451, %v4766, %v4767
      %v4769 = vrot.slane %v4767, 4
      %v4770 = vrot.slane %v3929, 5
      %v4771 = vsel %vm1451, %v4769, %v4770
      %v4772 = vrot.slane %v4672, 5
      %v4773 = vrot.slane %v4772, 4
      %v4774 = vrot.slane %v3931, 5
      %v4775 = vsel %vm1451, %v4773, %v4774
      %v4776 = vrot.slane %v4774, 4
      %v4777 = vrot.slane %v3932, 5
      %v4778 = vsel %vm1451, %v4776, %v4777
      %v4779 = vrot.slane %v4673, 5
      %v4780 = vrot.slane %v4779, 4
      %v4781 = vrot.slane %v3934, 5
      %v4782 = vsel %vm1451, %v4780, %v4781
      %v4783 = vrot.slane %v4781, 4
      %v4784 = vrot.slane %v3935, 5
      %v4785 = vsel %vm1451, %v4783, %v4784
      %v4786 = vrot.slane %v4674, 5
      %v4787 = vrot.slane %v4786, 4
      %v4788 = vrot.slane %v3937, 5
      %v4789 = vsel %vm1451, %v4787, %v4788
      %v4790 = vrot.slane %v4788, 4
      %v4791 = vrot.slane %v3938, 5
      %v4792 = vsel %vm1451, %v4790, %v4791
      %v4793 = vrot.slane %v4675, 5
      %v4794 = vrot.slane %v4793, 4
      %v4795 = vrot.slane %v3940, 5
      %v4796 = vsel %vm1451, %v4794, %v4795
      %v4797 = vrot.slane %v4795, 4
      %v4798 = vrot.slane %v3941, 5
      %v4799 = vsel %vm1451, %v4797, %v4798
      %v4800 = vrot.slane %v4676, 5
      %v4801 = vrot.slane %v4800, 4
      %v4802 = vrot.slane %v3943, 5
      %v4803 = vsel %vm1451, %v4801, %v4802
      %v4804 = vrot.slane %v4802, 4
      %v4805 = vrot.slane %v3944, 5
      %v4806 = vsel %vm1451, %v4804, %v4805
      %v4807 = vrot.slane %v4677, 5
      %v4808 = vrot.slane %v4807, 4
      %v4809 = vrot.slane %v3946, 5
      %v4810 = vsel %vm1451, %v4808, %v4809
      %v4811 = vrot.slane %v4809, 4
      %v4812 = vrot.slane %v3947, 5
      %v4813 = vsel %vm1451, %v4811, %v4812
      %v4814 = vrot.slane %v4678, 5
      %v4815 = vrot.slane %v4814, 4
      %v4816 = vrot.slane %v3949, 5
      %v4817 = vsel %vm1451, %v4815, %v4816
      %v4818 = vrot.slane %v4816, 4
      %v4819 = vrot.slane %v3950, 5
      %v4820 = vsel %vm1451, %v4818, %v4819
      %v4821 = vrot.slane %v4679, 5
      %v4822 = vrot.slane %v4821, 4
      %v4823 = vrot.slane %v3952, 5
      %v4824 = vsel %vm1451, %v4822, %v4823
      %v4825 = vrot.slane %v4823, 4
      %v4826 = vrot.slane %v3953, 5
      %v4827 = vsel %vm1451, %v4825, %v4826
      %v4828 = vrot.slane %v4680, 5
      %v4829 = vrot.slane %v4828, 4
      %v4830 = vrot.slane %v3955, 5
      %v4831 = vsel %vm1451, %v4829, %v4830
      %v4832 = vrot.slane %v4830, 4
      %v4833 = vrot.slane %v3956, 5
      %v4834 = vsel %vm1451, %v4832, %v4833
      %v4835 = vrot.slane %v4681, 5
      %v4836 = vrot.slane %v4835, 4
      %v4837 = vrot.slane %v3958, 5
      %v4838 = vsel %vm1451, %v4836, %v4837
      %v4839 = vrot.slane %v4837, 4
      %v4840 = vrot.slane %v3959, 5
      %v4841 = vsel %vm1451, %v4839, %v4840
      %s4842 = scalar_lea.vmem %s330, 512
      %v4843 = vld [vmem:[%s4842] sm:$0xf]
      %v4844 = vld [vmem:[%s4842 + $0x4] sm:$0xf]
      %v4845 = vld [vmem:[%s4842 + $0x8] sm:$0xf]
      %v4846 = vld [vmem:[%s4842 + $0xc] sm:$0xf]
      %v4847 = vld [vmem:[%s4842 + $0x10] sm:$0xf]
      %v4848 = vld [vmem:[%s4842 + $0x14] sm:$0xf]
      %v4849 = vld [vmem:[%s4842 + $0x18] sm:$0xf]
      %v4850 = vld [vmem:[%s4842 + $0x1c] sm:$0xf]
      %v4851 = vld [vmem:[%s4842 + $0x20] sm:$0xf]
      %v4852 = vld [vmem:[%s4842 + $0x24] sm:$0xf]
      %v4853 = vld [vmem:[%s4842 + $0x28] sm:$0xf]
      %v4854 = vld [vmem:[%s4842 + $0x2c] sm:$0xf]
      %v4855 = vld [vmem:[%s4842 + $0x30] sm:$0xf]
      %v4856 = vld [vmem:[%s4842 + $0x34] sm:$0xf]
      %v4857 = vld [vmem:[%s4842 + $0x38] sm:$0xf]
      %v4858 = vld [vmem:[%s4842 + $0x3c] sm:$0xf]
      %v4859 = vunpack.c.l.b16 %v4733
      %v4860 = vunpack.c.l.b16 %v4736
      %v4861 = vunpack.c.l.b16 %v4740
      %v4862 = vunpack.c.l.b16 %v4743
      %v4863 = vunpack.c.l.b16 %v4747
      %v4864 = vunpack.c.l.b16 %v4750
      %v4865 = vunpack.c.l.b16 %v4754
      %v4866 = vunpack.c.l.b16 %v4757
      %v4867 = vunpack.c.l.b16 %v4761
      %v4868 = vunpack.c.l.b16 %v4764
      %v4869 = vunpack.c.l.b16 %v4768
      %v4870 = vunpack.c.l.b16 %v4771
      %v4871 = vunpack.c.l.b16 %v4775
      %v4872 = vunpack.c.l.b16 %v4778
      %v4873 = vunpack.c.l.b16 %v4782
      %v4874 = vunpack.c.l.b16 %v4785
      %v4875 = vunpack.c.l.b16 %v4789
      %v4876 = vunpack.c.l.b16 %v4792
      %v4877 = vunpack.c.l.b16 %v4796
      %v4878 = vunpack.c.l.b16 %v4799
      %v4879 = vunpack.c.l.b16 %v4803
      %v4880 = vunpack.c.l.b16 %v4806
      %v4881 = vunpack.c.l.b16 %v4810
      %v4882 = vunpack.c.l.b16 %v4813
      %v4883 = vunpack.c.l.b16 %v4817
      %v4884 = vunpack.c.l.b16 %v4820
      %v4885 = vunpack.c.l.b16 %v4824
      %v4886 = vunpack.c.l.b16 %v4827
      %v4887 = vunpack.c.l.b16 %v4831
      %v4888 = vunpack.c.l.b16 %v4834
      %v4889 = vunpack.c.l.b16 %v4838
      %v4890 = vunpack.c.l.b16 %v4841
      %v4891 = vpack.c.b16 %v4860, %v4859
      %v4892 = vpack.c.b16 %v4862, %v4861
      %v4893 = vpack.c.b16 %v4864, %v4863
      %v4894 = vpack.c.b16 %v4866, %v4865
      %v4895 = vpack.c.b16 %v4868, %v4867
      %v4896 = vpack.c.b16 %v4870, %v4869
      %v4897 = vpack.c.b16 %v4872, %v4871
      %v4898 = vpack.c.b16 %v4874, %v4873
      %v4899 = vpack.c.b16 %v4876, %v4875
      %v4900 = vpack.c.b16 %v4878, %v4877
      %v4901 = vpack.c.b16 %v4880, %v4879
      %v4902 = vpack.c.b16 %v4882, %v4881
      %v4903 = vpack.c.b16 %v4884, %v4883
      %v4904 = vpack.c.b16 %v4886, %v4885
      %v4905 = vpack.c.b16 %v4888, %v4887
      %v4906 = vpack.c.b16 %v4890, %v4889
      %v4939 = vunpack.c.l.b16 %v4843
      %v4940 = vunpack.c.l.b16 %v4844
      %v4941 = vunpack.c.l.b16 %v4845
      %v4942 = vunpack.c.l.b16 %v4846
      %v4943 = vunpack.c.l.b16 %v4847
      %v4944 = vunpack.c.l.b16 %v4848
      %v4945 = vunpack.c.l.b16 %v4849
      %v4946 = vunpack.c.l.b16 %v4850
      %v4947 = vunpack.c.l.b16 %v4851
      %v4948 = vunpack.c.l.b16 %v4852
      %v4949 = vunpack.c.l.b16 %v4853
      %v4950 = vunpack.c.l.b16 %v4854
      %v4951 = vunpack.c.l.b16 %v4855
      %v4952 = vunpack.c.l.b16 %v4856
      %v4953 = vunpack.c.l.b16 %v4857
      %v4954 = vunpack.c.l.b16 %v4858
      %v4955 = vpack.c.b16 %v4940, %v4939
      %v4956 = vpack.c.b16 %v4942, %v4941
      %v4957 = vpack.c.b16 %v4944, %v4943
      %v4958 = vpack.c.b16 %v4946, %v4945
      %v4959 = vpack.c.b16 %v4948, %v4947
      %v4960 = vpack.c.b16 %v4950, %v4949
      %v4961 = vpack.c.b16 %v4952, %v4951
      %v4962 = vpack.c.b16 %v4954, %v4953
      %4971 = vmatprep.subr.bf16.mxu0 0
      %4972 = vmatpush1.bf16.msra.mxu0 %v4962
      %4973 = vmatprep.subr.bf16.mxu0 0
      %4974 = vmatpush1.bf16.msra.mxu0 %v4961
      %4975 = vmatprep.subr.bf16.mxu0 0
      %4976 = vmatpush1.bf16.msra.mxu0 %v4960
      %4977 = vmatprep.subr.bf16.mxu0 0
      %4978 = vmatpush1.bf16.msra.mxu0 %v4959
      %4979 = vmatprep.subr.bf16.mxu0 0
      %4980 = vmatpush1.bf16.msra.mxu0 %v4958
      %4981 = vmatprep.subr.bf16.mxu0 0
      %4982 = vmatpush1.bf16.msra.mxu0 %v4957
      %4983 = vmatprep.subr.bf16.mxu0 0
      %4984 = vmatpush1.bf16.msra.mxu0 %v4956
      %4985 = vmatprep.subr.bf16.mxu0 0
      %4986 = vmatpush1.bf16.msra.mxu0 %v4955
      %4987 = vmatprep.subr.bf16.mxu0 0
      %4988 = vmatpush2.bf16.msra.mxu0 0
      %4989 = vmatprep.subr.bf16.mxu0 0
      %4990 = vmatpush2.bf16.msra.mxu0 0
      %4991 = vmatprep.subr.bf16.mxu0 0
      %4992 = vmatpush2.bf16.msra.mxu0 0
      %4993 = vmatprep.subr.bf16.mxu0 0
      %4994 = vmatpush2.bf16.msra.mxu0 0
      %4995 = vmatprep.subr.bf16.mxu0 0
      %4996 = vmatpush2.bf16.msra.mxu0 0
      %4997 = vmatprep.subr.bf16.mxu0 0
      %4998 = vmatpush2.bf16.msra.mxu0 0
      %4999 = vmatprep.subr.bf16.mxu0 0
      %5000 = vmatpush2.bf16.msra.mxu0 0
      %5001 = vmatprep.subr.bf16.mxu0 0
      %5002 = vmatpush2.bf16.msra.mxu0 0
      %5003 = vmatprep.mubr.bf16.mxu0 0
      %5004 = vmatmul.mubr.bf16.gmra.mxu0 %v4891
      %v5005 = vpop.f32.mrf.mxu0
      %v5006 = vadd.f32 0.0, %v5005
      %v5007 = vpop.f32.mrf.mxu0
      %v5008 = vpop.f32.mrf.mxu0
      %v5009 = vadd.f32 0.0, %v5008
      %v5010 = vpop.f32.mrf.mxu0
      %5011 = vmatprep.mubr.bf16.mxu0 0
      %5012 = vmatmul.mubr.bf16.gmra.mxu0 %v4892
      %v5013 = vpop.f32.mrf.mxu0
      %v5014 = vadd.f32 0.0, %v5013
      %v5015 = vpop.f32.mrf.mxu0
      %v5016 = vpop.f32.mrf.mxu0
      %v5017 = vadd.f32 0.0, %v5016
      %v5018 = vpop.f32.mrf.mxu0
      %5019 = vmatprep.mubr.bf16.mxu0 0
      %5020 = vmatmul.mubr.bf16.gmra.mxu0 %v4893
      %v5021 = vpop.f32.mrf.mxu0
      %v5022 = vadd.f32 0.0, %v5021
      %v5023 = vpop.f32.mrf.mxu0
      %v5024 = vpop.f32.mrf.mxu0
      %v5025 = vadd.f32 0.0, %v5024
      %v5026 = vpop.f32.mrf.mxu0
      %5027 = vmatprep.mubr.bf16.mxu0 0
      %5028 = vmatmul.mubr.bf16.gmra.mxu0 %v4894
      %v5029 = vpop.f32.mrf.mxu0
      %v5030 = vadd.f32 0.0, %v5029
      %v5031 = vpop.f32.mrf.mxu0
      %v5032 = vpop.f32.mrf.mxu0
      %v5033 = vadd.f32 0.0, %v5032
      %v5034 = vpop.f32.mrf.mxu0
      %5035 = vmatprep.mubr.bf16.mxu0 0
      %5036 = vmatmul.mubr.bf16.gmra.mxu0 %v4895
      %v5037 = vpop.f32.mrf.mxu0
      %v5038 = vadd.f32 0.0, %v5037
      %v5039 = vpop.f32.mrf.mxu0
      %v5040 = vpop.f32.mrf.mxu0
      %v5041 = vadd.f32 0.0, %v5040
      %v5042 = vpop.f32.mrf.mxu0
      %5043 = vmatprep.mubr.bf16.mxu0 0
      %5044 = vmatmul.mubr.bf16.gmra.mxu0 %v4896
      %v5045 = vpop.f32.mrf.mxu0
      %v5046 = vadd.f32 0.0, %v5045
      %v5047 = vpop.f32.mrf.mxu0
      %v5048 = vpop.f32.mrf.mxu0
      %v5049 = vadd.f32 0.0, %v5048
      %v5050 = vpop.f32.mrf.mxu0
      %5051 = vmatprep.mubr.bf16.mxu0 0
      %5052 = vmatmul.mubr.bf16.gmra.mxu0 %v4897
      %v5053 = vpop.f32.mrf.mxu0
      %v5054 = vadd.f32 0.0, %v5053
      %v5055 = vpop.f32.mrf.mxu0
      %v5056 = vpop.f32.mrf.mxu0
      %v5057 = vadd.f32 0.0, %v5056
      %v5058 = vpop.f32.mrf.mxu0
      %5059 = vmatprep.mubr.bf16.mxu0 0
      %5060 = vmatmul.mubr.bf16.gmra.mxu0 %v4898
      %v5061 = vpop.f32.mrf.mxu0
      %v5062 = vadd.f32 0.0, %v5061
      %v5063 = vpop.f32.mrf.mxu0
      %v5064 = vpop.f32.mrf.mxu0
      %v5065 = vadd.f32 0.0, %v5064
      %v5066 = vpop.f32.mrf.mxu0
      %5067 = vmatprep.mubr.bf16.mxu0 0
      %5068 = vmatmul.mubr.bf16.gmra.mxu0 %v4899
      %v5069 = vpop.f32.mrf.mxu0
      %v5070 = vadd.f32 0.0, %v5069
      %v5071 = vpop.f32.mrf.mxu0
      %v5072 = vpop.f32.mrf.mxu0
      %v5073 = vadd.f32 0.0, %v5072
      %v5074 = vpop.f32.mrf.mxu0
      %5075 = vmatprep.mubr.bf16.mxu0 0
      %5076 = vmatmul.mubr.bf16.gmra.mxu0 %v4900
      %v5077 = vpop.f32.mrf.mxu0
      %v5078 = vadd.f32 0.0, %v5077
      %v5079 = vpop.f32.mrf.mxu0
      %v5080 = vpop.f32.mrf.mxu0
      %v5081 = vadd.f32 0.0, %v5080
      %v5082 = vpop.f32.mrf.mxu0
      %5083 = vmatprep.mubr.bf16.mxu0 0
      %5084 = vmatmul.mubr.bf16.gmra.mxu0 %v4901
      %v5085 = vpop.f32.mrf.mxu0
      %v5086 = vadd.f32 0.0, %v5085
      %v5087 = vpop.f32.mrf.mxu0
      %v5088 = vpop.f32.mrf.mxu0
      %v5089 = vadd.f32 0.0, %v5088
      %v5090 = vpop.f32.mrf.mxu0
      %5091 = vmatprep.mubr.bf16.mxu0 0
      %5092 = vmatmul.mubr.bf16.gmra.mxu0 %v4902
      %v5093 = vpop.f32.mrf.mxu0
      %v5094 = vadd.f32 0.0, %v5093
      %v5095 = vpop.f32.mrf.mxu0
      %v5096 = vpop.f32.mrf.mxu0
      %v5097 = vadd.f32 0.0, %v5096
      %v5098 = vpop.f32.mrf.mxu0
      %5099 = vmatprep.mubr.bf16.mxu0 0
      %5100 = vmatmul.mubr.bf16.gmra.mxu0 %v4903
      %v5101 = vpop.f32.mrf.mxu0
      %v5102 = vadd.f32 0.0, %v5101
      %v5103 = vpop.f32.mrf.mxu0
      %v5104 = vpop.f32.mrf.mxu0
      %v5105 = vadd.f32 0.0, %v5104
      %v5106 = vpop.f32.mrf.mxu0
      %5107 = vmatprep.mubr.bf16.mxu0 0
      %5108 = vmatmul.mubr.bf16.gmra.mxu0 %v4904
      %v5109 = vpop.f32.mrf.mxu0
      %v5110 = vadd.f32 0.0, %v5109
      %v5111 = vpop.f32.mrf.mxu0
      %v5112 = vpop.f32.mrf.mxu0
      %v5113 = vadd.f32 0.0, %v5112
      %v5114 = vpop.f32.mrf.mxu0
      %5115 = vmatprep.mubr.bf16.mxu0 0
      %5116 = vmatmul.mubr.bf16.gmra.mxu0 %v4905
      %v5117 = vpop.f32.mrf.mxu0
      %v5118 = vadd.f32 0.0, %v5117
      %v5119 = vpop.f32.mrf.mxu0
      %v5120 = vpop.f32.mrf.mxu0
      %v5121 = vadd.f32 0.0, %v5120
      %v5122 = vpop.f32.mrf.mxu0
      %5123 = vmatprep.mubr.bf16.mxu0 0
      %5124 = vmatmul.mubr.bf16.gmra.mxu0 %v4906
      %v5125 = vpop.f32.mrf.mxu0
      %v5126 = vadd.f32 0.0, %v5125
      %v5127 = vpop.f32.mrf.mxu0
      %v5128 = vpop.f32.mrf.mxu0
      %v5129 = vadd.f32 0.0, %v5128
      %v5130 = vpop.f32.mrf.mxu0
      %5131 = vdwg.mxu0
      %v5132 = vadd.f32 %v4634, %v5006
      %v5133 = vadd.f32 %v4635, %v5009
      %v5134 = vadd.f32 %v4636, %v5014
      %v5135 = vadd.f32 %v4637, %v5017
      %v5136 = vadd.f32 %v4638, %v5022
      %v5137 = vadd.f32 %v4639, %v5025
      %v5138 = vadd.f32 %v4640, %v5030
      %v5139 = vadd.f32 %v4641, %v5033
      %v5140 = vadd.f32 %v4642, %v5038
      %v5141 = vadd.f32 %v4643, %v5041
      %v5142 = vadd.f32 %v4644, %v5046
      %v5143 = vadd.f32 %v4645, %v5049
      %v5144 = vadd.f32 %v4646, %v5054
      %v5145 = vadd.f32 %v4647, %v5057
      %v5146 = vadd.f32 %v4648, %v5062
      %v5147 = vadd.f32 %v4649, %v5065
      %v5148 = vadd.f32 %v4650, %v5070
      %v5149 = vadd.f32 %v4651, %v5073
      %v5150 = vadd.f32 %v4652, %v5078
      %v5151 = vadd.f32 %v4653, %v5081
      %v5152 = vadd.f32 %v4654, %v5086
      %v5153 = vadd.f32 %v4655, %v5089
      %v5154 = vadd.f32 %v4656, %v5094
      %v5155 = vadd.f32 %v4657, %v5097
      %v5156 = vadd.f32 %v4658, %v5102
      %v5157 = vadd.f32 %v4659, %v5105
      %v5158 = vadd.f32 %v4660, %v5110
      %v5159 = vadd.f32 %v4661, %v5113
      %v5160 = vadd.f32 %v4662, %v5118
      %v5161 = vadd.f32 %v4663, %v5121
      %v5162 = vadd.f32 %v4664, %v5126
      %v5163 = vadd.f32 %v4665, %v5129
      %v5164 = vld [vmem:[%s333] sm:$0x1]
      %v5166 = vlaneseq
      %v5167 = vshrl.u32 %v5166, 7
      %v5168 = vsub.s32 0, %v5167
      %v5169 = vrot.slane %v5164, %v5168
      %v5171 = vadd.f32 %v5132, %v5169
      %v5172 = vadd.f32 %v5133, %v5169
      %v5173 = vadd.f32 %v5134, %v5169
      %v5174 = vadd.f32 %v5135, %v5169
      %v5175 = vadd.f32 %v5136, %v5169
      %v5176 = vadd.f32 %v5137, %v5169
      %v5177 = vadd.f32 %v5138, %v5169
      %v5178 = vadd.f32 %v5139, %v5169
      %v5179 = vadd.f32 %v5140, %v5169
      %v5180 = vadd.f32 %v5141, %v5169
      %v5181 = vadd.f32 %v5142, %v5169
      %v5182 = vadd.f32 %v5143, %v5169
      %v5183 = vadd.f32 %v5144, %v5169
      %v5184 = vadd.f32 %v5145, %v5169
      %v5185 = vadd.f32 %v5146, %v5169
      %v5186 = vadd.f32 %v5147, %v5169
      %v5187 = vadd.f32 %v5148, %v5169
      %v5188 = vadd.f32 %v5149, %v5169
      %v5189 = vadd.f32 %v5150, %v5169
      %v5190 = vadd.f32 %v5151, %v5169
      %v5191 = vadd.f32 %v5152, %v5169
      %v5192 = vadd.f32 %v5153, %v5169
      %v5193 = vadd.f32 %v5154, %v5169
      %v5194 = vadd.f32 %v5155, %v5169
      %v5195 = vadd.f32 %v5156, %v5169
      %v5196 = vadd.f32 %v5157, %v5169
      %v5197 = vadd.f32 %v5158, %v5169
      %v5198 = vadd.f32 %v5159, %v5169
      %v5199 = vadd.f32 %v5160, %v5169
      %v5200 = vadd.f32 %v5161, %v5169
      %v5201 = vadd.f32 %v5162, %v5169
      %v5202 = vadd.f32 %v5163, %v5169
      %v5203 = vld [vmem:[%s338] sm:$0xf]
      %v5204 = vld [vmem:[%s338 + $0x4] sm:$0xf]
      %v5205 = vld [vmem:[%s338 + $0x8] sm:$0xf]
      %v5206 = vld [vmem:[%s338 + $0xc] sm:$0xf]
      %v5207 = vld [vmem:[%s338 + $0x10] sm:$0xf]
      %v5208 = vld [vmem:[%s338 + $0x14] sm:$0xf]
      %v5209 = vld [vmem:[%s338 + $0x18] sm:$0xf]
      %v5210 = vld [vmem:[%s338 + $0x1c] sm:$0xf]
      %v5211 = vld [vmem:[%s338 + $0x20] sm:$0xf]
      %v5212 = vld [vmem:[%s338 + $0x24] sm:$0xf]
      %v5213 = vld [vmem:[%s338 + $0x28] sm:$0xf]
      %v5214 = vld [vmem:[%s338 + $0x2c] sm:$0xf]
      %v5215 = vld [vmem:[%s338 + $0x30] sm:$0xf]
      %v5216 = vld [vmem:[%s338 + $0x34] sm:$0xf]
      %v5217 = vld [vmem:[%s338 + $0x38] sm:$0xf]
      %v5218 = vld [vmem:[%s338 + $0x3c] sm:$0xf]
      %v5219 = vld [vmem:[%s338 + $0x40] sm:$0xf]
      %v5220 = vld [vmem:[%s338 + $0x44] sm:$0xf]
      %v5221 = vld [vmem:[%s338 + $0x48] sm:$0xf]
      %v5222 = vld [vmem:[%s338 + $0x4c] sm:$0xf]
      %v5223 = vld [vmem:[%s338 + $0x50] sm:$0xf]
      %v5224 = vld [vmem:[%s338 + $0x54] sm:$0xf]
      %v5225 = vld [vmem:[%s338 + $0x58] sm:$0xf]
      %v5226 = vld [vmem:[%s338 + $0x5c] sm:$0xf]
      %v5227 = vld [vmem:[%s338 + $0x60] sm:$0xf]
      %v5228 = vld [vmem:[%s338 + $0x64] sm:$0xf]
      %v5229 = vld [vmem:[%s338 + $0x68] sm:$0xf]
      %v5230 = vld [vmem:[%s338 + $0x6c] sm:$0xf]
      %v5231 = vld [vmem:[%s338 + $0x70] sm:$0xf]
      %v5232 = vld [vmem:[%s338 + $0x74] sm:$0xf]
      %v5233 = vld [vmem:[%s338 + $0x78] sm:$0xf]
      %v5234 = vld [vmem:[%s338 + $0x7c] sm:$0xf]
      %v5235 = vld [vmem:[%s342] sm:$0x3]
      %v5268 = vunpack.c.l.b16 %v5203
      %v5269 = vunpack.c.l.b16 %v5204
      %v5270 = vunpack.c.l.b16 %v5205
      %v5271 = vunpack.c.l.b16 %v5206
      %v5272 = vunpack.c.l.b16 %v5207
      %v5273 = vunpack.c.l.b16 %v5208
      %v5274 = vunpack.c.l.b16 %v5209
      %v5275 = vunpack.c.l.b16 %v5210
      %v5276 = vunpack.c.l.b16 %v5211
      %v5277 = vunpack.c.l.b16 %v5212
      %v5278 = vunpack.c.l.b16 %v5213
      %v5279 = vunpack.c.l.b16 %v5214
      %v5280 = vunpack.c.l.b16 %v5215
      %v5281 = vunpack.c.l.b16 %v5216
      %v5282 = vunpack.c.l.b16 %v5217
      %v5283 = vunpack.c.l.b16 %v5218
      %v5284 = vunpack.c.l.b16 %v5219
      %v5285 = vunpack.c.l.b16 %v5220
      %v5286 = vunpack.c.l.b16 %v5221
      %v5287 = vunpack.c.l.b16 %v5222
      %v5288 = vunpack.c.l.b16 %v5223
      %v5289 = vunpack.c.l.b16 %v5224
      %v5290 = vunpack.c.l.b16 %v5225
      %v5291 = vunpack.c.l.b16 %v5226
      %v5292 = vunpack.c.l.b16 %v5227
      %v5293 = vunpack.c.l.b16 %v5228
      %v5294 = vunpack.c.l.b16 %v5229
      %v5295 = vunpack.c.l.b16 %v5230
      %v5296 = vunpack.c.l.b16 %v5231
      %v5297 = vunpack.c.l.b16 %v5232
      %v5298 = vunpack.c.l.b16 %v5233
      %v5299 = vunpack.c.l.b16 %v5234
      %v5300 = vpack.c.b16 %v5269, %v5268
      %v5301 = vpack.c.b16 %v5271, %v5270
      %v5302 = vpack.c.b16 %v5273, %v5272
      %v5303 = vpack.c.b16 %v5275, %v5274
      %v5304 = vpack.c.b16 %v5277, %v5276
      %v5305 = vpack.c.b16 %v5279, %v5278
      %v5306 = vpack.c.b16 %v5281, %v5280
      %v5307 = vpack.c.b16 %v5283, %v5282
      %v5308 = vpack.c.b16 %v5285, %v5284
      %v5309 = vpack.c.b16 %v5287, %v5286
      %v5310 = vpack.c.b16 %v5289, %v5288
      %v5311 = vpack.c.b16 %v5291, %v5290
      %v5312 = vpack.c.b16 %v5293, %v5292
      %v5313 = vpack.c.b16 %v5295, %v5294
      %v5314 = vpack.c.b16 %v5297, %v5296
      %v5315 = vpack.c.b16 %v5299, %v5298
      %vm5316 = vcmask 31744
      %v5318 = vsel %vm5316, %v5300, 0
      %v5321 = vsel %vm5316, %v5301, 0
      %v5324 = vsel %vm5316, %v5302, 0
      %v5327 = vsel %vm5316, %v5303, 0
      %v5330 = vsel %vm5316, %v5304, 0
      %v5333 = vsel %vm5316, %v5305, 0
      %v5336 = vsel %vm5316, %v5306, 0
      %v5339 = vsel %vm5316, %v5307, 0
      %v5342 = vsel %vm5316, %v5308, 0
      %v5345 = vsel %vm5316, %v5309, 0
      %v5348 = vsel %vm5316, %v5310, 0
      %v5351 = vsel %vm5316, %v5311, 0
      %v5354 = vsel %vm5316, %v5312, 0
      %v5357 = vsel %vm5316, %v5313, 0
      %v5360 = vsel %vm5316, %v5314, 0
      %v5363 = vsel %vm5316, %v5315, 0
      %vm5365 = vcmask 1041408
      %v5367 = vsel %vm5365, %v5235, 0
      %5369 = vmatprep.subr.bf16.mxu0 0
      %5370 = vmatpush1.bf16.msra.mxu0 0
      %5371 = vmatprep.subr.bf16.mxu0 0
      %5372 = vmatpush1.bf16.msra.mxu0 0
      %5373 = vmatprep.subr.bf16.mxu0 0
      %5374 = vmatpush1.bf16.msra.mxu0 0
      %5375 = vmatprep.subr.bf16.mxu0 0
      %5376 = vmatpush1.bf16.msra.mxu0 0
      %5377 = vmatprep.subr.bf16.mxu0 0
      %5378 = vmatpush1.bf16.msra.mxu0 0
      %5379 = vmatprep.subr.bf16.mxu0 0
      %5380 = vmatpush1.bf16.msra.mxu0 0
      %5381 = vmatprep.subr.bf16.mxu0 0
      %5382 = vmatpush1.bf16.msra.mxu0 0
      %5383 = vmatprep.subr.bf16.mxu0 0
      %5384 = vmatpush1.bf16.msra.mxu0 %v5367
      %5385 = vmatprep.subr.bf16.mxu0 0
      %5386 = vmatpush2.bf16.msra.mxu0 0
      %5387 = vmatprep.subr.bf16.mxu0 0
      %5388 = vmatpush2.bf16.msra.mxu0 0
      %5389 = vmatprep.subr.bf16.mxu0 0
      %5390 = vmatpush2.bf16.msra.mxu0 0
      %5391 = vmatprep.subr.bf16.mxu0 0
      %5392 = vmatpush2.bf16.msra.mxu0 0
      %5393 = vmatprep.subr.bf16.mxu0 0
      %5394 = vmatpush2.bf16.msra.mxu0 0
      %5395 = vmatprep.subr.bf16.mxu0 0
      %5396 = vmatpush2.bf16.msra.mxu0 0
      %5397 = vmatprep.subr.bf16.mxu0 0
      %5398 = vmatpush2.bf16.msra.mxu0 0
      %5399 = vmatprep.subr.bf16.mxu0 0
      %5400 = vmatpush2.bf16.msra.mxu0 0
      %5401 = vmatprep.mubr.bf16.mxu0 0
      %5402 = vmatmul.mubr.bf16.gmra.mxu0 %v5318
      %v5403 = vpop.f32.mrf.mxu0
      %v5404 = vadd.f32 0.0, %v5403
      %v5405 = vpop.f32.mrf.mxu0
      %v5406 = vpop.f32.mrf.mxu0
      %v5407 = vadd.f32 0.0, %v5406
      %v5408 = vpop.f32.mrf.mxu0
      %5409 = vmatprep.mubr.bf16.mxu0 0
      %5410 = vmatmul.mubr.bf16.gmra.mxu0 %v5321
      %v5411 = vpop.f32.mrf.mxu0
      %v5412 = vadd.f32 0.0, %v5411
      %v5413 = vpop.f32.mrf.mxu0
      %v5414 = vpop.f32.mrf.mxu0
      %v5415 = vadd.f32 0.0, %v5414
      %v5416 = vpop.f32.mrf.mxu0
      %5417 = vmatprep.mubr.bf16.mxu0 0
      %5418 = vmatmul.mubr.bf16.gmra.mxu0 %v5324
      %v5419 = vpop.f32.mrf.mxu0
      %v5420 = vadd.f32 0.0, %v5419
      %v5421 = vpop.f32.mrf.mxu0
      %v5422 = vpop.f32.mrf.mxu0
      %v5423 = vadd.f32 0.0, %v5422
      %v5424 = vpop.f32.mrf.mxu0
      %5425 = vmatprep.mubr.bf16.mxu0 0
      %5426 = vmatmul.mubr.bf16.gmra.mxu0 %v5327
      %v5427 = vpop.f32.mrf.mxu0
      %v5428 = vadd.f32 0.0, %v5427
      %v5429 = vpop.f32.mrf.mxu0
      %v5430 = vpop.f32.mrf.mxu0
      %v5431 = vadd.f32 0.0, %v5430
      %v5432 = vpop.f32.mrf.mxu0
      %5433 = vmatprep.mubr.bf16.mxu0 0
      %5434 = vmatmul.mubr.bf16.gmra.mxu0 %v5330
      %v5435 = vpop.f32.mrf.mxu0
      %v5436 = vadd.f32 0.0, %v5435
      %v5437 = vpop.f32.mrf.mxu0
      %v5438 = vpop.f32.mrf.mxu0
      %v5439 = vadd.f32 0.0, %v5438
      %v5440 = vpop.f32.mrf.mxu0
      %5441 = vmatprep.mubr.bf16.mxu0 0
      %5442 = vmatmul.mubr.bf16.gmra.mxu0 %v5333
      %v5443 = vpop.f32.mrf.mxu0
      %v5444 = vadd.f32 0.0, %v5443
      %v5445 = vpop.f32.mrf.mxu0
      %v5446 = vpop.f32.mrf.mxu0
      %v5447 = vadd.f32 0.0, %v5446
      %v5448 = vpop.f32.mrf.mxu0
      %5449 = vmatprep.mubr.bf16.mxu0 0
      %5450 = vmatmul.mubr.bf16.gmra.mxu0 %v5336
      %v5451 = vpop.f32.mrf.mxu0
      %v5452 = vadd.f32 0.0, %v5451
      %v5453 = vpop.f32.mrf.mxu0
      %v5454 = vpop.f32.mrf.mxu0
      %v5455 = vadd.f32 0.0, %v5454
      %v5456 = vpop.f32.mrf.mxu0
      %5457 = vmatprep.mubr.bf16.mxu0 0
      %5458 = vmatmul.mubr.bf16.gmra.mxu0 %v5339
      %v5459 = vpop.f32.mrf.mxu0
      %v5460 = vadd.f32 0.0, %v5459
      %v5461 = vpop.f32.mrf.mxu0
      %v5462 = vpop.f32.mrf.mxu0
      %v5463 = vadd.f32 0.0, %v5462
      %v5464 = vpop.f32.mrf.mxu0
      %5465 = vmatprep.mubr.bf16.mxu0 0
      %5466 = vmatmul.mubr.bf16.gmra.mxu0 %v5342
      %v5467 = vpop.f32.mrf.mxu0
      %v5468 = vadd.f32 0.0, %v5467
      %v5469 = vpop.f32.mrf.mxu0
      %v5470 = vpop.f32.mrf.mxu0
      %v5471 = vadd.f32 0.0, %v5470
      %v5472 = vpop.f32.mrf.mxu0
      %5473 = vmatprep.mubr.bf16.mxu0 0
      %5474 = vmatmul.mubr.bf16.gmra.mxu0 %v5345
      %v5475 = vpop.f32.mrf.mxu0
      %v5476 = vadd.f32 0.0, %v5475
      %v5477 = vpop.f32.mrf.mxu0
      %v5478 = vpop.f32.mrf.mxu0
      %v5479 = vadd.f32 0.0, %v5478
      %v5480 = vpop.f32.mrf.mxu0
      %5481 = vmatprep.mubr.bf16.mxu0 0
      %5482 = vmatmul.mubr.bf16.gmra.mxu0 %v5348
      %v5483 = vpop.f32.mrf.mxu0
      %v5484 = vadd.f32 0.0, %v5483
      %v5485 = vpop.f32.mrf.mxu0
      %v5486 = vpop.f32.mrf.mxu0
      %v5487 = vadd.f32 0.0, %v5486
      %v5488 = vpop.f32.mrf.mxu0
      %5489 = vmatprep.mubr.bf16.mxu0 0
      %5490 = vmatmul.mubr.bf16.gmra.mxu0 %v5351
      %v5491 = vpop.f32.mrf.mxu0
      %v5492 = vadd.f32 0.0, %v5491
      %v5493 = vpop.f32.mrf.mxu0
      %v5494 = vpop.f32.mrf.mxu0
      %v5495 = vadd.f32 0.0, %v5494
      %v5496 = vpop.f32.mrf.mxu0
      %5497 = vmatprep.mubr.bf16.mxu0 0
      %5498 = vmatmul.mubr.bf16.gmra.mxu0 %v5354
      %v5499 = vpop.f32.mrf.mxu0
      %v5500 = vadd.f32 0.0, %v5499
      %v5501 = vpop.f32.mrf.mxu0
      %v5502 = vpop.f32.mrf.mxu0
      %v5503 = vadd.f32 0.0, %v5502
      %v5504 = vpop.f32.mrf.mxu0
      %5505 = vmatprep.mubr.bf16.mxu0 0
      %5506 = vmatmul.mubr.bf16.gmra.mxu0 %v5357
      %v5507 = vpop.f32.mrf.mxu0
      %v5508 = vadd.f32 0.0, %v5507
      %v5509 = vpop.f32.mrf.mxu0
      %v5510 = vpop.f32.mrf.mxu0
      %v5511 = vadd.f32 0.0, %v5510
      %v5512 = vpop.f32.mrf.mxu0
      %5513 = vmatprep.mubr.bf16.mxu0 0
      %5514 = vmatmul.mubr.bf16.gmra.mxu0 %v5360
      %v5515 = vpop.f32.mrf.mxu0
      %v5516 = vadd.f32 0.0, %v5515
      %v5517 = vpop.f32.mrf.mxu0
      %v5518 = vpop.f32.mrf.mxu0
      %v5519 = vadd.f32 0.0, %v5518
      %v5520 = vpop.f32.mrf.mxu0
      %5521 = vmatprep.mubr.bf16.mxu0 0
      %5522 = vmatmul.mubr.bf16.gmra.mxu0 %v5363
      %v5523 = vpop.f32.mrf.mxu0
      %v5524 = vadd.f32 0.0, %v5523
      %v5525 = vpop.f32.mrf.mxu0
      %v5526 = vpop.f32.mrf.mxu0
      %v5527 = vadd.f32 0.0, %v5526
      %v5528 = vpop.f32.mrf.mxu0
      %5529 = vdwg.mxu0
      %v5530 = vadd.f32 %v5171, %v5404
      %v5531 = vadd.f32 %v5172, %v5407
      %v5532 = vadd.f32 %v5173, %v5412
      %v5533 = vadd.f32 %v5174, %v5415
      %v5534 = vadd.f32 %v5175, %v5420
      %v5535 = vadd.f32 %v5176, %v5423
      %v5536 = vadd.f32 %v5177, %v5428
      %v5537 = vadd.f32 %v5178, %v5431
      %v5538 = vadd.f32 %v5179, %v5436
      %v5539 = vadd.f32 %v5180, %v5439
      %v5540 = vadd.f32 %v5181, %v5444
      %v5541 = vadd.f32 %v5182, %v5447
      %v5542 = vadd.f32 %v5183, %v5452
      %v5543 = vadd.f32 %v5184, %v5455
      %v5544 = vadd.f32 %v5185, %v5460
      %v5545 = vadd.f32 %v5186, %v5463
      %v5546 = vadd.f32 %v5187, %v5468
      %v5547 = vadd.f32 %v5188, %v5471
      %v5548 = vadd.f32 %v5189, %v5476
      %v5549 = vadd.f32 %v5190, %v5479
      %v5550 = vadd.f32 %v5191, %v5484
      %v5551 = vadd.f32 %v5192, %v5487
      %v5552 = vadd.f32 %v5193, %v5492
      %v5553 = vadd.f32 %v5194, %v5495
      %v5554 = vadd.f32 %v5195, %v5500
      %v5555 = vadd.f32 %v5196, %v5503
      %v5556 = vadd.f32 %v5197, %v5508
      %v5557 = vadd.f32 %v5198, %v5511
      %v5558 = vadd.f32 %v5199, %v5516
      %v5559 = vadd.f32 %v5200, %v5519
      %v5560 = vadd.f32 %v5201, %v5524
      %v5561 = vadd.f32 %v5202, %v5527
      %v5562 = vld [vmem:[%s345] sm:$0x1]
      %v5564 = vlaneseq
      %v5565 = vshrl.u32 %v5564, 7
      %v5566 = vsub.s32 0, %v5565
      %v5567 = vrot.slane %v5562, %v5566
      %v5569 = vadd.f32 %v5530, %v5567
      %v5570 = vadd.f32 %v5531, %v5567
      %v5571 = vadd.f32 %v5532, %v5567
      %v5572 = vadd.f32 %v5533, %v5567
      %v5573 = vadd.f32 %v5534, %v5567
      %v5574 = vadd.f32 %v5535, %v5567
      %v5575 = vadd.f32 %v5536, %v5567
      %v5576 = vadd.f32 %v5537, %v5567
      %v5577 = vadd.f32 %v5538, %v5567
      %v5578 = vadd.f32 %v5539, %v5567
      %v5579 = vadd.f32 %v5540, %v5567
      %v5580 = vadd.f32 %v5541, %v5567
      %v5581 = vadd.f32 %v5542, %v5567
      %v5582 = vadd.f32 %v5543, %v5567
      %v5583 = vadd.f32 %v5544, %v5567
      %v5584 = vadd.f32 %v5545, %v5567
      %v5585 = vadd.f32 %v5546, %v5567
      %v5586 = vadd.f32 %v5547, %v5567
      %v5587 = vadd.f32 %v5548, %v5567
      %v5588 = vadd.f32 %v5549, %v5567
      %v5589 = vadd.f32 %v5550, %v5567
      %v5590 = vadd.f32 %v5551, %v5567
      %v5591 = vadd.f32 %v5552, %v5567
      %v5592 = vadd.f32 %v5553, %v5567
      %v5593 = vadd.f32 %v5554, %v5567
      %v5594 = vadd.f32 %v5555, %v5567
      %v5595 = vadd.f32 %v5556, %v5567
      %v5596 = vadd.f32 %v5557, %v5567
      %v5597 = vadd.f32 %v5558, %v5567
      %v5598 = vadd.f32 %v5559, %v5567
      %v5599 = vadd.f32 %v5560, %v5567
      %v5600 = vadd.f32 %v5561, %v5567
      %v5601 = vmax.f32 %v5569, 0.0
      %v5602 = vmax.f32 %v5570, 0.0
      %v5603 = vmax.f32 %v5571, 0.0
      %v5604 = vmax.f32 %v5572, 0.0
      %v5605 = vmax.f32 %v5573, 0.0
      %v5606 = vmax.f32 %v5574, 0.0
      %v5607 = vmax.f32 %v5575, 0.0
      %v5608 = vmax.f32 %v5576, 0.0
      %v5609 = vmax.f32 %v5577, 0.0
      %v5610 = vmax.f32 %v5578, 0.0
      %v5611 = vmax.f32 %v5579, 0.0
      %v5612 = vmax.f32 %v5580, 0.0
      %v5613 = vmax.f32 %v5581, 0.0
      %v5614 = vmax.f32 %v5582, 0.0
      %v5615 = vmax.f32 %v5583, 0.0
      %v5616 = vmax.f32 %v5584, 0.0
      %v5617 = vmax.f32 %v5585, 0.0
      %v5618 = vmax.f32 %v5586, 0.0
      %v5619 = vmax.f32 %v5587, 0.0
      %v5620 = vmax.f32 %v5588, 0.0
      %v5621 = vmax.f32 %v5589, 0.0
      %v5622 = vmax.f32 %v5590, 0.0
      %v5623 = vmax.f32 %v5591, 0.0
      %v5624 = vmax.f32 %v5592, 0.0
      %v5625 = vmax.f32 %v5593, 0.0
      %v5626 = vmax.f32 %v5594, 0.0
      %v5627 = vmax.f32 %v5595, 0.0
      %v5628 = vmax.f32 %v5596, 0.0
      %v5629 = vmax.f32 %v5597, 0.0
      %v5630 = vmax.f32 %v5598, 0.0
      %v5631 = vmax.f32 %v5599, 0.0
      %v5632 = vmax.f32 %v5600, 0.0
      %5633 = vst [vmem:[%s353] sm:$0xff] %v5601
      %5634 = vst [vmem:[%s353 + $0x8] sm:$0xff] %v5602
      %5635 = vst [vmem:[%s353 + $0x10] sm:$0xff] %v5603
      %5636 = vst [vmem:[%s353 + $0x18] sm:$0xff] %v5604
      %5637 = vst [vmem:[%s353 + $0x20] sm:$0xff] %v5605
      %5638 = vst [vmem:[%s353 + $0x28] sm:$0xff] %v5606
      %5639 = vst [vmem:[%s353 + $0x30] sm:$0xff] %v5607
      %5640 = vst [vmem:[%s353 + $0x38] sm:$0xff] %v5608
      %5641 = vst [vmem:[%s353 + $0x40] sm:$0xff] %v5609
      %5642 = vst [vmem:[%s353 + $0x48] sm:$0xff] %v5610
      %5643 = vst [vmem:[%s353 + $0x50] sm:$0xff] %v5611
      %5644 = vst [vmem:[%s353 + $0x58] sm:$0xff] %v5612
      %5645 = vst [vmem:[%s353 + $0x60] sm:$0xff] %v5613
      %5646 = vst [vmem:[%s353 + $0x68] sm:$0xff] %v5614
      %5647 = vst [vmem:[%s353 + $0x70] sm:$0xff] %v5615
      %5648 = vst [vmem:[%s353 + $0x78] sm:$0xff] %v5616
      %5649 = vst [vmem:[%s353 + $0x80] sm:$0xff] %v5617
      %5650 = vst [vmem:[%s353 + $0x88] sm:$0xff] %v5618
      %5651 = vst [vmem:[%s353 + $0x90] sm:$0xff] %v5619
      %5652 = vst [vmem:[%s353 + $0x98] sm:$0xff] %v5620
      %5653 = vst [vmem:[%s353 + $0xa0] sm:$0xff] %v5621
      %5654 = vst [vmem:[%s353 + $0xa8] sm:$0xff] %v5622
      %5655 = vst [vmem:[%s353 + $0xb0] sm:$0xff] %v5623
      %5656 = vst [vmem:[%s353 + $0xb8] sm:$0xff] %v5624
      %5657 = vst [vmem:[%s353 + $0xc0] sm:$0xff] %v5625
      %5658 = vst [vmem:[%s353 + $0xc8] sm:$0xff] %v5626
      %5659 = vst [vmem:[%s353 + $0xd0] sm:$0xff] %v5627
      %5660 = vst [vmem:[%s353 + $0xd8] sm:$0xff] %v5628
      %5661 = vst [vmem:[%s353 + $0xe0] sm:$0xff] %v5629
      %5662 = vst [vmem:[%s353 + $0xe8] sm:$0xff] %v5630
      %5663 = vst [vmem:[%s353 + $0xf0] sm:$0xff] %v5631
      %5664 = vst [vmem:[%s353 + $0xf8] sm:$0xff] %v5632
      %p5665 = scmp.lt.s32.totalorder %s21, 1
      %s5666 = scalar_select %p5665, %s21, 1
      %p5667 = scmp.lt.s32.totalorder %s22, 0
      %s5668 = scalar_select %p5667, %s22, 0
      %s5669 = smul.addr %s5666, 32
      %s5670 = sadd.s32 %s5668, %s5669
      %s5671 = smul.addr %s5670, 8
      %s5672 = scalar_lea.vmem %s6, %s5671
      // Predicated region
      $region45: #{basic_block_forward.3} parent=43 // pred_check
        %p5673 = pneg %p205
      $region46: #{basic_block_forward.3} parent=43 // pred_check_branch
        %5675 = sbr.rel (%p5673) target = $region48
      $region47: #{basic_block_forward.3} parent=43 // pred_region
        _
      $region48: #{basic_block_forward.3} parent=43 // pred_fallthru
        _
    $region44: #{basic_block_forward.3} parent=5 // pred_fallthru
      _
    %p5676 = scmp.le.s32.totalorder 2, %s12
    // Predicated region
    $region49: #{basic_block_forward.3} parent=5 // pred_check
      %p5677 = pneg %p5676
    $region50: #{basic_block_forward.3} parent=5 // pred_check_branch
      %5679 = sbr.rel (%p5677) target = $region52
    $region51: #{basic_block_forward.3} parent=5 // pred_region
      %s5680 = ssub.s32 %s12, 2
      // Predicated region
      $region53: #{basic_block_forward.3} parent=51 // pred_check
        %p5681 = pneg %p211
      $region54: #{basic_block_forward.3} parent=51 // pred_check_branch
        %5683 = sbr.rel (%p5681) target = $region56
      $region55: #{basic_block_forward.3} parent=51 // pred_region
        %p5684 = scmp.lt.s32.totalorder %s23, 1
        %s5685 = scalar_select %p5684, %s23, 1
        %p5686 = scmp.lt.s32.totalorder %s24, 0
        %s5687 = scalar_select %p5686, %s24, 0
        %s5688 = smul.addr %s5685, 32
        %s5689 = sadd.s32 %s5687, %s5688
        %s5690 = smul.addr %s5689, 8
        %s5691 = scalar_lea.vmem %s6, %s5690
      $region56: #{basic_block_forward.3} parent=51 // pred_fallthru
        _
    $region52: #{basic_block_forward.3} parent=5 // pred_fallthru
      _
  $region6: #{basic_block_forward.3} parent=0 // loop_footer
    %s16 = sadd.s32 1, %s12
  $region7: #{basic_block_forward.3} parent=0 // loop_footer_branch
    %11 = sbr.rel target = $region3
  $region8: #{basic_block_forward.3} parent=0 // loop_exit
    _

</llo_original>
